<compile_context>
chip_gen: v6e
topology: v6e:2x2x1
jax: 0.10.0
libtpu: 0.0.40
codegen_flags: <defaults>
</compile_context>

<pallas_src>
import functools

import numpy as np

import jax
import jax.numpy as jnp
from jax import lax
from jax.experimental import pallas as pl
from jax.experimental.pallas import tpu as pltpu


def _round_up(x, m):
    return (x + m - 1) // m * m


def _fused_kernel(w_ref, mask_ref, gamma_ref, beta_ref, u_ref, x_ref, out_ref,
                  y_ref, ssum_ref, ssq_ref, *,
                  cout, d_out, wp, lp, lconv, kd_sz, kh_sz, kw_sz,
                  count, eps, neg_slope, up_factor):
    p = pl.program_id(0)   # 0: conv + batch statistics, 1: BN + act + upsample
    n = pl.program_id(1)   # batch element

    @pl.when(p == 0)
    def _conv_and_stats():
        @pl.when(n == 0)
        def _init():
            ssum_ref[...] = jnp.zeros_like(ssum_ref)
            ssq_ref[...] = jnp.zeros_like(ssq_ref)

        xall = x_ref[...]                                   # (Cin, Lfull) bf16
        acc = jnp.zeros((cout, lconv), jnp.float32)
        span = lconv + (kd_sz - 1) * lp
        for kh in range(kh_sz):
            for kw in range(kw_sz):
                t = kh * wp + kw
                # one (unaligned) lane shift per (kh, kw); the kd offsets below
                # are multiples of lp=128 lanes, i.e. free tile re-indexing.
                xs = xall[:, t:t + span]
                for kd in range(kd_sz):
                    k = (kd * kh_sz + kh) * kw_sz + kw
                    acc += jnp.dot(w_ref[k],
                                   xs[:, kd * lp:kd * lp + lconv],
                                   preferred_element_type=jnp.float32)

        y_ref[n] = acc                                      # stays in VMEM
        m = mask_ref[...]                                   # kills pad columns
        ssum_ref[...] += jnp.sum(acc * m, axis=1, keepdims=True)
        ssq_ref[...] += jnp.sum(acc * acc * m, axis=1, keepdims=True)

    @pl.when(p == 1)
    def _bn_act_upsample():
        inv_cnt = 1.0 / count
        mean = ssum_ref[...] * inv_cnt
        # E[x^2]-mean^2 in f32; fine at these scales (see notes).
        var = jnp.maximum(ssq_ref[...] * inv_cnt - mean * mean, 0.0)
        scale = gamma_ref[...] * lax.rsqrt(var + eps)
        shift = beta_ref[...] - mean * scale

        z = y_ref[n] * scale + shift                        # (Cout, D*Lp)
        z = jnp.where(z >= 0, z, neg_slope * z)             # LeakyReLU

        # Un-pad + nearest 2x H/W upsample via a constant 0/1 selection matrix
        # on the MXU.  hi/lo bf16 split keeps the selection f32-accurate
        # independent of the MXU's native f32 path.
        z_hi = z.astype(jnp.bfloat16)
        z_lo = (z - z_hi.astype(jnp.float32)).astype(jnp.bfloat16)
        u = u_ref[...]                                      # (Lp, r*r*H*W) bf16
        for d in range(d_out):
            sl = slice(d * lp, (d + 1) * lp)
            plane = (jnp.dot(z_hi[:, sl], u, preferred_element_type=jnp.float32)
                     + jnp.dot(z_lo[:, sl], u, preferred_element_type=jnp.float32))
            for rdup in range(up_factor):                   # depth duplication
                out_ref[:, up_factor * d + rdup, :] = plane


@functools.partial(jax.jit, static_argnames=("eps", "upsample", "negative_slope"))
def decoder_block_cup(x, weight, bias, gamma, beta, *, eps, upsample=True,
                      negative_slope=0.01):
    """x: (N, C_in, D, H, W) f32; weight: (C_out, C_in, kD, kH, kW)."""
    del bias  # cancels exactly under train-mode BatchNorm (mean subtraction)
    N, Cin, D, H, W = x.shape
    Cout, Cin_w, kD, kH, kW = weight.shape
    assert Cin_w == Cin and kD % 2 == 1 and kH % 2 == 1 and kW % 2 == 1
    pd, ph, pw = kD // 2, kH // 2, kW // 2
    Dp, Hp, Wp = D + 2 * pd, H + 2 * ph, W + 2 * pw
    kvol = kD * kH * kW
    Lp = _round_up(Hp * Wp, 128)          # lane stride of one padded depth plane
    Lconv = D * Lp                        # flattened conv output (all planes)
    max_t = (kH - 1) * Wp + (kW - 1)
    Lfull = _round_up(Dp * Lp + max_t, 128)
    r = 2 if upsample else 1
    lanes_out = r * r * H * W             # 256 for upsample=True (lane-dense)

    # ---- layout prep (one cheap XLA fusion; no im2col slab) ----
    xpad = jnp.pad(x, ((0, 0), (0, 0), (pd, pd), (ph, ph), (pw, pw)))
    xflat = xpad.astype(jnp.bfloat16).reshape(N, Cin, Dp, Hp * Wp)
    xflat = jnp.pad(xflat, ((0, 0), (0, 0), (0, 0), (0, Lp - Hp * Wp)))
    xflat = xflat.reshape(N, Cin, Dp * Lp)
    xflat = jnp.pad(xflat, ((0, 0), (0, 0), (0, Lfull - Dp * Lp)))

    w_r = jnp.transpose(weight, (2, 3, 4, 0, 1)).reshape(kvol, Cout, Cin)
    w_r = w_r.astype(jnp.bfloat16)
    gamma_r = gamma.reshape(Cout, 1).astype(jnp.float32)
    beta_r = beta.reshape(Cout, 1).astype(jnp.float32)

    # validity mask over the Lconv conv-output lanes (drops H/W pad columns)
    jj = np.arange(Lconv) % Lp
    mask_np = (((jj // Wp) < H) & ((jj % Wp) < W)).astype(np.float32)
    mask = jnp.asarray(mask_np.reshape(1, Lconv))

    # constant 0/1 un-pad + nearest-upsample selection matrix (per depth plane)
    J = np.arange(lanes_out)
    src = ((J // (r * W)) // r) * Wp + (J % (r * W)) // r
    u_np = np.zeros((Lp, lanes_out), np.float32)
    u_np[src, J] = 1.0
    u_mat = jnp.asarray(u_np, dtype=jnp.bfloat16)

    kern = functools.partial(
        _fused_kernel, cout=Cout, d_out=D, wp=Wp, lp=Lp, lconv=Lconv,
        kd_sz=kD, kh_sz=kH, kw_sz=kW, count=float(N * D * H * W),
        eps=float(eps), neg_slope=float(negative_slope), up_factor=r)

    out = pl.pallas_call(
        kern,
        out_shape=jax.ShapeDtypeStruct((N, Cout, r * D, lanes_out), jnp.float32),
        grid=(2, N),
        in_specs=[
            pl.BlockSpec((kvol, Cout, Cin), lambda p, n: (0, 0, 0)),   # weights (resident)
            pl.BlockSpec((1, Lconv), lambda p, n: (0, 0)),             # stats mask
            pl.BlockSpec((Cout, 1), lambda p, n: (0, 0)),              # gamma
            pl.BlockSpec((Cout, 1), lambda p, n: (0, 0)),              # beta
            pl.BlockSpec((Lp, lanes_out), lambda p, n: (0, 0)),        # upsample selector
            pl.BlockSpec((None, Cin, Lfull), lambda p, n: (n, 0, 0)),  # padded input
        ],
        # p*n keeps the output block pinned at 0 through the stats phase, so no
        # garbage block is ever flushed; phase-1 steps then walk 0..N-1.
        out_specs=pl.BlockSpec((None, Cout, r * D, lanes_out),
                               lambda p, n: (p * n, 0, 0, 0)),
        scratch_shapes=[
            pltpu.VMEM((N, Cout, Lconv), jnp.float32),   # resident conv output y
            pltpu.VMEM((Cout, 1), jnp.float32),          # per-channel sum
            pltpu.VMEM((Cout, 1), jnp.float32),          # per-channel sum of squares
        ],
        compiler_params=pltpu.CompilerParams(
            dimension_semantics=("arbitrary", "arbitrary")),
    )(w_r, mask, gamma_r, beta_r, u_mat, xflat)

    if upsample:
        return out.reshape(N, Cout, 2 * D, 2 * H, 2 * W)   # free reshape
    return out.reshape(N, Cout, D, H, W)


def _reference(x, weight, bias, gamma, beta, eps, upsample=True):
    y = lax.conv_general_dilated(
        x, weight, window_strides=(1, 1, 1), padding="SAME",
        dimension_numbers=("NCDHW", "OIDHW", "NCDHW"))
    y = y + bias.reshape(1, -1, 1, 1, 1)
    mean = jnp.mean(y, axis=(0, 2, 3, 4), keepdims=True)
    var = jnp.mean((y - mean) ** 2, axis=(0, 2, 3, 4), keepdims=True)
    z = (gamma.reshape(1, -1, 1, 1, 1) * (y - mean) * lax.rsqrt(var + eps)
         + beta.reshape(1, -1, 1, 1, 1))
    z = jnp.where(z >= 0, z, 0.01 * z)
    if upsample:
        z = jnp.repeat(jnp.repeat(jnp.repeat(z, 2, axis=2), 2, axis=3), 2, axis=4)
    return z


if __name__ == "__main__":
    # Module config: DecoderBlockCup(in_channels=4, out_channels=8, norm_rate=1e-5)
    N, Cin, Cout, D, H, W = 2, 4, 8, 8, 8, 8
    eps = 1e-5
    key = jax.random.PRNGKey(0)
    kx, kw_, kb, kg, kbe = jax.random.split(key, 5)

    x = jax.random.normal(kx, (N, Cin, D, H, W), dtype=jnp.float32)
    weight = jax.random.normal(kw_, (Cout, Cin, 3, 3, 3), dtype=jnp.float32) * 0.1
    bias = jax.random.normal(kb, (Cout,), dtype=jnp.float32) * 0.1
    gamma = 1.0 + 0.1 * jax.random.normal(kg, (Cout,), dtype=jnp.float32)
    beta = 0.1 * jax.random.normal(kbe, (Cout,), dtype=jnp.float32)

    out = decoder_block_cup(x, weight, bias, gamma, beta, eps=eps, upsample=True)
    out = jax.block_until_ready(out)
    assert out.shape == (N, Cout, 2 * D, 2 * H, 2 * W), out.shape

    # Tight check vs. a reference fed the same bf16-rounded conv inputs
    # (isolates kernel logic from the bf16 MXU operand cast).
    xq = x.astype(jnp.bfloat16).astype(jnp.float32)
    wq = weight.astype(jnp.bfloat16).astype(jnp.float32)
    ref_q = jax.block_until_ready(
        _reference(xq, wq, bias, gamma, beta, eps, upsample=True))
    err_q = float(jnp.max(jnp.abs(out - ref_q)))
    assert jnp.allclose(out, ref_q, atol=4e-3, rtol=4e-3), err_q

    # Loose check vs. the pure-f32 module semantics (only difference is the
    # bf16 quantization of the conv operands).
    ref_f = jax.block_until_ready(
        _reference(x, weight, bias, gamma, beta, eps, upsample=True))
    err_f = float(jnp.max(jnp.abs(out - ref_f)))
    assert jnp.allclose(out, ref_f, atol=5e-2, rtol=5e-2), err_f

    print("KERNEL_OK")
</pallas_src>

<mosaic_0001>
module attributes {stable_mosaic.version = 11 : i64} {
  func.func @_fused_kernel(%arg0: i32, %arg1: i32, %arg2: memref<27x8x4xbf16, #tpu.memory_space<vmem>>, %arg3: memref<1x1024xf32, #tpu.memory_space<vmem>>, %arg4: memref<8x1xf32, #tpu.memory_space<vmem>>, %arg5: memref<8x1xf32, #tpu.memory_space<vmem>>, %arg6: memref<128x256xbf16, #tpu.memory_space<vmem>>, %arg7: memref<1x4x1408xbf16, #tpu.memory_space<vmem>>, %arg8: memref<1x8x16x256xf32, #tpu.memory_space<vmem>>, %arg9: memref<2x8x1024xf32, #tpu.memory_space<vmem>>, %arg10: memref<8x1xf32, #tpu.memory_space<vmem>>, %arg11: memref<8x1xf32, #tpu.memory_space<vmem>>) attributes {dimension_semantics = [#tpu.dimension_semantics<arbitrary>, #tpu.dimension_semantics<arbitrary>], iteration_bounds = array<i64: 2, 2>, scalar_prefetch = 0 : i64, scratch_operands = 3 : i64, tpu.core_type = #tpu.core_type<tc>, window_params = [{pipeline_mode = #tpu.pipeline_mode<synchronous>, transform_indices = @transform_0, window_bounds = array<i64: 27, 8, 4>}, {pipeline_mode = #tpu.pipeline_mode<synchronous>, transform_indices = @transform_1, window_bounds = array<i64: 1, 1024>}, {pipeline_mode = #tpu.pipeline_mode<synchronous>, transform_indices = @transform_2, window_bounds = array<i64: 8, 1>}, {pipeline_mode = #tpu.pipeline_mode<synchronous>, transform_indices = @transform_3, window_bounds = array<i64: 8, 1>}, {pipeline_mode = #tpu.pipeline_mode<synchronous>, transform_indices = @transform_4, window_bounds = array<i64: 128, 256>}, {transform_indices = @transform_5, window_bounds = array<i64: 1, 4, 1408>}, {transform_indices = @transform_6, window_bounds = array<i64: 1, 8, 16, 256>}]} {
    %c0_i32 = arith.constant 0 : i32
    %0 = arith.cmpi eq, %arg0, %c0_i32 : i32
    %1 = arith.extui %0 : i1 to i32
    %c0_i32_0 = arith.constant 0 : i32
    %2 = arith.cmpi ne, %1, %c0_i32_0 : i32
    scf.if %2 {
      %c0_i32_2 = arith.constant 0 : i32
      %6 = arith.cmpi eq, %arg1, %c0_i32_2 : i32
      %7 = arith.extui %6 : i1 to i32
      %c0_i32_3 = arith.constant 0 : i32
      %8 = arith.cmpi ne, %7, %c0_i32_3 : i32
      scf.if %8 {
        %cst_102 = arith.constant 0.000000e+00 : f32
        %176 = vector.broadcast %cst_102 : f32 to vector<8x1xf32>
        %c0_103 = arith.constant 0 : index
        %c0_104 = arith.constant 0 : index
        %177 = vector.load %arg10[%c0_103, %c0_104] : memref<8x1xf32, #tpu.memory_space<vmem>>, vector<8x1xf32>
        tpu.vector_store %arg10[%c0_103, %c0_104], %176 {strides = array<i32>} : memref<8x1xf32, #tpu.memory_space<vmem>>, vector<8x1xf32>,
        %cst_105 = arith.constant 0.000000e+00 : f32
        %178 = vector.broadcast %cst_105 : f32 to vector<8x1xf32>
        %c0_106 = arith.constant 0 : index
        %c0_107 = arith.constant 0 : index
        %179 = vector.load %arg11[%c0_106, %c0_107] : memref<8x1xf32, #tpu.memory_space<vmem>>, vector<8x1xf32>
        tpu.vector_store %arg11[%c0_106, %c0_107], %178 {strides = array<i32>} : memref<8x1xf32, #tpu.memory_space<vmem>>, vector<8x1xf32>,
      } else {
      }
      %c0 = arith.constant 0 : index
      %c0_4 = arith.constant 0 : index
      %c0_5 = arith.constant 0 : index
      %9 = vector.load %arg7[%c0, %c0_4, %c0_5] : memref<1x4x1408xbf16, #tpu.memory_space<vmem>>, vector<1x4x1408xbf16>
      %10 = vector.shape_cast %9 : vector<1x4x1408xbf16> to vector<4x1408xbf16>
      %cst = arith.constant 0.000000e+00 : f32
      %11 = vector.broadcast %cst : f32 to vector<8x1024xf32>
      %12 = vector.extract_strided_slice %10 {offsets = [0, 0], sizes = [4, 1280], strides = [1, 1]} : vector<4x1408xbf16> to vector<4x1280xbf16>
      %c0_6 = arith.constant 0 : index
      %c0_7 = arith.constant 0 : index
      %c0_8 = arith.constant 0 : index
      %13 = vector.load %arg2[%c0_6, %c0_7, %c0_8] : memref<27x8x4xbf16, #tpu.memory_space<vmem>>, vector<1x8x4xbf16>
      %14 = vector.shape_cast %13 : vector<1x8x4xbf16> to vector<8x4xbf16>
      %15 = vector.extract_strided_slice %12 {offsets = [0, 0], sizes = [4, 1024], strides = [1, 1]} : vector<4x1280xbf16> to vector<4x1024xbf16>
      %cst_9 = arith.constant dense<0.000000e+00> : vector<8x1024xf32>
      %16 = tpu.matmul %14, %15, %cst_9 {dimension_numbers = #tpu.dot_dimension_numbers<[1], [0], [0], [1], [0, 0, 1, 1], [], []>} : vector<8x4xbf16>, vector<4x1024xbf16>, vector<8x1024xf32> -> vector<8x1024xf32>
      %17 = arith.addf %11, %16 : vector<8x1024xf32>
      %c9 = arith.constant 9 : index
      %c0_10 = arith.constant 0 : index
      %c0_11 = arith.constant 0 : index
      %18 = vector.load %arg2[%c9, %c0_10, %c0_11] : memref<27x8x4xbf16, #tpu.memory_space<vmem>>, vector<1x8x4xbf16>
      %19 = vector.shape_cast %18 : vector<1x8x4xbf16> to vector<8x4xbf16>
      %20 = vector.extract_strided_slice %12 {offsets = [0, 128], sizes = [4, 1024], strides = [1, 1]} : vector<4x1280xbf16> to vector<4x1024xbf16>
      %cst_12 = arith.constant dense<0.000000e+00> : vector<8x1024xf32>
      %21 = tpu.matmul %19, %20, %cst_12 {dimension_numbers = #tpu.dot_dimension_numbers<[1], [0], [0], [1], [0, 0, 1, 1], [], []>} : vector<8x4xbf16>, vector<4x1024xbf16>, vector<8x1024xf32> -> vector<8x1024xf32>
      %22 = arith.addf %17, %21 : vector<8x1024xf32>
      %c18 = arith.constant 18 : index
      %c0_13 = arith.constant 0 : index
      %c0_14 = arith.constant 0 : index
      %23 = vector.load %arg2[%c18, %c0_13, %c0_14] : memref<27x8x4xbf16, #tpu.memory_space<vmem>>, vector<1x8x4xbf16>
      %24 = vector.shape_cast %23 : vector<1x8x4xbf16> to vector<8x4xbf16>
      %25 = vector.extract_strided_slice %12 {offsets = [0, 256], sizes = [4, 1024], strides = [1, 1]} : vector<4x1280xbf16> to vector<4x1024xbf16>
      %cst_15 = arith.constant dense<0.000000e+00> : vector<8x1024xf32>
      %26 = tpu.matmul %24, %25, %cst_15 {dimension_numbers = #tpu.dot_dimension_numbers<[1], [0], [0], [1], [0, 0, 1, 1], [], []>} : vector<8x4xbf16>, vector<4x1024xbf16>, vector<8x1024xf32> -> vector<8x1024xf32>
      %27 = arith.addf %22, %26 : vector<8x1024xf32>
      %28 = vector.extract_strided_slice %10 {offsets = [0, 1], sizes = [4, 1280], strides = [1, 1]} : vector<4x1408xbf16> to vector<4x1280xbf16>
      %c1 = arith.constant 1 : index
      %c0_16 = arith.constant 0 : index
      %c0_17 = arith.constant 0 : index
      %29 = vector.load %arg2[%c1, %c0_16, %c0_17] : memref<27x8x4xbf16, #tpu.memory_space<vmem>>, vector<1x8x4xbf16>
      %30 = vector.shape_cast %29 : vector<1x8x4xbf16> to vector<8x4xbf16>
      %31 = vector.extract_strided_slice %28 {offsets = [0, 0], sizes = [4, 1024], strides = [1, 1]} : vector<4x1280xbf16> to vector<4x1024xbf16>
      %cst_18 = arith.constant dense<0.000000e+00> : vector<8x1024xf32>
      %32 = tpu.matmul %30, %31, %cst_18 {dimension_numbers = #tpu.dot_dimension_numbers<[1], [0], [0], [1], [0, 0, 1, 1], [], []>} : vector<8x4xbf16>, vector<4x1024xbf16>, vector<8x1024xf32> -> vector<8x1024xf32>
      %33 = arith.addf %27, %32 : vector<8x1024xf32>
      %c10 = arith.constant 10 : index
      %c0_19 = arith.constant 0 : index
      %c0_20 = arith.constant 0 : index
      %34 = vector.load %arg2[%c10, %c0_19, %c0_20] : memref<27x8x4xbf16, #tpu.memory_space<vmem>>, vector<1x8x4xbf16>
      %35 = vector.shape_cast %34 : vector<1x8x4xbf16> to vector<8x4xbf16>
      %36 = vector.extract_strided_slice %28 {offsets = [0, 128], sizes = [4, 1024], strides = [1, 1]} : vector<4x1280xbf16> to vector<4x1024xbf16>
      %cst_21 = arith.constant dense<0.000000e+00> : vector<8x1024xf32>
      %37 = tpu.matmul %35, %36, %cst_21 {dimension_numbers = #tpu.dot_dimension_numbers<[1], [0], [0], [1], [0, 0, 1, 1], [], []>} : vector<8x4xbf16>, vector<4x1024xbf16>, vector<8x1024xf32> -> vector<8x1024xf32>
      %38 = arith.addf %33, %37 : vector<8x1024xf32>
      %c19 = arith.constant 19 : index
      %c0_22 = arith.constant 0 : index
      %c0_23 = arith.constant 0 : index
      %39 = vector.load %arg2[%c19, %c0_22, %c0_23] : memref<27x8x4xbf16, #tpu.memory_space<vmem>>, vector<1x8x4xbf16>
      %40 = vector.shape_cast %39 : vector<1x8x4xbf16> to vector<8x4xbf16>
      %41 = vector.extract_strided_slice %28 {offsets = [0, 256], sizes = [4, 1024], strides = [1, 1]} : vector<4x1280xbf16> to vector<4x1024xbf16>
      %cst_24 = arith.constant dense<0.000000e+00> : vector<8x1024xf32>
      %42 = tpu.matmul %40, %41, %cst_24 {dimension_numbers = #tpu.dot_dimension_numbers<[1], [0], [0], [1], [0, 0, 1, 1], [], []>} : vector<8x4xbf16>, vector<4x1024xbf16>, vector<8x1024xf32> -> vector<8x1024xf32>
      %43 = arith.addf %38, %42 : vector<8x1024xf32>
      %44 = vector.extract_strided_slice %10 {offsets = [0, 2], sizes = [4, 1280], strides = [1, 1]} : vector<4x1408xbf16> to vector<4x1280xbf16>
      %c2 = arith.constant 2 : index
      %c0_25 = arith.constant 0 : index
      %c0_26 = arith.constant 0 : index
      %45 = vector.load %arg2[%c2, %c0_25, %c0_26] : memref<27x8x4xbf16, #tpu.memory_space<vmem>>, vector<1x8x4xbf16>
      %46 = vector.shape_cast %45 : vector<1x8x4xbf16> to vector<8x4xbf16>
      %47 = vector.extract_strided_slice %44 {offsets = [0, 0], sizes = [4, 1024], strides = [1, 1]} : vector<4x1280xbf16> to vector<4x1024xbf16>
      %cst_27 = arith.constant dense<0.000000e+00> : vector<8x1024xf32>
      %48 = tpu.matmul %46, %47, %cst_27 {dimension_numbers = #tpu.dot_dimension_numbers<[1], [0], [0], [1], [0, 0, 1, 1], [], []>} : vector<8x4xbf16>, vector<4x1024xbf16>, vector<8x1024xf32> -> vector<8x1024xf32>
      %49 = arith.addf %43, %48 : vector<8x1024xf32>
      %c11 = arith.constant 11 : index
      %c0_28 = arith.constant 0 : index
      %c0_29 = arith.constant 0 : index
      %50 = vector.load %arg2[%c11, %c0_28, %c0_29] : memref<27x8x4xbf16, #tpu.memory_space<vmem>>, vector<1x8x4xbf16>
      %51 = vector.shape_cast %50 : vector<1x8x4xbf16> to vector<8x4xbf16>
      %52 = vector.extract_strided_slice %44 {offsets = [0, 128], sizes = [4, 1024], strides = [1, 1]} : vector<4x1280xbf16> to vector<4x1024xbf16>
      %cst_30 = arith.constant dense<0.000000e+00> : vector<8x1024xf32>
      %53 = tpu.matmul %51, %52, %cst_30 {dimension_numbers = #tpu.dot_dimension_numbers<[1], [0], [0], [1], [0, 0, 1, 1], [], []>} : vector<8x4xbf16>, vector<4x1024xbf16>, vector<8x1024xf32> -> vector<8x1024xf32>
      %54 = arith.addf %49, %53 : vector<8x1024xf32>
      %c20 = arith.constant 20 : index
      %c0_31 = arith.constant 0 : index
      %c0_32 = arith.constant 0 : index
      %55 = vector.load %arg2[%c20, %c0_31, %c0_32] : memref<27x8x4xbf16, #tpu.memory_space<vmem>>, vector<1x8x4xbf16>
      %56 = vector.shape_cast %55 : vector<1x8x4xbf16> to vector<8x4xbf16>
      %57 = vector.extract_strided_slice %44 {offsets = [0, 256], sizes = [4, 1024], strides = [1, 1]} : vector<4x1280xbf16> to vector<4x1024xbf16>
      %cst_33 = arith.constant dense<0.000000e+00> : vector<8x1024xf32>
      %58 = tpu.matmul %56, %57, %cst_33 {dimension_numbers = #tpu.dot_dimension_numbers<[1], [0], [0], [1], [0, 0, 1, 1], [], []>} : vector<8x4xbf16>, vector<4x1024xbf16>, vector<8x1024xf32> -> vector<8x1024xf32>
      %59 = arith.addf %54, %58 : vector<8x1024xf32>
      %60 = vector.extract_strided_slice %10 {offsets = [0, 10], sizes = [4, 1280], strides = [1, 1]} : vector<4x1408xbf16> to vector<4x1280xbf16>
      %c3 = arith.constant 3 : index
      %c0_34 = arith.constant 0 : index
      %c0_35 = arith.constant 0 : index
      %61 = vector.load %arg2[%c3, %c0_34, %c0_35] : memref<27x8x4xbf16, #tpu.memory_space<vmem>>, vector<1x8x4xbf16>
      %62 = vector.shape_cast %61 : vector<1x8x4xbf16> to vector<8x4xbf16>
      %63 = vector.extract_strided_slice %60 {offsets = [0, 0], sizes = [4, 1024], strides = [1, 1]} : vector<4x1280xbf16> to vector<4x1024xbf16>
      %cst_36 = arith.constant dense<0.000000e+00> : vector<8x1024xf32>
      %64 = tpu.matmul %62, %63, %cst_36 {dimension_numbers = #tpu.dot_dimension_numbers<[1], [0], [0], [1], [0, 0, 1, 1], [], []>} : vector<8x4xbf16>, vector<4x1024xbf16>, vector<8x1024xf32> -> vector<8x1024xf32>
      %65 = arith.addf %59, %64 : vector<8x1024xf32>
      %c12 = arith.constant 12 : index
      %c0_37 = arith.constant 0 : index
      %c0_38 = arith.constant 0 : index
      %66 = vector.load %arg2[%c12, %c0_37, %c0_38] : memref<27x8x4xbf16, #tpu.memory_space<vmem>>, vector<1x8x4xbf16>
      %67 = vector.shape_cast %66 : vector<1x8x4xbf16> to vector<8x4xbf16>
      %68 = vector.extract_strided_slice %60 {offsets = [0, 128], sizes = [4, 1024], strides = [1, 1]} : vector<4x1280xbf16> to vector<4x1024xbf16>
      %cst_39 = arith.constant dense<0.000000e+00> : vector<8x1024xf32>
      %69 = tpu.matmul %67, %68, %cst_39 {dimension_numbers = #tpu.dot_dimension_numbers<[1], [0], [0], [1], [0, 0, 1, 1], [], []>} : vector<8x4xbf16>, vector<4x1024xbf16>, vector<8x1024xf32> -> vector<8x1024xf32>
      %70 = arith.addf %65, %69 : vector<8x1024xf32>
      %c21 = arith.constant 21 : index
      %c0_40 = arith.constant 0 : index
      %c0_41 = arith.constant 0 : index
      %71 = vector.load %arg2[%c21, %c0_40, %c0_41] : memref<27x8x4xbf16, #tpu.memory_space<vmem>>, vector<1x8x4xbf16>
      %72 = vector.shape_cast %71 : vector<1x8x4xbf16> to vector<8x4xbf16>
      %73 = vector.extract_strided_slice %60 {offsets = [0, 256], sizes = [4, 1024], strides = [1, 1]} : vector<4x1280xbf16> to vector<4x1024xbf16>
      %cst_42 = arith.constant dense<0.000000e+00> : vector<8x1024xf32>
      %74 = tpu.matmul %72, %73, %cst_42 {dimension_numbers = #tpu.dot_dimension_numbers<[1], [0], [0], [1], [0, 0, 1, 1], [], []>} : vector<8x4xbf16>, vector<4x1024xbf16>, vector<8x1024xf32> -> vector<8x1024xf32>
      %75 = arith.addf %70, %74 : vector<8x1024xf32>
      %76 = vector.extract_strided_slice %10 {offsets = [0, 11], sizes = [4, 1280], strides = [1, 1]} : vector<4x1408xbf16> to vector<4x1280xbf16>
      %c4 = arith.constant 4 : index
      %c0_43 = arith.constant 0 : index
      %c0_44 = arith.constant 0 : index
      %77 = vector.load %arg2[%c4, %c0_43, %c0_44] : memref<27x8x4xbf16, #tpu.memory_space<vmem>>, vector<1x8x4xbf16>
      %78 = vector.shape_cast %77 : vector<1x8x4xbf16> to vector<8x4xbf16>
      %79 = vector.extract_strided_slice %76 {offsets = [0, 0], sizes = [4, 1024], strides = [1, 1]} : vector<4x1280xbf16> to vector<4x1024xbf16>
      %cst_45 = arith.constant dense<0.000000e+00> : vector<8x1024xf32>
      %80 = tpu.matmul %78, %79, %cst_45 {dimension_numbers = #tpu.dot_dimension_numbers<[1], [0], [0], [1], [0, 0, 1, 1], [], []>} : vector<8x4xbf16>, vector<4x1024xbf16>, vector<8x1024xf32> -> vector<8x1024xf32>
      %81 = arith.addf %75, %80 : vector<8x1024xf32>
      %c13 = arith.constant 13 : index
      %c0_46 = arith.constant 0 : index
      %c0_47 = arith.constant 0 : index
      %82 = vector.load %arg2[%c13, %c0_46, %c0_47] : memref<27x8x4xbf16, #tpu.memory_space<vmem>>, vector<1x8x4xbf16>
      %83 = vector.shape_cast %82 : vector<1x8x4xbf16> to vector<8x4xbf16>
      %84 = vector.extract_strided_slice %76 {offsets = [0, 128], sizes = [4, 1024], strides = [1, 1]} : vector<4x1280xbf16> to vector<4x1024xbf16>
      %cst_48 = arith.constant dense<0.000000e+00> : vector<8x1024xf32>
      %85 = tpu.matmul %83, %84, %cst_48 {dimension_numbers = #tpu.dot_dimension_numbers<[1], [0], [0], [1], [0, 0, 1, 1], [], []>} : vector<8x4xbf16>, vector<4x1024xbf16>, vector<8x1024xf32> -> vector<8x1024xf32>
      %86 = arith.addf %81, %85 : vector<8x1024xf32>
      %c22 = arith.constant 22 : index
      %c0_49 = arith.constant 0 : index
      %c0_50 = arith.constant 0 : index
      %87 = vector.load %arg2[%c22, %c0_49, %c0_50] : memref<27x8x4xbf16, #tpu.memory_space<vmem>>, vector<1x8x4xbf16>
      %88 = vector.shape_cast %87 : vector<1x8x4xbf16> to vector<8x4xbf16>
      %89 = vector.extract_strided_slice %76 {offsets = [0, 256], sizes = [4, 1024], strides = [1, 1]} : vector<4x1280xbf16> to vector<4x1024xbf16>
      %cst_51 = arith.constant dense<0.000000e+00> : vector<8x1024xf32>
      %90 = tpu.matmul %88, %89, %cst_51 {dimension_numbers = #tpu.dot_dimension_numbers<[1], [0], [0], [1], [0, 0, 1, 1], [], []>} : vector<8x4xbf16>, vector<4x1024xbf16>, vector<8x1024xf32> -> vector<8x1024xf32>
      %91 = arith.addf %86, %90 : vector<8x1024xf32>
      %92 = vector.extract_strided_slice %10 {offsets = [0, 12], sizes = [4, 1280], strides = [1, 1]} : vector<4x1408xbf16> to vector<4x1280xbf16>
      %c5 = arith.constant 5 : index
      %c0_52 = arith.constant 0 : index
      %c0_53 = arith.constant 0 : index
      %93 = vector.load %arg2[%c5, %c0_52, %c0_53] : memref<27x8x4xbf16, #tpu.memory_space<vmem>>, vector<1x8x4xbf16>
      %94 = vector.shape_cast %93 : vector<1x8x4xbf16> to vector<8x4xbf16>
      %95 = vector.extract_strided_slice %92 {offsets = [0, 0], sizes = [4, 1024], strides = [1, 1]} : vector<4x1280xbf16> to vector<4x1024xbf16>
      %cst_54 = arith.constant dense<0.000000e+00> : vector<8x1024xf32>
      %96 = tpu.matmul %94, %95, %cst_54 {dimension_numbers = #tpu.dot_dimension_numbers<[1], [0], [0], [1], [0, 0, 1, 1], [], []>} : vector<8x4xbf16>, vector<4x1024xbf16>, vector<8x1024xf32> -> vector<8x1024xf32>
      %97 = arith.addf %91, %96 : vector<8x1024xf32>
      %c14 = arith.constant 14 : index
      %c0_55 = arith.constant 0 : index
      %c0_56 = arith.constant 0 : index
      %98 = vector.load %arg2[%c14, %c0_55, %c0_56] : memref<27x8x4xbf16, #tpu.memory_space<vmem>>, vector<1x8x4xbf16>
      %99 = vector.shape_cast %98 : vector<1x8x4xbf16> to vector<8x4xbf16>
      %100 = vector.extract_strided_slice %92 {offsets = [0, 128], sizes = [4, 1024], strides = [1, 1]} : vector<4x1280xbf16> to vector<4x1024xbf16>
      %cst_57 = arith.constant dense<0.000000e+00> : vector<8x1024xf32>
      %101 = tpu.matmul %99, %100, %cst_57 {dimension_numbers = #tpu.dot_dimension_numbers<[1], [0], [0], [1], [0, 0, 1, 1], [], []>} : vector<8x4xbf16>, vector<4x1024xbf16>, vector<8x1024xf32> -> vector<8x1024xf32>
      %102 = arith.addf %97, %101 : vector<8x1024xf32>
      %c23 = arith.constant 23 : index
      %c0_58 = arith.constant 0 : index
      %c0_59 = arith.constant 0 : index
      %103 = vector.load %arg2[%c23, %c0_58, %c0_59] : memref<27x8x4xbf16, #tpu.memory_space<vmem>>, vector<1x8x4xbf16>
      %104 = vector.shape_cast %103 : vector<1x8x4xbf16> to vector<8x4xbf16>
      %105 = vector.extract_strided_slice %92 {offsets = [0, 256], sizes = [4, 1024], strides = [1, 1]} : vector<4x1280xbf16> to vector<4x1024xbf16>
      %cst_60 = arith.constant dense<0.000000e+00> : vector<8x1024xf32>
      %106 = tpu.matmul %104, %105, %cst_60 {dimension_numbers = #tpu.dot_dimension_numbers<[1], [0], [0], [1], [0, 0, 1, 1], [], []>} : vector<8x4xbf16>, vector<4x1024xbf16>, vector<8x1024xf32> -> vector<8x1024xf32>
      %107 = arith.addf %102, %106 : vector<8x1024xf32>
      %108 = vector.extract_strided_slice %10 {offsets = [0, 20], sizes = [4, 1280], strides = [1, 1]} : vector<4x1408xbf16> to vector<4x1280xbf16>
      %c6 = arith.constant 6 : index
      %c0_61 = arith.constant 0 : index
      %c0_62 = arith.constant 0 : index
      %109 = vector.load %arg2[%c6, %c0_61, %c0_62] : memref<27x8x4xbf16, #tpu.memory_space<vmem>>, vector<1x8x4xbf16>
      %110 = vector.shape_cast %109 : vector<1x8x4xbf16> to vector<8x4xbf16>
      %111 = vector.extract_strided_slice %108 {offsets = [0, 0], sizes = [4, 1024], strides = [1, 1]} : vector<4x1280xbf16> to vector<4x1024xbf16>
      %cst_63 = arith.constant dense<0.000000e+00> : vector<8x1024xf32>
      %112 = tpu.matmul %110, %111, %cst_63 {dimension_numbers = #tpu.dot_dimension_numbers<[1], [0], [0], [1], [0, 0, 1, 1], [], []>} : vector<8x4xbf16>, vector<4x1024xbf16>, vector<8x1024xf32> -> vector<8x1024xf32>
      %113 = arith.addf %107, %112 : vector<8x1024xf32>
      %c15 = arith.constant 15 : index
      %c0_64 = arith.constant 0 : index
      %c0_65 = arith.constant 0 : index
      %114 = vector.load %arg2[%c15, %c0_64, %c0_65] : memref<27x8x4xbf16, #tpu.memory_space<vmem>>, vector<1x8x4xbf16>
      %115 = vector.shape_cast %114 : vector<1x8x4xbf16> to vector<8x4xbf16>
      %116 = vector.extract_strided_slice %108 {offsets = [0, 128], sizes = [4, 1024], strides = [1, 1]} : vector<4x1280xbf16> to vector<4x1024xbf16>
      %cst_66 = arith.constant dense<0.000000e+00> : vector<8x1024xf32>
      %117 = tpu.matmul %115, %116, %cst_66 {dimension_numbers = #tpu.dot_dimension_numbers<[1], [0], [0], [1], [0, 0, 1, 1], [], []>} : vector<8x4xbf16>, vector<4x1024xbf16>, vector<8x1024xf32> -> vector<8x1024xf32>
      %118 = arith.addf %113, %117 : vector<8x1024xf32>
      %c24 = arith.constant 24 : index
      %c0_67 = arith.constant 0 : index
      %c0_68 = arith.constant 0 : index
      %119 = vector.load %arg2[%c24, %c0_67, %c0_68] : memref<27x8x4xbf16, #tpu.memory_space<vmem>>, vector<1x8x4xbf16>
      %120 = vector.shape_cast %119 : vector<1x8x4xbf16> to vector<8x4xbf16>
      %121 = vector.extract_strided_slice %108 {offsets = [0, 256], sizes = [4, 1024], strides = [1, 1]} : vector<4x1280xbf16> to vector<4x1024xbf16>
      %cst_69 = arith.constant dense<0.000000e+00> : vector<8x1024xf32>
      %122 = tpu.matmul %120, %121, %cst_69 {dimension_numbers = #tpu.dot_dimension_numbers<[1], [0], [0], [1], [0, 0, 1, 1], [], []>} : vector<8x4xbf16>, vector<4x1024xbf16>, vector<8x1024xf32> -> vector<8x1024xf32>
      %123 = arith.addf %118, %122 : vector<8x1024xf32>
      %124 = vector.extract_strided_slice %10 {offsets = [0, 21], sizes = [4, 1280], strides = [1, 1]} : vector<4x1408xbf16> to vector<4x1280xbf16>
      %c7 = arith.constant 7 : index
      %c0_70 = arith.constant 0 : index
      %c0_71 = arith.constant 0 : index
      %125 = vector.load %arg2[%c7, %c0_70, %c0_71] : memref<27x8x4xbf16, #tpu.memory_space<vmem>>, vector<1x8x4xbf16>
      %126 = vector.shape_cast %125 : vector<1x8x4xbf16> to vector<8x4xbf16>
      %127 = vector.extract_strided_slice %124 {offsets = [0, 0], sizes = [4, 1024], strides = [1, 1]} : vector<4x1280xbf16> to vector<4x1024xbf16>
      %cst_72 = arith.constant dense<0.000000e+00> : vector<8x1024xf32>
      %128 = tpu.matmul %126, %127, %cst_72 {dimension_numbers = #tpu.dot_dimension_numbers<[1], [0], [0], [1], [0, 0, 1, 1], [], []>} : vector<8x4xbf16>, vector<4x1024xbf16>, vector<8x1024xf32> -> vector<8x1024xf32>
      %129 = arith.addf %123, %128 : vector<8x1024xf32>
      %c16 = arith.constant 16 : index
      %c0_73 = arith.constant 0 : index
      %c0_74 = arith.constant 0 : index
      %130 = vector.load %arg2[%c16, %c0_73, %c0_74] : memref<27x8x4xbf16, #tpu.memory_space<vmem>>, vector<1x8x4xbf16>
      %131 = vector.shape_cast %130 : vector<1x8x4xbf16> to vector<8x4xbf16>
      %132 = vector.extract_strided_slice %124 {offsets = [0, 128], sizes = [4, 1024], strides = [1, 1]} : vector<4x1280xbf16> to vector<4x1024xbf16>
      %cst_75 = arith.constant dense<0.000000e+00> : vector<8x1024xf32>
      %133 = tpu.matmul %131, %132, %cst_75 {dimension_numbers = #tpu.dot_dimension_numbers<[1], [0], [0], [1], [0, 0, 1, 1], [], []>} : vector<8x4xbf16>, vector<4x1024xbf16>, vector<8x1024xf32> -> vector<8x1024xf32>
      %134 = arith.addf %129, %133 : vector<8x1024xf32>
      %c25 = arith.constant 25 : index
      %c0_76 = arith.constant 0 : index
      %c0_77 = arith.constant 0 : index
      %135 = vector.load %arg2[%c25, %c0_76, %c0_77] : memref<27x8x4xbf16, #tpu.memory_space<vmem>>, vector<1x8x4xbf16>
      %136 = vector.shape_cast %135 : vector<1x8x4xbf16> to vector<8x4xbf16>
      %137 = vector.extract_strided_slice %124 {offsets = [0, 256], sizes = [4, 1024], strides = [1, 1]} : vector<4x1280xbf16> to vector<4x1024xbf16>
      %cst_78 = arith.constant dense<0.000000e+00> : vector<8x1024xf32>
      %138 = tpu.matmul %136, %137, %cst_78 {dimension_numbers = #tpu.dot_dimension_numbers<[1], [0], [0], [1], [0, 0, 1, 1], [], []>} : vector<8x4xbf16>, vector<4x1024xbf16>, vector<8x1024xf32> -> vector<8x1024xf32>
      %139 = arith.addf %134, %138 : vector<8x1024xf32>
      %140 = vector.extract_strided_slice %10 {offsets = [0, 22], sizes = [4, 1280], strides = [1, 1]} : vector<4x1408xbf16> to vector<4x1280xbf16>
      %c8 = arith.constant 8 : index
      %c0_79 = arith.constant 0 : index
      %c0_80 = arith.constant 0 : index
      %141 = vector.load %arg2[%c8, %c0_79, %c0_80] : memref<27x8x4xbf16, #tpu.memory_space<vmem>>, vector<1x8x4xbf16>
      %142 = vector.shape_cast %141 : vector<1x8x4xbf16> to vector<8x4xbf16>
      %143 = vector.extract_strided_slice %140 {offsets = [0, 0], sizes = [4, 1024], strides = [1, 1]} : vector<4x1280xbf16> to vector<4x1024xbf16>
      %cst_81 = arith.constant dense<0.000000e+00> : vector<8x1024xf32>
      %144 = tpu.matmul %142, %143, %cst_81 {dimension_numbers = #tpu.dot_dimension_numbers<[1], [0], [0], [1], [0, 0, 1, 1], [], []>} : vector<8x4xbf16>, vector<4x1024xbf16>, vector<8x1024xf32> -> vector<8x1024xf32>
      %145 = arith.addf %139, %144 : vector<8x1024xf32>
      %c17 = arith.constant 17 : index
      %c0_82 = arith.constant 0 : index
      %c0_83 = arith.constant 0 : index
      %146 = vector.load %arg2[%c17, %c0_82, %c0_83] : memref<27x8x4xbf16, #tpu.memory_space<vmem>>, vector<1x8x4xbf16>
      %147 = vector.shape_cast %146 : vector<1x8x4xbf16> to vector<8x4xbf16>
      %148 = vector.extract_strided_slice %140 {offsets = [0, 128], sizes = [4, 1024], strides = [1, 1]} : vector<4x1280xbf16> to vector<4x1024xbf16>
      %cst_84 = arith.constant dense<0.000000e+00> : vector<8x1024xf32>
      %149 = tpu.matmul %147, %148, %cst_84 {dimension_numbers = #tpu.dot_dimension_numbers<[1], [0], [0], [1], [0, 0, 1, 1], [], []>} : vector<8x4xbf16>, vector<4x1024xbf16>, vector<8x1024xf32> -> vector<8x1024xf32>
      %150 = arith.addf %145, %149 : vector<8x1024xf32>
      %c26 = arith.constant 26 : index
      %c0_85 = arith.constant 0 : index
      %c0_86 = arith.constant 0 : index
      %151 = vector.load %arg2[%c26, %c0_85, %c0_86] : memref<27x8x4xbf16, #tpu.memory_space<vmem>>, vector<1x8x4xbf16>
      %152 = vector.shape_cast %151 : vector<1x8x4xbf16> to vector<8x4xbf16>
      %153 = vector.extract_strided_slice %140 {offsets = [0, 256], sizes = [4, 1024], strides = [1, 1]} : vector<4x1280xbf16> to vector<4x1024xbf16>
      %cst_87 = arith.constant dense<0.000000e+00> : vector<8x1024xf32>
      %154 = tpu.matmul %152, %153, %cst_87 {dimension_numbers = #tpu.dot_dimension_numbers<[1], [0], [0], [1], [0, 0, 1, 1], [], []>} : vector<8x4xbf16>, vector<4x1024xbf16>, vector<8x1024xf32> -> vector<8x1024xf32>
      %155 = arith.addf %150, %154 : vector<8x1024xf32>
      %156 = arith.index_cast %arg1 : i32 to index
      %c0_88 = arith.constant 0 : index
      %c0_89 = arith.constant 0 : index
      %157 = vector.load %arg9[%156, %c0_88, %c0_89] : memref<2x8x1024xf32, #tpu.memory_space<vmem>>, vector<1x8x1024xf32>
      %158 = vector.shape_cast %157 : vector<1x8x1024xf32> to vector<8x1024xf32>
      %159 = vector.shape_cast %155 : vector<8x1024xf32> to vector<1x8x1024xf32>
      tpu.vector_store %arg9[%156, %c0_88, %c0_89], %159 {strides = array<i32>} : memref<2x8x1024xf32, #tpu.memory_space<vmem>>, vector<1x8x1024xf32>,
      %c0_90 = arith.constant 0 : index
      %c0_91 = arith.constant 0 : index
      %160 = vector.load %arg3[%c0_90, %c0_91] : memref<1x1024xf32, #tpu.memory_space<vmem>>, vector<1x1024xf32>
      %c0_92 = arith.constant 0 : index
      %c0_93 = arith.constant 0 : index
      %161 = vector.load %arg10[%c0_92, %c0_93] : memref<8x1xf32, #tpu.memory_space<vmem>>, vector<8x1xf32>
      %162 = vector.broadcast %160 : vector<1x1024xf32> to vector<8x1024xf32>
      %163 = arith.mulf %155, %162 : vector<8x1024xf32>
      %cst_94 = arith.constant dense<0.000000e+00> : vector<8xf32>
      %164 = vector.multi_reduction <add>, %163, %cst_94 [1] : vector<8x1024xf32> to vector<8xf32>
      %165 = vector.shape_cast %164 : vector<8xf32> to vector<8x1xf32>
      %166 = arith.addf %161, %165 : vector<8x1xf32>
      %c0_95 = arith.constant 0 : index
      %c0_96 = arith.constant 0 : index
      %167 = vector.load %arg10[%c0_95, %c0_96] : memref<8x1xf32, #tpu.memory_space<vmem>>, vector<8x1xf32>
      tpu.vector_store %arg10[%c0_95, %c0_96], %166 {strides = array<i32>} : memref<8x1xf32, #tpu.memory_space<vmem>>, vector<8x1xf32>,
      %c0_97 = arith.constant 0 : index
      %c0_98 = arith.constant 0 : index
      %168 = vector.load %arg11[%c0_97, %c0_98] : memref<8x1xf32, #tpu.memory_space<vmem>>, vector<8x1xf32>
      %169 = arith.mulf %155, %155 : vector<8x1024xf32>
      %170 = vector.broadcast %160 : vector<1x1024xf32> to vector<8x1024xf32>
      %171 = arith.mulf %169, %170 : vector<8x1024xf32>
      %cst_99 = arith.constant dense<0.000000e+00> : vector<8xf32>
      %172 = vector.multi_reduction <add>, %171, %cst_99 [1] : vector<8x1024xf32> to vector<8xf32>
      %173 = vector.shape_cast %172 : vector<8xf32> to vector<8x1xf32>
      %174 = arith.addf %168, %173 : vector<8x1xf32>
      %c0_100 = arith.constant 0 : index
      %c0_101 = arith.constant 0 : index
      %175 = vector.load %arg11[%c0_100, %c0_101] : memref<8x1xf32, #tpu.memory_space<vmem>>, vector<8x1xf32>
      tpu.vector_store %arg11[%c0_100, %c0_101], %174 {strides = array<i32>} : memref<8x1xf32, #tpu.memory_space<vmem>>, vector<8x1xf32>,
    } else {
    }
    %c1_i32 = arith.constant 1 : i32
    %3 = arith.cmpi eq, %arg0, %c1_i32 : i32
    %4 = arith.extui %3 : i1 to i32
    %c0_i32_1 = arith.constant 0 : i32
    %5 = arith.cmpi ne, %4, %c0_i32_1 : i32
    scf.if %5 {
      %c0 = arith.constant 0 : index
      %c0_2 = arith.constant 0 : index
      %6 = vector.load %arg10[%c0, %c0_2] : memref<8x1xf32, #tpu.memory_space<vmem>>, vector<8x1xf32>
      %cst = arith.constant 9.765625E-4 : f32
      %7 = vector.broadcast %cst : f32 to vector<8x1xf32>
      %8 = arith.mulf %6, %7 : vector<8x1xf32>
      %c0_3 = arith.constant 0 : index
      %c0_4 = arith.constant 0 : index
      %9 = vector.load %arg11[%c0_3, %c0_4] : memref<8x1xf32, #tpu.memory_space<vmem>>, vector<8x1xf32>
      %cst_5 = arith.constant 9.765625E-4 : f32
      %10 = vector.broadcast %cst_5 : f32 to vector<8x1xf32>
      %11 = arith.mulf %9, %10 : vector<8x1xf32>
      %12 = arith.mulf %8, %8 : vector<8x1xf32>
      %13 = arith.subf %11, %12 : vector<8x1xf32>
      %cst_6 = arith.constant 0.000000e+00 : f32
      %14 = vector.broadcast %cst_6 : f32 to vector<8x1xf32>
      %15 = arith.maximumf %13, %14 : vector<8x1xf32>
      %c0_7 = arith.constant 0 : index
      %c0_8 = arith.constant 0 : index
      %16 = vector.load %arg4[%c0_7, %c0_8] : memref<8x1xf32, #tpu.memory_space<vmem>>, vector<8x1xf32>
      %cst_9 = arith.constant 9.99999974E-6 : f32
      %17 = vector.broadcast %cst_9 : f32 to vector<8x1xf32>
      %18 = arith.addf %15, %17 : vector<8x1xf32>
      %19 = math.rsqrt %18 : vector<8x1xf32>
      %20 = arith.mulf %16, %19 : vector<8x1xf32>
      %c0_10 = arith.constant 0 : index
      %c0_11 = arith.constant 0 : index
      %21 = vector.load %arg5[%c0_10, %c0_11] : memref<8x1xf32, #tpu.memory_space<vmem>>, vector<8x1xf32>
      %22 = arith.mulf %8, %20 : vector<8x1xf32>
      %23 = arith.subf %21, %22 : vector<8x1xf32>
      %24 = arith.index_cast %arg1 : i32 to index
      %c0_12 = arith.constant 0 : index
      %c0_13 = arith.constant 0 : index
      %25 = vector.load %arg9[%24, %c0_12, %c0_13] : memref<2x8x1024xf32, #tpu.memory_space<vmem>>, vector<1x8x1024xf32>
      %26 = vector.shape_cast %25 : vector<1x8x1024xf32> to vector<8x1024xf32>
      %27 = vector.broadcast %20 : vector<8x1xf32> to vector<8x1024xf32>
      %28 = arith.mulf %26, %27 : vector<8x1024xf32>
      %29 = vector.broadcast %23 : vector<8x1xf32> to vector<8x1024xf32>
      %30 = arith.addf %28, %29 : vector<8x1024xf32>
      %cst_14 = arith.constant 0.000000e+00 : f32
      %31 = vector.broadcast %cst_14 : f32 to vector<8x1024xf32>
      %32 = arith.cmpf oge, %30, %31 : vector<8x1024xf32>
      %cst_15 = arith.constant 0.00999999977 : f32
      %33 = vector.broadcast %cst_15 : f32 to vector<8x1024xf32>
      %34 = arith.mulf %33, %30 : vector<8x1024xf32>
      %35 = arith.select %32, %30, %34 : vector<8x1024xi1>, vector<8x1024xf32>
      %36 = arith.truncf %35 : vector<8x1024xf32> to vector<8x1024xbf16>
      %37 = arith.extf %36 : vector<8x1024xbf16> to vector<8x1024xf32>
      %38 = arith.subf %35, %37 : vector<8x1024xf32>
      %39 = arith.truncf %38 : vector<8x1024xf32> to vector<8x1024xbf16>
      %c0_16 = arith.constant 0 : index
      %c0_17 = arith.constant 0 : index
      %40 = vector.load %arg6[%c0_16, %c0_17] : memref<128x256xbf16, #tpu.memory_space<vmem>>, vector<128x256xbf16>
      %41 = vector.extract_strided_slice %36 {offsets = [0, 0], sizes = [8, 128], strides = [1, 1]} : vector<8x1024xbf16> to vector<8x128xbf16>
      %cst_18 = arith.constant dense<0.000000e+00> : vector<8x256xf32>
      %42 = tpu.matmul %41, %40, %cst_18 {dimension_numbers = #tpu.dot_dimension_numbers<[1], [0], [0], [1], [0, 0, 1, 1], [], []>} : vector<8x128xbf16>, vector<128x256xbf16>, vector<8x256xf32> -> vector<8x256xf32>
      %43 = vector.extract_strided_slice %39 {offsets = [0, 0], sizes = [8, 128], strides = [1, 1]} : vector<8x1024xbf16> to vector<8x128xbf16>
      %cst_19 = arith.constant dense<0.000000e+00> : vector<8x256xf32>
      %44 = tpu.matmul %43, %40, %cst_19 {dimension_numbers = #tpu.dot_dimension_numbers<[1], [0], [0], [1], [0, 0, 1, 1], [], []>} : vector<8x128xbf16>, vector<128x256xbf16>, vector<8x256xf32> -> vector<8x256xf32>
      %45 = arith.addf %42, %44 : vector<8x256xf32>
      %c0_20 = arith.constant 0 : index
      %c0_21 = arith.constant 0 : index
      %c0_22 = arith.constant 0 : index
      %c0_23 = arith.constant 0 : index
      %46 = vector.load %arg8[%c0_20, %c0_21, %c0_22, %c0_23] : memref<1x8x16x256xf32, #tpu.memory_space<vmem>>, vector<1x8x1x256xf32>
      %47 = vector.shape_cast %46 : vector<1x8x1x256xf32> to vector<8x256xf32>
      %48 = vector.shape_cast %45 : vector<8x256xf32> to vector<1x8x1x256xf32>
      tpu.vector_store %arg8[%c0_20, %c0_21, %c0_22, %c0_23], %48 {strides = array<i32>} : memref<1x8x16x256xf32, #tpu.memory_space<vmem>>, vector<1x8x1x256xf32>,
      %c0_24 = arith.constant 0 : index
      %c0_25 = arith.constant 0 : index
      %c1 = arith.constant 1 : index
      %c0_26 = arith.constant 0 : index
      %49 = vector.load %arg8[%c0_24, %c0_25, %c1, %c0_26] : memref<1x8x16x256xf32, #tpu.memory_space<vmem>>, vector<1x8x1x256xf32>
      %50 = vector.shape_cast %49 : vector<1x8x1x256xf32> to vector<8x256xf32>
      %51 = vector.shape_cast %45 : vector<8x256xf32> to vector<1x8x1x256xf32>
      tpu.vector_store %arg8[%c0_24, %c0_25, %c1, %c0_26], %51 {strides = array<i32>} : memref<1x8x16x256xf32, #tpu.memory_space<vmem>>, vector<1x8x1x256xf32>,
      %52 = vector.extract_strided_slice %36 {offsets = [0, 128], sizes = [8, 128], strides = [1, 1]} : vector<8x1024xbf16> to vector<8x128xbf16>
      %cst_27 = arith.constant dense<0.000000e+00> : vector<8x256xf32>
      %53 = tpu.matmul %52, %40, %cst_27 {dimension_numbers = #tpu.dot_dimension_numbers<[1], [0], [0], [1], [0, 0, 1, 1], [], []>} : vector<8x128xbf16>, vector<128x256xbf16>, vector<8x256xf32> -> vector<8x256xf32>
      %54 = vector.extract_strided_slice %39 {offsets = [0, 128], sizes = [8, 128], strides = [1, 1]} : vector<8x1024xbf16> to vector<8x128xbf16>
      %cst_28 = arith.constant dense<0.000000e+00> : vector<8x256xf32>
      %55 = tpu.matmul %54, %40, %cst_28 {dimension_numbers = #tpu.dot_dimension_numbers<[1], [0], [0], [1], [0, 0, 1, 1], [], []>} : vector<8x128xbf16>, vector<128x256xbf16>, vector<8x256xf32> -> vector<8x256xf32>
      %56 = arith.addf %53, %55 : vector<8x256xf32>
      %c0_29 = arith.constant 0 : index
      %c0_30 = arith.constant 0 : index
      %c2 = arith.constant 2 : index
      %c0_31 = arith.constant 0 : index
      %57 = vector.load %arg8[%c0_29, %c0_30, %c2, %c0_31] : memref<1x8x16x256xf32, #tpu.memory_space<vmem>>, vector<1x8x1x256xf32>
      %58 = vector.shape_cast %57 : vector<1x8x1x256xf32> to vector<8x256xf32>
      %59 = vector.shape_cast %56 : vector<8x256xf32> to vector<1x8x1x256xf32>
      tpu.vector_store %arg8[%c0_29, %c0_30, %c2, %c0_31], %59 {strides = array<i32>} : memref<1x8x16x256xf32, #tpu.memory_space<vmem>>, vector<1x8x1x256xf32>,
      %c0_32 = arith.constant 0 : index
      %c0_33 = arith.constant 0 : index
      %c3 = arith.constant 3 : index
      %c0_34 = arith.constant 0 : index
      %60 = vector.load %arg8[%c0_32, %c0_33, %c3, %c0_34] : memref<1x8x16x256xf32, #tpu.memory_space<vmem>>, vector<1x8x1x256xf32>
      %61 = vector.shape_cast %60 : vector<1x8x1x256xf32> to vector<8x256xf32>
      %62 = vector.shape_cast %56 : vector<8x256xf32> to vector<1x8x1x256xf32>
      tpu.vector_store %arg8[%c0_32, %c0_33, %c3, %c0_34], %62 {strides = array<i32>} : memref<1x8x16x256xf32, #tpu.memory_space<vmem>>, vector<1x8x1x256xf32>,
      %63 = vector.extract_strided_slice %36 {offsets = [0, 256], sizes = [8, 128], strides = [1, 1]} : vector<8x1024xbf16> to vector<8x128xbf16>
      %cst_35 = arith.constant dense<0.000000e+00> : vector<8x256xf32>
      %64 = tpu.matmul %63, %40, %cst_35 {dimension_numbers = #tpu.dot_dimension_numbers<[1], [0], [0], [1], [0, 0, 1, 1], [], []>} : vector<8x128xbf16>, vector<128x256xbf16>, vector<8x256xf32> -> vector<8x256xf32>
      %65 = vector.extract_strided_slice %39 {offsets = [0, 256], sizes = [8, 128], strides = [1, 1]} : vector<8x1024xbf16> to vector<8x128xbf16>
      %cst_36 = arith.constant dense<0.000000e+00> : vector<8x256xf32>
      %66 = tpu.matmul %65, %40, %cst_36 {dimension_numbers = #tpu.dot_dimension_numbers<[1], [0], [0], [1], [0, 0, 1, 1], [], []>} : vector<8x128xbf16>, vector<128x256xbf16>, vector<8x256xf32> -> vector<8x256xf32>
      %67 = arith.addf %64, %66 : vector<8x256xf32>
      %c0_37 = arith.constant 0 : index
      %c0_38 = arith.constant 0 : index
      %c4 = arith.constant 4 : index
      %c0_39 = arith.constant 0 : index
      %68 = vector.load %arg8[%c0_37, %c0_38, %c4, %c0_39] : memref<1x8x16x256xf32, #tpu.memory_space<vmem>>, vector<1x8x1x256xf32>
      %69 = vector.shape_cast %68 : vector<1x8x1x256xf32> to vector<8x256xf32>
      %70 = vector.shape_cast %67 : vector<8x256xf32> to vector<1x8x1x256xf32>
      tpu.vector_store %arg8[%c0_37, %c0_38, %c4, %c0_39], %70 {strides = array<i32>} : memref<1x8x16x256xf32, #tpu.memory_space<vmem>>, vector<1x8x1x256xf32>,
      %c0_40 = arith.constant 0 : index
      %c0_41 = arith.constant 0 : index
      %c5 = arith.constant 5 : index
      %c0_42 = arith.constant 0 : index
      %71 = vector.load %arg8[%c0_40, %c0_41, %c5, %c0_42] : memref<1x8x16x256xf32, #tpu.memory_space<vmem>>, vector<1x8x1x256xf32>
      %72 = vector.shape_cast %71 : vector<1x8x1x256xf32> to vector<8x256xf32>
      %73 = vector.shape_cast %67 : vector<8x256xf32> to vector<1x8x1x256xf32>
      tpu.vector_store %arg8[%c0_40, %c0_41, %c5, %c0_42], %73 {strides = array<i32>} : memref<1x8x16x256xf32, #tpu.memory_space<vmem>>, vector<1x8x1x256xf32>,
      %74 = vector.extract_strided_slice %36 {offsets = [0, 384], sizes = [8, 128], strides = [1, 1]} : vector<8x1024xbf16> to vector<8x128xbf16>
      %cst_43 = arith.constant dense<0.000000e+00> : vector<8x256xf32>
      %75 = tpu.matmul %74, %40, %cst_43 {dimension_numbers = #tpu.dot_dimension_numbers<[1], [0], [0], [1], [0, 0, 1, 1], [], []>} : vector<8x128xbf16>, vector<128x256xbf16>, vector<8x256xf32> -> vector<8x256xf32>
      %76 = vector.extract_strided_slice %39 {offsets = [0, 384], sizes = [8, 128], strides = [1, 1]} : vector<8x1024xbf16> to vector<8x128xbf16>
      %cst_44 = arith.constant dense<0.000000e+00> : vector<8x256xf32>
      %77 = tpu.matmul %76, %40, %cst_44 {dimension_numbers = #tpu.dot_dimension_numbers<[1], [0], [0], [1], [0, 0, 1, 1], [], []>} : vector<8x128xbf16>, vector<128x256xbf16>, vector<8x256xf32> -> vector<8x256xf32>
      %78 = arith.addf %75, %77 : vector<8x256xf32>
      %c0_45 = arith.constant 0 : index
      %c0_46 = arith.constant 0 : index
      %c6 = arith.constant 6 : index
      %c0_47 = arith.constant 0 : index
      %79 = vector.load %arg8[%c0_45, %c0_46, %c6, %c0_47] : memref<1x8x16x256xf32, #tpu.memory_space<vmem>>, vector<1x8x1x256xf32>
      %80 = vector.shape_cast %79 : vector<1x8x1x256xf32> to vector<8x256xf32>
      %81 = vector.shape_cast %78 : vector<8x256xf32> to vector<1x8x1x256xf32>
      tpu.vector_store %arg8[%c0_45, %c0_46, %c6, %c0_47], %81 {strides = array<i32>} : memref<1x8x16x256xf32, #tpu.memory_space<vmem>>, vector<1x8x1x256xf32>,
      %c0_48 = arith.constant 0 : index
      %c0_49 = arith.constant 0 : index
      %c7 = arith.constant 7 : index
      %c0_50 = arith.constant 0 : index
      %82 = vector.load %arg8[%c0_48, %c0_49, %c7, %c0_50] : memref<1x8x16x256xf32, #tpu.memory_space<vmem>>, vector<1x8x1x256xf32>
      %83 = vector.shape_cast %82 : vector<1x8x1x256xf32> to vector<8x256xf32>
      %84 = vector.shape_cast %78 : vector<8x256xf32> to vector<1x8x1x256xf32>
      tpu.vector_store %arg8[%c0_48, %c0_49, %c7, %c0_50], %84 {strides = array<i32>} : memref<1x8x16x256xf32, #tpu.memory_space<vmem>>, vector<1x8x1x256xf32>,
      %85 = vector.extract_strided_slice %36 {offsets = [0, 512], sizes = [8, 128], strides = [1, 1]} : vector<8x1024xbf16> to vector<8x128xbf16>
      %cst_51 = arith.constant dense<0.000000e+00> : vector<8x256xf32>
      %86 = tpu.matmul %85, %40, %cst_51 {dimension_numbers = #tpu.dot_dimension_numbers<[1], [0], [0], [1], [0, 0, 1, 1], [], []>} : vector<8x128xbf16>, vector<128x256xbf16>, vector<8x256xf32> -> vector<8x256xf32>
      %87 = vector.extract_strided_slice %39 {offsets = [0, 512], sizes = [8, 128], strides = [1, 1]} : vector<8x1024xbf16> to vector<8x128xbf16>
      %cst_52 = arith.constant dense<0.000000e+00> : vector<8x256xf32>
      %88 = tpu.matmul %87, %40, %cst_52 {dimension_numbers = #tpu.dot_dimension_numbers<[1], [0], [0], [1], [0, 0, 1, 1], [], []>} : vector<8x128xbf16>, vector<128x256xbf16>, vector<8x256xf32> -> vector<8x256xf32>
      %89 = arith.addf %86, %88 : vector<8x256xf32>
      %c0_53 = arith.constant 0 : index
      %c0_54 = arith.constant 0 : index
      %c8 = arith.constant 8 : index
      %c0_55 = arith.constant 0 : index
      %90 = vector.load %arg8[%c0_53, %c0_54, %c8, %c0_55] : memref<1x8x16x256xf32, #tpu.memory_space<vmem>>, vector<1x8x1x256xf32>
      %91 = vector.shape_cast %90 : vector<1x8x1x256xf32> to vector<8x256xf32>
      %92 = vector.shape_cast %89 : vector<8x256xf32> to vector<1x8x1x256xf32>
      tpu.vector_store %arg8[%c0_53, %c0_54, %c8, %c0_55], %92 {strides = array<i32>} : memref<1x8x16x256xf32, #tpu.memory_space<vmem>>, vector<1x8x1x256xf32>,
      %c0_56 = arith.constant 0 : index
      %c0_57 = arith.constant 0 : index
      %c9 = arith.constant 9 : index
      %c0_58 = arith.constant 0 : index
      %93 = vector.load %arg8[%c0_56, %c0_57, %c9, %c0_58] : memref<1x8x16x256xf32, #tpu.memory_space<vmem>>, vector<1x8x1x256xf32>
      %94 = vector.shape_cast %93 : vector<1x8x1x256xf32> to vector<8x256xf32>
      %95 = vector.shape_cast %89 : vector<8x256xf32> to vector<1x8x1x256xf32>
      tpu.vector_store %arg8[%c0_56, %c0_57, %c9, %c0_58], %95 {strides = array<i32>} : memref<1x8x16x256xf32, #tpu.memory_space<vmem>>, vector<1x8x1x256xf32>,
      %96 = vector.extract_strided_slice %36 {offsets = [0, 640], sizes = [8, 128], strides = [1, 1]} : vector<8x1024xbf16> to vector<8x128xbf16>
      %cst_59 = arith.constant dense<0.000000e+00> : vector<8x256xf32>
      %97 = tpu.matmul %96, %40, %cst_59 {dimension_numbers = #tpu.dot_dimension_numbers<[1], [0], [0], [1], [0, 0, 1, 1], [], []>} : vector<8x128xbf16>, vector<128x256xbf16>, vector<8x256xf32> -> vector<8x256xf32>
      %98 = vector.extract_strided_slice %39 {offsets = [0, 640], sizes = [8, 128], strides = [1, 1]} : vector<8x1024xbf16> to vector<8x128xbf16>
      %cst_60 = arith.constant dense<0.000000e+00> : vector<8x256xf32>
      %99 = tpu.matmul %98, %40, %cst_60 {dimension_numbers = #tpu.dot_dimension_numbers<[1], [0], [0], [1], [0, 0, 1, 1], [], []>} : vector<8x128xbf16>, vector<128x256xbf16>, vector<8x256xf32> -> vector<8x256xf32>
      %100 = arith.addf %97, %99 : vector<8x256xf32>
      %c0_61 = arith.constant 0 : index
      %c0_62 = arith.constant 0 : index
      %c10 = arith.constant 10 : index
      %c0_63 = arith.constant 0 : index
      %101 = vector.load %arg8[%c0_61, %c0_62, %c10, %c0_63] : memref<1x8x16x256xf32, #tpu.memory_space<vmem>>, vector<1x8x1x256xf32>
      %102 = vector.shape_cast %101 : vector<1x8x1x256xf32> to vector<8x256xf32>
      %103 = vector.shape_cast %100 : vector<8x256xf32> to vector<1x8x1x256xf32>
      tpu.vector_store %arg8[%c0_61, %c0_62, %c10, %c0_63], %103 {strides = array<i32>} : memref<1x8x16x256xf32, #tpu.memory_space<vmem>>, vector<1x8x1x256xf32>,
      %c0_64 = arith.constant 0 : index
      %c0_65 = arith.constant 0 : index
      %c11 = arith.constant 11 : index
      %c0_66 = arith.constant 0 : index
      %104 = vector.load %arg8[%c0_64, %c0_65, %c11, %c0_66] : memref<1x8x16x256xf32, #tpu.memory_space<vmem>>, vector<1x8x1x256xf32>
      %105 = vector.shape_cast %104 : vector<1x8x1x256xf32> to vector<8x256xf32>
      %106 = vector.shape_cast %100 : vector<8x256xf32> to vector<1x8x1x256xf32>
      tpu.vector_store %arg8[%c0_64, %c0_65, %c11, %c0_66], %106 {strides = array<i32>} : memref<1x8x16x256xf32, #tpu.memory_space<vmem>>, vector<1x8x1x256xf32>,
      %107 = vector.extract_strided_slice %36 {offsets = [0, 768], sizes = [8, 128], strides = [1, 1]} : vector<8x1024xbf16> to vector<8x128xbf16>
      %cst_67 = arith.constant dense<0.000000e+00> : vector<8x256xf32>
      %108 = tpu.matmul %107, %40, %cst_67 {dimension_numbers = #tpu.dot_dimension_numbers<[1], [0], [0], [1], [0, 0, 1, 1], [], []>} : vector<8x128xbf16>, vector<128x256xbf16>, vector<8x256xf32> -> vector<8x256xf32>
      %109 = vector.extract_strided_slice %39 {offsets = [0, 768], sizes = [8, 128], strides = [1, 1]} : vector<8x1024xbf16> to vector<8x128xbf16>
      %cst_68 = arith.constant dense<0.000000e+00> : vector<8x256xf32>
      %110 = tpu.matmul %109, %40, %cst_68 {dimension_numbers = #tpu.dot_dimension_numbers<[1], [0], [0], [1], [0, 0, 1, 1], [], []>} : vector<8x128xbf16>, vector<128x256xbf16>, vector<8x256xf32> -> vector<8x256xf32>
      %111 = arith.addf %108, %110 : vector<8x256xf32>
      %c0_69 = arith.constant 0 : index
      %c0_70 = arith.constant 0 : index
      %c12 = arith.constant 12 : index
      %c0_71 = arith.constant 0 : index
      %112 = vector.load %arg8[%c0_69, %c0_70, %c12, %c0_71] : memref<1x8x16x256xf32, #tpu.memory_space<vmem>>, vector<1x8x1x256xf32>
      %113 = vector.shape_cast %112 : vector<1x8x1x256xf32> to vector<8x256xf32>
      %114 = vector.shape_cast %111 : vector<8x256xf32> to vector<1x8x1x256xf32>
      tpu.vector_store %arg8[%c0_69, %c0_70, %c12, %c0_71], %114 {strides = array<i32>} : memref<1x8x16x256xf32, #tpu.memory_space<vmem>>, vector<1x8x1x256xf32>,
      %c0_72 = arith.constant 0 : index
      %c0_73 = arith.constant 0 : index
      %c13 = arith.constant 13 : index
      %c0_74 = arith.constant 0 : index
      %115 = vector.load %arg8[%c0_72, %c0_73, %c13, %c0_74] : memref<1x8x16x256xf32, #tpu.memory_space<vmem>>, vector<1x8x1x256xf32>
      %116 = vector.shape_cast %115 : vector<1x8x1x256xf32> to vector<8x256xf32>
      %117 = vector.shape_cast %111 : vector<8x256xf32> to vector<1x8x1x256xf32>
      tpu.vector_store %arg8[%c0_72, %c0_73, %c13, %c0_74], %117 {strides = array<i32>} : memref<1x8x16x256xf32, #tpu.memory_space<vmem>>, vector<1x8x1x256xf32>,
      %118 = vector.extract_strided_slice %36 {offsets = [0, 896], sizes = [8, 128], strides = [1, 1]} : vector<8x1024xbf16> to vector<8x128xbf16>
      %cst_75 = arith.constant dense<0.000000e+00> : vector<8x256xf32>
      %119 = tpu.matmul %118, %40, %cst_75 {dimension_numbers = #tpu.dot_dimension_numbers<[1], [0], [0], [1], [0, 0, 1, 1], [], []>} : vector<8x128xbf16>, vector<128x256xbf16>, vector<8x256xf32> -> vector<8x256xf32>
      %120 = vector.extract_strided_slice %39 {offsets = [0, 896], sizes = [8, 128], strides = [1, 1]} : vector<8x1024xbf16> to vector<8x128xbf16>
      %cst_76 = arith.constant dense<0.000000e+00> : vector<8x256xf32>
      %121 = tpu.matmul %120, %40, %cst_76 {dimension_numbers = #tpu.dot_dimension_numbers<[1], [0], [0], [1], [0, 0, 1, 1], [], []>} : vector<8x128xbf16>, vector<128x256xbf16>, vector<8x256xf32> -> vector<8x256xf32>
      %122 = arith.addf %119, %121 : vector<8x256xf32>
      %c0_77 = arith.constant 0 : index
      %c0_78 = arith.constant 0 : index
      %c14 = arith.constant 14 : index
      %c0_79 = arith.constant 0 : index
      %123 = vector.load %arg8[%c0_77, %c0_78, %c14, %c0_79] : memref<1x8x16x256xf32, #tpu.memory_space<vmem>>, vector<1x8x1x256xf32>
      %124 = vector.shape_cast %123 : vector<1x8x1x256xf32> to vector<8x256xf32>
      %125 = vector.shape_cast %122 : vector<8x256xf32> to vector<1x8x1x256xf32>
      tpu.vector_store %arg8[%c0_77, %c0_78, %c14, %c0_79], %125 {strides = array<i32>} : memref<1x8x16x256xf32, #tpu.memory_space<vmem>>, vector<1x8x1x256xf32>,
      %c0_80 = arith.constant 0 : index
      %c0_81 = arith.constant 0 : index
      %c15 = arith.constant 15 : index
      %c0_82 = arith.constant 0 : index
      %126 = vector.load %arg8[%c0_80, %c0_81, %c15, %c0_82] : memref<1x8x16x256xf32, #tpu.memory_space<vmem>>, vector<1x8x1x256xf32>
      %127 = vector.shape_cast %126 : vector<1x8x1x256xf32> to vector<8x256xf32>
      %128 = vector.shape_cast %122 : vector<8x256xf32> to vector<1x8x1x256xf32>
      tpu.vector_store %arg8[%c0_80, %c0_81, %c15, %c0_82], %128 {strides = array<i32>} : memref<1x8x16x256xf32, #tpu.memory_space<vmem>>, vector<1x8x1x256xf32>,
    } else {
    }
    return
  }
  func.func @transform_0(%arg0: i32, %arg1: i32) -> (i32, i32, i32) {
    %c0_i32 = arith.constant 0 : i32
    %c0_i32_0 = arith.constant 0 : i32
    %c0_i32_1 = arith.constant 0 : i32
    %c0_i32_2 = arith.constant 0 : i32
    return %c0_i32, %c0_i32_0, %c0_i32_1 : i32, i32, i32
  }
  func.func @transform_1(%arg0: i32, %arg1: i32) -> (i32, i32) {
    %c0_i32 = arith.constant 0 : i32
    %c0_i32_0 = arith.constant 0 : i32
    %c0_i32_1 = arith.constant 0 : i32
    return %c0_i32, %c0_i32_0 : i32, i32
  }
  func.func @transform_2(%arg0: i32, %arg1: i32) -> (i32, i32) {
    %c0_i32 = arith.constant 0 : i32
    %c0_i32_0 = arith.constant 0 : i32
    %c0_i32_1 = arith.constant 0 : i32
    return %c0_i32, %c0_i32_0 : i32, i32
  }
  func.func @transform_3(%arg0: i32, %arg1: i32) -> (i32, i32) {
    %c0_i32 = arith.constant 0 : i32
    %c0_i32_0 = arith.constant 0 : i32
    %c0_i32_1 = arith.constant 0 : i32
    return %c0_i32, %c0_i32_0 : i32, i32
  }
  func.func @transform_4(%arg0: i32, %arg1: i32) -> (i32, i32) {
    %c0_i32 = arith.constant 0 : i32
    %c0_i32_0 = arith.constant 0 : i32
    %c0_i32_1 = arith.constant 0 : i32
    return %c0_i32, %c0_i32_0 : i32, i32
  }
  func.func @transform_5(%arg0: i32, %arg1: i32) -> (i32, i32, i32) {
    %c0_i32 = arith.constant 0 : i32
    %c0_i32_0 = arith.constant 0 : i32
    %c0_i32_1 = arith.constant 0 : i32
    return %arg1, %c0_i32, %c0_i32_0 : i32, i32, i32
  }
  func.func @transform_6(%arg0: i32, %arg1: i32) -> (i32, i32, i32, i32) {
    %0 = arith.muli %arg0, %arg1 : i32
    %c0_i32 = arith.constant 0 : i32
    %c0_i32_0 = arith.constant 0 : i32
    %c0_i32_1 = arith.constant 0 : i32
    %c0_i32_2 = arith.constant 0 : i32
    return %0, %c0_i32, %c0_i32_0, %c0_i32_1 : i32, i32, i32, i32
  }
}

</mosaic_0001>

<llo_original>
// kernel: decoder_block_cup.1
$region0: #{decoder_block_cup.1}
  #allocation0 [shape = 'u32[]', space=smem, size = 0x4, offset = 0x4, fixed_abs, tag = 'smem constant byte address 0x4 - core index']
  #allocation1 [shape = 'u32[144,128]{1,0:T(1,128)}', space=vmem, size = 0x12000, scoped, tag = 'internal scratch']
  #allocation2 [shape = 'f32[2,8,1024]{2,1,0:T(8,128)}', space=vmem, size = 0x10000, scoped, tag = 'scratch operand']
  #allocation3 [shape = 'f32[8,1]{1,0:T(8,128)}', space=vmem, size = 0x1000, scoped, tag = 'scratch operand']
  #allocation4 [shape = 'f32[8,1]{1,0:T(8,128)}', space=vmem, size = 0x1000, scoped, tag = 'scratch operand']
  %s0 = inlined_call_operand.vmem [shape: bf16[27,8,4], index: 0, kind: input, shape index: {}]
  %s1 = inlined_call_operand.hbm [shape: f32[1,1024], index: 1, kind: input, shape index: {}]
  %s2 = inlined_call_operand.vmem [shape: f32[8,1], index: 2, kind: input, shape index: {}]
  %s3 = inlined_call_operand.vmem [shape: f32[8,1], index: 3, kind: input, shape index: {}]
  %s4 = inlined_call_operand.hbm [shape: bf16[128,256], index: 4, kind: input, shape index: {}]
  %s5 = inlined_call_operand.vmem [shape: bf16[2,4,1408], index: 5, kind: input, shape index: {}]
  %s6 = inlined_call_operand.vmem [shape: f32[2,8,16,256], index: 6, kind: output, shape index: {}]
  %s7 = sld [smem:[#allocation0]]
  $region77: #{decoder_block_cup.1} parent=0
    _
  %s9 = ssub.s32 1, %s7
  %s10 = scalar_select 0, %s9, %s7
  $region1: #{decoder_block_cup.1} parent=0
    #allocation5 [shape = 'u8[4096]{0}', space=vmem, size = 0x1000, scoped, tag = 'input window, operand 1, single buffered']
    #allocation6 [shape = 's32[2]{0}', space=sflag, size = 0x8, scoped, tag = 'scoped memory for decoder_block_cup.1']
    #allocation7 [shape = 'u8[65536]{0}', space=vmem, size = 0x10000, scoped, tag = 'input window, operand 4, single buffered']
    #allocation8 [shape = 's32[1]{0}', space=sflag, size = 0x4, scoped, tag = 'scoped memory for decoder_block_cup.1']
    %11 = vsyncpa [#allocation6], 0
    %12 = vsyncpa [#allocation8], 0
    loop: start=0, step=1, limit=6
    $region2: #{decoder_block_cup.1} parent=1 // loop_pre_header
      _
    $region3: #{decoder_block_cup.1} parent=1 // loop_header
      %s14 = sphi 0, %s18
      %p15 = scmp.ge.s32.totalorder %s14, 6
      %s21 = sphi 0, %s33
      %s22 = sphi 0, %s29
      %s23 = sphi 0, %s21
      %s24 = sphi 0, %s22
      %s25 = sphi 0, %s23
      %s26 = sphi 0, %s24
      %s34 = sphi 0, %s34
      %s36 = sphi 0, %s34
      %s37 = sphi 0, %s36
      %s51 = sphi 0, %s37
      %s55 = sphi 0, %s55
      %s57 = sphi 0, %s55
      %s58 = sphi 0, %s57
      %s72 = sphi 0, %s58
      %s76 = sphi 0, %s76
      %s78 = sphi 0, %s76
      %s79 = sphi 0, %s78
      %s93 = sphi 0, %s79
      %s97 = sphi 0, %s97
      %s99 = sphi 0, %s97
      %s100 = sphi 0, %s99
      %s114 = sphi 0, %s100
      %s118 = sphi 0, %s118
      %s120 = sphi 0, %s118
      %s121 = sphi 0, %s120
      %s135 = sphi 0, %s121
      %s141 = sphi 0, %s143
      %s144 = sphi 0, %s141
      %s145 = sphi 0, %s144
      %s161 = sphi 0, %s145
      %s169 = sphi 0, %s171
      %s172 = sphi 0, %s169
      %s173 = sphi 0, %s172
      %s189 = sphi 0, %s173
    $region4: #{decoder_block_cup.1} parent=1 // loop_header_branch
      %17 = sbr.rel (%p15) target = $region8
    $region5: #{decoder_block_cup.1} parent=1 // loop_body
      %s19 = ssub.s32 %s14, 1
      %s20 = ssub.s32 %s14, 2
      %s27 = sadd.s32 1, %s22
      %p28 = scmp.ge.s32.totalorder %s27, 2
      %s29 = scalar_select %p28, 0, %s27
      %s30 = sadd.s32 1, %s21
      %s31 = scalar_select %p28, %s30, %s21
      %p32 = scmp.ge.s32.totalorder %s31, 2
      %s33 = scalar_select %p32, 0, %s31
      %s35 = sadd.s32 %s34, 1
      %p38 = scmp.eq.s32.totalorder %s14, 3
      %p39 = scmp.ne.s32.totalorder %s34, %s36
      %p40 = scmp.eq.s32.totalorder %s14, 0
      %p41 = por %p39, %p40
      %p42 = scmp.ne.s32.totalorder %s34, %s36
      %p43 = scmp.eq.s32.totalorder %s19, 3
      %p44 = por %p42, %p43
      %p45 = scmp.ne.s32.totalorder %s36, %s37
      %p46 = scmp.eq.s32.totalorder %s19, 0
      %p47 = por %p45, %p46
      %p48 = scmp.ne.s32.totalorder %s36, %s37
      %p49 = scmp.eq.s32.totalorder %s20, 3
      %p50 = por %p48, %p49
      %p52 = scmp.ne.s32.totalorder %s37, %s51
      %p53 = scmp.eq.s32.totalorder %s20, 0
      %p54 = por %p52, %p53
      %s56 = sadd.s32 %s55, 1
      %p59 = scmp.eq.s32.totalorder %s14, 3
      %p60 = scmp.ne.s32.totalorder %s55, %s57
      %p61 = scmp.eq.s32.totalorder %s14, 0
      %p62 = por %p60, %p61
      %p63 = scmp.ne.s32.totalorder %s55, %s57
      %p64 = scmp.eq.s32.totalorder %s19, 3
      %p65 = por %p63, %p64
      %p66 = scmp.ne.s32.totalorder %s57, %s58
      %p67 = scmp.eq.s32.totalorder %s19, 0
      %p68 = por %p66, %p67
      %p69 = scmp.ne.s32.totalorder %s57, %s58
      %p70 = scmp.eq.s32.totalorder %s20, 3
      %p71 = por %p69, %p70
      %p73 = scmp.ne.s32.totalorder %s58, %s72
      %p74 = scmp.eq.s32.totalorder %s20, 0
      %p75 = por %p73, %p74
      %s77 = sadd.s32 %s76, 1
      %p80 = scmp.eq.s32.totalorder %s14, 3
      %p81 = scmp.ne.s32.totalorder %s76, %s78
      %p82 = scmp.eq.s32.totalorder %s14, 0
      %p83 = por %p81, %p82
      %p84 = scmp.ne.s32.totalorder %s76, %s78
      %p85 = scmp.eq.s32.totalorder %s19, 3
      %p86 = por %p84, %p85
      %p87 = scmp.ne.s32.totalorder %s78, %s79
      %p88 = scmp.eq.s32.totalorder %s19, 0
      %p89 = por %p87, %p88
      %p90 = scmp.ne.s32.totalorder %s78, %s79
      %p91 = scmp.eq.s32.totalorder %s20, 3
      %p92 = por %p90, %p91
      %p94 = scmp.ne.s32.totalorder %s79, %s93
      %p95 = scmp.eq.s32.totalorder %s20, 0
      %p96 = por %p94, %p95
      %s98 = sadd.s32 %s97, 1
      %p101 = scmp.eq.s32.totalorder %s14, 3
      %p102 = scmp.ne.s32.totalorder %s97, %s99
      %p103 = scmp.eq.s32.totalorder %s14, 0
      %p104 = por %p102, %p103
      %p105 = scmp.ne.s32.totalorder %s97, %s99
      %p106 = scmp.eq.s32.totalorder %s19, 3
      %p107 = por %p105, %p106
      %p108 = scmp.ne.s32.totalorder %s99, %s100
      %p109 = scmp.eq.s32.totalorder %s19, 0
      %p110 = por %p108, %p109
      %p111 = scmp.ne.s32.totalorder %s99, %s100
      %p112 = scmp.eq.s32.totalorder %s20, 3
      %p113 = por %p111, %p112
      %p115 = scmp.ne.s32.totalorder %s100, %s114
      %p116 = scmp.eq.s32.totalorder %s20, 0
      %p117 = por %p115, %p116
      %s119 = sadd.s32 %s118, 1
      %p122 = scmp.eq.s32.totalorder %s14, 3
      %p123 = scmp.ne.s32.totalorder %s118, %s120
      %p124 = scmp.eq.s32.totalorder %s14, 0
      %p125 = por %p123, %p124
      %p126 = scmp.ne.s32.totalorder %s118, %s120
      %p127 = scmp.eq.s32.totalorder %s19, 3
      %p128 = por %p126, %p127
      %p129 = scmp.ne.s32.totalorder %s120, %s121
      %p130 = scmp.eq.s32.totalorder %s19, 0
      %p131 = por %p129, %p130
      %p132 = scmp.ne.s32.totalorder %s120, %s121
      %p133 = scmp.eq.s32.totalorder %s20, 3
      %p134 = por %p132, %p133
      %p136 = scmp.ne.s32.totalorder %s121, %s135
      %p137 = scmp.eq.s32.totalorder %s20, 0
      %p138 = por %p136, %p137
      %s139 = ssub.s32 %s22, %s29
      %p140 = scmp.eq.s32.totalorder %s139, 0
      %s142 = sadd.s32 %s141, 1
      %s143 = scalar_select %p140, %s141, %s142
      %p146 = pneg %p140
      %p147 = scmp.eq.s32.totalorder %s14, 3
      %p148 = por %p146, %p147
      %p149 = scmp.ne.s32.totalorder %s141, %s144
      %p150 = scmp.eq.s32.totalorder %s14, 0
      %p151 = por %p149, %p150
      %p152 = scmp.ne.s32.totalorder %s141, %s144
      %p153 = scmp.eq.s32.totalorder %s19, 3
      %p154 = por %p152, %p153
      %p155 = scmp.ne.s32.totalorder %s144, %s145
      %p156 = scmp.eq.s32.totalorder %s19, 0
      %p157 = por %p155, %p156
      %p158 = scmp.ne.s32.totalorder %s144, %s145
      %p159 = scmp.eq.s32.totalorder %s20, 3
      %p160 = por %p158, %p159
      %p162 = scmp.ne.s32.totalorder %s145, %s161
      %p163 = scmp.eq.s32.totalorder %s20, 0
      %p164 = por %p162, %p163
      %s165 = smul.u32 %s21, %s22
      %s166 = smul.u32 %s33, %s29
      %s167 = ssub.s32 %s165, %s166
      %p168 = scmp.eq.s32.totalorder %s167, 0
      %s170 = sadd.s32 %s169, 1
      %s171 = scalar_select %p168, %s169, %s170
      %p174 = pneg %p168
      %p175 = scmp.eq.s32.totalorder %s14, 3
      %p176 = por %p174, %p175
      %p177 = scmp.ne.s32.totalorder %s169, %s172
      %p178 = scmp.eq.s32.totalorder %s14, 0
      %p179 = por %p177, %p178
      %p180 = scmp.ne.s32.totalorder %s169, %s172
      %p181 = scmp.eq.s32.totalorder %s19, 3
      %p182 = por %p180, %p181
      %p183 = scmp.ne.s32.totalorder %s172, %s173
      %p184 = scmp.eq.s32.totalorder %s19, 0
      %p185 = por %p183, %p184
      %p186 = scmp.ne.s32.totalorder %s172, %s173
      %p187 = scmp.eq.s32.totalorder %s20, 3
      %p188 = por %p186, %p187
      %p190 = scmp.ne.s32.totalorder %s173, %s189
      %p191 = scmp.eq.s32.totalorder %s20, 0
      %p192 = por %p190, %p191
      %p193 = scmp.le.s32.totalorder 1, %s14
      %p194 = scmp.lt.s32.totalorder %s14, 5
      %p195 = pnand %p193, %p194
      %p196 = pneg %p195
      // Predicated region
      $region9: #{decoder_block_cup.1} parent=5 // pred_check
        _
      $region10: #{decoder_block_cup.1} parent=5 // pred_check_branch
        %198 = sbr.rel (%p195) target = $region12
      $region11: #{decoder_block_cup.1} parent=5 // pred_region
        %s199 = ssub.s32 %s14, 1
        // Predicated region
        $region13: #{decoder_block_cup.1} parent=11 // pred_check
          %p200 = pneg %p47
        $region14: #{decoder_block_cup.1} parent=11 // pred_check_branch
          %202 = sbr.rel (%p200) target = $region16
        $region15: #{decoder_block_cup.1} parent=11 // pred_region
          _
        $region16: #{decoder_block_cup.1} parent=11 // pred_fallthru
          _
        // Predicated region
        $region17: #{decoder_block_cup.1} parent=11 // pred_check
          %p203 = pneg %p68
        $region18: #{decoder_block_cup.1} parent=11 // pred_check_branch
          %205 = sbr.rel (%p203) target = $region20
        $region19: #{decoder_block_cup.1} parent=11 // pred_region
          %s207 = ssub.s32 128, 128
          %208 = vsyncadd [#allocation6], %s207
          %s210 = sshll.u32 [#allocation5], 4
          %s211 = int_to_ptr.vmem [resolvable:$true] %s210
          %213 = dma.hbm_to_vmem [thread:$0]  %s1, 128, %s211, [#allocation6]
        $region20: #{decoder_block_cup.1} parent=11 // pred_fallthru
          _
        // Predicated region
        $region21: #{decoder_block_cup.1} parent=11 // pred_check
          %p214 = pneg %p89
        $region22: #{decoder_block_cup.1} parent=11 // pred_check_branch
          %216 = sbr.rel (%p214) target = $region24
        $region23: #{decoder_block_cup.1} parent=11 // pred_region
          _
        $region24: #{decoder_block_cup.1} parent=11 // pred_fallthru
          _
        // Predicated region
        $region25: #{decoder_block_cup.1} parent=11 // pred_check
          %p217 = pneg %p110
        $region26: #{decoder_block_cup.1} parent=11 // pred_check_branch
          %219 = sbr.rel (%p217) target = $region28
        $region27: #{decoder_block_cup.1} parent=11 // pred_region
          _
        $region28: #{decoder_block_cup.1} parent=11 // pred_fallthru
          _
        // Predicated region
        $region29: #{decoder_block_cup.1} parent=11 // pred_check
          %p220 = pneg %p131
        $region30: #{decoder_block_cup.1} parent=11 // pred_check_branch
          %222 = sbr.rel (%p220) target = $region32
        $region31: #{decoder_block_cup.1} parent=11 // pred_region
          %s224 = ssub.s32 2048, 2048
          %225 = vsyncadd [#allocation8], %s224
          %s226 = sshll.u32 [#allocation7], 4
          %s227 = int_to_ptr.vmem [resolvable:$true] %s226
          %232 = dma.hbm_to_vmem [thread:$0]  %s4, 2048, %s227, [#allocation8], 128, 128, 8
        $region32: #{decoder_block_cup.1} parent=11 // pred_fallthru
          _
      $region12: #{decoder_block_cup.1} parent=5 // pred_fallthru
        _
      %p233 = scmp.lt.s32.totalorder %s14, 4
      // Predicated region
      $region33: #{decoder_block_cup.1} parent=5 // pred_check
        %p234 = pneg %p233
      $region34: #{decoder_block_cup.1} parent=5 // pred_check_branch
        %236 = sbr.rel (%p234) target = $region36
      $region35: #{decoder_block_cup.1} parent=5 // pred_region
        // Predicated region
        $region37: #{decoder_block_cup.1} parent=35 // pred_check
          %p237 = pneg %p151
        $region38: #{decoder_block_cup.1} parent=35 // pred_check_branch
          %239 = sbr.rel (%p237) target = $region40
        $region39: #{decoder_block_cup.1} parent=35 // pred_region
          %p240 = scmp.lt.s32.totalorder %s22, 1
          %s241 = scalar_select %p240, %s22, 1
          %s242 = smul.addr %s241, 11
          %s243 = smul.addr %s242, 2
          %s244 = scalar_lea.vmem %s5, %s243
        $region40: #{decoder_block_cup.1} parent=35 // pred_fallthru
          _
      $region36: #{decoder_block_cup.1} parent=5 // pred_fallthru
        _
      %p245 = scmp.le.s32.totalorder 1, %s14
      %p246 = scmp.lt.s32.totalorder %s14, 5
      %p247 = pnand %p245, %p246
      %p248 = pneg %p247
      // Predicated region
      $region41: #{decoder_block_cup.1} parent=5 // pred_check
        _
      $region42: #{decoder_block_cup.1} parent=5 // pred_check_branch
        %250 = sbr.rel (%p247) target = $region44
      $region43: #{decoder_block_cup.1} parent=5 // pred_region
        %s251 = ssub.s32 %s14, 1
        // Predicated region
        $region45: #{decoder_block_cup.1} parent=43 // pred_check
          %p252 = pneg %p68
        $region46: #{decoder_block_cup.1} parent=43 // pred_check_branch
          %254 = sbr.rel (%p252) target = $region48
        $region47: #{decoder_block_cup.1} parent=43 // pred_region
          %255 = dma.done [#allocation6], 128
        $region48: #{decoder_block_cup.1} parent=43 // pred_fallthru
          _
        // Predicated region
        $region49: #{decoder_block_cup.1} parent=43 // pred_check
          %p256 = pneg %p131
        $region50: #{decoder_block_cup.1} parent=43 // pred_check_branch
          %258 = sbr.rel (%p256) target = $region52
        $region51: #{decoder_block_cup.1} parent=43 // pred_region
          %259 = dma.done [#allocation8], 2048
        $region52: #{decoder_block_cup.1} parent=43 // pred_fallthru
          _
        %p260 = pneg %p47
        %p261 = pneg %p44
        %p262 = pneg %p68
        %p263 = pneg %p65
        %p264 = pneg %p89
        %p265 = pneg %p86
        %p266 = pneg %p110
        %p267 = pneg %p107
        %p268 = pneg %p131
        %p269 = pneg %p128
        %p270 = scmp.lt.s32.totalorder %s24, 1
        %s271 = scalar_select %p270, %s24, 1
        %s272 = smul.addr %s271, 11
        %s273 = smul.addr %s272, 2
        %s274 = scalar_lea.vmem %s5, %s273
        %p275 = pneg %p157
        %p276 = pneg %p154
        %p277 = pneg %p185
        %p278 = pneg %p182
        %s279 = smul.u32 %s23, %s24
        %p280 = scmp.lt.s32.totalorder %s279, 1
        %s281 = scalar_select %p280, %s279, 1
        %s282 = smul.addr %s281, 32
        %s283 = smul.addr %s282, 8
        %s284 = scalar_lea.vmem %s6, %s283
        %p285 = scmp.lt.s32.totalorder %s24, 1
        %s286 = scalar_select %p285, %s24, 1
        %s287 = smul.addr %s286, 11
        %s288 = smul.addr %s287, 2
        %s289 = scalar_lea.vmem %s5, %s288
        %s290 = smul.u32 %s23, %s24
        %p291 = scmp.lt.s32.totalorder %s290, 1
        %s292 = scalar_select %p291, %s290, 1
        %s293 = smul.addr %s292, 32
        %s294 = smul.addr %s293, 8
        %s295 = scalar_lea.vmem %s6, %s294
        %s296 = smul.u32 %s23, %s24
        %p298 = scmp.eq.s32.totalorder %s23, 0
        // Predicated region
        $region53: #{decoder_block_cup.1} parent=43 // pred_check
          %p299 = pneg %p298
        $region54: #{decoder_block_cup.1} parent=43 // pred_check_branch
          %301 = sbr.rel (%p299) target = $region56
        $region55: #{decoder_block_cup.1} parent=43 // pred_region
          %p302 = scmp.eq.s32.totalorder %s24, 0
          // Predicated region
          $region57: #{decoder_block_cup.1} parent=55 // pred_check
            %p303 = pneg %p302
          $region58: #{decoder_block_cup.1} parent=55 // pred_check_branch
            %305 = sbr.rel (%p303) target = $region60
          $region59: #{decoder_block_cup.1} parent=55 // pred_region
            %vm306 = vcmask 7168
            %307 = vst.msk [vmem:[#allocation3] sm:$0xff] %vm306, 0.0
            %308 = vst.msk [vmem:[#allocation4] sm:$0xff] %vm306, 0.0
          $region60: #{decoder_block_cup.1} parent=55 // pred_fallthru
            _
          %v309 = vld [vmem:[%s289] sm:$0xff]
          %v310 = vld [vmem:[%s289 + $0x8] sm:$0xff]
          %v311 = vld [vmem:[%s289 + $0x10] sm:$0x3f]
          %v312 = vld [vmem:[%s0] sm:$0xf]
          %s313 = scalar_lea.vmem %s0, 36
          %v314 = vld [vmem:[%s313] sm:$0xf]
          %v318 = vcombine.high %v309, %v309
          %v320 = vunpack.c.l.s4 1983009808
          %v321 = vunpack.c.0.s8 %v320
          %v322 = vlaneseq
          %v323 = vshrl.u32 %v322, 7
          %v324 = vsub.s32 %v321, %v323
          %v325 = vrot.slane %v309, %v324
          %v327 = vunpack.c.l.s4 1983009808
          %v328 = vunpack.c.0.s8 %v327
          %v329 = vlaneseq
          %v330 = vshrl.u32 %v329, 7
          %v331 = vsub.s32 %v328, %v330
          %v332 = vrot.slane %v318, %v331
          %v333 = vcombine.high %v325, %v325
          %v334 = vcombine.high %v332, %v332
          %v335 = vcombine.high %v310, %v310
          %v337 = vunpack.c.l.s4 1983009808
          %v338 = vunpack.c.0.s8 %v337
          %v339 = vlaneseq
          %v340 = vshrl.u32 %v339, 7
          %v341 = vsub.s32 %v338, %v340
          %v342 = vrot.slane %v310, %v341
          %v344 = vunpack.c.l.s4 1983009808
          %v345 = vunpack.c.0.s8 %v344
          %v346 = vlaneseq
          %v347 = vshrl.u32 %v346, 7
          %v348 = vsub.s32 %v345, %v347
          %v349 = vrot.slane %v335, %v348
          %v350 = vcombine.high %v342, %v342
          %v351 = vcombine.high %v349, %v349
          %v353 = vunpack.c.l.s4 1983009808
          %v354 = vunpack.c.0.s8 %v353
          %v355 = vlaneseq
          %v356 = vshrl.u32 %v355, 7
          %v357 = vsub.s32 %v354, %v356
          %v358 = vrot.slane %v311, %v357
          %vm359 = vcmask 31744
          %v361 = vsel %vm359, %v314, 0
          %vm363 = vcmask 1041408
          %v365 = vsel %vm363, %v333, 0
          %v368 = vsel %vm363, %v332, 0
          %v371 = vsel %vm363, %v334, 0
          %v374 = vsel %vm363, %v342, 0
          %v377 = vsel %vm363, %v350, 0
          %v380 = vsel %vm363, %v349, 0
          %v383 = vsel %vm363, %v351, 0
          %v386 = vsel %vm363, %v358, 0
          %388 = vmatprep.subr.bf16.mxu0 0
          %389 = vmatpush1.bf16.msra.mxu0 0
          %390 = vmatprep.subr.bf16.mxu0 0
          %391 = vmatpush1.bf16.msra.mxu0 0
          %392 = vmatprep.subr.bf16.mxu0 0
          %393 = vmatpush1.bf16.msra.mxu0 0
          %394 = vmatprep.subr.bf16.mxu0 0
          %395 = vmatpush1.bf16.msra.mxu0 0
          %396 = vmatprep.subr.bf16.mxu0 0
          %397 = vmatpush1.bf16.msra.mxu0 0
          %398 = vmatprep.subr.bf16.mxu0 0
          %399 = vmatpush1.bf16.msra.mxu0 0
          %400 = vmatprep.subr.bf16.mxu0 0
          %401 = vmatpush1.bf16.msra.mxu0 0
          %402 = vmatprep.subr.bf16.mxu0 %v368
          %403 = vmatpush1.bf16.msra.mxu0 %v365
          %404 = vmatprep.subr.bf16.mxu0 0
          %405 = vmatpush2.bf16.msra.mxu0 0
          %406 = vmatprep.subr.bf16.mxu0 0
          %407 = vmatpush2.bf16.msra.mxu0 0
          %408 = vmatprep.subr.bf16.mxu0 0
          %409 = vmatpush2.bf16.msra.mxu0 0
          %410 = vmatprep.subr.bf16.mxu0 0
          %411 = vmatpush2.bf16.msra.mxu0 0
          %412 = vmatprep.subr.bf16.mxu0 0
          %413 = vmatpush2.bf16.msra.mxu0 0
          %414 = vmatprep.subr.bf16.mxu0 0
          %415 = vmatpush2.bf16.msra.mxu0 0
          %416 = vmatprep.subr.bf16.mxu0 0
          %417 = vmatpush2.bf16.msra.mxu0 0
          %418 = vmatprep.subr.bf16.mxu0 0
          %419 = vmatpush2.bf16.msra.mxu0 0
          %420 = vmatprep.mubr.bf16.mxu0 0
          %421 = vmatmul.mubr.bf16.gmra.mxu0 %v361
          %v422 = vpop.f32.mrf.mxu0
          %v423 = vadd.f32 0.0, %v422
          %v424 = vpop.f32.mrf.mxu0
          %v425 = vadd.f32 0.0, %v424
          %v426 = vpop.f32.mrf.mxu0
          %v427 = vpop.f32.mrf.mxu0
          %428 = vdwg.mxu0
          %429 = vmatprep.subr.bf16.mxu0 0
          %430 = vmatpush1.bf16.msra.mxu0 0
          %431 = vmatprep.subr.bf16.mxu0 0
          %432 = vmatpush1.bf16.msra.mxu0 0
          %433 = vmatprep.subr.bf16.mxu0 0
          %434 = vmatpush1.bf16.msra.mxu0 0
          %435 = vmatprep.subr.bf16.mxu0 0
          %436 = vmatpush1.bf16.msra.mxu0 0
          %437 = vmatprep.subr.bf16.mxu0 0
          %438 = vmatpush1.bf16.msra.mxu0 0
          %439 = vmatprep.subr.bf16.mxu0 0
          %440 = vmatpush1.bf16.msra.mxu0 0
          %441 = vmatprep.subr.bf16.mxu0 0
          %442 = vmatpush1.bf16.msra.mxu0 0
          %443 = vmatprep.subr.bf16.mxu0 %v374
          %444 = vmatpush1.bf16.msra.mxu0 %v371
          %445 = vmatprep.subr.bf16.mxu0 0
          %446 = vmatpush2.bf16.msra.mxu0 0
          %447 = vmatprep.subr.bf16.mxu0 0
          %448 = vmatpush2.bf16.msra.mxu0 0
          %449 = vmatprep.subr.bf16.mxu0 0
          %450 = vmatpush2.bf16.msra.mxu0 0
          %451 = vmatprep.subr.bf16.mxu0 0
          %452 = vmatpush2.bf16.msra.mxu0 0
          %453 = vmatprep.subr.bf16.mxu0 0
          %454 = vmatpush2.bf16.msra.mxu0 0
          %455 = vmatprep.subr.bf16.mxu0 0
          %456 = vmatpush2.bf16.msra.mxu0 0
          %457 = vmatprep.subr.bf16.mxu0 0
          %458 = vmatpush2.bf16.msra.mxu0 0
          %459 = vmatprep.subr.bf16.mxu0 0
          %460 = vmatpush2.bf16.msra.mxu0 0
          %461 = vmatprep.mubr.bf16.mxu0 0
          %462 = vmatmul.mubr.bf16.gmra.mxu0 %v361
          %v463 = vpop.f32.mrf.mxu0
          %v464 = vadd.f32 0.0, %v463
          %v465 = vpop.f32.mrf.mxu0
          %v466 = vadd.f32 0.0, %v465
          %v467 = vpop.f32.mrf.mxu0
          %v468 = vpop.f32.mrf.mxu0
          %469 = vdwg.mxu0
          %470 = vmatprep.subr.bf16.mxu0 0
          %471 = vmatpush1.bf16.msra.mxu0 0
          %472 = vmatprep.subr.bf16.mxu0 0
          %473 = vmatpush1.bf16.msra.mxu0 0
          %474 = vmatprep.subr.bf16.mxu0 0
          %475 = vmatpush1.bf16.msra.mxu0 0
          %476 = vmatprep.subr.bf16.mxu0 0
          %477 = vmatpush1.bf16.msra.mxu0 0
          %478 = vmatprep.subr.bf16.mxu0 0
          %479 = vmatpush1.bf16.msra.mxu0 0
          %480 = vmatprep.subr.bf16.mxu0 0
          %481 = vmatpush1.bf16.msra.mxu0 0
          %482 = vmatprep.subr.bf16.mxu0 0
          %483 = vmatpush1.bf16.msra.mxu0 0
          %484 = vmatprep.subr.bf16.mxu0 %v380
          %485 = vmatpush1.bf16.msra.mxu0 %v377
          %486 = vmatprep.subr.bf16.mxu0 0
          %487 = vmatpush2.bf16.msra.mxu0 0
          %488 = vmatprep.subr.bf16.mxu0 0
          %489 = vmatpush2.bf16.msra.mxu0 0
          %490 = vmatprep.subr.bf16.mxu0 0
          %491 = vmatpush2.bf16.msra.mxu0 0
          %492 = vmatprep.subr.bf16.mxu0 0
          %493 = vmatpush2.bf16.msra.mxu0 0
          %494 = vmatprep.subr.bf16.mxu0 0
          %495 = vmatpush2.bf16.msra.mxu0 0
          %496 = vmatprep.subr.bf16.mxu0 0
          %497 = vmatpush2.bf16.msra.mxu0 0
          %498 = vmatprep.subr.bf16.mxu0 0
          %499 = vmatpush2.bf16.msra.mxu0 0
          %500 = vmatprep.subr.bf16.mxu0 0
          %501 = vmatpush2.bf16.msra.mxu0 0
          %502 = vmatprep.mubr.bf16.mxu0 0
          %503 = vmatmul.mubr.bf16.gmra.mxu0 %v361
          %v504 = vpop.f32.mrf.mxu0
          %v505 = vadd.f32 0.0, %v504
          %v506 = vpop.f32.mrf.mxu0
          %v507 = vadd.f32 0.0, %v506
          %v508 = vpop.f32.mrf.mxu0
          %v509 = vpop.f32.mrf.mxu0
          %510 = vdwg.mxu0
          %511 = vmatprep.subr.bf16.mxu0 0
          %512 = vmatpush1.bf16.msra.mxu0 0
          %513 = vmatprep.subr.bf16.mxu0 0
          %514 = vmatpush1.bf16.msra.mxu0 0
          %515 = vmatprep.subr.bf16.mxu0 0
          %516 = vmatpush1.bf16.msra.mxu0 0
          %517 = vmatprep.subr.bf16.mxu0 0
          %518 = vmatpush1.bf16.msra.mxu0 0
          %519 = vmatprep.subr.bf16.mxu0 0
          %520 = vmatpush1.bf16.msra.mxu0 0
          %521 = vmatprep.subr.bf16.mxu0 0
          %522 = vmatpush1.bf16.msra.mxu0 0
          %523 = vmatprep.subr.bf16.mxu0 0
          %524 = vmatpush1.bf16.msra.mxu0 0
          %525 = vmatprep.subr.bf16.mxu0 %v386
          %526 = vmatpush1.bf16.msra.mxu0 %v383
          %527 = vmatprep.subr.bf16.mxu0 0
          %528 = vmatpush2.bf16.msra.mxu0 0
          %529 = vmatprep.subr.bf16.mxu0 0
          %530 = vmatpush2.bf16.msra.mxu0 0
          %531 = vmatprep.subr.bf16.mxu0 0
          %532 = vmatpush2.bf16.msra.mxu0 0
          %533 = vmatprep.subr.bf16.mxu0 0
          %534 = vmatpush2.bf16.msra.mxu0 0
          %535 = vmatprep.subr.bf16.mxu0 0
          %536 = vmatpush2.bf16.msra.mxu0 0
          %537 = vmatprep.subr.bf16.mxu0 0
          %538 = vmatpush2.bf16.msra.mxu0 0
          %539 = vmatprep.subr.bf16.mxu0 0
          %540 = vmatpush2.bf16.msra.mxu0 0
          %541 = vmatprep.subr.bf16.mxu0 0
          %542 = vmatpush2.bf16.msra.mxu0 0
          %543 = vmatprep.mubr.bf16.mxu0 0
          %544 = vmatmul.mubr.bf16.gmra.mxu0 %v361
          %v545 = vpop.f32.mrf.mxu0
          %v546 = vadd.f32 0.0, %v545
          %v547 = vpop.f32.mrf.mxu0
          %v548 = vadd.f32 0.0, %v547
          %v549 = vpop.f32.mrf.mxu0
          %v550 = vpop.f32.mrf.mxu0
          %551 = vdwg.mxu0
          %v553 = vsel %vm359, %v312, 0
          %v556 = vsel %vm363, %v325, 0
          %558 = vmatprep.subr.bf16.mxu0 0
          %559 = vmatpush1.bf16.msra.mxu0 0
          %560 = vmatprep.subr.bf16.mxu0 0
          %561 = vmatpush1.bf16.msra.mxu0 0
          %562 = vmatprep.subr.bf16.mxu0 0
          %563 = vmatpush1.bf16.msra.mxu0 0
          %564 = vmatprep.subr.bf16.mxu0 0
          %565 = vmatpush1.bf16.msra.mxu0 0
          %566 = vmatprep.subr.bf16.mxu0 0
          %567 = vmatpush1.bf16.msra.mxu0 0
          %568 = vmatprep.subr.bf16.mxu0 0
          %569 = vmatpush1.bf16.msra.mxu0 0
          %570 = vmatprep.subr.bf16.mxu0 0
          %571 = vmatpush1.bf16.msra.mxu0 0
          %572 = vmatprep.subr.bf16.mxu0 %v365
          %573 = vmatpush1.bf16.msra.mxu0 %v556
          %574 = vmatprep.subr.bf16.mxu0 0
          %575 = vmatpush2.bf16.msra.mxu0 0
          %576 = vmatprep.subr.bf16.mxu0 0
          %577 = vmatpush2.bf16.msra.mxu0 0
          %578 = vmatprep.subr.bf16.mxu0 0
          %579 = vmatpush2.bf16.msra.mxu0 0
          %580 = vmatprep.subr.bf16.mxu0 0
          %581 = vmatpush2.bf16.msra.mxu0 0
          %582 = vmatprep.subr.bf16.mxu0 0
          %583 = vmatpush2.bf16.msra.mxu0 0
          %584 = vmatprep.subr.bf16.mxu0 0
          %585 = vmatpush2.bf16.msra.mxu0 0
          %586 = vmatprep.subr.bf16.mxu0 0
          %587 = vmatpush2.bf16.msra.mxu0 0
          %588 = vmatprep.subr.bf16.mxu0 0
          %589 = vmatpush2.bf16.msra.mxu0 0
          %590 = vmatprep.mubr.bf16.mxu0 0
          %591 = vmatmul.mubr.bf16.gmra.mxu0 %v553
          %v592 = vpop.f32.mrf.mxu0
          %v593 = vadd.f32 %v423, %v592
          %v594 = vpop.f32.mrf.mxu0
          %v595 = vadd.f32 %v425, %v594
          %v596 = vpop.f32.mrf.mxu0
          %v597 = vpop.f32.mrf.mxu0
          %598 = vdwg.mxu0
          %599 = vmatprep.subr.bf16.mxu0 0
          %600 = vmatpush1.bf16.msra.mxu0 0
          %601 = vmatprep.subr.bf16.mxu0 0
          %602 = vmatpush1.bf16.msra.mxu0 0
          %603 = vmatprep.subr.bf16.mxu0 0
          %604 = vmatpush1.bf16.msra.mxu0 0
          %605 = vmatprep.subr.bf16.mxu0 0
          %606 = vmatpush1.bf16.msra.mxu0 0
          %607 = vmatprep.subr.bf16.mxu0 0
          %608 = vmatpush1.bf16.msra.mxu0 0
          %609 = vmatprep.subr.bf16.mxu0 0
          %610 = vmatpush1.bf16.msra.mxu0 0
          %611 = vmatprep.subr.bf16.mxu0 0
          %612 = vmatpush1.bf16.msra.mxu0 0
          %613 = vmatprep.subr.bf16.mxu0 %v371
          %614 = vmatpush1.bf16.msra.mxu0 %v368
          %615 = vmatprep.subr.bf16.mxu0 0
          %616 = vmatpush2.bf16.msra.mxu0 0
          %617 = vmatprep.subr.bf16.mxu0 0
          %618 = vmatpush2.bf16.msra.mxu0 0
          %619 = vmatprep.subr.bf16.mxu0 0
          %620 = vmatpush2.bf16.msra.mxu0 0
          %621 = vmatprep.subr.bf16.mxu0 0
          %622 = vmatpush2.bf16.msra.mxu0 0
          %623 = vmatprep.subr.bf16.mxu0 0
          %624 = vmatpush2.bf16.msra.mxu0 0
          %625 = vmatprep.subr.bf16.mxu0 0
          %626 = vmatpush2.bf16.msra.mxu0 0
          %627 = vmatprep.subr.bf16.mxu0 0
          %628 = vmatpush2.bf16.msra.mxu0 0
          %629 = vmatprep.subr.bf16.mxu0 0
          %630 = vmatpush2.bf16.msra.mxu0 0
          %631 = vmatprep.mubr.bf16.mxu0 0
          %632 = vmatmul.mubr.bf16.gmra.mxu0 %v553
          %v633 = vpop.f32.mrf.mxu0
          %v634 = vadd.f32 %v464, %v633
          %v635 = vpop.f32.mrf.mxu0
          %v636 = vadd.f32 %v466, %v635
          %v637 = vpop.f32.mrf.mxu0
          %v638 = vpop.f32.mrf.mxu0
          %639 = vdwg.mxu0
          %640 = vmatprep.subr.bf16.mxu0 0
          %641 = vmatpush1.bf16.msra.mxu0 0
          %642 = vmatprep.subr.bf16.mxu0 0
          %643 = vmatpush1.bf16.msra.mxu0 0
          %644 = vmatprep.subr.bf16.mxu0 0
          %645 = vmatpush1.bf16.msra.mxu0 0
          %646 = vmatprep.subr.bf16.mxu0 0
          %647 = vmatpush1.bf16.msra.mxu0 0
          %648 = vmatprep.subr.bf16.mxu0 0
          %649 = vmatpush1.bf16.msra.mxu0 0
          %650 = vmatprep.subr.bf16.mxu0 0
          %651 = vmatpush1.bf16.msra.mxu0 0
          %652 = vmatprep.subr.bf16.mxu0 0
          %653 = vmatpush1.bf16.msra.mxu0 0
          %654 = vmatprep.subr.bf16.mxu0 %v377
          %655 = vmatpush1.bf16.msra.mxu0 %v374
          %656 = vmatprep.subr.bf16.mxu0 0
          %657 = vmatpush2.bf16.msra.mxu0 0
          %658 = vmatprep.subr.bf16.mxu0 0
          %659 = vmatpush2.bf16.msra.mxu0 0
          %660 = vmatprep.subr.bf16.mxu0 0
          %661 = vmatpush2.bf16.msra.mxu0 0
          %662 = vmatprep.subr.bf16.mxu0 0
          %663 = vmatpush2.bf16.msra.mxu0 0
          %664 = vmatprep.subr.bf16.mxu0 0
          %665 = vmatpush2.bf16.msra.mxu0 0
          %666 = vmatprep.subr.bf16.mxu0 0
          %667 = vmatpush2.bf16.msra.mxu0 0
          %668 = vmatprep.subr.bf16.mxu0 0
          %669 = vmatpush2.bf16.msra.mxu0 0
          %670 = vmatprep.subr.bf16.mxu0 0
          %671 = vmatpush2.bf16.msra.mxu0 0
          %672 = vmatprep.mubr.bf16.mxu0 0
          %673 = vmatmul.mubr.bf16.gmra.mxu0 %v553
          %v674 = vpop.f32.mrf.mxu0
          %v675 = vadd.f32 %v505, %v674
          %v676 = vpop.f32.mrf.mxu0
          %v677 = vadd.f32 %v507, %v676
          %v678 = vpop.f32.mrf.mxu0
          %v679 = vpop.f32.mrf.mxu0
          %680 = vdwg.mxu0
          %681 = vmatprep.subr.bf16.mxu0 0
          %682 = vmatpush1.bf16.msra.mxu0 0
          %683 = vmatprep.subr.bf16.mxu0 0
          %684 = vmatpush1.bf16.msra.mxu0 0
          %685 = vmatprep.subr.bf16.mxu0 0
          %686 = vmatpush1.bf16.msra.mxu0 0
          %687 = vmatprep.subr.bf16.mxu0 0
          %688 = vmatpush1.bf16.msra.mxu0 0
          %689 = vmatprep.subr.bf16.mxu0 0
          %690 = vmatpush1.bf16.msra.mxu0 0
          %691 = vmatprep.subr.bf16.mxu0 0
          %692 = vmatpush1.bf16.msra.mxu0 0
          %693 = vmatprep.subr.bf16.mxu0 0
          %694 = vmatpush1.bf16.msra.mxu0 0
          %695 = vmatprep.subr.bf16.mxu0 %v383
          %696 = vmatpush1.bf16.msra.mxu0 %v380
          %697 = vmatprep.subr.bf16.mxu0 0
          %698 = vmatpush2.bf16.msra.mxu0 0
          %699 = vmatprep.subr.bf16.mxu0 0
          %700 = vmatpush2.bf16.msra.mxu0 0
          %701 = vmatprep.subr.bf16.mxu0 0
          %702 = vmatpush2.bf16.msra.mxu0 0
          %703 = vmatprep.subr.bf16.mxu0 0
          %704 = vmatpush2.bf16.msra.mxu0 0
          %705 = vmatprep.subr.bf16.mxu0 0
          %706 = vmatpush2.bf16.msra.mxu0 0
          %707 = vmatprep.subr.bf16.mxu0 0
          %708 = vmatpush2.bf16.msra.mxu0 0
          %709 = vmatprep.subr.bf16.mxu0 0
          %710 = vmatpush2.bf16.msra.mxu0 0
          %711 = vmatprep.subr.bf16.mxu0 0
          %712 = vmatpush2.bf16.msra.mxu0 0
          %713 = vmatprep.mubr.bf16.mxu0 0
          %714 = vmatmul.mubr.bf16.gmra.mxu0 %v553
          %v715 = vpop.f32.mrf.mxu0
          %v716 = vadd.f32 %v546, %v715
          %v717 = vpop.f32.mrf.mxu0
          %v718 = vadd.f32 %v548, %v717
          %v719 = vpop.f32.mrf.mxu0
          %v720 = vpop.f32.mrf.mxu0
          %721 = vdwg.mxu0
          %s722 = scalar_lea.vmem %s0, 72
          %v723 = vld [vmem:[%s722] sm:$0xf]
          %v724 = vcombine.high %v358, %v358
          %v726 = vsel %vm359, %v723, 0
          %v729 = vsel %vm363, %v724, 0
          %731 = vmatprep.subr.bf16.mxu0 0
          %732 = vmatpush1.bf16.msra.mxu0 0
          %733 = vmatprep.subr.bf16.mxu0 0
          %734 = vmatpush1.bf16.msra.mxu0 0
          %735 = vmatprep.subr.bf16.mxu0 0
          %736 = vmatpush1.bf16.msra.mxu0 0
          %737 = vmatprep.subr.bf16.mxu0 0
          %738 = vmatpush1.bf16.msra.mxu0 0
          %739 = vmatprep.subr.bf16.mxu0 0
          %740 = vmatpush1.bf16.msra.mxu0 0
          %741 = vmatprep.subr.bf16.mxu0 0
          %742 = vmatpush1.bf16.msra.mxu0 0
          %743 = vmatprep.subr.bf16.mxu0 0
          %744 = vmatpush1.bf16.msra.mxu0 0
          %745 = vmatprep.subr.bf16.mxu0 %v371
          %746 = vmatpush1.bf16.msra.mxu0 %v368
          %747 = vmatprep.subr.bf16.mxu0 0
          %748 = vmatpush2.bf16.msra.mxu0 0
          %749 = vmatprep.subr.bf16.mxu0 0
          %750 = vmatpush2.bf16.msra.mxu0 0
          %751 = vmatprep.subr.bf16.mxu0 0
          %752 = vmatpush2.bf16.msra.mxu0 0
          %753 = vmatprep.subr.bf16.mxu0 0
          %754 = vmatpush2.bf16.msra.mxu0 0
          %755 = vmatprep.subr.bf16.mxu0 0
          %756 = vmatpush2.bf16.msra.mxu0 0
          %757 = vmatprep.subr.bf16.mxu0 0
          %758 = vmatpush2.bf16.msra.mxu0 0
          %759 = vmatprep.subr.bf16.mxu0 0
          %760 = vmatpush2.bf16.msra.mxu0 0
          %761 = vmatprep.subr.bf16.mxu0 0
          %762 = vmatpush2.bf16.msra.mxu0 0
          %763 = vmatprep.mubr.bf16.mxu0 0
          %764 = vmatmul.mubr.bf16.gmra.mxu0 %v726
          %v765 = vpop.f32.mrf.mxu0
          %v766 = vadd.f32 0.0, %v765
          %v767 = vpop.f32.mrf.mxu0
          %v768 = vadd.f32 0.0, %v767
          %v769 = vpop.f32.mrf.mxu0
          %v770 = vpop.f32.mrf.mxu0
          %771 = vdwg.mxu0
          %772 = vmatprep.subr.bf16.mxu0 0
          %773 = vmatpush1.bf16.msra.mxu0 0
          %774 = vmatprep.subr.bf16.mxu0 0
          %775 = vmatpush1.bf16.msra.mxu0 0
          %776 = vmatprep.subr.bf16.mxu0 0
          %777 = vmatpush1.bf16.msra.mxu0 0
          %778 = vmatprep.subr.bf16.mxu0 0
          %779 = vmatpush1.bf16.msra.mxu0 0
          %780 = vmatprep.subr.bf16.mxu0 0
          %781 = vmatpush1.bf16.msra.mxu0 0
          %782 = vmatprep.subr.bf16.mxu0 0
          %783 = vmatpush1.bf16.msra.mxu0 0
          %784 = vmatprep.subr.bf16.mxu0 0
          %785 = vmatpush1.bf16.msra.mxu0 0
          %786 = vmatprep.subr.bf16.mxu0 %v377
          %787 = vmatpush1.bf16.msra.mxu0 %v374
          %788 = vmatprep.subr.bf16.mxu0 0
          %789 = vmatpush2.bf16.msra.mxu0 0
          %790 = vmatprep.subr.bf16.mxu0 0
          %791 = vmatpush2.bf16.msra.mxu0 0
          %792 = vmatprep.subr.bf16.mxu0 0
          %793 = vmatpush2.bf16.msra.mxu0 0
          %794 = vmatprep.subr.bf16.mxu0 0
          %795 = vmatpush2.bf16.msra.mxu0 0
          %796 = vmatprep.subr.bf16.mxu0 0
          %797 = vmatpush2.bf16.msra.mxu0 0
          %798 = vmatprep.subr.bf16.mxu0 0
          %799 = vmatpush2.bf16.msra.mxu0 0
          %800 = vmatprep.subr.bf16.mxu0 0
          %801 = vmatpush2.bf16.msra.mxu0 0
          %802 = vmatprep.subr.bf16.mxu0 0
          %803 = vmatpush2.bf16.msra.mxu0 0
          %804 = vmatprep.mubr.bf16.mxu0 0
          %805 = vmatmul.mubr.bf16.gmra.mxu0 %v726
          %v806 = vpop.f32.mrf.mxu0
          %v807 = vadd.f32 0.0, %v806
          %v808 = vpop.f32.mrf.mxu0
          %v809 = vadd.f32 0.0, %v808
          %v810 = vpop.f32.mrf.mxu0
          %v811 = vpop.f32.mrf.mxu0
          %812 = vdwg.mxu0
          %813 = vmatprep.subr.bf16.mxu0 0
          %814 = vmatpush1.bf16.msra.mxu0 0
          %815 = vmatprep.subr.bf16.mxu0 0
          %816 = vmatpush1.bf16.msra.mxu0 0
          %817 = vmatprep.subr.bf16.mxu0 0
          %818 = vmatpush1.bf16.msra.mxu0 0
          %819 = vmatprep.subr.bf16.mxu0 0
          %820 = vmatpush1.bf16.msra.mxu0 0
          %821 = vmatprep.subr.bf16.mxu0 0
          %822 = vmatpush1.bf16.msra.mxu0 0
          %823 = vmatprep.subr.bf16.mxu0 0
          %824 = vmatpush1.bf16.msra.mxu0 0
          %825 = vmatprep.subr.bf16.mxu0 0
          %826 = vmatpush1.bf16.msra.mxu0 0
          %827 = vmatprep.subr.bf16.mxu0 %v383
          %828 = vmatpush1.bf16.msra.mxu0 %v380
          %829 = vmatprep.subr.bf16.mxu0 0
          %830 = vmatpush2.bf16.msra.mxu0 0
          %831 = vmatprep.subr.bf16.mxu0 0
          %832 = vmatpush2.bf16.msra.mxu0 0
          %833 = vmatprep.subr.bf16.mxu0 0
          %834 = vmatpush2.bf16.msra.mxu0 0
          %835 = vmatprep.subr.bf16.mxu0 0
          %836 = vmatpush2.bf16.msra.mxu0 0
          %837 = vmatprep.subr.bf16.mxu0 0
          %838 = vmatpush2.bf16.msra.mxu0 0
          %839 = vmatprep.subr.bf16.mxu0 0
          %840 = vmatpush2.bf16.msra.mxu0 0
          %841 = vmatprep.subr.bf16.mxu0 0
          %842 = vmatpush2.bf16.msra.mxu0 0
          %843 = vmatprep.subr.bf16.mxu0 0
          %844 = vmatpush2.bf16.msra.mxu0 0
          %845 = vmatprep.mubr.bf16.mxu0 0
          %846 = vmatmul.mubr.bf16.gmra.mxu0 %v726
          %v847 = vpop.f32.mrf.mxu0
          %v848 = vadd.f32 0.0, %v847
          %v849 = vpop.f32.mrf.mxu0
          %v850 = vadd.f32 0.0, %v849
          %v851 = vpop.f32.mrf.mxu0
          %v852 = vpop.f32.mrf.mxu0
          %853 = vdwg.mxu0
          %854 = vmatprep.subr.bf16.mxu0 0
          %855 = vmatpush1.bf16.msra.mxu0 0
          %856 = vmatprep.subr.bf16.mxu0 0
          %857 = vmatpush1.bf16.msra.mxu0 0
          %858 = vmatprep.subr.bf16.mxu0 0
          %859 = vmatpush1.bf16.msra.mxu0 0
          %860 = vmatprep.subr.bf16.mxu0 0
          %861 = vmatpush1.bf16.msra.mxu0 0
          %862 = vmatprep.subr.bf16.mxu0 0
          %863 = vmatpush1.bf16.msra.mxu0 0
          %864 = vmatprep.subr.bf16.mxu0 0
          %865 = vmatpush1.bf16.msra.mxu0 0
          %866 = vmatprep.subr.bf16.mxu0 0
          %867 = vmatpush1.bf16.msra.mxu0 0
          %868 = vmatprep.subr.bf16.mxu0 %v729
          %869 = vmatpush1.bf16.msra.mxu0 %v386
          %870 = vmatprep.subr.bf16.mxu0 0
          %871 = vmatpush2.bf16.msra.mxu0 0
          %872 = vmatprep.subr.bf16.mxu0 0
          %873 = vmatpush2.bf16.msra.mxu0 0
          %874 = vmatprep.subr.bf16.mxu0 0
          %875 = vmatpush2.bf16.msra.mxu0 0
          %876 = vmatprep.subr.bf16.mxu0 0
          %877 = vmatpush2.bf16.msra.mxu0 0
          %878 = vmatprep.subr.bf16.mxu0 0
          %879 = vmatpush2.bf16.msra.mxu0 0
          %880 = vmatprep.subr.bf16.mxu0 0
          %881 = vmatpush2.bf16.msra.mxu0 0
          %882 = vmatprep.subr.bf16.mxu0 0
          %883 = vmatpush2.bf16.msra.mxu0 0
          %884 = vmatprep.subr.bf16.mxu0 0
          %885 = vmatpush2.bf16.msra.mxu0 0
          %886 = vmatprep.mubr.bf16.mxu0 0
          %887 = vmatmul.mubr.bf16.gmra.mxu0 %v726
          %v888 = vpop.f32.mrf.mxu0
          %v889 = vadd.f32 0.0, %v888
          %v890 = vpop.f32.mrf.mxu0
          %v891 = vadd.f32 0.0, %v890
          %v892 = vpop.f32.mrf.mxu0
          %v893 = vpop.f32.mrf.mxu0
          %894 = vdwg.mxu0
          %v895 = vadd.f32 %v593, %v766
          %v896 = vadd.f32 %v595, %v768
          %v897 = vadd.f32 %v634, %v807
          %v898 = vadd.f32 %v636, %v809
          %v899 = vadd.f32 %v675, %v848
          %v900 = vadd.f32 %v677, %v850
          %v901 = vadd.f32 %v716, %v889
          %v902 = vadd.f32 %v718, %v891
          %s903 = scalar_lea.vmem %s0, 4
          %v904 = vld [vmem:[%s903] sm:$0xf]
          %905 = vrot.lane.b32.xlu0 %v325, 127
          %v906 = vpop.permute.xlu0 %905
          %907 = vrot.lane.b32.xlu0 %v333, 127
          %v908 = vpop.permute.xlu0 %907
          %909 = vrot.lane.b32.xlu0 %v332, 127
          %v910 = vpop.permute.xlu0 %909
          %911 = vrot.lane.b32.xlu0 %v334, 127
          %v912 = vpop.permute.xlu0 %911
          %913 = vrot.lane.b32.xlu0 %v342, 127
          %v914 = vpop.permute.xlu0 %913
          %915 = vrot.lane.b32.xlu0 %v350, 127
          %v916 = vpop.permute.xlu0 %915
          %917 = vrot.lane.b32.xlu0 %v349, 127
          %v918 = vpop.permute.xlu0 %917
          %919 = vrot.lane.b32.xlu0 %v351, 127
          %v920 = vpop.permute.xlu0 %919
          %921 = vrot.lane.b32.xlu0 %v358, 127
          %v922 = vpop.permute.xlu0 %921
          %vm923 = vcmask 1039360
          %v924 = vsel %vm923, %v906, %v908
          %v925 = vsel %vm923, %v908, %v910
          %v926 = vsel %vm923, %v910, %v912
          %v927 = vsel %vm923, %v912, %v914
          %v928 = vsel %vm923, %v914, %v916
          %v929 = vsel %vm923, %v916, %v918
          %v930 = vsel %vm923, %v918, %v920
          %v931 = vsel %vm923, %v920, %v922
          %v933 = vsel %vm359, %v904, 0
          %v936 = vsel %vm363, %v924, 0
          %v939 = vsel %vm363, %v925, 0
          %v942 = vsel %vm363, %v926, 0
          %v945 = vsel %vm363, %v927, 0
          %v948 = vsel %vm363, %v928, 0
          %v951 = vsel %vm363, %v929, 0
          %v954 = vsel %vm363, %v930, 0
          %v957 = vsel %vm363, %v931, 0
          %959 = vmatprep.subr.bf16.mxu0 0
          %960 = vmatpush1.bf16.msra.mxu0 0
          %961 = vmatprep.subr.bf16.mxu0 0
          %962 = vmatpush1.bf16.msra.mxu0 0
          %963 = vmatprep.subr.bf16.mxu0 0
          %964 = vmatpush1.bf16.msra.mxu0 0
          %965 = vmatprep.subr.bf16.mxu0 0
          %966 = vmatpush1.bf16.msra.mxu0 0
          %967 = vmatprep.subr.bf16.mxu0 0
          %968 = vmatpush1.bf16.msra.mxu0 0
          %969 = vmatprep.subr.bf16.mxu0 0
          %970 = vmatpush1.bf16.msra.mxu0 0
          %971 = vmatprep.subr.bf16.mxu0 0
          %972 = vmatpush1.bf16.msra.mxu0 0
          %973 = vmatprep.subr.bf16.mxu0 %v939
          %974 = vmatpush1.bf16.msra.mxu0 %v936
          %975 = vmatprep.subr.bf16.mxu0 0
          %976 = vmatpush2.bf16.msra.mxu0 0
          %977 = vmatprep.subr.bf16.mxu0 0
          %978 = vmatpush2.bf16.msra.mxu0 0
          %979 = vmatprep.subr.bf16.mxu0 0
          %980 = vmatpush2.bf16.msra.mxu0 0
          %981 = vmatprep.subr.bf16.mxu0 0
          %982 = vmatpush2.bf16.msra.mxu0 0
          %983 = vmatprep.subr.bf16.mxu0 0
          %984 = vmatpush2.bf16.msra.mxu0 0
          %985 = vmatprep.subr.bf16.mxu0 0
          %986 = vmatpush2.bf16.msra.mxu0 0
          %987 = vmatprep.subr.bf16.mxu0 0
          %988 = vmatpush2.bf16.msra.mxu0 0
          %989 = vmatprep.subr.bf16.mxu0 0
          %990 = vmatpush2.bf16.msra.mxu0 0
          %991 = vmatprep.mubr.bf16.mxu0 0
          %992 = vmatmul.mubr.bf16.gmra.mxu0 %v933
          %v993 = vpop.f32.mrf.mxu0
          %v994 = vadd.f32 0.0, %v993
          %v995 = vpop.f32.mrf.mxu0
          %v996 = vadd.f32 0.0, %v995
          %v997 = vpop.f32.mrf.mxu0
          %v998 = vpop.f32.mrf.mxu0
          %999 = vdwg.mxu0
          %1000 = vmatprep.subr.bf16.mxu0 0
          %1001 = vmatpush1.bf16.msra.mxu0 0
          %1002 = vmatprep.subr.bf16.mxu0 0
          %1003 = vmatpush1.bf16.msra.mxu0 0
          %1004 = vmatprep.subr.bf16.mxu0 0
          %1005 = vmatpush1.bf16.msra.mxu0 0
          %1006 = vmatprep.subr.bf16.mxu0 0
          %1007 = vmatpush1.bf16.msra.mxu0 0
          %1008 = vmatprep.subr.bf16.mxu0 0
          %1009 = vmatpush1.bf16.msra.mxu0 0
          %1010 = vmatprep.subr.bf16.mxu0 0
          %1011 = vmatpush1.bf16.msra.mxu0 0
          %1012 = vmatprep.subr.bf16.mxu0 0
          %1013 = vmatpush1.bf16.msra.mxu0 0
          %1014 = vmatprep.subr.bf16.mxu0 %v945
          %1015 = vmatpush1.bf16.msra.mxu0 %v942
          %1016 = vmatprep.subr.bf16.mxu0 0
          %1017 = vmatpush2.bf16.msra.mxu0 0
          %1018 = vmatprep.subr.bf16.mxu0 0
          %1019 = vmatpush2.bf16.msra.mxu0 0
          %1020 = vmatprep.subr.bf16.mxu0 0
          %1021 = vmatpush2.bf16.msra.mxu0 0
          %1022 = vmatprep.subr.bf16.mxu0 0
          %1023 = vmatpush2.bf16.msra.mxu0 0
          %1024 = vmatprep.subr.bf16.mxu0 0
          %1025 = vmatpush2.bf16.msra.mxu0 0
          %1026 = vmatprep.subr.bf16.mxu0 0
          %1027 = vmatpush2.bf16.msra.mxu0 0
          %1028 = vmatprep.subr.bf16.mxu0 0
          %1029 = vmatpush2.bf16.msra.mxu0 0
          %1030 = vmatprep.subr.bf16.mxu0 0
          %1031 = vmatpush2.bf16.msra.mxu0 0
          %1032 = vmatprep.mubr.bf16.mxu0 0
          %1033 = vmatmul.mubr.bf16.gmra.mxu0 %v933
          %v1034 = vpop.f32.mrf.mxu0
          %v1035 = vadd.f32 0.0, %v1034
          %v1036 = vpop.f32.mrf.mxu0
          %v1037 = vadd.f32 0.0, %v1036
          %v1038 = vpop.f32.mrf.mxu0
          %v1039 = vpop.f32.mrf.mxu0
          %1040 = vdwg.mxu0
          %1041 = vmatprep.subr.bf16.mxu0 0
          %1042 = vmatpush1.bf16.msra.mxu0 0
          %1043 = vmatprep.subr.bf16.mxu0 0
          %1044 = vmatpush1.bf16.msra.mxu0 0
          %1045 = vmatprep.subr.bf16.mxu0 0
          %1046 = vmatpush1.bf16.msra.mxu0 0
          %1047 = vmatprep.subr.bf16.mxu0 0
          %1048 = vmatpush1.bf16.msra.mxu0 0
          %1049 = vmatprep.subr.bf16.mxu0 0
          %1050 = vmatpush1.bf16.msra.mxu0 0
          %1051 = vmatprep.subr.bf16.mxu0 0
          %1052 = vmatpush1.bf16.msra.mxu0 0
          %1053 = vmatprep.subr.bf16.mxu0 0
          %1054 = vmatpush1.bf16.msra.mxu0 0
          %1055 = vmatprep.subr.bf16.mxu0 %v951
          %1056 = vmatpush1.bf16.msra.mxu0 %v948
          %1057 = vmatprep.subr.bf16.mxu0 0
          %1058 = vmatpush2.bf16.msra.mxu0 0
          %1059 = vmatprep.subr.bf16.mxu0 0
          %1060 = vmatpush2.bf16.msra.mxu0 0
          %1061 = vmatprep.subr.bf16.mxu0 0
          %1062 = vmatpush2.bf16.msra.mxu0 0
          %1063 = vmatprep.subr.bf16.mxu0 0
          %1064 = vmatpush2.bf16.msra.mxu0 0
          %1065 = vmatprep.subr.bf16.mxu0 0
          %1066 = vmatpush2.bf16.msra.mxu0 0
          %1067 = vmatprep.subr.bf16.mxu0 0
          %1068 = vmatpush2.bf16.msra.mxu0 0
          %1069 = vmatprep.subr.bf16.mxu0 0
          %1070 = vmatpush2.bf16.msra.mxu0 0
          %1071 = vmatprep.subr.bf16.mxu0 0
          %1072 = vmatpush2.bf16.msra.mxu0 0
          %1073 = vmatprep.mubr.bf16.mxu0 0
          %1074 = vmatmul.mubr.bf16.gmra.mxu0 %v933
          %v1075 = vpop.f32.mrf.mxu0
          %v1076 = vadd.f32 0.0, %v1075
          %v1077 = vpop.f32.mrf.mxu0
          %v1078 = vadd.f32 0.0, %v1077
          %v1079 = vpop.f32.mrf.mxu0
          %v1080 = vpop.f32.mrf.mxu0
          %1081 = vdwg.mxu0
          %1082 = vmatprep.subr.bf16.mxu0 0
          %1083 = vmatpush1.bf16.msra.mxu0 0
          %1084 = vmatprep.subr.bf16.mxu0 0
          %1085 = vmatpush1.bf16.msra.mxu0 0
          %1086 = vmatprep.subr.bf16.mxu0 0
          %1087 = vmatpush1.bf16.msra.mxu0 0
          %1088 = vmatprep.subr.bf16.mxu0 0
          %1089 = vmatpush1.bf16.msra.mxu0 0
          %1090 = vmatprep.subr.bf16.mxu0 0
          %1091 = vmatpush1.bf16.msra.mxu0 0
          %1092 = vmatprep.subr.bf16.mxu0 0
          %1093 = vmatpush1.bf16.msra.mxu0 0
          %1094 = vmatprep.subr.bf16.mxu0 0
          %1095 = vmatpush1.bf16.msra.mxu0 0
          %1096 = vmatprep.subr.bf16.mxu0 %v957
          %1097 = vmatpush1.bf16.msra.mxu0 %v954
          %1098 = vmatprep.subr.bf16.mxu0 0
          %1099 = vmatpush2.bf16.msra.mxu0 0
          %1100 = vmatprep.subr.bf16.mxu0 0
          %1101 = vmatpush2.bf16.msra.mxu0 0
          %1102 = vmatprep.subr.bf16.mxu0 0
          %1103 = vmatpush2.bf16.msra.mxu0 0
          %1104 = vmatprep.subr.bf16.mxu0 0
          %1105 = vmatpush2.bf16.msra.mxu0 0
          %1106 = vmatprep.subr.bf16.mxu0 0
          %1107 = vmatpush2.bf16.msra.mxu0 0
          %1108 = vmatprep.subr.bf16.mxu0 0
          %1109 = vmatpush2.bf16.msra.mxu0 0
          %1110 = vmatprep.subr.bf16.mxu0 0
          %1111 = vmatpush2.bf16.msra.mxu0 0
          %1112 = vmatprep.subr.bf16.mxu0 0
          %1113 = vmatpush2.bf16.msra.mxu0 0
          %1114 = vmatprep.mubr.bf16.mxu0 0
          %1115 = vmatmul.mubr.bf16.gmra.mxu0 %v933
          %v1116 = vpop.f32.mrf.mxu0
          %v1117 = vadd.f32 0.0, %v1116
          %v1118 = vpop.f32.mrf.mxu0
          %v1119 = vadd.f32 0.0, %v1118
          %v1120 = vpop.f32.mrf.mxu0
          %v1121 = vpop.f32.mrf.mxu0
          %1122 = vdwg.mxu0
          %v1123 = vadd.f32 %v895, %v994
          %v1124 = vadd.f32 %v896, %v996
          %v1125 = vadd.f32 %v897, %v1035
          %v1126 = vadd.f32 %v898, %v1037
          %v1127 = vadd.f32 %v899, %v1076
          %v1128 = vadd.f32 %v900, %v1078
          %v1129 = vadd.f32 %v901, %v1117
          %v1130 = vadd.f32 %v902, %v1119
          %s1131 = scalar_lea.vmem %s0, 40
          %v1132 = vld [vmem:[%s1131] sm:$0xf]
          %1133 = vrot.lane.b32.xlu0 %v724, 127
          %v1134 = vpop.permute.xlu0 %1133
          %v1135 = vsel %vm923, %v922, %v1134
          %v1137 = vsel %vm359, %v1132, 0
          %v1140 = vsel %vm363, %v1135, 0
          %1142 = vmatprep.subr.bf16.mxu0 0
          %1143 = vmatpush1.bf16.msra.mxu0 0
          %1144 = vmatprep.subr.bf16.mxu0 0
          %1145 = vmatpush1.bf16.msra.mxu0 0
          %1146 = vmatprep.subr.bf16.mxu0 0
          %1147 = vmatpush1.bf16.msra.mxu0 0
          %1148 = vmatprep.subr.bf16.mxu0 0
          %1149 = vmatpush1.bf16.msra.mxu0 0
          %1150 = vmatprep.subr.bf16.mxu0 0
          %1151 = vmatpush1.bf16.msra.mxu0 0
          %1152 = vmatprep.subr.bf16.mxu0 0
          %1153 = vmatpush1.bf16.msra.mxu0 0
          %1154 = vmatprep.subr.bf16.mxu0 0
          %1155 = vmatpush1.bf16.msra.mxu0 0
          %1156 = vmatprep.subr.bf16.mxu0 %v942
          %1157 = vmatpush1.bf16.msra.mxu0 %v939
          %1158 = vmatprep.subr.bf16.mxu0 0
          %1159 = vmatpush2.bf16.msra.mxu0 0
          %1160 = vmatprep.subr.bf16.mxu0 0
          %1161 = vmatpush2.bf16.msra.mxu0 0
          %1162 = vmatprep.subr.bf16.mxu0 0
          %1163 = vmatpush2.bf16.msra.mxu0 0
          %1164 = vmatprep.subr.bf16.mxu0 0
          %1165 = vmatpush2.bf16.msra.mxu0 0
          %1166 = vmatprep.subr.bf16.mxu0 0
          %1167 = vmatpush2.bf16.msra.mxu0 0
          %1168 = vmatprep.subr.bf16.mxu0 0
          %1169 = vmatpush2.bf16.msra.mxu0 0
          %1170 = vmatprep.subr.bf16.mxu0 0
          %1171 = vmatpush2.bf16.msra.mxu0 0
          %1172 = vmatprep.subr.bf16.mxu0 0
          %1173 = vmatpush2.bf16.msra.mxu0 0
          %1174 = vmatprep.mubr.bf16.mxu0 0
          %1175 = vmatmul.mubr.bf16.gmra.mxu0 %v1137
          %v1176 = vpop.f32.mrf.mxu0
          %v1177 = vadd.f32 0.0, %v1176
          %v1178 = vpop.f32.mrf.mxu0
          %v1179 = vadd.f32 0.0, %v1178
          %v1180 = vpop.f32.mrf.mxu0
          %v1181 = vpop.f32.mrf.mxu0
          %1182 = vdwg.mxu0
          %1183 = vmatprep.subr.bf16.mxu0 0
          %1184 = vmatpush1.bf16.msra.mxu0 0
          %1185 = vmatprep.subr.bf16.mxu0 0
          %1186 = vmatpush1.bf16.msra.mxu0 0
          %1187 = vmatprep.subr.bf16.mxu0 0
          %1188 = vmatpush1.bf16.msra.mxu0 0
          %1189 = vmatprep.subr.bf16.mxu0 0
          %1190 = vmatpush1.bf16.msra.mxu0 0
          %1191 = vmatprep.subr.bf16.mxu0 0
          %1192 = vmatpush1.bf16.msra.mxu0 0
          %1193 = vmatprep.subr.bf16.mxu0 0
          %1194 = vmatpush1.bf16.msra.mxu0 0
          %1195 = vmatprep.subr.bf16.mxu0 0
          %1196 = vmatpush1.bf16.msra.mxu0 0
          %1197 = vmatprep.subr.bf16.mxu0 %v948
          %1198 = vmatpush1.bf16.msra.mxu0 %v945
          %1199 = vmatprep.subr.bf16.mxu0 0
          %1200 = vmatpush2.bf16.msra.mxu0 0
          %1201 = vmatprep.subr.bf16.mxu0 0
          %1202 = vmatpush2.bf16.msra.mxu0 0
          %1203 = vmatprep.subr.bf16.mxu0 0
          %1204 = vmatpush2.bf16.msra.mxu0 0
          %1205 = vmatprep.subr.bf16.mxu0 0
          %1206 = vmatpush2.bf16.msra.mxu0 0
          %1207 = vmatprep.subr.bf16.mxu0 0
          %1208 = vmatpush2.bf16.msra.mxu0 0
          %1209 = vmatprep.subr.bf16.mxu0 0
          %1210 = vmatpush2.bf16.msra.mxu0 0
          %1211 = vmatprep.subr.bf16.mxu0 0
          %1212 = vmatpush2.bf16.msra.mxu0 0
          %1213 = vmatprep.subr.bf16.mxu0 0
          %1214 = vmatpush2.bf16.msra.mxu0 0
          %1215 = vmatprep.mubr.bf16.mxu0 0
          %1216 = vmatmul.mubr.bf16.gmra.mxu0 %v1137
          %v1217 = vpop.f32.mrf.mxu0
          %v1218 = vadd.f32 0.0, %v1217
          %v1219 = vpop.f32.mrf.mxu0
          %v1220 = vadd.f32 0.0, %v1219
          %v1221 = vpop.f32.mrf.mxu0
          %v1222 = vpop.f32.mrf.mxu0
          %1223 = vdwg.mxu0
          %1224 = vmatprep.subr.bf16.mxu0 0
          %1225 = vmatpush1.bf16.msra.mxu0 0
          %1226 = vmatprep.subr.bf16.mxu0 0
          %1227 = vmatpush1.bf16.msra.mxu0 0
          %1228 = vmatprep.subr.bf16.mxu0 0
          %1229 = vmatpush1.bf16.msra.mxu0 0
          %1230 = vmatprep.subr.bf16.mxu0 0
          %1231 = vmatpush1.bf16.msra.mxu0 0
          %1232 = vmatprep.subr.bf16.mxu0 0
          %1233 = vmatpush1.bf16.msra.mxu0 0
          %1234 = vmatprep.subr.bf16.mxu0 0
          %1235 = vmatpush1.bf16.msra.mxu0 0
          %1236 = vmatprep.subr.bf16.mxu0 0
          %1237 = vmatpush1.bf16.msra.mxu0 0
          %1238 = vmatprep.subr.bf16.mxu0 %v954
          %1239 = vmatpush1.bf16.msra.mxu0 %v951
          %1240 = vmatprep.subr.bf16.mxu0 0
          %1241 = vmatpush2.bf16.msra.mxu0 0
          %1242 = vmatprep.subr.bf16.mxu0 0
          %1243 = vmatpush2.bf16.msra.mxu0 0
          %1244 = vmatprep.subr.bf16.mxu0 0
          %1245 = vmatpush2.bf16.msra.mxu0 0
          %1246 = vmatprep.subr.bf16.mxu0 0
          %1247 = vmatpush2.bf16.msra.mxu0 0
          %1248 = vmatprep.subr.bf16.mxu0 0
          %1249 = vmatpush2.bf16.msra.mxu0 0
          %1250 = vmatprep.subr.bf16.mxu0 0
          %1251 = vmatpush2.bf16.msra.mxu0 0
          %1252 = vmatprep.subr.bf16.mxu0 0
          %1253 = vmatpush2.bf16.msra.mxu0 0
          %1254 = vmatprep.subr.bf16.mxu0 0
          %1255 = vmatpush2.bf16.msra.mxu0 0
          %1256 = vmatprep.mubr.bf16.mxu0 0
          %1257 = vmatmul.mubr.bf16.gmra.mxu0 %v1137
          %v1258 = vpop.f32.mrf.mxu0
          %v1259 = vadd.f32 0.0, %v1258
          %v1260 = vpop.f32.mrf.mxu0
          %v1261 = vadd.f32 0.0, %v1260
          %v1262 = vpop.f32.mrf.mxu0
          %v1263 = vpop.f32.mrf.mxu0
          %1264 = vdwg.mxu0
          %1265 = vmatprep.subr.bf16.mxu0 0
          %1266 = vmatpush1.bf16.msra.mxu0 0
          %1267 = vmatprep.subr.bf16.mxu0 0
          %1268 = vmatpush1.bf16.msra.mxu0 0
          %1269 = vmatprep.subr.bf16.mxu0 0
          %1270 = vmatpush1.bf16.msra.mxu0 0
          %1271 = vmatprep.subr.bf16.mxu0 0
          %1272 = vmatpush1.bf16.msra.mxu0 0
          %1273 = vmatprep.subr.bf16.mxu0 0
          %1274 = vmatpush1.bf16.msra.mxu0 0
          %1275 = vmatprep.subr.bf16.mxu0 0
          %1276 = vmatpush1.bf16.msra.mxu0 0
          %1277 = vmatprep.subr.bf16.mxu0 0
          %1278 = vmatpush1.bf16.msra.mxu0 0
          %1279 = vmatprep.subr.bf16.mxu0 %v1140
          %1280 = vmatpush1.bf16.msra.mxu0 %v957
          %1281 = vmatprep.subr.bf16.mxu0 0
          %1282 = vmatpush2.bf16.msra.mxu0 0
          %1283 = vmatprep.subr.bf16.mxu0 0
          %1284 = vmatpush2.bf16.msra.mxu0 0
          %1285 = vmatprep.subr.bf16.mxu0 0
          %1286 = vmatpush2.bf16.msra.mxu0 0
          %1287 = vmatprep.subr.bf16.mxu0 0
          %1288 = vmatpush2.bf16.msra.mxu0 0
          %1289 = vmatprep.subr.bf16.mxu0 0
          %1290 = vmatpush2.bf16.msra.mxu0 0
          %1291 = vmatprep.subr.bf16.mxu0 0
          %1292 = vmatpush2.bf16.msra.mxu0 0
          %1293 = vmatprep.subr.bf16.mxu0 0
          %1294 = vmatpush2.bf16.msra.mxu0 0
          %1295 = vmatprep.subr.bf16.mxu0 0
          %1296 = vmatpush2.bf16.msra.mxu0 0
          %1297 = vmatprep.mubr.bf16.mxu0 0
          %1298 = vmatmul.mubr.bf16.gmra.mxu0 %v1137
          %v1299 = vpop.f32.mrf.mxu0
          %v1300 = vadd.f32 0.0, %v1299
          %v1301 = vpop.f32.mrf.mxu0
          %v1302 = vadd.f32 0.0, %v1301
          %v1303 = vpop.f32.mrf.mxu0
          %v1304 = vpop.f32.mrf.mxu0
          %1305 = vdwg.mxu0
          %v1306 = vadd.f32 %v1123, %v1177
          %v1307 = vadd.f32 %v1124, %v1179
          %v1308 = vadd.f32 %v1125, %v1218
          %v1309 = vadd.f32 %v1126, %v1220
          %v1310 = vadd.f32 %v1127, %v1259
          %v1311 = vadd.f32 %v1128, %v1261
          %v1312 = vadd.f32 %v1129, %v1300
          %v1313 = vadd.f32 %v1130, %v1302
          %s1314 = scalar_lea.vmem %s0, 76
          %v1315 = vld [vmem:[%s1314] sm:$0xf]
          %v1316 = vcombine.high %v311, %v311
          %v1318 = vunpack.c.l.s4 1983009808
          %v1319 = vunpack.c.0.s8 %v1318
          %v1320 = vlaneseq
          %v1321 = vshrl.u32 %v1320, 7
          %v1322 = vsub.s32 %v1319, %v1321
          %v1323 = vrot.slane %v1316, %v1322
          %1324 = vrot.lane.b32.xlu0 %v1323, 127
          %v1325 = vpop.permute.xlu0 %1324
          %v1326 = vsel %vm923, %v1134, %v1325
          %v1328 = vsel %vm359, %v1315, 0
          %v1331 = vsel %vm363, %v1326, 0
          %1333 = vmatprep.subr.bf16.mxu0 0
          %1334 = vmatpush1.bf16.msra.mxu0 0
          %1335 = vmatprep.subr.bf16.mxu0 0
          %1336 = vmatpush1.bf16.msra.mxu0 0
          %1337 = vmatprep.subr.bf16.mxu0 0
          %1338 = vmatpush1.bf16.msra.mxu0 0
          %1339 = vmatprep.subr.bf16.mxu0 0
          %1340 = vmatpush1.bf16.msra.mxu0 0
          %1341 = vmatprep.subr.bf16.mxu0 0
          %1342 = vmatpush1.bf16.msra.mxu0 0
          %1343 = vmatprep.subr.bf16.mxu0 0
          %1344 = vmatpush1.bf16.msra.mxu0 0
          %1345 = vmatprep.subr.bf16.mxu0 0
          %1346 = vmatpush1.bf16.msra.mxu0 0
          %1347 = vmatprep.subr.bf16.mxu0 %v945
          %1348 = vmatpush1.bf16.msra.mxu0 %v942
          %1349 = vmatprep.subr.bf16.mxu0 0
          %1350 = vmatpush2.bf16.msra.mxu0 0
          %1351 = vmatprep.subr.bf16.mxu0 0
          %1352 = vmatpush2.bf16.msra.mxu0 0
          %1353 = vmatprep.subr.bf16.mxu0 0
          %1354 = vmatpush2.bf16.msra.mxu0 0
          %1355 = vmatprep.subr.bf16.mxu0 0
          %1356 = vmatpush2.bf16.msra.mxu0 0
          %1357 = vmatprep.subr.bf16.mxu0 0
          %1358 = vmatpush2.bf16.msra.mxu0 0
          %1359 = vmatprep.subr.bf16.mxu0 0
          %1360 = vmatpush2.bf16.msra.mxu0 0
          %1361 = vmatprep.subr.bf16.mxu0 0
          %1362 = vmatpush2.bf16.msra.mxu0 0
          %1363 = vmatprep.subr.bf16.mxu0 0
          %1364 = vmatpush2.bf16.msra.mxu0 0
          %1365 = vmatprep.mubr.bf16.mxu0 0
          %1366 = vmatmul.mubr.bf16.gmra.mxu0 %v1328
          %v1367 = vpop.f32.mrf.mxu0
          %v1368 = vadd.f32 0.0, %v1367
          %v1369 = vpop.f32.mrf.mxu0
          %v1370 = vadd.f32 0.0, %v1369
          %v1371 = vpop.f32.mrf.mxu0
          %v1372 = vpop.f32.mrf.mxu0
          %1373 = vdwg.mxu0
          %1374 = vmatprep.subr.bf16.mxu0 0
          %1375 = vmatpush1.bf16.msra.mxu0 0
          %1376 = vmatprep.subr.bf16.mxu0 0
          %1377 = vmatpush1.bf16.msra.mxu0 0
          %1378 = vmatprep.subr.bf16.mxu0 0
          %1379 = vmatpush1.bf16.msra.mxu0 0
          %1380 = vmatprep.subr.bf16.mxu0 0
          %1381 = vmatpush1.bf16.msra.mxu0 0
          %1382 = vmatprep.subr.bf16.mxu0 0
          %1383 = vmatpush1.bf16.msra.mxu0 0
          %1384 = vmatprep.subr.bf16.mxu0 0
          %1385 = vmatpush1.bf16.msra.mxu0 0
          %1386 = vmatprep.subr.bf16.mxu0 0
          %1387 = vmatpush1.bf16.msra.mxu0 0
          %1388 = vmatprep.subr.bf16.mxu0 %v951
          %1389 = vmatpush1.bf16.msra.mxu0 %v948
          %1390 = vmatprep.subr.bf16.mxu0 0
          %1391 = vmatpush2.bf16.msra.mxu0 0
          %1392 = vmatprep.subr.bf16.mxu0 0
          %1393 = vmatpush2.bf16.msra.mxu0 0
          %1394 = vmatprep.subr.bf16.mxu0 0
          %1395 = vmatpush2.bf16.msra.mxu0 0
          %1396 = vmatprep.subr.bf16.mxu0 0
          %1397 = vmatpush2.bf16.msra.mxu0 0
          %1398 = vmatprep.subr.bf16.mxu0 0
          %1399 = vmatpush2.bf16.msra.mxu0 0
          %1400 = vmatprep.subr.bf16.mxu0 0
          %1401 = vmatpush2.bf16.msra.mxu0 0
          %1402 = vmatprep.subr.bf16.mxu0 0
          %1403 = vmatpush2.bf16.msra.mxu0 0
          %1404 = vmatprep.subr.bf16.mxu0 0
          %1405 = vmatpush2.bf16.msra.mxu0 0
          %1406 = vmatprep.mubr.bf16.mxu0 0
          %1407 = vmatmul.mubr.bf16.gmra.mxu0 %v1328
          %v1408 = vpop.f32.mrf.mxu0
          %v1409 = vadd.f32 0.0, %v1408
          %v1410 = vpop.f32.mrf.mxu0
          %v1411 = vadd.f32 0.0, %v1410
          %v1412 = vpop.f32.mrf.mxu0
          %v1413 = vpop.f32.mrf.mxu0
          %1414 = vdwg.mxu0
          %1415 = vmatprep.subr.bf16.mxu0 0
          %1416 = vmatpush1.bf16.msra.mxu0 0
          %1417 = vmatprep.subr.bf16.mxu0 0
          %1418 = vmatpush1.bf16.msra.mxu0 0
          %1419 = vmatprep.subr.bf16.mxu0 0
          %1420 = vmatpush1.bf16.msra.mxu0 0
          %1421 = vmatprep.subr.bf16.mxu0 0
          %1422 = vmatpush1.bf16.msra.mxu0 0
          %1423 = vmatprep.subr.bf16.mxu0 0
          %1424 = vmatpush1.bf16.msra.mxu0 0
          %1425 = vmatprep.subr.bf16.mxu0 0
          %1426 = vmatpush1.bf16.msra.mxu0 0
          %1427 = vmatprep.subr.bf16.mxu0 0
          %1428 = vmatpush1.bf16.msra.mxu0 0
          %1429 = vmatprep.subr.bf16.mxu0 %v957
          %1430 = vmatpush1.bf16.msra.mxu0 %v954
          %1431 = vmatprep.subr.bf16.mxu0 0
          %1432 = vmatpush2.bf16.msra.mxu0 0
          %1433 = vmatprep.subr.bf16.mxu0 0
          %1434 = vmatpush2.bf16.msra.mxu0 0
          %1435 = vmatprep.subr.bf16.mxu0 0
          %1436 = vmatpush2.bf16.msra.mxu0 0
          %1437 = vmatprep.subr.bf16.mxu0 0
          %1438 = vmatpush2.bf16.msra.mxu0 0
          %1439 = vmatprep.subr.bf16.mxu0 0
          %1440 = vmatpush2.bf16.msra.mxu0 0
          %1441 = vmatprep.subr.bf16.mxu0 0
          %1442 = vmatpush2.bf16.msra.mxu0 0
          %1443 = vmatprep.subr.bf16.mxu0 0
          %1444 = vmatpush2.bf16.msra.mxu0 0
          %1445 = vmatprep.subr.bf16.mxu0 0
          %1446 = vmatpush2.bf16.msra.mxu0 0
          %1447 = vmatprep.mubr.bf16.mxu0 0
          %1448 = vmatmul.mubr.bf16.gmra.mxu0 %v1328
          %v1449 = vpop.f32.mrf.mxu0
          %v1450 = vadd.f32 0.0, %v1449
          %v1451 = vpop.f32.mrf.mxu0
          %v1452 = vadd.f32 0.0, %v1451
          %v1453 = vpop.f32.mrf.mxu0
          %v1454 = vpop.f32.mrf.mxu0
          %1455 = vdwg.mxu0
          %1456 = vmatprep.subr.bf16.mxu0 0
          %1457 = vmatpush1.bf16.msra.mxu0 0
          %1458 = vmatprep.subr.bf16.mxu0 0
          %1459 = vmatpush1.bf16.msra.mxu0 0
          %1460 = vmatprep.subr.bf16.mxu0 0
          %1461 = vmatpush1.bf16.msra.mxu0 0
          %1462 = vmatprep.subr.bf16.mxu0 0
          %1463 = vmatpush1.bf16.msra.mxu0 0
          %1464 = vmatprep.subr.bf16.mxu0 0
          %1465 = vmatpush1.bf16.msra.mxu0 0
          %1466 = vmatprep.subr.bf16.mxu0 0
          %1467 = vmatpush1.bf16.msra.mxu0 0
          %1468 = vmatprep.subr.bf16.mxu0 0
          %1469 = vmatpush1.bf16.msra.mxu0 0
          %1470 = vmatprep.subr.bf16.mxu0 %v1331
          %1471 = vmatpush1.bf16.msra.mxu0 %v1140
          %1472 = vmatprep.subr.bf16.mxu0 0
          %1473 = vmatpush2.bf16.msra.mxu0 0
          %1474 = vmatprep.subr.bf16.mxu0 0
          %1475 = vmatpush2.bf16.msra.mxu0 0
          %1476 = vmatprep.subr.bf16.mxu0 0
          %1477 = vmatpush2.bf16.msra.mxu0 0
          %1478 = vmatprep.subr.bf16.mxu0 0
          %1479 = vmatpush2.bf16.msra.mxu0 0
          %1480 = vmatprep.subr.bf16.mxu0 0
          %1481 = vmatpush2.bf16.msra.mxu0 0
          %1482 = vmatprep.subr.bf16.mxu0 0
          %1483 = vmatpush2.bf16.msra.mxu0 0
          %1484 = vmatprep.subr.bf16.mxu0 0
          %1485 = vmatpush2.bf16.msra.mxu0 0
          %1486 = vmatprep.subr.bf16.mxu0 0
          %1487 = vmatpush2.bf16.msra.mxu0 0
          %1488 = vmatprep.mubr.bf16.mxu0 0
          %1489 = vmatmul.mubr.bf16.gmra.mxu0 %v1328
          %v1490 = vpop.f32.mrf.mxu0
          %v1491 = vadd.f32 0.0, %v1490
          %v1492 = vpop.f32.mrf.mxu0
          %v1493 = vadd.f32 0.0, %v1492
          %v1494 = vpop.f32.mrf.mxu0
          %v1495 = vpop.f32.mrf.mxu0
          %1496 = vdwg.mxu0
          %v1497 = vadd.f32 %v1306, %v1368
          %v1498 = vadd.f32 %v1307, %v1370
          %v1499 = vadd.f32 %v1308, %v1409
          %v1500 = vadd.f32 %v1309, %v1411
          %v1501 = vadd.f32 %v1310, %v1450
          %v1502 = vadd.f32 %v1311, %v1452
          %v1503 = vadd.f32 %v1312, %v1491
          %v1504 = vadd.f32 %v1313, %v1493
          %s1505 = scalar_lea.vmem %s0, 8
          %v1506 = vld [vmem:[%s1505] sm:$0xf]
          %1507 = vrot.lane.b32.xlu0 %v325, 126
          %v1508 = vpop.permute.xlu0 %1507
          %1509 = vrot.lane.b32.xlu0 %v333, 126
          %v1510 = vpop.permute.xlu0 %1509
          %1511 = vrot.lane.b32.xlu0 %v332, 126
          %v1512 = vpop.permute.xlu0 %1511
          %1513 = vrot.lane.b32.xlu0 %v334, 126
          %v1514 = vpop.permute.xlu0 %1513
          %1515 = vrot.lane.b32.xlu0 %v342, 126
          %v1516 = vpop.permute.xlu0 %1515
          %1517 = vrot.lane.b32.xlu0 %v350, 126
          %v1518 = vpop.permute.xlu0 %1517
          %1519 = vrot.lane.b32.xlu0 %v349, 126
          %v1520 = vpop.permute.xlu0 %1519
          %1521 = vrot.lane.b32.xlu0 %v351, 126
          %v1522 = vpop.permute.xlu0 %1521
          %1523 = vrot.lane.b32.xlu0 %v358, 126
          %v1524 = vpop.permute.xlu0 %1523
          %vm1525 = vcmask 1031168
          %v1526 = vsel %vm1525, %v1508, %v1510
          %v1527 = vsel %vm1525, %v1510, %v1512
          %v1528 = vsel %vm1525, %v1512, %v1514
          %v1529 = vsel %vm1525, %v1514, %v1516
          %v1530 = vsel %vm1525, %v1516, %v1518
          %v1531 = vsel %vm1525, %v1518, %v1520
          %v1532 = vsel %vm1525, %v1520, %v1522
          %v1533 = vsel %vm1525, %v1522, %v1524
          %v1535 = vsel %vm359, %v1506, 0
          %v1538 = vsel %vm363, %v1526, 0
          %v1541 = vsel %vm363, %v1527, 0
          %v1544 = vsel %vm363, %v1528, 0
          %v1547 = vsel %vm363, %v1529, 0
          %v1550 = vsel %vm363, %v1530, 0
          %v1553 = vsel %vm363, %v1531, 0
          %v1556 = vsel %vm363, %v1532, 0
          %v1559 = vsel %vm363, %v1533, 0
          %1561 = vmatprep.subr.bf16.mxu0 0
          %1562 = vmatpush1.bf16.msra.mxu0 0
          %1563 = vmatprep.subr.bf16.mxu0 0
          %1564 = vmatpush1.bf16.msra.mxu0 0
          %1565 = vmatprep.subr.bf16.mxu0 0
          %1566 = vmatpush1.bf16.msra.mxu0 0
          %1567 = vmatprep.subr.bf16.mxu0 0
          %1568 = vmatpush1.bf16.msra.mxu0 0
          %1569 = vmatprep.subr.bf16.mxu0 0
          %1570 = vmatpush1.bf16.msra.mxu0 0
          %1571 = vmatprep.subr.bf16.mxu0 0
          %1572 = vmatpush1.bf16.msra.mxu0 0
          %1573 = vmatprep.subr.bf16.mxu0 0
          %1574 = vmatpush1.bf16.msra.mxu0 0
          %1575 = vmatprep.subr.bf16.mxu0 %v1541
          %1576 = vmatpush1.bf16.msra.mxu0 %v1538
          %1577 = vmatprep.subr.bf16.mxu0 0
          %1578 = vmatpush2.bf16.msra.mxu0 0
          %1579 = vmatprep.subr.bf16.mxu0 0
          %1580 = vmatpush2.bf16.msra.mxu0 0
          %1581 = vmatprep.subr.bf16.mxu0 0
          %1582 = vmatpush2.bf16.msra.mxu0 0
          %1583 = vmatprep.subr.bf16.mxu0 0
          %1584 = vmatpush2.bf16.msra.mxu0 0
          %1585 = vmatprep.subr.bf16.mxu0 0
          %1586 = vmatpush2.bf16.msra.mxu0 0
          %1587 = vmatprep.subr.bf16.mxu0 0
          %1588 = vmatpush2.bf16.msra.mxu0 0
          %1589 = vmatprep.subr.bf16.mxu0 0
          %1590 = vmatpush2.bf16.msra.mxu0 0
          %1591 = vmatprep.subr.bf16.mxu0 0
          %1592 = vmatpush2.bf16.msra.mxu0 0
          %1593 = vmatprep.mubr.bf16.mxu0 0
          %1594 = vmatmul.mubr.bf16.gmra.mxu0 %v1535
          %v1595 = vpop.f32.mrf.mxu0
          %v1596 = vadd.f32 0.0, %v1595
          %v1597 = vpop.f32.mrf.mxu0
          %v1598 = vadd.f32 0.0, %v1597
          %v1599 = vpop.f32.mrf.mxu0
          %v1600 = vpop.f32.mrf.mxu0
          %1601 = vdwg.mxu0
          %1602 = vmatprep.subr.bf16.mxu0 0
          %1603 = vmatpush1.bf16.msra.mxu0 0
          %1604 = vmatprep.subr.bf16.mxu0 0
          %1605 = vmatpush1.bf16.msra.mxu0 0
          %1606 = vmatprep.subr.bf16.mxu0 0
          %1607 = vmatpush1.bf16.msra.mxu0 0
          %1608 = vmatprep.subr.bf16.mxu0 0
          %1609 = vmatpush1.bf16.msra.mxu0 0
          %1610 = vmatprep.subr.bf16.mxu0 0
          %1611 = vmatpush1.bf16.msra.mxu0 0
          %1612 = vmatprep.subr.bf16.mxu0 0
          %1613 = vmatpush1.bf16.msra.mxu0 0
          %1614 = vmatprep.subr.bf16.mxu0 0
          %1615 = vmatpush1.bf16.msra.mxu0 0
          %1616 = vmatprep.subr.bf16.mxu0 %v1547
          %1617 = vmatpush1.bf16.msra.mxu0 %v1544
          %1618 = vmatprep.subr.bf16.mxu0 0
          %1619 = vmatpush2.bf16.msra.mxu0 0
          %1620 = vmatprep.subr.bf16.mxu0 0
          %1621 = vmatpush2.bf16.msra.mxu0 0
          %1622 = vmatprep.subr.bf16.mxu0 0
          %1623 = vmatpush2.bf16.msra.mxu0 0
          %1624 = vmatprep.subr.bf16.mxu0 0
          %1625 = vmatpush2.bf16.msra.mxu0 0
          %1626 = vmatprep.subr.bf16.mxu0 0
          %1627 = vmatpush2.bf16.msra.mxu0 0
          %1628 = vmatprep.subr.bf16.mxu0 0
          %1629 = vmatpush2.bf16.msra.mxu0 0
          %1630 = vmatprep.subr.bf16.mxu0 0
          %1631 = vmatpush2.bf16.msra.mxu0 0
          %1632 = vmatprep.subr.bf16.mxu0 0
          %1633 = vmatpush2.bf16.msra.mxu0 0
          %1634 = vmatprep.mubr.bf16.mxu0 0
          %1635 = vmatmul.mubr.bf16.gmra.mxu0 %v1535
          %v1636 = vpop.f32.mrf.mxu0
          %v1637 = vadd.f32 0.0, %v1636
          %v1638 = vpop.f32.mrf.mxu0
          %v1639 = vadd.f32 0.0, %v1638
          %v1640 = vpop.f32.mrf.mxu0
          %v1641 = vpop.f32.mrf.mxu0
          %1642 = vdwg.mxu0
          %1643 = vmatprep.subr.bf16.mxu0 0
          %1644 = vmatpush1.bf16.msra.mxu0 0
          %1645 = vmatprep.subr.bf16.mxu0 0
          %1646 = vmatpush1.bf16.msra.mxu0 0
          %1647 = vmatprep.subr.bf16.mxu0 0
          %1648 = vmatpush1.bf16.msra.mxu0 0
          %1649 = vmatprep.subr.bf16.mxu0 0
          %1650 = vmatpush1.bf16.msra.mxu0 0
          %1651 = vmatprep.subr.bf16.mxu0 0
          %1652 = vmatpush1.bf16.msra.mxu0 0
          %1653 = vmatprep.subr.bf16.mxu0 0
          %1654 = vmatpush1.bf16.msra.mxu0 0
          %1655 = vmatprep.subr.bf16.mxu0 0
          %1656 = vmatpush1.bf16.msra.mxu0 0
          %1657 = vmatprep.subr.bf16.mxu0 %v1553
          %1658 = vmatpush1.bf16.msra.mxu0 %v1550
          %1659 = vmatprep.subr.bf16.mxu0 0
          %1660 = vmatpush2.bf16.msra.mxu0 0
          %1661 = vmatprep.subr.bf16.mxu0 0
          %1662 = vmatpush2.bf16.msra.mxu0 0
          %1663 = vmatprep.subr.bf16.mxu0 0
          %1664 = vmatpush2.bf16.msra.mxu0 0
          %1665 = vmatprep.subr.bf16.mxu0 0
          %1666 = vmatpush2.bf16.msra.mxu0 0
          %1667 = vmatprep.subr.bf16.mxu0 0
          %1668 = vmatpush2.bf16.msra.mxu0 0
          %1669 = vmatprep.subr.bf16.mxu0 0
          %1670 = vmatpush2.bf16.msra.mxu0 0
          %1671 = vmatprep.subr.bf16.mxu0 0
          %1672 = vmatpush2.bf16.msra.mxu0 0
          %1673 = vmatprep.subr.bf16.mxu0 0
          %1674 = vmatpush2.bf16.msra.mxu0 0
          %1675 = vmatprep.mubr.bf16.mxu0 0
          %1676 = vmatmul.mubr.bf16.gmra.mxu0 %v1535
          %v1677 = vpop.f32.mrf.mxu0
          %v1678 = vadd.f32 0.0, %v1677
          %v1679 = vpop.f32.mrf.mxu0
          %v1680 = vadd.f32 0.0, %v1679
          %v1681 = vpop.f32.mrf.mxu0
          %v1682 = vpop.f32.mrf.mxu0
          %1683 = vdwg.mxu0
          %1684 = vmatprep.subr.bf16.mxu0 0
          %1685 = vmatpush1.bf16.msra.mxu0 0
          %1686 = vmatprep.subr.bf16.mxu0 0
          %1687 = vmatpush1.bf16.msra.mxu0 0
          %1688 = vmatprep.subr.bf16.mxu0 0
          %1689 = vmatpush1.bf16.msra.mxu0 0
          %1690 = vmatprep.subr.bf16.mxu0 0
          %1691 = vmatpush1.bf16.msra.mxu0 0
          %1692 = vmatprep.subr.bf16.mxu0 0
          %1693 = vmatpush1.bf16.msra.mxu0 0
          %1694 = vmatprep.subr.bf16.mxu0 0
          %1695 = vmatpush1.bf16.msra.mxu0 0
          %1696 = vmatprep.subr.bf16.mxu0 0
          %1697 = vmatpush1.bf16.msra.mxu0 0
          %1698 = vmatprep.subr.bf16.mxu0 %v1559
          %1699 = vmatpush1.bf16.msra.mxu0 %v1556
          %1700 = vmatprep.subr.bf16.mxu0 0
          %1701 = vmatpush2.bf16.msra.mxu0 0
          %1702 = vmatprep.subr.bf16.mxu0 0
          %1703 = vmatpush2.bf16.msra.mxu0 0
          %1704 = vmatprep.subr.bf16.mxu0 0
          %1705 = vmatpush2.bf16.msra.mxu0 0
          %1706 = vmatprep.subr.bf16.mxu0 0
          %1707 = vmatpush2.bf16.msra.mxu0 0
          %1708 = vmatprep.subr.bf16.mxu0 0
          %1709 = vmatpush2.bf16.msra.mxu0 0
          %1710 = vmatprep.subr.bf16.mxu0 0
          %1711 = vmatpush2.bf16.msra.mxu0 0
          %1712 = vmatprep.subr.bf16.mxu0 0
          %1713 = vmatpush2.bf16.msra.mxu0 0
          %1714 = vmatprep.subr.bf16.mxu0 0
          %1715 = vmatpush2.bf16.msra.mxu0 0
          %1716 = vmatprep.mubr.bf16.mxu0 0
          %1717 = vmatmul.mubr.bf16.gmra.mxu0 %v1535
          %v1718 = vpop.f32.mrf.mxu0
          %v1719 = vadd.f32 0.0, %v1718
          %v1720 = vpop.f32.mrf.mxu0
          %v1721 = vadd.f32 0.0, %v1720
          %v1722 = vpop.f32.mrf.mxu0
          %v1723 = vpop.f32.mrf.mxu0
          %1724 = vdwg.mxu0
          %v1725 = vadd.f32 %v1497, %v1596
          %v1726 = vadd.f32 %v1498, %v1598
          %v1727 = vadd.f32 %v1499, %v1637
          %v1728 = vadd.f32 %v1500, %v1639
          %v1729 = vadd.f32 %v1501, %v1678
          %v1730 = vadd.f32 %v1502, %v1680
          %v1731 = vadd.f32 %v1503, %v1719
          %v1732 = vadd.f32 %v1504, %v1721
          %s1733 = scalar_lea.vmem %s0, 44
          %v1734 = vld [vmem:[%s1733] sm:$0xf]
          %1735 = vrot.lane.b32.xlu0 %v724, 126
          %v1736 = vpop.permute.xlu0 %1735
          %v1737 = vsel %vm1525, %v1524, %v1736
          %v1739 = vsel %vm359, %v1734, 0
          %v1742 = vsel %vm363, %v1737, 0
          %1744 = vmatprep.subr.bf16.mxu0 0
          %1745 = vmatpush1.bf16.msra.mxu0 0
          %1746 = vmatprep.subr.bf16.mxu0 0
          %1747 = vmatpush1.bf16.msra.mxu0 0
          %1748 = vmatprep.subr.bf16.mxu0 0
          %1749 = vmatpush1.bf16.msra.mxu0 0
          %1750 = vmatprep.subr.bf16.mxu0 0
          %1751 = vmatpush1.bf16.msra.mxu0 0
          %1752 = vmatprep.subr.bf16.mxu0 0
          %1753 = vmatpush1.bf16.msra.mxu0 0
          %1754 = vmatprep.subr.bf16.mxu0 0
          %1755 = vmatpush1.bf16.msra.mxu0 0
          %1756 = vmatprep.subr.bf16.mxu0 0
          %1757 = vmatpush1.bf16.msra.mxu0 0
          %1758 = vmatprep.subr.bf16.mxu0 %v1544
          %1759 = vmatpush1.bf16.msra.mxu0 %v1541
          %1760 = vmatprep.subr.bf16.mxu0 0
          %1761 = vmatpush2.bf16.msra.mxu0 0
          %1762 = vmatprep.subr.bf16.mxu0 0
          %1763 = vmatpush2.bf16.msra.mxu0 0
          %1764 = vmatprep.subr.bf16.mxu0 0
          %1765 = vmatpush2.bf16.msra.mxu0 0
          %1766 = vmatprep.subr.bf16.mxu0 0
          %1767 = vmatpush2.bf16.msra.mxu0 0
          %1768 = vmatprep.subr.bf16.mxu0 0
          %1769 = vmatpush2.bf16.msra.mxu0 0
          %1770 = vmatprep.subr.bf16.mxu0 0
          %1771 = vmatpush2.bf16.msra.mxu0 0
          %1772 = vmatprep.subr.bf16.mxu0 0
          %1773 = vmatpush2.bf16.msra.mxu0 0
          %1774 = vmatprep.subr.bf16.mxu0 0
          %1775 = vmatpush2.bf16.msra.mxu0 0
          %1776 = vmatprep.mubr.bf16.mxu0 0
          %1777 = vmatmul.mubr.bf16.gmra.mxu0 %v1739
          %v1778 = vpop.f32.mrf.mxu0
          %v1779 = vadd.f32 0.0, %v1778
          %v1780 = vpop.f32.mrf.mxu0
          %v1781 = vadd.f32 0.0, %v1780
          %v1782 = vpop.f32.mrf.mxu0
          %v1783 = vpop.f32.mrf.mxu0
          %1784 = vdwg.mxu0
          %1785 = vmatprep.subr.bf16.mxu0 0
          %1786 = vmatpush1.bf16.msra.mxu0 0
          %1787 = vmatprep.subr.bf16.mxu0 0
          %1788 = vmatpush1.bf16.msra.mxu0 0
          %1789 = vmatprep.subr.bf16.mxu0 0
          %1790 = vmatpush1.bf16.msra.mxu0 0
          %1791 = vmatprep.subr.bf16.mxu0 0
          %1792 = vmatpush1.bf16.msra.mxu0 0
          %1793 = vmatprep.subr.bf16.mxu0 0
          %1794 = vmatpush1.bf16.msra.mxu0 0
          %1795 = vmatprep.subr.bf16.mxu0 0
          %1796 = vmatpush1.bf16.msra.mxu0 0
          %1797 = vmatprep.subr.bf16.mxu0 0
          %1798 = vmatpush1.bf16.msra.mxu0 0
          %1799 = vmatprep.subr.bf16.mxu0 %v1550
          %1800 = vmatpush1.bf16.msra.mxu0 %v1547
          %1801 = vmatprep.subr.bf16.mxu0 0
          %1802 = vmatpush2.bf16.msra.mxu0 0
          %1803 = vmatprep.subr.bf16.mxu0 0
          %1804 = vmatpush2.bf16.msra.mxu0 0
          %1805 = vmatprep.subr.bf16.mxu0 0
          %1806 = vmatpush2.bf16.msra.mxu0 0
          %1807 = vmatprep.subr.bf16.mxu0 0
          %1808 = vmatpush2.bf16.msra.mxu0 0
          %1809 = vmatprep.subr.bf16.mxu0 0
          %1810 = vmatpush2.bf16.msra.mxu0 0
          %1811 = vmatprep.subr.bf16.mxu0 0
          %1812 = vmatpush2.bf16.msra.mxu0 0
          %1813 = vmatprep.subr.bf16.mxu0 0
          %1814 = vmatpush2.bf16.msra.mxu0 0
          %1815 = vmatprep.subr.bf16.mxu0 0
          %1816 = vmatpush2.bf16.msra.mxu0 0
          %1817 = vmatprep.mubr.bf16.mxu0 0
          %1818 = vmatmul.mubr.bf16.gmra.mxu0 %v1739
          %v1819 = vpop.f32.mrf.mxu0
          %v1820 = vadd.f32 0.0, %v1819
          %v1821 = vpop.f32.mrf.mxu0
          %v1822 = vadd.f32 0.0, %v1821
          %v1823 = vpop.f32.mrf.mxu0
          %v1824 = vpop.f32.mrf.mxu0
          %1825 = vdwg.mxu0
          %1826 = vmatprep.subr.bf16.mxu0 0
          %1827 = vmatpush1.bf16.msra.mxu0 0
          %1828 = vmatprep.subr.bf16.mxu0 0
          %1829 = vmatpush1.bf16.msra.mxu0 0
          %1830 = vmatprep.subr.bf16.mxu0 0
          %1831 = vmatpush1.bf16.msra.mxu0 0
          %1832 = vmatprep.subr.bf16.mxu0 0
          %1833 = vmatpush1.bf16.msra.mxu0 0
          %1834 = vmatprep.subr.bf16.mxu0 0
          %1835 = vmatpush1.bf16.msra.mxu0 0
          %1836 = vmatprep.subr.bf16.mxu0 0
          %1837 = vmatpush1.bf16.msra.mxu0 0
          %1838 = vmatprep.subr.bf16.mxu0 0
          %1839 = vmatpush1.bf16.msra.mxu0 0
          %1840 = vmatprep.subr.bf16.mxu0 %v1556
          %1841 = vmatpush1.bf16.msra.mxu0 %v1553
          %1842 = vmatprep.subr.bf16.mxu0 0
          %1843 = vmatpush2.bf16.msra.mxu0 0
          %1844 = vmatprep.subr.bf16.mxu0 0
          %1845 = vmatpush2.bf16.msra.mxu0 0
          %1846 = vmatprep.subr.bf16.mxu0 0
          %1847 = vmatpush2.bf16.msra.mxu0 0
          %1848 = vmatprep.subr.bf16.mxu0 0
          %1849 = vmatpush2.bf16.msra.mxu0 0
          %1850 = vmatprep.subr.bf16.mxu0 0
          %1851 = vmatpush2.bf16.msra.mxu0 0
          %1852 = vmatprep.subr.bf16.mxu0 0
          %1853 = vmatpush2.bf16.msra.mxu0 0
          %1854 = vmatprep.subr.bf16.mxu0 0
          %1855 = vmatpush2.bf16.msra.mxu0 0
          %1856 = vmatprep.subr.bf16.mxu0 0
          %1857 = vmatpush2.bf16.msra.mxu0 0
          %1858 = vmatprep.mubr.bf16.mxu0 0
          %1859 = vmatmul.mubr.bf16.gmra.mxu0 %v1739
          %v1860 = vpop.f32.mrf.mxu0
          %v1861 = vadd.f32 0.0, %v1860
          %v1862 = vpop.f32.mrf.mxu0
          %v1863 = vadd.f32 0.0, %v1862
          %v1864 = vpop.f32.mrf.mxu0
          %v1865 = vpop.f32.mrf.mxu0
          %1866 = vdwg.mxu0
          %1867 = vmatprep.subr.bf16.mxu0 0
          %1868 = vmatpush1.bf16.msra.mxu0 0
          %1869 = vmatprep.subr.bf16.mxu0 0
          %1870 = vmatpush1.bf16.msra.mxu0 0
          %1871 = vmatprep.subr.bf16.mxu0 0
          %1872 = vmatpush1.bf16.msra.mxu0 0
          %1873 = vmatprep.subr.bf16.mxu0 0
          %1874 = vmatpush1.bf16.msra.mxu0 0
          %1875 = vmatprep.subr.bf16.mxu0 0
          %1876 = vmatpush1.bf16.msra.mxu0 0
          %1877 = vmatprep.subr.bf16.mxu0 0
          %1878 = vmatpush1.bf16.msra.mxu0 0
          %1879 = vmatprep.subr.bf16.mxu0 0
          %1880 = vmatpush1.bf16.msra.mxu0 0
          %1881 = vmatprep.subr.bf16.mxu0 %v1742
          %1882 = vmatpush1.bf16.msra.mxu0 %v1559
          %1883 = vmatprep.subr.bf16.mxu0 0
          %1884 = vmatpush2.bf16.msra.mxu0 0
          %1885 = vmatprep.subr.bf16.mxu0 0
          %1886 = vmatpush2.bf16.msra.mxu0 0
          %1887 = vmatprep.subr.bf16.mxu0 0
          %1888 = vmatpush2.bf16.msra.mxu0 0
          %1889 = vmatprep.subr.bf16.mxu0 0
          %1890 = vmatpush2.bf16.msra.mxu0 0
          %1891 = vmatprep.subr.bf16.mxu0 0
          %1892 = vmatpush2.bf16.msra.mxu0 0
          %1893 = vmatprep.subr.bf16.mxu0 0
          %1894 = vmatpush2.bf16.msra.mxu0 0
          %1895 = vmatprep.subr.bf16.mxu0 0
          %1896 = vmatpush2.bf16.msra.mxu0 0
          %1897 = vmatprep.subr.bf16.mxu0 0
          %1898 = vmatpush2.bf16.msra.mxu0 0
          %1899 = vmatprep.mubr.bf16.mxu0 0
          %1900 = vmatmul.mubr.bf16.gmra.mxu0 %v1739
          %v1901 = vpop.f32.mrf.mxu0
          %v1902 = vadd.f32 0.0, %v1901
          %v1903 = vpop.f32.mrf.mxu0
          %v1904 = vadd.f32 0.0, %v1903
          %v1905 = vpop.f32.mrf.mxu0
          %v1906 = vpop.f32.mrf.mxu0
          %1907 = vdwg.mxu0
          %v1908 = vadd.f32 %v1725, %v1779
          %v1909 = vadd.f32 %v1726, %v1781
          %v1910 = vadd.f32 %v1727, %v1820
          %v1911 = vadd.f32 %v1728, %v1822
          %v1912 = vadd.f32 %v1729, %v1861
          %v1913 = vadd.f32 %v1730, %v1863
          %v1914 = vadd.f32 %v1731, %v1902
          %v1915 = vadd.f32 %v1732, %v1904
          %s1916 = scalar_lea.vmem %s0, 80
          %v1917 = vld [vmem:[%s1916] sm:$0xf]
          %1918 = vrot.lane.b32.xlu0 %v1323, 126
          %v1919 = vpop.permute.xlu0 %1918
          %v1920 = vsel %vm1525, %v1736, %v1919
          %v1922 = vsel %vm359, %v1917, 0
          %v1925 = vsel %vm363, %v1920, 0
          %1927 = vmatprep.subr.bf16.mxu0 0
          %1928 = vmatpush1.bf16.msra.mxu0 0
          %1929 = vmatprep.subr.bf16.mxu0 0
          %1930 = vmatpush1.bf16.msra.mxu0 0
          %1931 = vmatprep.subr.bf16.mxu0 0
          %1932 = vmatpush1.bf16.msra.mxu0 0
          %1933 = vmatprep.subr.bf16.mxu0 0
          %1934 = vmatpush1.bf16.msra.mxu0 0
          %1935 = vmatprep.subr.bf16.mxu0 0
          %1936 = vmatpush1.bf16.msra.mxu0 0
          %1937 = vmatprep.subr.bf16.mxu0 0
          %1938 = vmatpush1.bf16.msra.mxu0 0
          %1939 = vmatprep.subr.bf16.mxu0 0
          %1940 = vmatpush1.bf16.msra.mxu0 0
          %1941 = vmatprep.subr.bf16.mxu0 %v1547
          %1942 = vmatpush1.bf16.msra.mxu0 %v1544
          %1943 = vmatprep.subr.bf16.mxu0 0
          %1944 = vmatpush2.bf16.msra.mxu0 0
          %1945 = vmatprep.subr.bf16.mxu0 0
          %1946 = vmatpush2.bf16.msra.mxu0 0
          %1947 = vmatprep.subr.bf16.mxu0 0
          %1948 = vmatpush2.bf16.msra.mxu0 0
          %1949 = vmatprep.subr.bf16.mxu0 0
          %1950 = vmatpush2.bf16.msra.mxu0 0
          %1951 = vmatprep.subr.bf16.mxu0 0
          %1952 = vmatpush2.bf16.msra.mxu0 0
          %1953 = vmatprep.subr.bf16.mxu0 0
          %1954 = vmatpush2.bf16.msra.mxu0 0
          %1955 = vmatprep.subr.bf16.mxu0 0
          %1956 = vmatpush2.bf16.msra.mxu0 0
          %1957 = vmatprep.subr.bf16.mxu0 0
          %1958 = vmatpush2.bf16.msra.mxu0 0
          %1959 = vmatprep.mubr.bf16.mxu0 0
          %1960 = vmatmul.mubr.bf16.gmra.mxu0 %v1922
          %v1961 = vpop.f32.mrf.mxu0
          %v1962 = vadd.f32 0.0, %v1961
          %v1963 = vpop.f32.mrf.mxu0
          %v1964 = vadd.f32 0.0, %v1963
          %v1965 = vpop.f32.mrf.mxu0
          %v1966 = vpop.f32.mrf.mxu0
          %1967 = vdwg.mxu0
          %1968 = vmatprep.subr.bf16.mxu0 0
          %1969 = vmatpush1.bf16.msra.mxu0 0
          %1970 = vmatprep.subr.bf16.mxu0 0
          %1971 = vmatpush1.bf16.msra.mxu0 0
          %1972 = vmatprep.subr.bf16.mxu0 0
          %1973 = vmatpush1.bf16.msra.mxu0 0
          %1974 = vmatprep.subr.bf16.mxu0 0
          %1975 = vmatpush1.bf16.msra.mxu0 0
          %1976 = vmatprep.subr.bf16.mxu0 0
          %1977 = vmatpush1.bf16.msra.mxu0 0
          %1978 = vmatprep.subr.bf16.mxu0 0
          %1979 = vmatpush1.bf16.msra.mxu0 0
          %1980 = vmatprep.subr.bf16.mxu0 0
          %1981 = vmatpush1.bf16.msra.mxu0 0
          %1982 = vmatprep.subr.bf16.mxu0 %v1553
          %1983 = vmatpush1.bf16.msra.mxu0 %v1550
          %1984 = vmatprep.subr.bf16.mxu0 0
          %1985 = vmatpush2.bf16.msra.mxu0 0
          %1986 = vmatprep.subr.bf16.mxu0 0
          %1987 = vmatpush2.bf16.msra.mxu0 0
          %1988 = vmatprep.subr.bf16.mxu0 0
          %1989 = vmatpush2.bf16.msra.mxu0 0
          %1990 = vmatprep.subr.bf16.mxu0 0
          %1991 = vmatpush2.bf16.msra.mxu0 0
          %1992 = vmatprep.subr.bf16.mxu0 0
          %1993 = vmatpush2.bf16.msra.mxu0 0
          %1994 = vmatprep.subr.bf16.mxu0 0
          %1995 = vmatpush2.bf16.msra.mxu0 0
          %1996 = vmatprep.subr.bf16.mxu0 0
          %1997 = vmatpush2.bf16.msra.mxu0 0
          %1998 = vmatprep.subr.bf16.mxu0 0
          %1999 = vmatpush2.bf16.msra.mxu0 0
          %2000 = vmatprep.mubr.bf16.mxu0 0
          %2001 = vmatmul.mubr.bf16.gmra.mxu0 %v1922
          %v2002 = vpop.f32.mrf.mxu0
          %v2003 = vadd.f32 0.0, %v2002
          %v2004 = vpop.f32.mrf.mxu0
          %v2005 = vadd.f32 0.0, %v2004
          %v2006 = vpop.f32.mrf.mxu0
          %v2007 = vpop.f32.mrf.mxu0
          %2008 = vdwg.mxu0
          %2009 = vmatprep.subr.bf16.mxu0 0
          %2010 = vmatpush1.bf16.msra.mxu0 0
          %2011 = vmatprep.subr.bf16.mxu0 0
          %2012 = vmatpush1.bf16.msra.mxu0 0
          %2013 = vmatprep.subr.bf16.mxu0 0
          %2014 = vmatpush1.bf16.msra.mxu0 0
          %2015 = vmatprep.subr.bf16.mxu0 0
          %2016 = vmatpush1.bf16.msra.mxu0 0
          %2017 = vmatprep.subr.bf16.mxu0 0
          %2018 = vmatpush1.bf16.msra.mxu0 0
          %2019 = vmatprep.subr.bf16.mxu0 0
          %2020 = vmatpush1.bf16.msra.mxu0 0
          %2021 = vmatprep.subr.bf16.mxu0 0
          %2022 = vmatpush1.bf16.msra.mxu0 0
          %2023 = vmatprep.subr.bf16.mxu0 %v1559
          %2024 = vmatpush1.bf16.msra.mxu0 %v1556
          %2025 = vmatprep.subr.bf16.mxu0 0
          %2026 = vmatpush2.bf16.msra.mxu0 0
          %2027 = vmatprep.subr.bf16.mxu0 0
          %2028 = vmatpush2.bf16.msra.mxu0 0
          %2029 = vmatprep.subr.bf16.mxu0 0
          %2030 = vmatpush2.bf16.msra.mxu0 0
          %2031 = vmatprep.subr.bf16.mxu0 0
          %2032 = vmatpush2.bf16.msra.mxu0 0
          %2033 = vmatprep.subr.bf16.mxu0 0
          %2034 = vmatpush2.bf16.msra.mxu0 0
          %2035 = vmatprep.subr.bf16.mxu0 0
          %2036 = vmatpush2.bf16.msra.mxu0 0
          %2037 = vmatprep.subr.bf16.mxu0 0
          %2038 = vmatpush2.bf16.msra.mxu0 0
          %2039 = vmatprep.subr.bf16.mxu0 0
          %2040 = vmatpush2.bf16.msra.mxu0 0
          %2041 = vmatprep.mubr.bf16.mxu0 0
          %2042 = vmatmul.mubr.bf16.gmra.mxu0 %v1922
          %v2043 = vpop.f32.mrf.mxu0
          %v2044 = vadd.f32 0.0, %v2043
          %v2045 = vpop.f32.mrf.mxu0
          %v2046 = vadd.f32 0.0, %v2045
          %v2047 = vpop.f32.mrf.mxu0
          %v2048 = vpop.f32.mrf.mxu0
          %2049 = vdwg.mxu0
          %2050 = vmatprep.subr.bf16.mxu0 0
          %2051 = vmatpush1.bf16.msra.mxu0 0
          %2052 = vmatprep.subr.bf16.mxu0 0
          %2053 = vmatpush1.bf16.msra.mxu0 0
          %2054 = vmatprep.subr.bf16.mxu0 0
          %2055 = vmatpush1.bf16.msra.mxu0 0
          %2056 = vmatprep.subr.bf16.mxu0 0
          %2057 = vmatpush1.bf16.msra.mxu0 0
          %2058 = vmatprep.subr.bf16.mxu0 0
          %2059 = vmatpush1.bf16.msra.mxu0 0
          %2060 = vmatprep.subr.bf16.mxu0 0
          %2061 = vmatpush1.bf16.msra.mxu0 0
          %2062 = vmatprep.subr.bf16.mxu0 0
          %2063 = vmatpush1.bf16.msra.mxu0 0
          %2064 = vmatprep.subr.bf16.mxu0 %v1925
          %2065 = vmatpush1.bf16.msra.mxu0 %v1742
          %2066 = vmatprep.subr.bf16.mxu0 0
          %2067 = vmatpush2.bf16.msra.mxu0 0
          %2068 = vmatprep.subr.bf16.mxu0 0
          %2069 = vmatpush2.bf16.msra.mxu0 0
          %2070 = vmatprep.subr.bf16.mxu0 0
          %2071 = vmatpush2.bf16.msra.mxu0 0
          %2072 = vmatprep.subr.bf16.mxu0 0
          %2073 = vmatpush2.bf16.msra.mxu0 0
          %2074 = vmatprep.subr.bf16.mxu0 0
          %2075 = vmatpush2.bf16.msra.mxu0 0
          %2076 = vmatprep.subr.bf16.mxu0 0
          %2077 = vmatpush2.bf16.msra.mxu0 0
          %2078 = vmatprep.subr.bf16.mxu0 0
          %2079 = vmatpush2.bf16.msra.mxu0 0
          %2080 = vmatprep.subr.bf16.mxu0 0
          %2081 = vmatpush2.bf16.msra.mxu0 0
          %2082 = vmatprep.mubr.bf16.mxu0 0
          %2083 = vmatmul.mubr.bf16.gmra.mxu0 %v1922
          %v2084 = vpop.f32.mrf.mxu0
          %v2085 = vadd.f32 0.0, %v2084
          %v2086 = vpop.f32.mrf.mxu0
          %v2087 = vadd.f32 0.0, %v2086
          %v2088 = vpop.f32.mrf.mxu0
          %v2089 = vpop.f32.mrf.mxu0
          %2090 = vdwg.mxu0
          %v2091 = vadd.f32 %v1908, %v1962
          %v2092 = vadd.f32 %v1909, %v1964
          %v2093 = vadd.f32 %v1910, %v2003
          %v2094 = vadd.f32 %v1911, %v2005
          %v2095 = vadd.f32 %v1912, %v2044
          %v2096 = vadd.f32 %v1913, %v2046
          %v2097 = vadd.f32 %v1914, %v2085
          %v2098 = vadd.f32 %v1915, %v2087
          %s2099 = scalar_lea.vmem %s0, 12
          %v2100 = vld [vmem:[%s2099] sm:$0xf]
          %2101 = vrot.lane.b32.xlu0 %v325, 118
          %v2102 = vpop.permute.xlu0 %2101
          %2103 = vrot.lane.b32.xlu0 %v333, 118
          %v2104 = vpop.permute.xlu0 %2103
          %2105 = vrot.lane.b32.xlu0 %v332, 118
          %v2106 = vpop.permute.xlu0 %2105
          %2107 = vrot.lane.b32.xlu0 %v334, 118
          %v2108 = vpop.permute.xlu0 %2107
          %2109 = vrot.lane.b32.xlu0 %v342, 118
          %v2110 = vpop.permute.xlu0 %2109
          %2111 = vrot.lane.b32.xlu0 %v350, 118
          %v2112 = vpop.permute.xlu0 %2111
          %2113 = vrot.lane.b32.xlu0 %v349, 118
          %v2114 = vpop.permute.xlu0 %2113
          %2115 = vrot.lane.b32.xlu0 %v351, 118
          %v2116 = vpop.permute.xlu0 %2115
          %2117 = vrot.lane.b32.xlu0 %v358, 118
          %v2118 = vpop.permute.xlu0 %2117
          %vm2119 = vcmask 965632
          %v2120 = vsel %vm2119, %v2102, %v2104
          %v2121 = vsel %vm2119, %v2104, %v2106
          %v2122 = vsel %vm2119, %v2106, %v2108
          %v2123 = vsel %vm2119, %v2108, %v2110
          %v2124 = vsel %vm2119, %v2110, %v2112
          %v2125 = vsel %vm2119, %v2112, %v2114
          %v2126 = vsel %vm2119, %v2114, %v2116
          %v2127 = vsel %vm2119, %v2116, %v2118
          %v2129 = vsel %vm359, %v2100, 0
          %v2132 = vsel %vm363, %v2120, 0
          %v2135 = vsel %vm363, %v2121, 0
          %v2138 = vsel %vm363, %v2122, 0
          %v2141 = vsel %vm363, %v2123, 0
          %v2144 = vsel %vm363, %v2124, 0
          %v2147 = vsel %vm363, %v2125, 0
          %v2150 = vsel %vm363, %v2126, 0
          %v2153 = vsel %vm363, %v2127, 0
          %2155 = vmatprep.subr.bf16.mxu0 0
          %2156 = vmatpush1.bf16.msra.mxu0 0
          %2157 = vmatprep.subr.bf16.mxu0 0
          %2158 = vmatpush1.bf16.msra.mxu0 0
          %2159 = vmatprep.subr.bf16.mxu0 0
          %2160 = vmatpush1.bf16.msra.mxu0 0
          %2161 = vmatprep.subr.bf16.mxu0 0
          %2162 = vmatpush1.bf16.msra.mxu0 0
          %2163 = vmatprep.subr.bf16.mxu0 0
          %2164 = vmatpush1.bf16.msra.mxu0 0
          %2165 = vmatprep.subr.bf16.mxu0 0
          %2166 = vmatpush1.bf16.msra.mxu0 0
          %2167 = vmatprep.subr.bf16.mxu0 0
          %2168 = vmatpush1.bf16.msra.mxu0 0
          %2169 = vmatprep.subr.bf16.mxu0 %v2135
          %2170 = vmatpush1.bf16.msra.mxu0 %v2132
          %2171 = vmatprep.subr.bf16.mxu0 0
          %2172 = vmatpush2.bf16.msra.mxu0 0
          %2173 = vmatprep.subr.bf16.mxu0 0
          %2174 = vmatpush2.bf16.msra.mxu0 0
          %2175 = vmatprep.subr.bf16.mxu0 0
          %2176 = vmatpush2.bf16.msra.mxu0 0
          %2177 = vmatprep.subr.bf16.mxu0 0
          %2178 = vmatpush2.bf16.msra.mxu0 0
          %2179 = vmatprep.subr.bf16.mxu0 0
          %2180 = vmatpush2.bf16.msra.mxu0 0
          %2181 = vmatprep.subr.bf16.mxu0 0
          %2182 = vmatpush2.bf16.msra.mxu0 0
          %2183 = vmatprep.subr.bf16.mxu0 0
          %2184 = vmatpush2.bf16.msra.mxu0 0
          %2185 = vmatprep.subr.bf16.mxu0 0
          %2186 = vmatpush2.bf16.msra.mxu0 0
          %2187 = vmatprep.mubr.bf16.mxu0 0
          %2188 = vmatmul.mubr.bf16.gmra.mxu0 %v2129
          %v2189 = vpop.f32.mrf.mxu0
          %v2190 = vadd.f32 0.0, %v2189
          %v2191 = vpop.f32.mrf.mxu0
          %v2192 = vadd.f32 0.0, %v2191
          %v2193 = vpop.f32.mrf.mxu0
          %v2194 = vpop.f32.mrf.mxu0
          %2195 = vdwg.mxu0
          %2196 = vmatprep.subr.bf16.mxu0 0
          %2197 = vmatpush1.bf16.msra.mxu0 0
          %2198 = vmatprep.subr.bf16.mxu0 0
          %2199 = vmatpush1.bf16.msra.mxu0 0
          %2200 = vmatprep.subr.bf16.mxu0 0
          %2201 = vmatpush1.bf16.msra.mxu0 0
          %2202 = vmatprep.subr.bf16.mxu0 0
          %2203 = vmatpush1.bf16.msra.mxu0 0
          %2204 = vmatprep.subr.bf16.mxu0 0
          %2205 = vmatpush1.bf16.msra.mxu0 0
          %2206 = vmatprep.subr.bf16.mxu0 0
          %2207 = vmatpush1.bf16.msra.mxu0 0
          %2208 = vmatprep.subr.bf16.mxu0 0
          %2209 = vmatpush1.bf16.msra.mxu0 0
          %2210 = vmatprep.subr.bf16.mxu0 %v2141
          %2211 = vmatpush1.bf16.msra.mxu0 %v2138
          %2212 = vmatprep.subr.bf16.mxu0 0
          %2213 = vmatpush2.bf16.msra.mxu0 0
          %2214 = vmatprep.subr.bf16.mxu0 0
          %2215 = vmatpush2.bf16.msra.mxu0 0
          %2216 = vmatprep.subr.bf16.mxu0 0
          %2217 = vmatpush2.bf16.msra.mxu0 0
          %2218 = vmatprep.subr.bf16.mxu0 0
          %2219 = vmatpush2.bf16.msra.mxu0 0
          %2220 = vmatprep.subr.bf16.mxu0 0
          %2221 = vmatpush2.bf16.msra.mxu0 0
          %2222 = vmatprep.subr.bf16.mxu0 0
          %2223 = vmatpush2.bf16.msra.mxu0 0
          %2224 = vmatprep.subr.bf16.mxu0 0
          %2225 = vmatpush2.bf16.msra.mxu0 0
          %2226 = vmatprep.subr.bf16.mxu0 0
          %2227 = vmatpush2.bf16.msra.mxu0 0
          %2228 = vmatprep.mubr.bf16.mxu0 0
          %2229 = vmatmul.mubr.bf16.gmra.mxu0 %v2129
          %v2230 = vpop.f32.mrf.mxu0
          %v2231 = vadd.f32 0.0, %v2230
          %v2232 = vpop.f32.mrf.mxu0
          %v2233 = vadd.f32 0.0, %v2232
          %v2234 = vpop.f32.mrf.mxu0
          %v2235 = vpop.f32.mrf.mxu0
          %2236 = vdwg.mxu0
          %2237 = vmatprep.subr.bf16.mxu0 0
          %2238 = vmatpush1.bf16.msra.mxu0 0
          %2239 = vmatprep.subr.bf16.mxu0 0
          %2240 = vmatpush1.bf16.msra.mxu0 0
          %2241 = vmatprep.subr.bf16.mxu0 0
          %2242 = vmatpush1.bf16.msra.mxu0 0
          %2243 = vmatprep.subr.bf16.mxu0 0
          %2244 = vmatpush1.bf16.msra.mxu0 0
          %2245 = vmatprep.subr.bf16.mxu0 0
          %2246 = vmatpush1.bf16.msra.mxu0 0
          %2247 = vmatprep.subr.bf16.mxu0 0
          %2248 = vmatpush1.bf16.msra.mxu0 0
          %2249 = vmatprep.subr.bf16.mxu0 0
          %2250 = vmatpush1.bf16.msra.mxu0 0
          %2251 = vmatprep.subr.bf16.mxu0 %v2147
          %2252 = vmatpush1.bf16.msra.mxu0 %v2144
          %2253 = vmatprep.subr.bf16.mxu0 0
          %2254 = vmatpush2.bf16.msra.mxu0 0
          %2255 = vmatprep.subr.bf16.mxu0 0
          %2256 = vmatpush2.bf16.msra.mxu0 0
          %2257 = vmatprep.subr.bf16.mxu0 0
          %2258 = vmatpush2.bf16.msra.mxu0 0
          %2259 = vmatprep.subr.bf16.mxu0 0
          %2260 = vmatpush2.bf16.msra.mxu0 0
          %2261 = vmatprep.subr.bf16.mxu0 0
          %2262 = vmatpush2.bf16.msra.mxu0 0
          %2263 = vmatprep.subr.bf16.mxu0 0
          %2264 = vmatpush2.bf16.msra.mxu0 0
          %2265 = vmatprep.subr.bf16.mxu0 0
          %2266 = vmatpush2.bf16.msra.mxu0 0
          %2267 = vmatprep.subr.bf16.mxu0 0
          %2268 = vmatpush2.bf16.msra.mxu0 0
          %2269 = vmatprep.mubr.bf16.mxu0 0
          %2270 = vmatmul.mubr.bf16.gmra.mxu0 %v2129
          %v2271 = vpop.f32.mrf.mxu0
          %v2272 = vadd.f32 0.0, %v2271
          %v2273 = vpop.f32.mrf.mxu0
          %v2274 = vadd.f32 0.0, %v2273
          %v2275 = vpop.f32.mrf.mxu0
          %v2276 = vpop.f32.mrf.mxu0
          %2277 = vdwg.mxu0
          %2278 = vmatprep.subr.bf16.mxu0 0
          %2279 = vmatpush1.bf16.msra.mxu0 0
          %2280 = vmatprep.subr.bf16.mxu0 0
          %2281 = vmatpush1.bf16.msra.mxu0 0
          %2282 = vmatprep.subr.bf16.mxu0 0
          %2283 = vmatpush1.bf16.msra.mxu0 0
          %2284 = vmatprep.subr.bf16.mxu0 0
          %2285 = vmatpush1.bf16.msra.mxu0 0
          %2286 = vmatprep.subr.bf16.mxu0 0
          %2287 = vmatpush1.bf16.msra.mxu0 0
          %2288 = vmatprep.subr.bf16.mxu0 0
          %2289 = vmatpush1.bf16.msra.mxu0 0
          %2290 = vmatprep.subr.bf16.mxu0 0
          %2291 = vmatpush1.bf16.msra.mxu0 0
          %2292 = vmatprep.subr.bf16.mxu0 %v2153
          %2293 = vmatpush1.bf16.msra.mxu0 %v2150
          %2294 = vmatprep.subr.bf16.mxu0 0
          %2295 = vmatpush2.bf16.msra.mxu0 0
          %2296 = vmatprep.subr.bf16.mxu0 0
          %2297 = vmatpush2.bf16.msra.mxu0 0
          %2298 = vmatprep.subr.bf16.mxu0 0
          %2299 = vmatpush2.bf16.msra.mxu0 0
          %2300 = vmatprep.subr.bf16.mxu0 0
          %2301 = vmatpush2.bf16.msra.mxu0 0
          %2302 = vmatprep.subr.bf16.mxu0 0
          %2303 = vmatpush2.bf16.msra.mxu0 0
          %2304 = vmatprep.subr.bf16.mxu0 0
          %2305 = vmatpush2.bf16.msra.mxu0 0
          %2306 = vmatprep.subr.bf16.mxu0 0
          %2307 = vmatpush2.bf16.msra.mxu0 0
          %2308 = vmatprep.subr.bf16.mxu0 0
          %2309 = vmatpush2.bf16.msra.mxu0 0
          %2310 = vmatprep.mubr.bf16.mxu0 0
          %2311 = vmatmul.mubr.bf16.gmra.mxu0 %v2129
          %v2312 = vpop.f32.mrf.mxu0
          %v2313 = vadd.f32 0.0, %v2312
          %v2314 = vpop.f32.mrf.mxu0
          %v2315 = vadd.f32 0.0, %v2314
          %v2316 = vpop.f32.mrf.mxu0
          %v2317 = vpop.f32.mrf.mxu0
          %2318 = vdwg.mxu0
          %v2319 = vadd.f32 %v2091, %v2190
          %v2320 = vadd.f32 %v2092, %v2192
          %v2321 = vadd.f32 %v2093, %v2231
          %v2322 = vadd.f32 %v2094, %v2233
          %v2323 = vadd.f32 %v2095, %v2272
          %v2324 = vadd.f32 %v2096, %v2274
          %v2325 = vadd.f32 %v2097, %v2313
          %v2326 = vadd.f32 %v2098, %v2315
          %s2327 = scalar_lea.vmem %s0, 48
          %v2328 = vld [vmem:[%s2327] sm:$0xf]
          %2329 = vrot.lane.b32.xlu0 %v724, 118
          %v2330 = vpop.permute.xlu0 %2329
          %v2331 = vsel %vm2119, %v2118, %v2330
          %v2333 = vsel %vm359, %v2328, 0
          %v2336 = vsel %vm363, %v2331, 0
          %2338 = vmatprep.subr.bf16.mxu0 0
          %2339 = vmatpush1.bf16.msra.mxu0 0
          %2340 = vmatprep.subr.bf16.mxu0 0
          %2341 = vmatpush1.bf16.msra.mxu0 0
          %2342 = vmatprep.subr.bf16.mxu0 0
          %2343 = vmatpush1.bf16.msra.mxu0 0
          %2344 = vmatprep.subr.bf16.mxu0 0
          %2345 = vmatpush1.bf16.msra.mxu0 0
          %2346 = vmatprep.subr.bf16.mxu0 0
          %2347 = vmatpush1.bf16.msra.mxu0 0
          %2348 = vmatprep.subr.bf16.mxu0 0
          %2349 = vmatpush1.bf16.msra.mxu0 0
          %2350 = vmatprep.subr.bf16.mxu0 0
          %2351 = vmatpush1.bf16.msra.mxu0 0
          %2352 = vmatprep.subr.bf16.mxu0 %v2138
          %2353 = vmatpush1.bf16.msra.mxu0 %v2135
          %2354 = vmatprep.subr.bf16.mxu0 0
          %2355 = vmatpush2.bf16.msra.mxu0 0
          %2356 = vmatprep.subr.bf16.mxu0 0
          %2357 = vmatpush2.bf16.msra.mxu0 0
          %2358 = vmatprep.subr.bf16.mxu0 0
          %2359 = vmatpush2.bf16.msra.mxu0 0
          %2360 = vmatprep.subr.bf16.mxu0 0
          %2361 = vmatpush2.bf16.msra.mxu0 0
          %2362 = vmatprep.subr.bf16.mxu0 0
          %2363 = vmatpush2.bf16.msra.mxu0 0
          %2364 = vmatprep.subr.bf16.mxu0 0
          %2365 = vmatpush2.bf16.msra.mxu0 0
          %2366 = vmatprep.subr.bf16.mxu0 0
          %2367 = vmatpush2.bf16.msra.mxu0 0
          %2368 = vmatprep.subr.bf16.mxu0 0
          %2369 = vmatpush2.bf16.msra.mxu0 0
          %2370 = vmatprep.mubr.bf16.mxu0 0
          %2371 = vmatmul.mubr.bf16.gmra.mxu0 %v2333
          %v2372 = vpop.f32.mrf.mxu0
          %v2373 = vadd.f32 0.0, %v2372
          %v2374 = vpop.f32.mrf.mxu0
          %v2375 = vadd.f32 0.0, %v2374
          %v2376 = vpop.f32.mrf.mxu0
          %v2377 = vpop.f32.mrf.mxu0
          %2378 = vdwg.mxu0
          %2379 = vmatprep.subr.bf16.mxu0 0
          %2380 = vmatpush1.bf16.msra.mxu0 0
          %2381 = vmatprep.subr.bf16.mxu0 0
          %2382 = vmatpush1.bf16.msra.mxu0 0
          %2383 = vmatprep.subr.bf16.mxu0 0
          %2384 = vmatpush1.bf16.msra.mxu0 0
          %2385 = vmatprep.subr.bf16.mxu0 0
          %2386 = vmatpush1.bf16.msra.mxu0 0
          %2387 = vmatprep.subr.bf16.mxu0 0
          %2388 = vmatpush1.bf16.msra.mxu0 0
          %2389 = vmatprep.subr.bf16.mxu0 0
          %2390 = vmatpush1.bf16.msra.mxu0 0
          %2391 = vmatprep.subr.bf16.mxu0 0
          %2392 = vmatpush1.bf16.msra.mxu0 0
          %2393 = vmatprep.subr.bf16.mxu0 %v2144
          %2394 = vmatpush1.bf16.msra.mxu0 %v2141
          %2395 = vmatprep.subr.bf16.mxu0 0
          %2396 = vmatpush2.bf16.msra.mxu0 0
          %2397 = vmatprep.subr.bf16.mxu0 0
          %2398 = vmatpush2.bf16.msra.mxu0 0
          %2399 = vmatprep.subr.bf16.mxu0 0
          %2400 = vmatpush2.bf16.msra.mxu0 0
          %2401 = vmatprep.subr.bf16.mxu0 0
          %2402 = vmatpush2.bf16.msra.mxu0 0
          %2403 = vmatprep.subr.bf16.mxu0 0
          %2404 = vmatpush2.bf16.msra.mxu0 0
          %2405 = vmatprep.subr.bf16.mxu0 0
          %2406 = vmatpush2.bf16.msra.mxu0 0
          %2407 = vmatprep.subr.bf16.mxu0 0
          %2408 = vmatpush2.bf16.msra.mxu0 0
          %2409 = vmatprep.subr.bf16.mxu0 0
          %2410 = vmatpush2.bf16.msra.mxu0 0
          %2411 = vmatprep.mubr.bf16.mxu0 0
          %2412 = vmatmul.mubr.bf16.gmra.mxu0 %v2333
          %v2413 = vpop.f32.mrf.mxu0
          %v2414 = vadd.f32 0.0, %v2413
          %v2415 = vpop.f32.mrf.mxu0
          %v2416 = vadd.f32 0.0, %v2415
          %v2417 = vpop.f32.mrf.mxu0
          %v2418 = vpop.f32.mrf.mxu0
          %2419 = vdwg.mxu0
          %2420 = vmatprep.subr.bf16.mxu0 0
          %2421 = vmatpush1.bf16.msra.mxu0 0
          %2422 = vmatprep.subr.bf16.mxu0 0
          %2423 = vmatpush1.bf16.msra.mxu0 0
          %2424 = vmatprep.subr.bf16.mxu0 0
          %2425 = vmatpush1.bf16.msra.mxu0 0
          %2426 = vmatprep.subr.bf16.mxu0 0
          %2427 = vmatpush1.bf16.msra.mxu0 0
          %2428 = vmatprep.subr.bf16.mxu0 0
          %2429 = vmatpush1.bf16.msra.mxu0 0
          %2430 = vmatprep.subr.bf16.mxu0 0
          %2431 = vmatpush1.bf16.msra.mxu0 0
          %2432 = vmatprep.subr.bf16.mxu0 0
          %2433 = vmatpush1.bf16.msra.mxu0 0
          %2434 = vmatprep.subr.bf16.mxu0 %v2150
          %2435 = vmatpush1.bf16.msra.mxu0 %v2147
          %2436 = vmatprep.subr.bf16.mxu0 0
          %2437 = vmatpush2.bf16.msra.mxu0 0
          %2438 = vmatprep.subr.bf16.mxu0 0
          %2439 = vmatpush2.bf16.msra.mxu0 0
          %2440 = vmatprep.subr.bf16.mxu0 0
          %2441 = vmatpush2.bf16.msra.mxu0 0
          %2442 = vmatprep.subr.bf16.mxu0 0
          %2443 = vmatpush2.bf16.msra.mxu0 0
          %2444 = vmatprep.subr.bf16.mxu0 0
          %2445 = vmatpush2.bf16.msra.mxu0 0
          %2446 = vmatprep.subr.bf16.mxu0 0
          %2447 = vmatpush2.bf16.msra.mxu0 0
          %2448 = vmatprep.subr.bf16.mxu0 0
          %2449 = vmatpush2.bf16.msra.mxu0 0
          %2450 = vmatprep.subr.bf16.mxu0 0
          %2451 = vmatpush2.bf16.msra.mxu0 0
          %2452 = vmatprep.mubr.bf16.mxu0 0
          %2453 = vmatmul.mubr.bf16.gmra.mxu0 %v2333
          %v2454 = vpop.f32.mrf.mxu0
          %v2455 = vadd.f32 0.0, %v2454
          %v2456 = vpop.f32.mrf.mxu0
          %v2457 = vadd.f32 0.0, %v2456
          %v2458 = vpop.f32.mrf.mxu0
          %v2459 = vpop.f32.mrf.mxu0
          %2460 = vdwg.mxu0
          %2461 = vmatprep.subr.bf16.mxu0 0
          %2462 = vmatpush1.bf16.msra.mxu0 0
          %2463 = vmatprep.subr.bf16.mxu0 0
          %2464 = vmatpush1.bf16.msra.mxu0 0
          %2465 = vmatprep.subr.bf16.mxu0 0
          %2466 = vmatpush1.bf16.msra.mxu0 0
          %2467 = vmatprep.subr.bf16.mxu0 0
          %2468 = vmatpush1.bf16.msra.mxu0 0
          %2469 = vmatprep.subr.bf16.mxu0 0
          %2470 = vmatpush1.bf16.msra.mxu0 0
          %2471 = vmatprep.subr.bf16.mxu0 0
          %2472 = vmatpush1.bf16.msra.mxu0 0
          %2473 = vmatprep.subr.bf16.mxu0 0
          %2474 = vmatpush1.bf16.msra.mxu0 0
          %2475 = vmatprep.subr.bf16.mxu0 %v2336
          %2476 = vmatpush1.bf16.msra.mxu0 %v2153
          %2477 = vmatprep.subr.bf16.mxu0 0
          %2478 = vmatpush2.bf16.msra.mxu0 0
          %2479 = vmatprep.subr.bf16.mxu0 0
          %2480 = vmatpush2.bf16.msra.mxu0 0
          %2481 = vmatprep.subr.bf16.mxu0 0
          %2482 = vmatpush2.bf16.msra.mxu0 0
          %2483 = vmatprep.subr.bf16.mxu0 0
          %2484 = vmatpush2.bf16.msra.mxu0 0
          %2485 = vmatprep.subr.bf16.mxu0 0
          %2486 = vmatpush2.bf16.msra.mxu0 0
          %2487 = vmatprep.subr.bf16.mxu0 0
          %2488 = vmatpush2.bf16.msra.mxu0 0
          %2489 = vmatprep.subr.bf16.mxu0 0
          %2490 = vmatpush2.bf16.msra.mxu0 0
          %2491 = vmatprep.subr.bf16.mxu0 0
          %2492 = vmatpush2.bf16.msra.mxu0 0
          %2493 = vmatprep.mubr.bf16.mxu0 0
          %2494 = vmatmul.mubr.bf16.gmra.mxu0 %v2333
          %v2495 = vpop.f32.mrf.mxu0
          %v2496 = vadd.f32 0.0, %v2495
          %v2497 = vpop.f32.mrf.mxu0
          %v2498 = vadd.f32 0.0, %v2497
          %v2499 = vpop.f32.mrf.mxu0
          %v2500 = vpop.f32.mrf.mxu0
          %2501 = vdwg.mxu0
          %v2502 = vadd.f32 %v2319, %v2373
          %v2503 = vadd.f32 %v2320, %v2375
          %v2504 = vadd.f32 %v2321, %v2414
          %v2505 = vadd.f32 %v2322, %v2416
          %v2506 = vadd.f32 %v2323, %v2455
          %v2507 = vadd.f32 %v2324, %v2457
          %v2508 = vadd.f32 %v2325, %v2496
          %v2509 = vadd.f32 %v2326, %v2498
          %s2510 = scalar_lea.vmem %s0, 84
          %v2511 = vld [vmem:[%s2510] sm:$0xf]
          %2512 = vrot.lane.b32.xlu0 %v1323, 118
          %v2513 = vpop.permute.xlu0 %2512
          %v2514 = vsel %vm2119, %v2330, %v2513
          %v2516 = vsel %vm359, %v2511, 0
          %v2519 = vsel %vm363, %v2514, 0
          %2521 = vmatprep.subr.bf16.mxu0 0
          %2522 = vmatpush1.bf16.msra.mxu0 0
          %2523 = vmatprep.subr.bf16.mxu0 0
          %2524 = vmatpush1.bf16.msra.mxu0 0
          %2525 = vmatprep.subr.bf16.mxu0 0
          %2526 = vmatpush1.bf16.msra.mxu0 0
          %2527 = vmatprep.subr.bf16.mxu0 0
          %2528 = vmatpush1.bf16.msra.mxu0 0
          %2529 = vmatprep.subr.bf16.mxu0 0
          %2530 = vmatpush1.bf16.msra.mxu0 0
          %2531 = vmatprep.subr.bf16.mxu0 0
          %2532 = vmatpush1.bf16.msra.mxu0 0
          %2533 = vmatprep.subr.bf16.mxu0 0
          %2534 = vmatpush1.bf16.msra.mxu0 0
          %2535 = vmatprep.subr.bf16.mxu0 %v2141
          %2536 = vmatpush1.bf16.msra.mxu0 %v2138
          %2537 = vmatprep.subr.bf16.mxu0 0
          %2538 = vmatpush2.bf16.msra.mxu0 0
          %2539 = vmatprep.subr.bf16.mxu0 0
          %2540 = vmatpush2.bf16.msra.mxu0 0
          %2541 = vmatprep.subr.bf16.mxu0 0
          %2542 = vmatpush2.bf16.msra.mxu0 0
          %2543 = vmatprep.subr.bf16.mxu0 0
          %2544 = vmatpush2.bf16.msra.mxu0 0
          %2545 = vmatprep.subr.bf16.mxu0 0
          %2546 = vmatpush2.bf16.msra.mxu0 0
          %2547 = vmatprep.subr.bf16.mxu0 0
          %2548 = vmatpush2.bf16.msra.mxu0 0
          %2549 = vmatprep.subr.bf16.mxu0 0
          %2550 = vmatpush2.bf16.msra.mxu0 0
          %2551 = vmatprep.subr.bf16.mxu0 0
          %2552 = vmatpush2.bf16.msra.mxu0 0
          %2553 = vmatprep.mubr.bf16.mxu0 0
          %2554 = vmatmul.mubr.bf16.gmra.mxu0 %v2516
          %v2555 = vpop.f32.mrf.mxu0
          %v2556 = vadd.f32 0.0, %v2555
          %v2557 = vpop.f32.mrf.mxu0
          %v2558 = vadd.f32 0.0, %v2557
          %v2559 = vpop.f32.mrf.mxu0
          %v2560 = vpop.f32.mrf.mxu0
          %2561 = vdwg.mxu0
          %2562 = vmatprep.subr.bf16.mxu0 0
          %2563 = vmatpush1.bf16.msra.mxu0 0
          %2564 = vmatprep.subr.bf16.mxu0 0
          %2565 = vmatpush1.bf16.msra.mxu0 0
          %2566 = vmatprep.subr.bf16.mxu0 0
          %2567 = vmatpush1.bf16.msra.mxu0 0
          %2568 = vmatprep.subr.bf16.mxu0 0
          %2569 = vmatpush1.bf16.msra.mxu0 0
          %2570 = vmatprep.subr.bf16.mxu0 0
          %2571 = vmatpush1.bf16.msra.mxu0 0
          %2572 = vmatprep.subr.bf16.mxu0 0
          %2573 = vmatpush1.bf16.msra.mxu0 0
          %2574 = vmatprep.subr.bf16.mxu0 0
          %2575 = vmatpush1.bf16.msra.mxu0 0
          %2576 = vmatprep.subr.bf16.mxu0 %v2147
          %2577 = vmatpush1.bf16.msra.mxu0 %v2144
          %2578 = vmatprep.subr.bf16.mxu0 0
          %2579 = vmatpush2.bf16.msra.mxu0 0
          %2580 = vmatprep.subr.bf16.mxu0 0
          %2581 = vmatpush2.bf16.msra.mxu0 0
          %2582 = vmatprep.subr.bf16.mxu0 0
          %2583 = vmatpush2.bf16.msra.mxu0 0
          %2584 = vmatprep.subr.bf16.mxu0 0
          %2585 = vmatpush2.bf16.msra.mxu0 0
          %2586 = vmatprep.subr.bf16.mxu0 0
          %2587 = vmatpush2.bf16.msra.mxu0 0
          %2588 = vmatprep.subr.bf16.mxu0 0
          %2589 = vmatpush2.bf16.msra.mxu0 0
          %2590 = vmatprep.subr.bf16.mxu0 0
          %2591 = vmatpush2.bf16.msra.mxu0 0
          %2592 = vmatprep.subr.bf16.mxu0 0
          %2593 = vmatpush2.bf16.msra.mxu0 0
          %2594 = vmatprep.mubr.bf16.mxu0 0
          %2595 = vmatmul.mubr.bf16.gmra.mxu0 %v2516
          %v2596 = vpop.f32.mrf.mxu0
          %v2597 = vadd.f32 0.0, %v2596
          %v2598 = vpop.f32.mrf.mxu0
          %v2599 = vadd.f32 0.0, %v2598
          %v2600 = vpop.f32.mrf.mxu0
          %v2601 = vpop.f32.mrf.mxu0
          %2602 = vdwg.mxu0
          %2603 = vmatprep.subr.bf16.mxu0 0
          %2604 = vmatpush1.bf16.msra.mxu0 0
          %2605 = vmatprep.subr.bf16.mxu0 0
          %2606 = vmatpush1.bf16.msra.mxu0 0
          %2607 = vmatprep.subr.bf16.mxu0 0
          %2608 = vmatpush1.bf16.msra.mxu0 0
          %2609 = vmatprep.subr.bf16.mxu0 0
          %2610 = vmatpush1.bf16.msra.mxu0 0
          %2611 = vmatprep.subr.bf16.mxu0 0
          %2612 = vmatpush1.bf16.msra.mxu0 0
          %2613 = vmatprep.subr.bf16.mxu0 0
          %2614 = vmatpush1.bf16.msra.mxu0 0
          %2615 = vmatprep.subr.bf16.mxu0 0
          %2616 = vmatpush1.bf16.msra.mxu0 0
          %2617 = vmatprep.subr.bf16.mxu0 %v2153
          %2618 = vmatpush1.bf16.msra.mxu0 %v2150
          %2619 = vmatprep.subr.bf16.mxu0 0
          %2620 = vmatpush2.bf16.msra.mxu0 0
          %2621 = vmatprep.subr.bf16.mxu0 0
          %2622 = vmatpush2.bf16.msra.mxu0 0
          %2623 = vmatprep.subr.bf16.mxu0 0
          %2624 = vmatpush2.bf16.msra.mxu0 0
          %2625 = vmatprep.subr.bf16.mxu0 0
          %2626 = vmatpush2.bf16.msra.mxu0 0
          %2627 = vmatprep.subr.bf16.mxu0 0
          %2628 = vmatpush2.bf16.msra.mxu0 0
          %2629 = vmatprep.subr.bf16.mxu0 0
          %2630 = vmatpush2.bf16.msra.mxu0 0
          %2631 = vmatprep.subr.bf16.mxu0 0
          %2632 = vmatpush2.bf16.msra.mxu0 0
          %2633 = vmatprep.subr.bf16.mxu0 0
          %2634 = vmatpush2.bf16.msra.mxu0 0
          %2635 = vmatprep.mubr.bf16.mxu0 0
          %2636 = vmatmul.mubr.bf16.gmra.mxu0 %v2516
          %v2637 = vpop.f32.mrf.mxu0
          %v2638 = vadd.f32 0.0, %v2637
          %v2639 = vpop.f32.mrf.mxu0
          %v2640 = vadd.f32 0.0, %v2639
          %v2641 = vpop.f32.mrf.mxu0
          %v2642 = vpop.f32.mrf.mxu0
          %2643 = vdwg.mxu0
          %2644 = vmatprep.subr.bf16.mxu0 0
          %2645 = vmatpush1.bf16.msra.mxu0 0
          %2646 = vmatprep.subr.bf16.mxu0 0
          %2647 = vmatpush1.bf16.msra.mxu0 0
          %2648 = vmatprep.subr.bf16.mxu0 0
          %2649 = vmatpush1.bf16.msra.mxu0 0
          %2650 = vmatprep.subr.bf16.mxu0 0
          %2651 = vmatpush1.bf16.msra.mxu0 0
          %2652 = vmatprep.subr.bf16.mxu0 0
          %2653 = vmatpush1.bf16.msra.mxu0 0
          %2654 = vmatprep.subr.bf16.mxu0 0
          %2655 = vmatpush1.bf16.msra.mxu0 0
          %2656 = vmatprep.subr.bf16.mxu0 0
          %2657 = vmatpush1.bf16.msra.mxu0 0
          %2658 = vmatprep.subr.bf16.mxu0 %v2519
          %2659 = vmatpush1.bf16.msra.mxu0 %v2336
          %2660 = vmatprep.subr.bf16.mxu0 0
          %2661 = vmatpush2.bf16.msra.mxu0 0
          %2662 = vmatprep.subr.bf16.mxu0 0
          %2663 = vmatpush2.bf16.msra.mxu0 0
          %2664 = vmatprep.subr.bf16.mxu0 0
          %2665 = vmatpush2.bf16.msra.mxu0 0
          %2666 = vmatprep.subr.bf16.mxu0 0
          %2667 = vmatpush2.bf16.msra.mxu0 0
          %2668 = vmatprep.subr.bf16.mxu0 0
          %2669 = vmatpush2.bf16.msra.mxu0 0
          %2670 = vmatprep.subr.bf16.mxu0 0
          %2671 = vmatpush2.bf16.msra.mxu0 0
          %2672 = vmatprep.subr.bf16.mxu0 0
          %2673 = vmatpush2.bf16.msra.mxu0 0
          %2674 = vmatprep.subr.bf16.mxu0 0
          %2675 = vmatpush2.bf16.msra.mxu0 0
          %2676 = vmatprep.mubr.bf16.mxu0 0
          %2677 = vmatmul.mubr.bf16.gmra.mxu0 %v2516
          %v2678 = vpop.f32.mrf.mxu0
          %v2679 = vadd.f32 0.0, %v2678
          %v2680 = vpop.f32.mrf.mxu0
          %v2681 = vadd.f32 0.0, %v2680
          %v2682 = vpop.f32.mrf.mxu0
          %v2683 = vpop.f32.mrf.mxu0
          %2684 = vdwg.mxu0
          %v2685 = vadd.f32 %v2502, %v2556
          %v2686 = vadd.f32 %v2503, %v2558
          %v2687 = vadd.f32 %v2504, %v2597
          %v2688 = vadd.f32 %v2505, %v2599
          %v2689 = vadd.f32 %v2506, %v2638
          %v2690 = vadd.f32 %v2507, %v2640
          %v2691 = vadd.f32 %v2508, %v2679
          %v2692 = vadd.f32 %v2509, %v2681
          %s2693 = scalar_lea.vmem %s0, 16
          %v2694 = vld [vmem:[%s2693] sm:$0xf]
          %2695 = vrot.lane.b32.xlu0 %v325, 117
          %v2696 = vpop.permute.xlu0 %2695
          %2697 = vrot.lane.b32.xlu0 %v333, 117
          %v2698 = vpop.permute.xlu0 %2697
          %2699 = vrot.lane.b32.xlu0 %v332, 117
          %v2700 = vpop.permute.xlu0 %2699
          %2701 = vrot.lane.b32.xlu0 %v334, 117
          %v2702 = vpop.permute.xlu0 %2701
          %2703 = vrot.lane.b32.xlu0 %v342, 117
          %v2704 = vpop.permute.xlu0 %2703
          %2705 = vrot.lane.b32.xlu0 %v350, 117
          %v2706 = vpop.permute.xlu0 %2705
          %2707 = vrot.lane.b32.xlu0 %v349, 117
          %v2708 = vpop.permute.xlu0 %2707
          %2709 = vrot.lane.b32.xlu0 %v351, 117
          %v2710 = vpop.permute.xlu0 %2709
          %2711 = vrot.lane.b32.xlu0 %v358, 117
          %v2712 = vpop.permute.xlu0 %2711
          %vm2713 = vcmask 957440
          %v2714 = vsel %vm2713, %v2696, %v2698
          %v2715 = vsel %vm2713, %v2698, %v2700
          %v2716 = vsel %vm2713, %v2700, %v2702
          %v2717 = vsel %vm2713, %v2702, %v2704
          %v2718 = vsel %vm2713, %v2704, %v2706
          %v2719 = vsel %vm2713, %v2706, %v2708
          %v2720 = vsel %vm2713, %v2708, %v2710
          %v2721 = vsel %vm2713, %v2710, %v2712
          %v2723 = vsel %vm359, %v2694, 0
          %v2726 = vsel %vm363, %v2714, 0
          %v2729 = vsel %vm363, %v2715, 0
          %v2732 = vsel %vm363, %v2716, 0
          %v2735 = vsel %vm363, %v2717, 0
          %v2738 = vsel %vm363, %v2718, 0
          %v2741 = vsel %vm363, %v2719, 0
          %v2744 = vsel %vm363, %v2720, 0
          %v2747 = vsel %vm363, %v2721, 0
          %2749 = vmatprep.subr.bf16.mxu0 0
          %2750 = vmatpush1.bf16.msra.mxu0 0
          %2751 = vmatprep.subr.bf16.mxu0 0
          %2752 = vmatpush1.bf16.msra.mxu0 0
          %2753 = vmatprep.subr.bf16.mxu0 0
          %2754 = vmatpush1.bf16.msra.mxu0 0
          %2755 = vmatprep.subr.bf16.mxu0 0
          %2756 = vmatpush1.bf16.msra.mxu0 0
          %2757 = vmatprep.subr.bf16.mxu0 0
          %2758 = vmatpush1.bf16.msra.mxu0 0
          %2759 = vmatprep.subr.bf16.mxu0 0
          %2760 = vmatpush1.bf16.msra.mxu0 0
          %2761 = vmatprep.subr.bf16.mxu0 0
          %2762 = vmatpush1.bf16.msra.mxu0 0
          %2763 = vmatprep.subr.bf16.mxu0 %v2729
          %2764 = vmatpush1.bf16.msra.mxu0 %v2726
          %2765 = vmatprep.subr.bf16.mxu0 0
          %2766 = vmatpush2.bf16.msra.mxu0 0
          %2767 = vmatprep.subr.bf16.mxu0 0
          %2768 = vmatpush2.bf16.msra.mxu0 0
          %2769 = vmatprep.subr.bf16.mxu0 0
          %2770 = vmatpush2.bf16.msra.mxu0 0
          %2771 = vmatprep.subr.bf16.mxu0 0
          %2772 = vmatpush2.bf16.msra.mxu0 0
          %2773 = vmatprep.subr.bf16.mxu0 0
          %2774 = vmatpush2.bf16.msra.mxu0 0
          %2775 = vmatprep.subr.bf16.mxu0 0
          %2776 = vmatpush2.bf16.msra.mxu0 0
          %2777 = vmatprep.subr.bf16.mxu0 0
          %2778 = vmatpush2.bf16.msra.mxu0 0
          %2779 = vmatprep.subr.bf16.mxu0 0
          %2780 = vmatpush2.bf16.msra.mxu0 0
          %2781 = vmatprep.mubr.bf16.mxu0 0
          %2782 = vmatmul.mubr.bf16.gmra.mxu0 %v2723
          %v2783 = vpop.f32.mrf.mxu0
          %v2784 = vadd.f32 0.0, %v2783
          %v2785 = vpop.f32.mrf.mxu0
          %v2786 = vadd.f32 0.0, %v2785
          %v2787 = vpop.f32.mrf.mxu0
          %v2788 = vpop.f32.mrf.mxu0
          %2789 = vdwg.mxu0
          %2790 = vmatprep.subr.bf16.mxu0 0
          %2791 = vmatpush1.bf16.msra.mxu0 0
          %2792 = vmatprep.subr.bf16.mxu0 0
          %2793 = vmatpush1.bf16.msra.mxu0 0
          %2794 = vmatprep.subr.bf16.mxu0 0
          %2795 = vmatpush1.bf16.msra.mxu0 0
          %2796 = vmatprep.subr.bf16.mxu0 0
          %2797 = vmatpush1.bf16.msra.mxu0 0
          %2798 = vmatprep.subr.bf16.mxu0 0
          %2799 = vmatpush1.bf16.msra.mxu0 0
          %2800 = vmatprep.subr.bf16.mxu0 0
          %2801 = vmatpush1.bf16.msra.mxu0 0
          %2802 = vmatprep.subr.bf16.mxu0 0
          %2803 = vmatpush1.bf16.msra.mxu0 0
          %2804 = vmatprep.subr.bf16.mxu0 %v2735
          %2805 = vmatpush1.bf16.msra.mxu0 %v2732
          %2806 = vmatprep.subr.bf16.mxu0 0
          %2807 = vmatpush2.bf16.msra.mxu0 0
          %2808 = vmatprep.subr.bf16.mxu0 0
          %2809 = vmatpush2.bf16.msra.mxu0 0
          %2810 = vmatprep.subr.bf16.mxu0 0
          %2811 = vmatpush2.bf16.msra.mxu0 0
          %2812 = vmatprep.subr.bf16.mxu0 0
          %2813 = vmatpush2.bf16.msra.mxu0 0
          %2814 = vmatprep.subr.bf16.mxu0 0
          %2815 = vmatpush2.bf16.msra.mxu0 0
          %2816 = vmatprep.subr.bf16.mxu0 0
          %2817 = vmatpush2.bf16.msra.mxu0 0
          %2818 = vmatprep.subr.bf16.mxu0 0
          %2819 = vmatpush2.bf16.msra.mxu0 0
          %2820 = vmatprep.subr.bf16.mxu0 0
          %2821 = vmatpush2.bf16.msra.mxu0 0
          %2822 = vmatprep.mubr.bf16.mxu0 0
          %2823 = vmatmul.mubr.bf16.gmra.mxu0 %v2723
          %v2824 = vpop.f32.mrf.mxu0
          %v2825 = vadd.f32 0.0, %v2824
          %v2826 = vpop.f32.mrf.mxu0
          %v2827 = vadd.f32 0.0, %v2826
          %v2828 = vpop.f32.mrf.mxu0
          %v2829 = vpop.f32.mrf.mxu0
          %2830 = vdwg.mxu0
          %2831 = vmatprep.subr.bf16.mxu0 0
          %2832 = vmatpush1.bf16.msra.mxu0 0
          %2833 = vmatprep.subr.bf16.mxu0 0
          %2834 = vmatpush1.bf16.msra.mxu0 0
          %2835 = vmatprep.subr.bf16.mxu0 0
          %2836 = vmatpush1.bf16.msra.mxu0 0
          %2837 = vmatprep.subr.bf16.mxu0 0
          %2838 = vmatpush1.bf16.msra.mxu0 0
          %2839 = vmatprep.subr.bf16.mxu0 0
          %2840 = vmatpush1.bf16.msra.mxu0 0
          %2841 = vmatprep.subr.bf16.mxu0 0
          %2842 = vmatpush1.bf16.msra.mxu0 0
          %2843 = vmatprep.subr.bf16.mxu0 0
          %2844 = vmatpush1.bf16.msra.mxu0 0
          %2845 = vmatprep.subr.bf16.mxu0 %v2741
          %2846 = vmatpush1.bf16.msra.mxu0 %v2738
          %2847 = vmatprep.subr.bf16.mxu0 0
          %2848 = vmatpush2.bf16.msra.mxu0 0
          %2849 = vmatprep.subr.bf16.mxu0 0
          %2850 = vmatpush2.bf16.msra.mxu0 0
          %2851 = vmatprep.subr.bf16.mxu0 0
          %2852 = vmatpush2.bf16.msra.mxu0 0
          %2853 = vmatprep.subr.bf16.mxu0 0
          %2854 = vmatpush2.bf16.msra.mxu0 0
          %2855 = vmatprep.subr.bf16.mxu0 0
          %2856 = vmatpush2.bf16.msra.mxu0 0
          %2857 = vmatprep.subr.bf16.mxu0 0
          %2858 = vmatpush2.bf16.msra.mxu0 0
          %2859 = vmatprep.subr.bf16.mxu0 0
          %2860 = vmatpush2.bf16.msra.mxu0 0
          %2861 = vmatprep.subr.bf16.mxu0 0
          %2862 = vmatpush2.bf16.msra.mxu0 0
          %2863 = vmatprep.mubr.bf16.mxu0 0
          %2864 = vmatmul.mubr.bf16.gmra.mxu0 %v2723
          %v2865 = vpop.f32.mrf.mxu0
          %v2866 = vadd.f32 0.0, %v2865
          %v2867 = vpop.f32.mrf.mxu0
          %v2868 = vadd.f32 0.0, %v2867
          %v2869 = vpop.f32.mrf.mxu0
          %v2870 = vpop.f32.mrf.mxu0
          %2871 = vdwg.mxu0
          %2872 = vmatprep.subr.bf16.mxu0 0
          %2873 = vmatpush1.bf16.msra.mxu0 0
          %2874 = vmatprep.subr.bf16.mxu0 0
          %2875 = vmatpush1.bf16.msra.mxu0 0
          %2876 = vmatprep.subr.bf16.mxu0 0
          %2877 = vmatpush1.bf16.msra.mxu0 0
          %2878 = vmatprep.subr.bf16.mxu0 0
          %2879 = vmatpush1.bf16.msra.mxu0 0
          %2880 = vmatprep.subr.bf16.mxu0 0
          %2881 = vmatpush1.bf16.msra.mxu0 0
          %2882 = vmatprep.subr.bf16.mxu0 0
          %2883 = vmatpush1.bf16.msra.mxu0 0
          %2884 = vmatprep.subr.bf16.mxu0 0
          %2885 = vmatpush1.bf16.msra.mxu0 0
          %2886 = vmatprep.subr.bf16.mxu0 %v2747
          %2887 = vmatpush1.bf16.msra.mxu0 %v2744
          %2888 = vmatprep.subr.bf16.mxu0 0
          %2889 = vmatpush2.bf16.msra.mxu0 0
          %2890 = vmatprep.subr.bf16.mxu0 0
          %2891 = vmatpush2.bf16.msra.mxu0 0
          %2892 = vmatprep.subr.bf16.mxu0 0
          %2893 = vmatpush2.bf16.msra.mxu0 0
          %2894 = vmatprep.subr.bf16.mxu0 0
          %2895 = vmatpush2.bf16.msra.mxu0 0
          %2896 = vmatprep.subr.bf16.mxu0 0
          %2897 = vmatpush2.bf16.msra.mxu0 0
          %2898 = vmatprep.subr.bf16.mxu0 0
          %2899 = vmatpush2.bf16.msra.mxu0 0
          %2900 = vmatprep.subr.bf16.mxu0 0
          %2901 = vmatpush2.bf16.msra.mxu0 0
          %2902 = vmatprep.subr.bf16.mxu0 0
          %2903 = vmatpush2.bf16.msra.mxu0 0
          %2904 = vmatprep.mubr.bf16.mxu0 0
          %2905 = vmatmul.mubr.bf16.gmra.mxu0 %v2723
          %v2906 = vpop.f32.mrf.mxu0
          %v2907 = vadd.f32 0.0, %v2906
          %v2908 = vpop.f32.mrf.mxu0
          %v2909 = vadd.f32 0.0, %v2908
          %v2910 = vpop.f32.mrf.mxu0
          %v2911 = vpop.f32.mrf.mxu0
          %2912 = vdwg.mxu0
          %v2913 = vadd.f32 %v2685, %v2784
          %v2914 = vadd.f32 %v2686, %v2786
          %v2915 = vadd.f32 %v2687, %v2825
          %v2916 = vadd.f32 %v2688, %v2827
          %v2917 = vadd.f32 %v2689, %v2866
          %v2918 = vadd.f32 %v2690, %v2868
          %v2919 = vadd.f32 %v2691, %v2907
          %v2920 = vadd.f32 %v2692, %v2909
          %s2921 = scalar_lea.vmem %s0, 52
          %v2922 = vld [vmem:[%s2921] sm:$0xf]
          %2923 = vrot.lane.b32.xlu0 %v724, 117
          %v2924 = vpop.permute.xlu0 %2923
          %v2925 = vsel %vm2713, %v2712, %v2924
          %v2927 = vsel %vm359, %v2922, 0
          %v2930 = vsel %vm363, %v2925, 0
          %2932 = vmatprep.subr.bf16.mxu0 0
          %2933 = vmatpush1.bf16.msra.mxu0 0
          %2934 = vmatprep.subr.bf16.mxu0 0
          %2935 = vmatpush1.bf16.msra.mxu0 0
          %2936 = vmatprep.subr.bf16.mxu0 0
          %2937 = vmatpush1.bf16.msra.mxu0 0
          %2938 = vmatprep.subr.bf16.mxu0 0
          %2939 = vmatpush1.bf16.msra.mxu0 0
          %2940 = vmatprep.subr.bf16.mxu0 0
          %2941 = vmatpush1.bf16.msra.mxu0 0
          %2942 = vmatprep.subr.bf16.mxu0 0
          %2943 = vmatpush1.bf16.msra.mxu0 0
          %2944 = vmatprep.subr.bf16.mxu0 0
          %2945 = vmatpush1.bf16.msra.mxu0 0
          %2946 = vmatprep.subr.bf16.mxu0 %v2732
          %2947 = vmatpush1.bf16.msra.mxu0 %v2729
          %2948 = vmatprep.subr.bf16.mxu0 0
          %2949 = vmatpush2.bf16.msra.mxu0 0
          %2950 = vmatprep.subr.bf16.mxu0 0
          %2951 = vmatpush2.bf16.msra.mxu0 0
          %2952 = vmatprep.subr.bf16.mxu0 0
          %2953 = vmatpush2.bf16.msra.mxu0 0
          %2954 = vmatprep.subr.bf16.mxu0 0
          %2955 = vmatpush2.bf16.msra.mxu0 0
          %2956 = vmatprep.subr.bf16.mxu0 0
          %2957 = vmatpush2.bf16.msra.mxu0 0
          %2958 = vmatprep.subr.bf16.mxu0 0
          %2959 = vmatpush2.bf16.msra.mxu0 0
          %2960 = vmatprep.subr.bf16.mxu0 0
          %2961 = vmatpush2.bf16.msra.mxu0 0
          %2962 = vmatprep.subr.bf16.mxu0 0
          %2963 = vmatpush2.bf16.msra.mxu0 0
          %2964 = vmatprep.mubr.bf16.mxu0 0
          %2965 = vmatmul.mubr.bf16.gmra.mxu0 %v2927
          %v2966 = vpop.f32.mrf.mxu0
          %v2967 = vadd.f32 0.0, %v2966
          %v2968 = vpop.f32.mrf.mxu0
          %v2969 = vadd.f32 0.0, %v2968
          %v2970 = vpop.f32.mrf.mxu0
          %v2971 = vpop.f32.mrf.mxu0
          %2972 = vdwg.mxu0
          %2973 = vmatprep.subr.bf16.mxu0 0
          %2974 = vmatpush1.bf16.msra.mxu0 0
          %2975 = vmatprep.subr.bf16.mxu0 0
          %2976 = vmatpush1.bf16.msra.mxu0 0
          %2977 = vmatprep.subr.bf16.mxu0 0
          %2978 = vmatpush1.bf16.msra.mxu0 0
          %2979 = vmatprep.subr.bf16.mxu0 0
          %2980 = vmatpush1.bf16.msra.mxu0 0
          %2981 = vmatprep.subr.bf16.mxu0 0
          %2982 = vmatpush1.bf16.msra.mxu0 0
          %2983 = vmatprep.subr.bf16.mxu0 0
          %2984 = vmatpush1.bf16.msra.mxu0 0
          %2985 = vmatprep.subr.bf16.mxu0 0
          %2986 = vmatpush1.bf16.msra.mxu0 0
          %2987 = vmatprep.subr.bf16.mxu0 %v2738
          %2988 = vmatpush1.bf16.msra.mxu0 %v2735
          %2989 = vmatprep.subr.bf16.mxu0 0
          %2990 = vmatpush2.bf16.msra.mxu0 0
          %2991 = vmatprep.subr.bf16.mxu0 0
          %2992 = vmatpush2.bf16.msra.mxu0 0
          %2993 = vmatprep.subr.bf16.mxu0 0
          %2994 = vmatpush2.bf16.msra.mxu0 0
          %2995 = vmatprep.subr.bf16.mxu0 0
          %2996 = vmatpush2.bf16.msra.mxu0 0
          %2997 = vmatprep.subr.bf16.mxu0 0
          %2998 = vmatpush2.bf16.msra.mxu0 0
          %2999 = vmatprep.subr.bf16.mxu0 0
          %3000 = vmatpush2.bf16.msra.mxu0 0
          %3001 = vmatprep.subr.bf16.mxu0 0
          %3002 = vmatpush2.bf16.msra.mxu0 0
          %3003 = vmatprep.subr.bf16.mxu0 0
          %3004 = vmatpush2.bf16.msra.mxu0 0
          %3005 = vmatprep.mubr.bf16.mxu0 0
          %3006 = vmatmul.mubr.bf16.gmra.mxu0 %v2927
          %v3007 = vpop.f32.mrf.mxu0
          %v3008 = vadd.f32 0.0, %v3007
          %v3009 = vpop.f32.mrf.mxu0
          %v3010 = vadd.f32 0.0, %v3009
          %v3011 = vpop.f32.mrf.mxu0
          %v3012 = vpop.f32.mrf.mxu0
          %3013 = vdwg.mxu0
          %3014 = vmatprep.subr.bf16.mxu0 0
          %3015 = vmatpush1.bf16.msra.mxu0 0
          %3016 = vmatprep.subr.bf16.mxu0 0
          %3017 = vmatpush1.bf16.msra.mxu0 0
          %3018 = vmatprep.subr.bf16.mxu0 0
          %3019 = vmatpush1.bf16.msra.mxu0 0
          %3020 = vmatprep.subr.bf16.mxu0 0
          %3021 = vmatpush1.bf16.msra.mxu0 0
          %3022 = vmatprep.subr.bf16.mxu0 0
          %3023 = vmatpush1.bf16.msra.mxu0 0
          %3024 = vmatprep.subr.bf16.mxu0 0
          %3025 = vmatpush1.bf16.msra.mxu0 0
          %3026 = vmatprep.subr.bf16.mxu0 0
          %3027 = vmatpush1.bf16.msra.mxu0 0
          %3028 = vmatprep.subr.bf16.mxu0 %v2744
          %3029 = vmatpush1.bf16.msra.mxu0 %v2741
          %3030 = vmatprep.subr.bf16.mxu0 0
          %3031 = vmatpush2.bf16.msra.mxu0 0
          %3032 = vmatprep.subr.bf16.mxu0 0
          %3033 = vmatpush2.bf16.msra.mxu0 0
          %3034 = vmatprep.subr.bf16.mxu0 0
          %3035 = vmatpush2.bf16.msra.mxu0 0
          %3036 = vmatprep.subr.bf16.mxu0 0
          %3037 = vmatpush2.bf16.msra.mxu0 0
          %3038 = vmatprep.subr.bf16.mxu0 0
          %3039 = vmatpush2.bf16.msra.mxu0 0
          %3040 = vmatprep.subr.bf16.mxu0 0
          %3041 = vmatpush2.bf16.msra.mxu0 0
          %3042 = vmatprep.subr.bf16.mxu0 0
          %3043 = vmatpush2.bf16.msra.mxu0 0
          %3044 = vmatprep.subr.bf16.mxu0 0
          %3045 = vmatpush2.bf16.msra.mxu0 0
          %3046 = vmatprep.mubr.bf16.mxu0 0
          %3047 = vmatmul.mubr.bf16.gmra.mxu0 %v2927
          %v3048 = vpop.f32.mrf.mxu0
          %v3049 = vadd.f32 0.0, %v3048
          %v3050 = vpop.f32.mrf.mxu0
          %v3051 = vadd.f32 0.0, %v3050
          %v3052 = vpop.f32.mrf.mxu0
          %v3053 = vpop.f32.mrf.mxu0
          %3054 = vdwg.mxu0
          %3055 = vmatprep.subr.bf16.mxu0 0
          %3056 = vmatpush1.bf16.msra.mxu0 0
          %3057 = vmatprep.subr.bf16.mxu0 0
          %3058 = vmatpush1.bf16.msra.mxu0 0
          %3059 = vmatprep.subr.bf16.mxu0 0
          %3060 = vmatpush1.bf16.msra.mxu0 0
          %3061 = vmatprep.subr.bf16.mxu0 0
          %3062 = vmatpush1.bf16.msra.mxu0 0
          %3063 = vmatprep.subr.bf16.mxu0 0
          %3064 = vmatpush1.bf16.msra.mxu0 0
          %3065 = vmatprep.subr.bf16.mxu0 0
          %3066 = vmatpush1.bf16.msra.mxu0 0
          %3067 = vmatprep.subr.bf16.mxu0 0
          %3068 = vmatpush1.bf16.msra.mxu0 0
          %3069 = vmatprep.subr.bf16.mxu0 %v2930
          %3070 = vmatpush1.bf16.msra.mxu0 %v2747
          %3071 = vmatprep.subr.bf16.mxu0 0
          %3072 = vmatpush2.bf16.msra.mxu0 0
          %3073 = vmatprep.subr.bf16.mxu0 0
          %3074 = vmatpush2.bf16.msra.mxu0 0
          %3075 = vmatprep.subr.bf16.mxu0 0
          %3076 = vmatpush2.bf16.msra.mxu0 0
          %3077 = vmatprep.subr.bf16.mxu0 0
          %3078 = vmatpush2.bf16.msra.mxu0 0
          %3079 = vmatprep.subr.bf16.mxu0 0
          %3080 = vmatpush2.bf16.msra.mxu0 0
          %3081 = vmatprep.subr.bf16.mxu0 0
          %3082 = vmatpush2.bf16.msra.mxu0 0
          %3083 = vmatprep.subr.bf16.mxu0 0
          %3084 = vmatpush2.bf16.msra.mxu0 0
          %3085 = vmatprep.subr.bf16.mxu0 0
          %3086 = vmatpush2.bf16.msra.mxu0 0
          %3087 = vmatprep.mubr.bf16.mxu0 0
          %3088 = vmatmul.mubr.bf16.gmra.mxu0 %v2927
          %v3089 = vpop.f32.mrf.mxu0
          %v3090 = vadd.f32 0.0, %v3089
          %v3091 = vpop.f32.mrf.mxu0
          %v3092 = vadd.f32 0.0, %v3091
          %v3093 = vpop.f32.mrf.mxu0
          %v3094 = vpop.f32.mrf.mxu0
          %3095 = vdwg.mxu0
          %v3096 = vadd.f32 %v2913, %v2967
          %v3097 = vadd.f32 %v2914, %v2969
          %v3098 = vadd.f32 %v2915, %v3008
          %v3099 = vadd.f32 %v2916, %v3010
          %v3100 = vadd.f32 %v2917, %v3049
          %v3101 = vadd.f32 %v2918, %v3051
          %v3102 = vadd.f32 %v2919, %v3090
          %v3103 = vadd.f32 %v2920, %v3092
          %s3104 = scalar_lea.vmem %s0, 88
          %v3105 = vld [vmem:[%s3104] sm:$0xf]
          %3106 = vrot.lane.b32.xlu0 %v1323, 117
          %v3107 = vpop.permute.xlu0 %3106
          %v3108 = vsel %vm2713, %v2924, %v3107
          %v3110 = vsel %vm359, %v3105, 0
          %v3113 = vsel %vm363, %v3108, 0
          %3115 = vmatprep.subr.bf16.mxu0 0
          %3116 = vmatpush1.bf16.msra.mxu0 0
          %3117 = vmatprep.subr.bf16.mxu0 0
          %3118 = vmatpush1.bf16.msra.mxu0 0
          %3119 = vmatprep.subr.bf16.mxu0 0
          %3120 = vmatpush1.bf16.msra.mxu0 0
          %3121 = vmatprep.subr.bf16.mxu0 0
          %3122 = vmatpush1.bf16.msra.mxu0 0
          %3123 = vmatprep.subr.bf16.mxu0 0
          %3124 = vmatpush1.bf16.msra.mxu0 0
          %3125 = vmatprep.subr.bf16.mxu0 0
          %3126 = vmatpush1.bf16.msra.mxu0 0
          %3127 = vmatprep.subr.bf16.mxu0 0
          %3128 = vmatpush1.bf16.msra.mxu0 0
          %3129 = vmatprep.subr.bf16.mxu0 %v2735
          %3130 = vmatpush1.bf16.msra.mxu0 %v2732
          %3131 = vmatprep.subr.bf16.mxu0 0
          %3132 = vmatpush2.bf16.msra.mxu0 0
          %3133 = vmatprep.subr.bf16.mxu0 0
          %3134 = vmatpush2.bf16.msra.mxu0 0
          %3135 = vmatprep.subr.bf16.mxu0 0
          %3136 = vmatpush2.bf16.msra.mxu0 0
          %3137 = vmatprep.subr.bf16.mxu0 0
          %3138 = vmatpush2.bf16.msra.mxu0 0
          %3139 = vmatprep.subr.bf16.mxu0 0
          %3140 = vmatpush2.bf16.msra.mxu0 0
          %3141 = vmatprep.subr.bf16.mxu0 0
          %3142 = vmatpush2.bf16.msra.mxu0 0
          %3143 = vmatprep.subr.bf16.mxu0 0
          %3144 = vmatpush2.bf16.msra.mxu0 0
          %3145 = vmatprep.subr.bf16.mxu0 0
          %3146 = vmatpush2.bf16.msra.mxu0 0
          %3147 = vmatprep.mubr.bf16.mxu0 0
          %3148 = vmatmul.mubr.bf16.gmra.mxu0 %v3110
          %v3149 = vpop.f32.mrf.mxu0
          %v3150 = vadd.f32 0.0, %v3149
          %v3151 = vpop.f32.mrf.mxu0
          %v3152 = vadd.f32 0.0, %v3151
          %v3153 = vpop.f32.mrf.mxu0
          %v3154 = vpop.f32.mrf.mxu0
          %3155 = vdwg.mxu0
          %3156 = vmatprep.subr.bf16.mxu0 0
          %3157 = vmatpush1.bf16.msra.mxu0 0
          %3158 = vmatprep.subr.bf16.mxu0 0
          %3159 = vmatpush1.bf16.msra.mxu0 0
          %3160 = vmatprep.subr.bf16.mxu0 0
          %3161 = vmatpush1.bf16.msra.mxu0 0
          %3162 = vmatprep.subr.bf16.mxu0 0
          %3163 = vmatpush1.bf16.msra.mxu0 0
          %3164 = vmatprep.subr.bf16.mxu0 0
          %3165 = vmatpush1.bf16.msra.mxu0 0
          %3166 = vmatprep.subr.bf16.mxu0 0
          %3167 = vmatpush1.bf16.msra.mxu0 0
          %3168 = vmatprep.subr.bf16.mxu0 0
          %3169 = vmatpush1.bf16.msra.mxu0 0
          %3170 = vmatprep.subr.bf16.mxu0 %v2741
          %3171 = vmatpush1.bf16.msra.mxu0 %v2738
          %3172 = vmatprep.subr.bf16.mxu0 0
          %3173 = vmatpush2.bf16.msra.mxu0 0
          %3174 = vmatprep.subr.bf16.mxu0 0
          %3175 = vmatpush2.bf16.msra.mxu0 0
          %3176 = vmatprep.subr.bf16.mxu0 0
          %3177 = vmatpush2.bf16.msra.mxu0 0
          %3178 = vmatprep.subr.bf16.mxu0 0
          %3179 = vmatpush2.bf16.msra.mxu0 0
          %3180 = vmatprep.subr.bf16.mxu0 0
          %3181 = vmatpush2.bf16.msra.mxu0 0
          %3182 = vmatprep.subr.bf16.mxu0 0
          %3183 = vmatpush2.bf16.msra.mxu0 0
          %3184 = vmatprep.subr.bf16.mxu0 0
          %3185 = vmatpush2.bf16.msra.mxu0 0
          %3186 = vmatprep.subr.bf16.mxu0 0
          %3187 = vmatpush2.bf16.msra.mxu0 0
          %3188 = vmatprep.mubr.bf16.mxu0 0
          %3189 = vmatmul.mubr.bf16.gmra.mxu0 %v3110
          %v3190 = vpop.f32.mrf.mxu0
          %v3191 = vadd.f32 0.0, %v3190
          %v3192 = vpop.f32.mrf.mxu0
          %v3193 = vadd.f32 0.0, %v3192
          %v3194 = vpop.f32.mrf.mxu0
          %v3195 = vpop.f32.mrf.mxu0
          %3196 = vdwg.mxu0
          %3197 = vmatprep.subr.bf16.mxu0 0
          %3198 = vmatpush1.bf16.msra.mxu0 0
          %3199 = vmatprep.subr.bf16.mxu0 0
          %3200 = vmatpush1.bf16.msra.mxu0 0
          %3201 = vmatprep.subr.bf16.mxu0 0
          %3202 = vmatpush1.bf16.msra.mxu0 0
          %3203 = vmatprep.subr.bf16.mxu0 0
          %3204 = vmatpush1.bf16.msra.mxu0 0
          %3205 = vmatprep.subr.bf16.mxu0 0
          %3206 = vmatpush1.bf16.msra.mxu0 0
          %3207 = vmatprep.subr.bf16.mxu0 0
          %3208 = vmatpush1.bf16.msra.mxu0 0
          %3209 = vmatprep.subr.bf16.mxu0 0
          %3210 = vmatpush1.bf16.msra.mxu0 0
          %3211 = vmatprep.subr.bf16.mxu0 %v2747
          %3212 = vmatpush1.bf16.msra.mxu0 %v2744
          %3213 = vmatprep.subr.bf16.mxu0 0
          %3214 = vmatpush2.bf16.msra.mxu0 0
          %3215 = vmatprep.subr.bf16.mxu0 0
          %3216 = vmatpush2.bf16.msra.mxu0 0
          %3217 = vmatprep.subr.bf16.mxu0 0
          %3218 = vmatpush2.bf16.msra.mxu0 0
          %3219 = vmatprep.subr.bf16.mxu0 0
          %3220 = vmatpush2.bf16.msra.mxu0 0
          %3221 = vmatprep.subr.bf16.mxu0 0
          %3222 = vmatpush2.bf16.msra.mxu0 0
          %3223 = vmatprep.subr.bf16.mxu0 0
          %3224 = vmatpush2.bf16.msra.mxu0 0
          %3225 = vmatprep.subr.bf16.mxu0 0
          %3226 = vmatpush2.bf16.msra.mxu0 0
          %3227 = vmatprep.subr.bf16.mxu0 0
          %3228 = vmatpush2.bf16.msra.mxu0 0
          %3229 = vmatprep.mubr.bf16.mxu0 0
          %3230 = vmatmul.mubr.bf16.gmra.mxu0 %v3110
          %v3231 = vpop.f32.mrf.mxu0
          %v3232 = vadd.f32 0.0, %v3231
          %v3233 = vpop.f32.mrf.mxu0
          %v3234 = vadd.f32 0.0, %v3233
          %v3235 = vpop.f32.mrf.mxu0
          %v3236 = vpop.f32.mrf.mxu0
          %3237 = vdwg.mxu0
          %3238 = vmatprep.subr.bf16.mxu0 0
          %3239 = vmatpush1.bf16.msra.mxu0 0
          %3240 = vmatprep.subr.bf16.mxu0 0
          %3241 = vmatpush1.bf16.msra.mxu0 0
          %3242 = vmatprep.subr.bf16.mxu0 0
          %3243 = vmatpush1.bf16.msra.mxu0 0
          %3244 = vmatprep.subr.bf16.mxu0 0
          %3245 = vmatpush1.bf16.msra.mxu0 0
          %3246 = vmatprep.subr.bf16.mxu0 0
          %3247 = vmatpush1.bf16.msra.mxu0 0
          %3248 = vmatprep.subr.bf16.mxu0 0
          %3249 = vmatpush1.bf16.msra.mxu0 0
          %3250 = vmatprep.subr.bf16.mxu0 0
          %3251 = vmatpush1.bf16.msra.mxu0 0
          %3252 = vmatprep.subr.bf16.mxu0 %v3113
          %3253 = vmatpush1.bf16.msra.mxu0 %v2930
          %3254 = vmatprep.subr.bf16.mxu0 0
          %3255 = vmatpush2.bf16.msra.mxu0 0
          %3256 = vmatprep.subr.bf16.mxu0 0
          %3257 = vmatpush2.bf16.msra.mxu0 0
          %3258 = vmatprep.subr.bf16.mxu0 0
          %3259 = vmatpush2.bf16.msra.mxu0 0
          %3260 = vmatprep.subr.bf16.mxu0 0
          %3261 = vmatpush2.bf16.msra.mxu0 0
          %3262 = vmatprep.subr.bf16.mxu0 0
          %3263 = vmatpush2.bf16.msra.mxu0 0
          %3264 = vmatprep.subr.bf16.mxu0 0
          %3265 = vmatpush2.bf16.msra.mxu0 0
          %3266 = vmatprep.subr.bf16.mxu0 0
          %3267 = vmatpush2.bf16.msra.mxu0 0
          %3268 = vmatprep.subr.bf16.mxu0 0
          %3269 = vmatpush2.bf16.msra.mxu0 0
          %3270 = vmatprep.mubr.bf16.mxu0 0
          %3271 = vmatmul.mubr.bf16.gmra.mxu0 %v3110
          %v3272 = vpop.f32.mrf.mxu0
          %v3273 = vadd.f32 0.0, %v3272
          %v3274 = vpop.f32.mrf.mxu0
          %v3275 = vadd.f32 0.0, %v3274
          %v3276 = vpop.f32.mrf.mxu0
          %v3277 = vpop.f32.mrf.mxu0
          %3278 = vdwg.mxu0
          %v3279 = vadd.f32 %v3096, %v3150
          %v3280 = vadd.f32 %v3097, %v3152
          %v3281 = vadd.f32 %v3098, %v3191
          %v3282 = vadd.f32 %v3099, %v3193
          %v3283 = vadd.f32 %v3100, %v3232
          %v3284 = vadd.f32 %v3101, %v3234
          %v3285 = vadd.f32 %v3102, %v3273
          %v3286 = vadd.f32 %v3103, %v3275
          %s3287 = scalar_lea.vmem %s0, 20
          %v3288 = vld [vmem:[%s3287] sm:$0xf]
          %3289 = vrot.lane.b32.xlu0 %v325, 116
          %v3290 = vpop.permute.xlu0 %3289
          %3291 = vrot.lane.b32.xlu0 %v333, 116
          %v3292 = vpop.permute.xlu0 %3291
          %3293 = vrot.lane.b32.xlu0 %v332, 116
          %v3294 = vpop.permute.xlu0 %3293
          %3295 = vrot.lane.b32.xlu0 %v334, 116
          %v3296 = vpop.permute.xlu0 %3295
          %3297 = vrot.lane.b32.xlu0 %v342, 116
          %v3298 = vpop.permute.xlu0 %3297
          %3299 = vrot.lane.b32.xlu0 %v350, 116
          %v3300 = vpop.permute.xlu0 %3299
          %3301 = vrot.lane.b32.xlu0 %v349, 116
          %v3302 = vpop.permute.xlu0 %3301
          %3303 = vrot.lane.b32.xlu0 %v351, 116
          %v3304 = vpop.permute.xlu0 %3303
          %3305 = vrot.lane.b32.xlu0 %v358, 116
          %v3306 = vpop.permute.xlu0 %3305
          %vm3307 = vcmask 949248
          %v3308 = vsel %vm3307, %v3290, %v3292
          %v3309 = vsel %vm3307, %v3292, %v3294
          %v3310 = vsel %vm3307, %v3294, %v3296
          %v3311 = vsel %vm3307, %v3296, %v3298
          %v3312 = vsel %vm3307, %v3298, %v3300
          %v3313 = vsel %vm3307, %v3300, %v3302
          %v3314 = vsel %vm3307, %v3302, %v3304
          %v3315 = vsel %vm3307, %v3304, %v3306
          %v3317 = vsel %vm359, %v3288, 0
          %v3320 = vsel %vm363, %v3308, 0
          %v3323 = vsel %vm363, %v3309, 0
          %v3326 = vsel %vm363, %v3310, 0
          %v3329 = vsel %vm363, %v3311, 0
          %v3332 = vsel %vm363, %v3312, 0
          %v3335 = vsel %vm363, %v3313, 0
          %v3338 = vsel %vm363, %v3314, 0
          %v3341 = vsel %vm363, %v3315, 0
          %3343 = vmatprep.subr.bf16.mxu0 0
          %3344 = vmatpush1.bf16.msra.mxu0 0
          %3345 = vmatprep.subr.bf16.mxu0 0
          %3346 = vmatpush1.bf16.msra.mxu0 0
          %3347 = vmatprep.subr.bf16.mxu0 0
          %3348 = vmatpush1.bf16.msra.mxu0 0
          %3349 = vmatprep.subr.bf16.mxu0 0
          %3350 = vmatpush1.bf16.msra.mxu0 0
          %3351 = vmatprep.subr.bf16.mxu0 0
          %3352 = vmatpush1.bf16.msra.mxu0 0
          %3353 = vmatprep.subr.bf16.mxu0 0
          %3354 = vmatpush1.bf16.msra.mxu0 0
          %3355 = vmatprep.subr.bf16.mxu0 0
          %3356 = vmatpush1.bf16.msra.mxu0 0
          %3357 = vmatprep.subr.bf16.mxu0 %v3323
          %3358 = vmatpush1.bf16.msra.mxu0 %v3320
          %3359 = vmatprep.subr.bf16.mxu0 0
          %3360 = vmatpush2.bf16.msra.mxu0 0
          %3361 = vmatprep.subr.bf16.mxu0 0
          %3362 = vmatpush2.bf16.msra.mxu0 0
          %3363 = vmatprep.subr.bf16.mxu0 0
          %3364 = vmatpush2.bf16.msra.mxu0 0
          %3365 = vmatprep.subr.bf16.mxu0 0
          %3366 = vmatpush2.bf16.msra.mxu0 0
          %3367 = vmatprep.subr.bf16.mxu0 0
          %3368 = vmatpush2.bf16.msra.mxu0 0
          %3369 = vmatprep.subr.bf16.mxu0 0
          %3370 = vmatpush2.bf16.msra.mxu0 0
          %3371 = vmatprep.subr.bf16.mxu0 0
          %3372 = vmatpush2.bf16.msra.mxu0 0
          %3373 = vmatprep.subr.bf16.mxu0 0
          %3374 = vmatpush2.bf16.msra.mxu0 0
          %3375 = vmatprep.mubr.bf16.mxu0 0
          %3376 = vmatmul.mubr.bf16.gmra.mxu0 %v3317
          %v3377 = vpop.f32.mrf.mxu0
          %v3378 = vadd.f32 0.0, %v3377
          %v3379 = vpop.f32.mrf.mxu0
          %v3380 = vadd.f32 0.0, %v3379
          %v3381 = vpop.f32.mrf.mxu0
          %v3382 = vpop.f32.mrf.mxu0
          %3383 = vdwg.mxu0
          %3384 = vmatprep.subr.bf16.mxu0 0
          %3385 = vmatpush1.bf16.msra.mxu0 0
          %3386 = vmatprep.subr.bf16.mxu0 0
          %3387 = vmatpush1.bf16.msra.mxu0 0
          %3388 = vmatprep.subr.bf16.mxu0 0
          %3389 = vmatpush1.bf16.msra.mxu0 0
          %3390 = vmatprep.subr.bf16.mxu0 0
          %3391 = vmatpush1.bf16.msra.mxu0 0
          %3392 = vmatprep.subr.bf16.mxu0 0
          %3393 = vmatpush1.bf16.msra.mxu0 0
          %3394 = vmatprep.subr.bf16.mxu0 0
          %3395 = vmatpush1.bf16.msra.mxu0 0
          %3396 = vmatprep.subr.bf16.mxu0 0
          %3397 = vmatpush1.bf16.msra.mxu0 0
          %3398 = vmatprep.subr.bf16.mxu0 %v3329
          %3399 = vmatpush1.bf16.msra.mxu0 %v3326
          %3400 = vmatprep.subr.bf16.mxu0 0
          %3401 = vmatpush2.bf16.msra.mxu0 0
          %3402 = vmatprep.subr.bf16.mxu0 0
          %3403 = vmatpush2.bf16.msra.mxu0 0
          %3404 = vmatprep.subr.bf16.mxu0 0
          %3405 = vmatpush2.bf16.msra.mxu0 0
          %3406 = vmatprep.subr.bf16.mxu0 0
          %3407 = vmatpush2.bf16.msra.mxu0 0
          %3408 = vmatprep.subr.bf16.mxu0 0
          %3409 = vmatpush2.bf16.msra.mxu0 0
          %3410 = vmatprep.subr.bf16.mxu0 0
          %3411 = vmatpush2.bf16.msra.mxu0 0
          %3412 = vmatprep.subr.bf16.mxu0 0
          %3413 = vmatpush2.bf16.msra.mxu0 0
          %3414 = vmatprep.subr.bf16.mxu0 0
          %3415 = vmatpush2.bf16.msra.mxu0 0
          %3416 = vmatprep.mubr.bf16.mxu0 0
          %3417 = vmatmul.mubr.bf16.gmra.mxu0 %v3317
          %v3418 = vpop.f32.mrf.mxu0
          %v3419 = vadd.f32 0.0, %v3418
          %v3420 = vpop.f32.mrf.mxu0
          %v3421 = vadd.f32 0.0, %v3420
          %v3422 = vpop.f32.mrf.mxu0
          %v3423 = vpop.f32.mrf.mxu0
          %3424 = vdwg.mxu0
          %3425 = vmatprep.subr.bf16.mxu0 0
          %3426 = vmatpush1.bf16.msra.mxu0 0
          %3427 = vmatprep.subr.bf16.mxu0 0
          %3428 = vmatpush1.bf16.msra.mxu0 0
          %3429 = vmatprep.subr.bf16.mxu0 0
          %3430 = vmatpush1.bf16.msra.mxu0 0
          %3431 = vmatprep.subr.bf16.mxu0 0
          %3432 = vmatpush1.bf16.msra.mxu0 0
          %3433 = vmatprep.subr.bf16.mxu0 0
          %3434 = vmatpush1.bf16.msra.mxu0 0
          %3435 = vmatprep.subr.bf16.mxu0 0
          %3436 = vmatpush1.bf16.msra.mxu0 0
          %3437 = vmatprep.subr.bf16.mxu0 0
          %3438 = vmatpush1.bf16.msra.mxu0 0
          %3439 = vmatprep.subr.bf16.mxu0 %v3335
          %3440 = vmatpush1.bf16.msra.mxu0 %v3332
          %3441 = vmatprep.subr.bf16.mxu0 0
          %3442 = vmatpush2.bf16.msra.mxu0 0
          %3443 = vmatprep.subr.bf16.mxu0 0
          %3444 = vmatpush2.bf16.msra.mxu0 0
          %3445 = vmatprep.subr.bf16.mxu0 0
          %3446 = vmatpush2.bf16.msra.mxu0 0
          %3447 = vmatprep.subr.bf16.mxu0 0
          %3448 = vmatpush2.bf16.msra.mxu0 0
          %3449 = vmatprep.subr.bf16.mxu0 0
          %3450 = vmatpush2.bf16.msra.mxu0 0
          %3451 = vmatprep.subr.bf16.mxu0 0
          %3452 = vmatpush2.bf16.msra.mxu0 0
          %3453 = vmatprep.subr.bf16.mxu0 0
          %3454 = vmatpush2.bf16.msra.mxu0 0
          %3455 = vmatprep.subr.bf16.mxu0 0
          %3456 = vmatpush2.bf16.msra.mxu0 0
          %3457 = vmatprep.mubr.bf16.mxu0 0
          %3458 = vmatmul.mubr.bf16.gmra.mxu0 %v3317
          %v3459 = vpop.f32.mrf.mxu0
          %v3460 = vadd.f32 0.0, %v3459
          %v3461 = vpop.f32.mrf.mxu0
          %v3462 = vadd.f32 0.0, %v3461
          %v3463 = vpop.f32.mrf.mxu0
          %v3464 = vpop.f32.mrf.mxu0
          %3465 = vdwg.mxu0
          %3466 = vmatprep.subr.bf16.mxu0 0
          %3467 = vmatpush1.bf16.msra.mxu0 0
          %3468 = vmatprep.subr.bf16.mxu0 0
          %3469 = vmatpush1.bf16.msra.mxu0 0
          %3470 = vmatprep.subr.bf16.mxu0 0
          %3471 = vmatpush1.bf16.msra.mxu0 0
          %3472 = vmatprep.subr.bf16.mxu0 0
          %3473 = vmatpush1.bf16.msra.mxu0 0
          %3474 = vmatprep.subr.bf16.mxu0 0
          %3475 = vmatpush1.bf16.msra.mxu0 0
          %3476 = vmatprep.subr.bf16.mxu0 0
          %3477 = vmatpush1.bf16.msra.mxu0 0
          %3478 = vmatprep.subr.bf16.mxu0 0
          %3479 = vmatpush1.bf16.msra.mxu0 0
          %3480 = vmatprep.subr.bf16.mxu0 %v3341
          %3481 = vmatpush1.bf16.msra.mxu0 %v3338
          %3482 = vmatprep.subr.bf16.mxu0 0
          %3483 = vmatpush2.bf16.msra.mxu0 0
          %3484 = vmatprep.subr.bf16.mxu0 0
          %3485 = vmatpush2.bf16.msra.mxu0 0
          %3486 = vmatprep.subr.bf16.mxu0 0
          %3487 = vmatpush2.bf16.msra.mxu0 0
          %3488 = vmatprep.subr.bf16.mxu0 0
          %3489 = vmatpush2.bf16.msra.mxu0 0
          %3490 = vmatprep.subr.bf16.mxu0 0
          %3491 = vmatpush2.bf16.msra.mxu0 0
          %3492 = vmatprep.subr.bf16.mxu0 0
          %3493 = vmatpush2.bf16.msra.mxu0 0
          %3494 = vmatprep.subr.bf16.mxu0 0
          %3495 = vmatpush2.bf16.msra.mxu0 0
          %3496 = vmatprep.subr.bf16.mxu0 0
          %3497 = vmatpush2.bf16.msra.mxu0 0
          %3498 = vmatprep.mubr.bf16.mxu0 0
          %3499 = vmatmul.mubr.bf16.gmra.mxu0 %v3317
          %v3500 = vpop.f32.mrf.mxu0
          %v3501 = vadd.f32 0.0, %v3500
          %v3502 = vpop.f32.mrf.mxu0
          %v3503 = vadd.f32 0.0, %v3502
          %v3504 = vpop.f32.mrf.mxu0
          %v3505 = vpop.f32.mrf.mxu0
          %3506 = vdwg.mxu0
          %v3507 = vadd.f32 %v3279, %v3378
          %v3508 = vadd.f32 %v3280, %v3380
          %v3509 = vadd.f32 %v3281, %v3419
          %v3510 = vadd.f32 %v3282, %v3421
          %v3511 = vadd.f32 %v3283, %v3460
          %v3512 = vadd.f32 %v3284, %v3462
          %v3513 = vadd.f32 %v3285, %v3501
          %v3514 = vadd.f32 %v3286, %v3503
          %s3515 = scalar_lea.vmem %s0, 56
          %v3516 = vld [vmem:[%s3515] sm:$0xf]
          %3517 = vrot.lane.b32.xlu0 %v724, 116
          %v3518 = vpop.permute.xlu0 %3517
          %v3519 = vsel %vm3307, %v3306, %v3518
          %v3521 = vsel %vm359, %v3516, 0
          %v3524 = vsel %vm363, %v3519, 0
          %3526 = vmatprep.subr.bf16.mxu0 0
          %3527 = vmatpush1.bf16.msra.mxu0 0
          %3528 = vmatprep.subr.bf16.mxu0 0
          %3529 = vmatpush1.bf16.msra.mxu0 0
          %3530 = vmatprep.subr.bf16.mxu0 0
          %3531 = vmatpush1.bf16.msra.mxu0 0
          %3532 = vmatprep.subr.bf16.mxu0 0
          %3533 = vmatpush1.bf16.msra.mxu0 0
          %3534 = vmatprep.subr.bf16.mxu0 0
          %3535 = vmatpush1.bf16.msra.mxu0 0
          %3536 = vmatprep.subr.bf16.mxu0 0
          %3537 = vmatpush1.bf16.msra.mxu0 0
          %3538 = vmatprep.subr.bf16.mxu0 0
          %3539 = vmatpush1.bf16.msra.mxu0 0
          %3540 = vmatprep.subr.bf16.mxu0 %v3326
          %3541 = vmatpush1.bf16.msra.mxu0 %v3323
          %3542 = vmatprep.subr.bf16.mxu0 0
          %3543 = vmatpush2.bf16.msra.mxu0 0
          %3544 = vmatprep.subr.bf16.mxu0 0
          %3545 = vmatpush2.bf16.msra.mxu0 0
          %3546 = vmatprep.subr.bf16.mxu0 0
          %3547 = vmatpush2.bf16.msra.mxu0 0
          %3548 = vmatprep.subr.bf16.mxu0 0
          %3549 = vmatpush2.bf16.msra.mxu0 0
          %3550 = vmatprep.subr.bf16.mxu0 0
          %3551 = vmatpush2.bf16.msra.mxu0 0
          %3552 = vmatprep.subr.bf16.mxu0 0
          %3553 = vmatpush2.bf16.msra.mxu0 0
          %3554 = vmatprep.subr.bf16.mxu0 0
          %3555 = vmatpush2.bf16.msra.mxu0 0
          %3556 = vmatprep.subr.bf16.mxu0 0
          %3557 = vmatpush2.bf16.msra.mxu0 0
          %3558 = vmatprep.mubr.bf16.mxu0 0
          %3559 = vmatmul.mubr.bf16.gmra.mxu0 %v3521
          %v3560 = vpop.f32.mrf.mxu0
          %v3561 = vadd.f32 0.0, %v3560
          %v3562 = vpop.f32.mrf.mxu0
          %v3563 = vadd.f32 0.0, %v3562
          %v3564 = vpop.f32.mrf.mxu0
          %v3565 = vpop.f32.mrf.mxu0
          %3566 = vdwg.mxu0
          %3567 = vmatprep.subr.bf16.mxu0 0
          %3568 = vmatpush1.bf16.msra.mxu0 0
          %3569 = vmatprep.subr.bf16.mxu0 0
          %3570 = vmatpush1.bf16.msra.mxu0 0
          %3571 = vmatprep.subr.bf16.mxu0 0
          %3572 = vmatpush1.bf16.msra.mxu0 0
          %3573 = vmatprep.subr.bf16.mxu0 0
          %3574 = vmatpush1.bf16.msra.mxu0 0
          %3575 = vmatprep.subr.bf16.mxu0 0
          %3576 = vmatpush1.bf16.msra.mxu0 0
          %3577 = vmatprep.subr.bf16.mxu0 0
          %3578 = vmatpush1.bf16.msra.mxu0 0
          %3579 = vmatprep.subr.bf16.mxu0 0
          %3580 = vmatpush1.bf16.msra.mxu0 0
          %3581 = vmatprep.subr.bf16.mxu0 %v3332
          %3582 = vmatpush1.bf16.msra.mxu0 %v3329
          %3583 = vmatprep.subr.bf16.mxu0 0
          %3584 = vmatpush2.bf16.msra.mxu0 0
          %3585 = vmatprep.subr.bf16.mxu0 0
          %3586 = vmatpush2.bf16.msra.mxu0 0
          %3587 = vmatprep.subr.bf16.mxu0 0
          %3588 = vmatpush2.bf16.msra.mxu0 0
          %3589 = vmatprep.subr.bf16.mxu0 0
          %3590 = vmatpush2.bf16.msra.mxu0 0
          %3591 = vmatprep.subr.bf16.mxu0 0
          %3592 = vmatpush2.bf16.msra.mxu0 0
          %3593 = vmatprep.subr.bf16.mxu0 0
          %3594 = vmatpush2.bf16.msra.mxu0 0
          %3595 = vmatprep.subr.bf16.mxu0 0
          %3596 = vmatpush2.bf16.msra.mxu0 0
          %3597 = vmatprep.subr.bf16.mxu0 0
          %3598 = vmatpush2.bf16.msra.mxu0 0
          %3599 = vmatprep.mubr.bf16.mxu0 0
          %3600 = vmatmul.mubr.bf16.gmra.mxu0 %v3521
          %v3601 = vpop.f32.mrf.mxu0
          %v3602 = vadd.f32 0.0, %v3601
          %v3603 = vpop.f32.mrf.mxu0
          %v3604 = vadd.f32 0.0, %v3603
          %v3605 = vpop.f32.mrf.mxu0
          %v3606 = vpop.f32.mrf.mxu0
          %3607 = vdwg.mxu0
          %3608 = vmatprep.subr.bf16.mxu0 0
          %3609 = vmatpush1.bf16.msra.mxu0 0
          %3610 = vmatprep.subr.bf16.mxu0 0
          %3611 = vmatpush1.bf16.msra.mxu0 0
          %3612 = vmatprep.subr.bf16.mxu0 0
          %3613 = vmatpush1.bf16.msra.mxu0 0
          %3614 = vmatprep.subr.bf16.mxu0 0
          %3615 = vmatpush1.bf16.msra.mxu0 0
          %3616 = vmatprep.subr.bf16.mxu0 0
          %3617 = vmatpush1.bf16.msra.mxu0 0
          %3618 = vmatprep.subr.bf16.mxu0 0
          %3619 = vmatpush1.bf16.msra.mxu0 0
          %3620 = vmatprep.subr.bf16.mxu0 0
          %3621 = vmatpush1.bf16.msra.mxu0 0
          %3622 = vmatprep.subr.bf16.mxu0 %v3338
          %3623 = vmatpush1.bf16.msra.mxu0 %v3335
          %3624 = vmatprep.subr.bf16.mxu0 0
          %3625 = vmatpush2.bf16.msra.mxu0 0
          %3626 = vmatprep.subr.bf16.mxu0 0
          %3627 = vmatpush2.bf16.msra.mxu0 0
          %3628 = vmatprep.subr.bf16.mxu0 0
          %3629 = vmatpush2.bf16.msra.mxu0 0
          %3630 = vmatprep.subr.bf16.mxu0 0
          %3631 = vmatpush2.bf16.msra.mxu0 0
          %3632 = vmatprep.subr.bf16.mxu0 0
          %3633 = vmatpush2.bf16.msra.mxu0 0
          %3634 = vmatprep.subr.bf16.mxu0 0
          %3635 = vmatpush2.bf16.msra.mxu0 0
          %3636 = vmatprep.subr.bf16.mxu0 0
          %3637 = vmatpush2.bf16.msra.mxu0 0
          %3638 = vmatprep.subr.bf16.mxu0 0
          %3639 = vmatpush2.bf16.msra.mxu0 0
          %3640 = vmatprep.mubr.bf16.mxu0 0
          %3641 = vmatmul.mubr.bf16.gmra.mxu0 %v3521
          %v3642 = vpop.f32.mrf.mxu0
          %v3643 = vadd.f32 0.0, %v3642
          %v3644 = vpop.f32.mrf.mxu0
          %v3645 = vadd.f32 0.0, %v3644
          %v3646 = vpop.f32.mrf.mxu0
          %v3647 = vpop.f32.mrf.mxu0
          %3648 = vdwg.mxu0
          %3649 = vmatprep.subr.bf16.mxu0 0
          %3650 = vmatpush1.bf16.msra.mxu0 0
          %3651 = vmatprep.subr.bf16.mxu0 0
          %3652 = vmatpush1.bf16.msra.mxu0 0
          %3653 = vmatprep.subr.bf16.mxu0 0
          %3654 = vmatpush1.bf16.msra.mxu0 0
          %3655 = vmatprep.subr.bf16.mxu0 0
          %3656 = vmatpush1.bf16.msra.mxu0 0
          %3657 = vmatprep.subr.bf16.mxu0 0
          %3658 = vmatpush1.bf16.msra.mxu0 0
          %3659 = vmatprep.subr.bf16.mxu0 0
          %3660 = vmatpush1.bf16.msra.mxu0 0
          %3661 = vmatprep.subr.bf16.mxu0 0
          %3662 = vmatpush1.bf16.msra.mxu0 0
          %3663 = vmatprep.subr.bf16.mxu0 %v3524
          %3664 = vmatpush1.bf16.msra.mxu0 %v3341
          %3665 = vmatprep.subr.bf16.mxu0 0
          %3666 = vmatpush2.bf16.msra.mxu0 0
          %3667 = vmatprep.subr.bf16.mxu0 0
          %3668 = vmatpush2.bf16.msra.mxu0 0
          %3669 = vmatprep.subr.bf16.mxu0 0
          %3670 = vmatpush2.bf16.msra.mxu0 0
          %3671 = vmatprep.subr.bf16.mxu0 0
          %3672 = vmatpush2.bf16.msra.mxu0 0
          %3673 = vmatprep.subr.bf16.mxu0 0
          %3674 = vmatpush2.bf16.msra.mxu0 0
          %3675 = vmatprep.subr.bf16.mxu0 0
          %3676 = vmatpush2.bf16.msra.mxu0 0
          %3677 = vmatprep.subr.bf16.mxu0 0
          %3678 = vmatpush2.bf16.msra.mxu0 0
          %3679 = vmatprep.subr.bf16.mxu0 0
          %3680 = vmatpush2.bf16.msra.mxu0 0
          %3681 = vmatprep.mubr.bf16.mxu0 0
          %3682 = vmatmul.mubr.bf16.gmra.mxu0 %v3521
          %v3683 = vpop.f32.mrf.mxu0
          %v3684 = vadd.f32 0.0, %v3683
          %v3685 = vpop.f32.mrf.mxu0
          %v3686 = vadd.f32 0.0, %v3685
          %v3687 = vpop.f32.mrf.mxu0
          %v3688 = vpop.f32.mrf.mxu0
          %3689 = vdwg.mxu0
          %v3690 = vadd.f32 %v3507, %v3561
          %v3691 = vadd.f32 %v3508, %v3563
          %v3692 = vadd.f32 %v3509, %v3602
          %v3693 = vadd.f32 %v3510, %v3604
          %v3694 = vadd.f32 %v3511, %v3643
          %v3695 = vadd.f32 %v3512, %v3645
          %v3696 = vadd.f32 %v3513, %v3684
          %v3697 = vadd.f32 %v3514, %v3686
          %s3698 = scalar_lea.vmem %s0, 92
          %v3699 = vld [vmem:[%s3698] sm:$0xf]
          %3700 = vrot.lane.b32.xlu0 %v1323, 116
          %v3701 = vpop.permute.xlu0 %3700
          %v3702 = vsel %vm3307, %v3518, %v3701
          %v3704 = vsel %vm359, %v3699, 0
          %v3707 = vsel %vm363, %v3702, 0
          %3709 = vmatprep.subr.bf16.mxu0 0
          %3710 = vmatpush1.bf16.msra.mxu0 0
          %3711 = vmatprep.subr.bf16.mxu0 0
          %3712 = vmatpush1.bf16.msra.mxu0 0
          %3713 = vmatprep.subr.bf16.mxu0 0
          %3714 = vmatpush1.bf16.msra.mxu0 0
          %3715 = vmatprep.subr.bf16.mxu0 0
          %3716 = vmatpush1.bf16.msra.mxu0 0
          %3717 = vmatprep.subr.bf16.mxu0 0
          %3718 = vmatpush1.bf16.msra.mxu0 0
          %3719 = vmatprep.subr.bf16.mxu0 0
          %3720 = vmatpush1.bf16.msra.mxu0 0
          %3721 = vmatprep.subr.bf16.mxu0 0
          %3722 = vmatpush1.bf16.msra.mxu0 0
          %3723 = vmatprep.subr.bf16.mxu0 %v3329
          %3724 = vmatpush1.bf16.msra.mxu0 %v3326
          %3725 = vmatprep.subr.bf16.mxu0 0
          %3726 = vmatpush2.bf16.msra.mxu0 0
          %3727 = vmatprep.subr.bf16.mxu0 0
          %3728 = vmatpush2.bf16.msra.mxu0 0
          %3729 = vmatprep.subr.bf16.mxu0 0
          %3730 = vmatpush2.bf16.msra.mxu0 0
          %3731 = vmatprep.subr.bf16.mxu0 0
          %3732 = vmatpush2.bf16.msra.mxu0 0
          %3733 = vmatprep.subr.bf16.mxu0 0
          %3734 = vmatpush2.bf16.msra.mxu0 0
          %3735 = vmatprep.subr.bf16.mxu0 0
          %3736 = vmatpush2.bf16.msra.mxu0 0
          %3737 = vmatprep.subr.bf16.mxu0 0
          %3738 = vmatpush2.bf16.msra.mxu0 0
          %3739 = vmatprep.subr.bf16.mxu0 0
          %3740 = vmatpush2.bf16.msra.mxu0 0
          %3741 = vmatprep.mubr.bf16.mxu0 0
          %3742 = vmatmul.mubr.bf16.gmra.mxu0 %v3704
          %v3743 = vpop.f32.mrf.mxu0
          %v3744 = vadd.f32 0.0, %v3743
          %v3745 = vpop.f32.mrf.mxu0
          %v3746 = vadd.f32 0.0, %v3745
          %v3747 = vpop.f32.mrf.mxu0
          %v3748 = vpop.f32.mrf.mxu0
          %3749 = vdwg.mxu0
          %3750 = vmatprep.subr.bf16.mxu0 0
          %3751 = vmatpush1.bf16.msra.mxu0 0
          %3752 = vmatprep.subr.bf16.mxu0 0
          %3753 = vmatpush1.bf16.msra.mxu0 0
          %3754 = vmatprep.subr.bf16.mxu0 0
          %3755 = vmatpush1.bf16.msra.mxu0 0
          %3756 = vmatprep.subr.bf16.mxu0 0
          %3757 = vmatpush1.bf16.msra.mxu0 0
          %3758 = vmatprep.subr.bf16.mxu0 0
          %3759 = vmatpush1.bf16.msra.mxu0 0
          %3760 = vmatprep.subr.bf16.mxu0 0
          %3761 = vmatpush1.bf16.msra.mxu0 0
          %3762 = vmatprep.subr.bf16.mxu0 0
          %3763 = vmatpush1.bf16.msra.mxu0 0
          %3764 = vmatprep.subr.bf16.mxu0 %v3335
          %3765 = vmatpush1.bf16.msra.mxu0 %v3332
          %3766 = vmatprep.subr.bf16.mxu0 0
          %3767 = vmatpush2.bf16.msra.mxu0 0
          %3768 = vmatprep.subr.bf16.mxu0 0
          %3769 = vmatpush2.bf16.msra.mxu0 0
          %3770 = vmatprep.subr.bf16.mxu0 0
          %3771 = vmatpush2.bf16.msra.mxu0 0
          %3772 = vmatprep.subr.bf16.mxu0 0
          %3773 = vmatpush2.bf16.msra.mxu0 0
          %3774 = vmatprep.subr.bf16.mxu0 0
          %3775 = vmatpush2.bf16.msra.mxu0 0
          %3776 = vmatprep.subr.bf16.mxu0 0
          %3777 = vmatpush2.bf16.msra.mxu0 0
          %3778 = vmatprep.subr.bf16.mxu0 0
          %3779 = vmatpush2.bf16.msra.mxu0 0
          %3780 = vmatprep.subr.bf16.mxu0 0
          %3781 = vmatpush2.bf16.msra.mxu0 0
          %3782 = vmatprep.mubr.bf16.mxu0 0
          %3783 = vmatmul.mubr.bf16.gmra.mxu0 %v3704
          %v3784 = vpop.f32.mrf.mxu0
          %v3785 = vadd.f32 0.0, %v3784
          %v3786 = vpop.f32.mrf.mxu0
          %v3787 = vadd.f32 0.0, %v3786
          %v3788 = vpop.f32.mrf.mxu0
          %v3789 = vpop.f32.mrf.mxu0
          %3790 = vdwg.mxu0
          %3791 = vmatprep.subr.bf16.mxu0 0
          %3792 = vmatpush1.bf16.msra.mxu0 0
          %3793 = vmatprep.subr.bf16.mxu0 0
          %3794 = vmatpush1.bf16.msra.mxu0 0
          %3795 = vmatprep.subr.bf16.mxu0 0
          %3796 = vmatpush1.bf16.msra.mxu0 0
          %3797 = vmatprep.subr.bf16.mxu0 0
          %3798 = vmatpush1.bf16.msra.mxu0 0
          %3799 = vmatprep.subr.bf16.mxu0 0
          %3800 = vmatpush1.bf16.msra.mxu0 0
          %3801 = vmatprep.subr.bf16.mxu0 0
          %3802 = vmatpush1.bf16.msra.mxu0 0
          %3803 = vmatprep.subr.bf16.mxu0 0
          %3804 = vmatpush1.bf16.msra.mxu0 0
          %3805 = vmatprep.subr.bf16.mxu0 %v3341
          %3806 = vmatpush1.bf16.msra.mxu0 %v3338
          %3807 = vmatprep.subr.bf16.mxu0 0
          %3808 = vmatpush2.bf16.msra.mxu0 0
          %3809 = vmatprep.subr.bf16.mxu0 0
          %3810 = vmatpush2.bf16.msra.mxu0 0
          %3811 = vmatprep.subr.bf16.mxu0 0
          %3812 = vmatpush2.bf16.msra.mxu0 0
          %3813 = vmatprep.subr.bf16.mxu0 0
          %3814 = vmatpush2.bf16.msra.mxu0 0
          %3815 = vmatprep.subr.bf16.mxu0 0
          %3816 = vmatpush2.bf16.msra.mxu0 0
          %3817 = vmatprep.subr.bf16.mxu0 0
          %3818 = vmatpush2.bf16.msra.mxu0 0
          %3819 = vmatprep.subr.bf16.mxu0 0
          %3820 = vmatpush2.bf16.msra.mxu0 0
          %3821 = vmatprep.subr.bf16.mxu0 0
          %3822 = vmatpush2.bf16.msra.mxu0 0
          %3823 = vmatprep.mubr.bf16.mxu0 0
          %3824 = vmatmul.mubr.bf16.gmra.mxu0 %v3704
          %v3825 = vpop.f32.mrf.mxu0
          %v3826 = vadd.f32 0.0, %v3825
          %v3827 = vpop.f32.mrf.mxu0
          %v3828 = vadd.f32 0.0, %v3827
          %v3829 = vpop.f32.mrf.mxu0
          %v3830 = vpop.f32.mrf.mxu0
          %3831 = vdwg.mxu0
          %3832 = vmatprep.subr.bf16.mxu0 0
          %3833 = vmatpush1.bf16.msra.mxu0 0
          %3834 = vmatprep.subr.bf16.mxu0 0
          %3835 = vmatpush1.bf16.msra.mxu0 0
          %3836 = vmatprep.subr.bf16.mxu0 0
          %3837 = vmatpush1.bf16.msra.mxu0 0
          %3838 = vmatprep.subr.bf16.mxu0 0
          %3839 = vmatpush1.bf16.msra.mxu0 0
          %3840 = vmatprep.subr.bf16.mxu0 0
          %3841 = vmatpush1.bf16.msra.mxu0 0
          %3842 = vmatprep.subr.bf16.mxu0 0
          %3843 = vmatpush1.bf16.msra.mxu0 0
          %3844 = vmatprep.subr.bf16.mxu0 0
          %3845 = vmatpush1.bf16.msra.mxu0 0
          %3846 = vmatprep.subr.bf16.mxu0 %v3707
          %3847 = vmatpush1.bf16.msra.mxu0 %v3524
          %3848 = vmatprep.subr.bf16.mxu0 0
          %3849 = vmatpush2.bf16.msra.mxu0 0
          %3850 = vmatprep.subr.bf16.mxu0 0
          %3851 = vmatpush2.bf16.msra.mxu0 0
          %3852 = vmatprep.subr.bf16.mxu0 0
          %3853 = vmatpush2.bf16.msra.mxu0 0
          %3854 = vmatprep.subr.bf16.mxu0 0
          %3855 = vmatpush2.bf16.msra.mxu0 0
          %3856 = vmatprep.subr.bf16.mxu0 0
          %3857 = vmatpush2.bf16.msra.mxu0 0
          %3858 = vmatprep.subr.bf16.mxu0 0
          %3859 = vmatpush2.bf16.msra.mxu0 0
          %3860 = vmatprep.subr.bf16.mxu0 0
          %3861 = vmatpush2.bf16.msra.mxu0 0
          %3862 = vmatprep.subr.bf16.mxu0 0
          %3863 = vmatpush2.bf16.msra.mxu0 0
          %3864 = vmatprep.mubr.bf16.mxu0 0
          %3865 = vmatmul.mubr.bf16.gmra.mxu0 %v3704
          %v3866 = vpop.f32.mrf.mxu0
          %v3867 = vadd.f32 0.0, %v3866
          %v3868 = vpop.f32.mrf.mxu0
          %v3869 = vadd.f32 0.0, %v3868
          %v3870 = vpop.f32.mrf.mxu0
          %v3871 = vpop.f32.mrf.mxu0
          %3872 = vdwg.mxu0
          %v3873 = vadd.f32 %v3690, %v3744
          %v3874 = vadd.f32 %v3691, %v3746
          %v3875 = vadd.f32 %v3692, %v3785
          %v3876 = vadd.f32 %v3693, %v3787
          %v3877 = vadd.f32 %v3694, %v3826
          %v3878 = vadd.f32 %v3695, %v3828
          %v3879 = vadd.f32 %v3696, %v3867
          %v3880 = vadd.f32 %v3697, %v3869
          %s3881 = scalar_lea.vmem %s0, 24
          %v3882 = vld [vmem:[%s3881] sm:$0xf]
          %3883 = vrot.lane.b32.xlu0 %v325, 108
          %v3884 = vpop.permute.xlu0 %3883
          %3885 = vrot.lane.b32.xlu0 %v333, 108
          %v3886 = vpop.permute.xlu0 %3885
          %3887 = vrot.lane.b32.xlu0 %v332, 108
          %v3888 = vpop.permute.xlu0 %3887
          %3889 = vrot.lane.b32.xlu0 %v334, 108
          %v3890 = vpop.permute.xlu0 %3889
          %3891 = vrot.lane.b32.xlu0 %v342, 108
          %v3892 = vpop.permute.xlu0 %3891
          %3893 = vrot.lane.b32.xlu0 %v350, 108
          %v3894 = vpop.permute.xlu0 %3893
          %3895 = vrot.lane.b32.xlu0 %v349, 108
          %v3896 = vpop.permute.xlu0 %3895
          %3897 = vrot.lane.b32.xlu0 %v351, 108
          %v3898 = vpop.permute.xlu0 %3897
          %3899 = vrot.lane.b32.xlu0 %v358, 108
          %v3900 = vpop.permute.xlu0 %3899
          %vm3901 = vcmask 883712
          %v3902 = vsel %vm3901, %v3884, %v3886
          %v3903 = vsel %vm3901, %v3886, %v3888
          %v3904 = vsel %vm3901, %v3888, %v3890
          %v3905 = vsel %vm3901, %v3890, %v3892
          %v3906 = vsel %vm3901, %v3892, %v3894
          %v3907 = vsel %vm3901, %v3894, %v3896
          %v3908 = vsel %vm3901, %v3896, %v3898
          %v3909 = vsel %vm3901, %v3898, %v3900
          %v3911 = vsel %vm359, %v3882, 0
          %v3914 = vsel %vm363, %v3902, 0
          %v3917 = vsel %vm363, %v3903, 0
          %v3920 = vsel %vm363, %v3904, 0
          %v3923 = vsel %vm363, %v3905, 0
          %v3926 = vsel %vm363, %v3906, 0
          %v3929 = vsel %vm363, %v3907, 0
          %v3932 = vsel %vm363, %v3908, 0
          %v3935 = vsel %vm363, %v3909, 0
          %3937 = vmatprep.subr.bf16.mxu0 0
          %3938 = vmatpush1.bf16.msra.mxu0 0
          %3939 = vmatprep.subr.bf16.mxu0 0
          %3940 = vmatpush1.bf16.msra.mxu0 0
          %3941 = vmatprep.subr.bf16.mxu0 0
          %3942 = vmatpush1.bf16.msra.mxu0 0
          %3943 = vmatprep.subr.bf16.mxu0 0
          %3944 = vmatpush1.bf16.msra.mxu0 0
          %3945 = vmatprep.subr.bf16.mxu0 0
          %3946 = vmatpush1.bf16.msra.mxu0 0
          %3947 = vmatprep.subr.bf16.mxu0 0
          %3948 = vmatpush1.bf16.msra.mxu0 0
          %3949 = vmatprep.subr.bf16.mxu0 0
          %3950 = vmatpush1.bf16.msra.mxu0 0
          %3951 = vmatprep.subr.bf16.mxu0 %v3917
          %3952 = vmatpush1.bf16.msra.mxu0 %v3914
          %3953 = vmatprep.subr.bf16.mxu0 0
          %3954 = vmatpush2.bf16.msra.mxu0 0
          %3955 = vmatprep.subr.bf16.mxu0 0
          %3956 = vmatpush2.bf16.msra.mxu0 0
          %3957 = vmatprep.subr.bf16.mxu0 0
          %3958 = vmatpush2.bf16.msra.mxu0 0
          %3959 = vmatprep.subr.bf16.mxu0 0
          %3960 = vmatpush2.bf16.msra.mxu0 0
          %3961 = vmatprep.subr.bf16.mxu0 0
          %3962 = vmatpush2.bf16.msra.mxu0 0
          %3963 = vmatprep.subr.bf16.mxu0 0
          %3964 = vmatpush2.bf16.msra.mxu0 0
          %3965 = vmatprep.subr.bf16.mxu0 0
          %3966 = vmatpush2.bf16.msra.mxu0 0
          %3967 = vmatprep.subr.bf16.mxu0 0
          %3968 = vmatpush2.bf16.msra.mxu0 0
          %3969 = vmatprep.mubr.bf16.mxu0 0
          %3970 = vmatmul.mubr.bf16.gmra.mxu0 %v3911
          %v3971 = vpop.f32.mrf.mxu0
          %v3972 = vadd.f32 0.0, %v3971
          %v3973 = vpop.f32.mrf.mxu0
          %v3974 = vadd.f32 0.0, %v3973
          %v3975 = vpop.f32.mrf.mxu0
          %v3976 = vpop.f32.mrf.mxu0
          %3977 = vdwg.mxu0
          %3978 = vmatprep.subr.bf16.mxu0 0
          %3979 = vmatpush1.bf16.msra.mxu0 0
          %3980 = vmatprep.subr.bf16.mxu0 0
          %3981 = vmatpush1.bf16.msra.mxu0 0
          %3982 = vmatprep.subr.bf16.mxu0 0
          %3983 = vmatpush1.bf16.msra.mxu0 0
          %3984 = vmatprep.subr.bf16.mxu0 0
          %3985 = vmatpush1.bf16.msra.mxu0 0
          %3986 = vmatprep.subr.bf16.mxu0 0
          %3987 = vmatpush1.bf16.msra.mxu0 0
          %3988 = vmatprep.subr.bf16.mxu0 0
          %3989 = vmatpush1.bf16.msra.mxu0 0
          %3990 = vmatprep.subr.bf16.mxu0 0
          %3991 = vmatpush1.bf16.msra.mxu0 0
          %3992 = vmatprep.subr.bf16.mxu0 %v3923
          %3993 = vmatpush1.bf16.msra.mxu0 %v3920
          %3994 = vmatprep.subr.bf16.mxu0 0
          %3995 = vmatpush2.bf16.msra.mxu0 0
          %3996 = vmatprep.subr.bf16.mxu0 0
          %3997 = vmatpush2.bf16.msra.mxu0 0
          %3998 = vmatprep.subr.bf16.mxu0 0
          %3999 = vmatpush2.bf16.msra.mxu0 0
          %4000 = vmatprep.subr.bf16.mxu0 0
          %4001 = vmatpush2.bf16.msra.mxu0 0
          %4002 = vmatprep.subr.bf16.mxu0 0
          %4003 = vmatpush2.bf16.msra.mxu0 0
          %4004 = vmatprep.subr.bf16.mxu0 0
          %4005 = vmatpush2.bf16.msra.mxu0 0
          %4006 = vmatprep.subr.bf16.mxu0 0
          %4007 = vmatpush2.bf16.msra.mxu0 0
          %4008 = vmatprep.subr.bf16.mxu0 0
          %4009 = vmatpush2.bf16.msra.mxu0 0
          %4010 = vmatprep.mubr.bf16.mxu0 0
          %4011 = vmatmul.mubr.bf16.gmra.mxu0 %v3911
          %v4012 = vpop.f32.mrf.mxu0
          %v4013 = vadd.f32 0.0, %v4012
          %v4014 = vpop.f32.mrf.mxu0
          %v4015 = vadd.f32 0.0, %v4014
          %v4016 = vpop.f32.mrf.mxu0
          %v4017 = vpop.f32.mrf.mxu0
          %4018 = vdwg.mxu0
          %4019 = vmatprep.subr.bf16.mxu0 0
          %4020 = vmatpush1.bf16.msra.mxu0 0
          %4021 = vmatprep.subr.bf16.mxu0 0
          %4022 = vmatpush1.bf16.msra.mxu0 0
          %4023 = vmatprep.subr.bf16.mxu0 0
          %4024 = vmatpush1.bf16.msra.mxu0 0
          %4025 = vmatprep.subr.bf16.mxu0 0
          %4026 = vmatpush1.bf16.msra.mxu0 0
          %4027 = vmatprep.subr.bf16.mxu0 0
          %4028 = vmatpush1.bf16.msra.mxu0 0
          %4029 = vmatprep.subr.bf16.mxu0 0
          %4030 = vmatpush1.bf16.msra.mxu0 0
          %4031 = vmatprep.subr.bf16.mxu0 0
          %4032 = vmatpush1.bf16.msra.mxu0 0
          %4033 = vmatprep.subr.bf16.mxu0 %v3929
          %4034 = vmatpush1.bf16.msra.mxu0 %v3926
          %4035 = vmatprep.subr.bf16.mxu0 0
          %4036 = vmatpush2.bf16.msra.mxu0 0
          %4037 = vmatprep.subr.bf16.mxu0 0
          %4038 = vmatpush2.bf16.msra.mxu0 0
          %4039 = vmatprep.subr.bf16.mxu0 0
          %4040 = vmatpush2.bf16.msra.mxu0 0
          %4041 = vmatprep.subr.bf16.mxu0 0
          %4042 = vmatpush2.bf16.msra.mxu0 0
          %4043 = vmatprep.subr.bf16.mxu0 0
          %4044 = vmatpush2.bf16.msra.mxu0 0
          %4045 = vmatprep.subr.bf16.mxu0 0
          %4046 = vmatpush2.bf16.msra.mxu0 0
          %4047 = vmatprep.subr.bf16.mxu0 0
          %4048 = vmatpush2.bf16.msra.mxu0 0
          %4049 = vmatprep.subr.bf16.mxu0 0
          %4050 = vmatpush2.bf16.msra.mxu0 0
          %4051 = vmatprep.mubr.bf16.mxu0 0
          %4052 = vmatmul.mubr.bf16.gmra.mxu0 %v3911
          %v4053 = vpop.f32.mrf.mxu0
          %v4054 = vadd.f32 0.0, %v4053
          %v4055 = vpop.f32.mrf.mxu0
          %v4056 = vadd.f32 0.0, %v4055
          %v4057 = vpop.f32.mrf.mxu0
          %v4058 = vpop.f32.mrf.mxu0
          %4059 = vdwg.mxu0
          %4060 = vmatprep.subr.bf16.mxu0 0
          %4061 = vmatpush1.bf16.msra.mxu0 0
          %4062 = vmatprep.subr.bf16.mxu0 0
          %4063 = vmatpush1.bf16.msra.mxu0 0
          %4064 = vmatprep.subr.bf16.mxu0 0
          %4065 = vmatpush1.bf16.msra.mxu0 0
          %4066 = vmatprep.subr.bf16.mxu0 0
          %4067 = vmatpush1.bf16.msra.mxu0 0
          %4068 = vmatprep.subr.bf16.mxu0 0
          %4069 = vmatpush1.bf16.msra.mxu0 0
          %4070 = vmatprep.subr.bf16.mxu0 0
          %4071 = vmatpush1.bf16.msra.mxu0 0
          %4072 = vmatprep.subr.bf16.mxu0 0
          %4073 = vmatpush1.bf16.msra.mxu0 0
          %4074 = vmatprep.subr.bf16.mxu0 %v3935
          %4075 = vmatpush1.bf16.msra.mxu0 %v3932
          %4076 = vmatprep.subr.bf16.mxu0 0
          %4077 = vmatpush2.bf16.msra.mxu0 0
          %4078 = vmatprep.subr.bf16.mxu0 0
          %4079 = vmatpush2.bf16.msra.mxu0 0
          %4080 = vmatprep.subr.bf16.mxu0 0
          %4081 = vmatpush2.bf16.msra.mxu0 0
          %4082 = vmatprep.subr.bf16.mxu0 0
          %4083 = vmatpush2.bf16.msra.mxu0 0
          %4084 = vmatprep.subr.bf16.mxu0 0
          %4085 = vmatpush2.bf16.msra.mxu0 0
          %4086 = vmatprep.subr.bf16.mxu0 0
          %4087 = vmatpush2.bf16.msra.mxu0 0
          %4088 = vmatprep.subr.bf16.mxu0 0
          %4089 = vmatpush2.bf16.msra.mxu0 0
          %4090 = vmatprep.subr.bf16.mxu0 0
          %4091 = vmatpush2.bf16.msra.mxu0 0
          %4092 = vmatprep.mubr.bf16.mxu0 0
          %4093 = vmatmul.mubr.bf16.gmra.mxu0 %v3911
          %v4094 = vpop.f32.mrf.mxu0
          %v4095 = vadd.f32 0.0, %v4094
          %v4096 = vpop.f32.mrf.mxu0
          %v4097 = vadd.f32 0.0, %v4096
          %v4098 = vpop.f32.mrf.mxu0
          %v4099 = vpop.f32.mrf.mxu0
          %4100 = vdwg.mxu0
          %v4101 = vadd.f32 %v3873, %v3972
          %v4102 = vadd.f32 %v3874, %v3974
          %v4103 = vadd.f32 %v3875, %v4013
          %v4104 = vadd.f32 %v3876, %v4015
          %v4105 = vadd.f32 %v3877, %v4054
          %v4106 = vadd.f32 %v3878, %v4056
          %v4107 = vadd.f32 %v3879, %v4095
          %v4108 = vadd.f32 %v3880, %v4097
          %s4109 = scalar_lea.vmem %s0, 60
          %v4110 = vld [vmem:[%s4109] sm:$0xf]
          %4111 = vrot.lane.b32.xlu0 %v724, 108
          %v4112 = vpop.permute.xlu0 %4111
          %v4113 = vsel %vm3901, %v3900, %v4112
          %v4115 = vsel %vm359, %v4110, 0
          %v4118 = vsel %vm363, %v4113, 0
          %4120 = vmatprep.subr.bf16.mxu0 0
          %4121 = vmatpush1.bf16.msra.mxu0 0
          %4122 = vmatprep.subr.bf16.mxu0 0
          %4123 = vmatpush1.bf16.msra.mxu0 0
          %4124 = vmatprep.subr.bf16.mxu0 0
          %4125 = vmatpush1.bf16.msra.mxu0 0
          %4126 = vmatprep.subr.bf16.mxu0 0
          %4127 = vmatpush1.bf16.msra.mxu0 0
          %4128 = vmatprep.subr.bf16.mxu0 0
          %4129 = vmatpush1.bf16.msra.mxu0 0
          %4130 = vmatprep.subr.bf16.mxu0 0
          %4131 = vmatpush1.bf16.msra.mxu0 0
          %4132 = vmatprep.subr.bf16.mxu0 0
          %4133 = vmatpush1.bf16.msra.mxu0 0
          %4134 = vmatprep.subr.bf16.mxu0 %v3920
          %4135 = vmatpush1.bf16.msra.mxu0 %v3917
          %4136 = vmatprep.subr.bf16.mxu0 0
          %4137 = vmatpush2.bf16.msra.mxu0 0
          %4138 = vmatprep.subr.bf16.mxu0 0
          %4139 = vmatpush2.bf16.msra.mxu0 0
          %4140 = vmatprep.subr.bf16.mxu0 0
          %4141 = vmatpush2.bf16.msra.mxu0 0
          %4142 = vmatprep.subr.bf16.mxu0 0
          %4143 = vmatpush2.bf16.msra.mxu0 0
          %4144 = vmatprep.subr.bf16.mxu0 0
          %4145 = vmatpush2.bf16.msra.mxu0 0
          %4146 = vmatprep.subr.bf16.mxu0 0
          %4147 = vmatpush2.bf16.msra.mxu0 0
          %4148 = vmatprep.subr.bf16.mxu0 0
          %4149 = vmatpush2.bf16.msra.mxu0 0
          %4150 = vmatprep.subr.bf16.mxu0 0
          %4151 = vmatpush2.bf16.msra.mxu0 0
          %4152 = vmatprep.mubr.bf16.mxu0 0
          %4153 = vmatmul.mubr.bf16.gmra.mxu0 %v4115
          %v4154 = vpop.f32.mrf.mxu0
          %v4155 = vadd.f32 0.0, %v4154
          %v4156 = vpop.f32.mrf.mxu0
          %v4157 = vadd.f32 0.0, %v4156
          %v4158 = vpop.f32.mrf.mxu0
          %v4159 = vpop.f32.mrf.mxu0
          %4160 = vdwg.mxu0
          %4161 = vmatprep.subr.bf16.mxu0 0
          %4162 = vmatpush1.bf16.msra.mxu0 0
          %4163 = vmatprep.subr.bf16.mxu0 0
          %4164 = vmatpush1.bf16.msra.mxu0 0
          %4165 = vmatprep.subr.bf16.mxu0 0
          %4166 = vmatpush1.bf16.msra.mxu0 0
          %4167 = vmatprep.subr.bf16.mxu0 0
          %4168 = vmatpush1.bf16.msra.mxu0 0
          %4169 = vmatprep.subr.bf16.mxu0 0
          %4170 = vmatpush1.bf16.msra.mxu0 0
          %4171 = vmatprep.subr.bf16.mxu0 0
          %4172 = vmatpush1.bf16.msra.mxu0 0
          %4173 = vmatprep.subr.bf16.mxu0 0
          %4174 = vmatpush1.bf16.msra.mxu0 0
          %4175 = vmatprep.subr.bf16.mxu0 %v3926
          %4176 = vmatpush1.bf16.msra.mxu0 %v3923
          %4177 = vmatprep.subr.bf16.mxu0 0
          %4178 = vmatpush2.bf16.msra.mxu0 0
          %4179 = vmatprep.subr.bf16.mxu0 0
          %4180 = vmatpush2.bf16.msra.mxu0 0
          %4181 = vmatprep.subr.bf16.mxu0 0
          %4182 = vmatpush2.bf16.msra.mxu0 0
          %4183 = vmatprep.subr.bf16.mxu0 0
          %4184 = vmatpush2.bf16.msra.mxu0 0
          %4185 = vmatprep.subr.bf16.mxu0 0
          %4186 = vmatpush2.bf16.msra.mxu0 0
          %4187 = vmatprep.subr.bf16.mxu0 0
          %4188 = vmatpush2.bf16.msra.mxu0 0
          %4189 = vmatprep.subr.bf16.mxu0 0
          %4190 = vmatpush2.bf16.msra.mxu0 0
          %4191 = vmatprep.subr.bf16.mxu0 0
          %4192 = vmatpush2.bf16.msra.mxu0 0
          %4193 = vmatprep.mubr.bf16.mxu0 0
          %4194 = vmatmul.mubr.bf16.gmra.mxu0 %v4115
          %v4195 = vpop.f32.mrf.mxu0
          %v4196 = vadd.f32 0.0, %v4195
          %v4197 = vpop.f32.mrf.mxu0
          %v4198 = vadd.f32 0.0, %v4197
          %v4199 = vpop.f32.mrf.mxu0
          %v4200 = vpop.f32.mrf.mxu0
          %4201 = vdwg.mxu0
          %4202 = vmatprep.subr.bf16.mxu0 0
          %4203 = vmatpush1.bf16.msra.mxu0 0
          %4204 = vmatprep.subr.bf16.mxu0 0
          %4205 = vmatpush1.bf16.msra.mxu0 0
          %4206 = vmatprep.subr.bf16.mxu0 0
          %4207 = vmatpush1.bf16.msra.mxu0 0
          %4208 = vmatprep.subr.bf16.mxu0 0
          %4209 = vmatpush1.bf16.msra.mxu0 0
          %4210 = vmatprep.subr.bf16.mxu0 0
          %4211 = vmatpush1.bf16.msra.mxu0 0
          %4212 = vmatprep.subr.bf16.mxu0 0
          %4213 = vmatpush1.bf16.msra.mxu0 0
          %4214 = vmatprep.subr.bf16.mxu0 0
          %4215 = vmatpush1.bf16.msra.mxu0 0
          %4216 = vmatprep.subr.bf16.mxu0 %v3932
          %4217 = vmatpush1.bf16.msra.mxu0 %v3929
          %4218 = vmatprep.subr.bf16.mxu0 0
          %4219 = vmatpush2.bf16.msra.mxu0 0
          %4220 = vmatprep.subr.bf16.mxu0 0
          %4221 = vmatpush2.bf16.msra.mxu0 0
          %4222 = vmatprep.subr.bf16.mxu0 0
          %4223 = vmatpush2.bf16.msra.mxu0 0
          %4224 = vmatprep.subr.bf16.mxu0 0
          %4225 = vmatpush2.bf16.msra.mxu0 0
          %4226 = vmatprep.subr.bf16.mxu0 0
          %4227 = vmatpush2.bf16.msra.mxu0 0
          %4228 = vmatprep.subr.bf16.mxu0 0
          %4229 = vmatpush2.bf16.msra.mxu0 0
          %4230 = vmatprep.subr.bf16.mxu0 0
          %4231 = vmatpush2.bf16.msra.mxu0 0
          %4232 = vmatprep.subr.bf16.mxu0 0
          %4233 = vmatpush2.bf16.msra.mxu0 0
          %4234 = vmatprep.mubr.bf16.mxu0 0
          %4235 = vmatmul.mubr.bf16.gmra.mxu0 %v4115
          %v4236 = vpop.f32.mrf.mxu0
          %v4237 = vadd.f32 0.0, %v4236
          %v4238 = vpop.f32.mrf.mxu0
          %v4239 = vadd.f32 0.0, %v4238
          %v4240 = vpop.f32.mrf.mxu0
          %v4241 = vpop.f32.mrf.mxu0
          %4242 = vdwg.mxu0
          %4243 = vmatprep.subr.bf16.mxu0 0
          %4244 = vmatpush1.bf16.msra.mxu0 0
          %4245 = vmatprep.subr.bf16.mxu0 0
          %4246 = vmatpush1.bf16.msra.mxu0 0
          %4247 = vmatprep.subr.bf16.mxu0 0
          %4248 = vmatpush1.bf16.msra.mxu0 0
          %4249 = vmatprep.subr.bf16.mxu0 0
          %4250 = vmatpush1.bf16.msra.mxu0 0
          %4251 = vmatprep.subr.bf16.mxu0 0
          %4252 = vmatpush1.bf16.msra.mxu0 0
          %4253 = vmatprep.subr.bf16.mxu0 0
          %4254 = vmatpush1.bf16.msra.mxu0 0
          %4255 = vmatprep.subr.bf16.mxu0 0
          %4256 = vmatpush1.bf16.msra.mxu0 0
          %4257 = vmatprep.subr.bf16.mxu0 %v4118
          %4258 = vmatpush1.bf16.msra.mxu0 %v3935
          %4259 = vmatprep.subr.bf16.mxu0 0
          %4260 = vmatpush2.bf16.msra.mxu0 0
          %4261 = vmatprep.subr.bf16.mxu0 0
          %4262 = vmatpush2.bf16.msra.mxu0 0
          %4263 = vmatprep.subr.bf16.mxu0 0
          %4264 = vmatpush2.bf16.msra.mxu0 0
          %4265 = vmatprep.subr.bf16.mxu0 0
          %4266 = vmatpush2.bf16.msra.mxu0 0
          %4267 = vmatprep.subr.bf16.mxu0 0
          %4268 = vmatpush2.bf16.msra.mxu0 0
          %4269 = vmatprep.subr.bf16.mxu0 0
          %4270 = vmatpush2.bf16.msra.mxu0 0
          %4271 = vmatprep.subr.bf16.mxu0 0
          %4272 = vmatpush2.bf16.msra.mxu0 0
          %4273 = vmatprep.subr.bf16.mxu0 0
          %4274 = vmatpush2.bf16.msra.mxu0 0
          %4275 = vmatprep.mubr.bf16.mxu0 0
          %4276 = vmatmul.mubr.bf16.gmra.mxu0 %v4115
          %v4277 = vpop.f32.mrf.mxu0
          %v4278 = vadd.f32 0.0, %v4277
          %v4279 = vpop.f32.mrf.mxu0
          %v4280 = vadd.f32 0.0, %v4279
          %v4281 = vpop.f32.mrf.mxu0
          %v4282 = vpop.f32.mrf.mxu0
          %4283 = vdwg.mxu0
          %v4284 = vadd.f32 %v4101, %v4155
          %v4285 = vadd.f32 %v4102, %v4157
          %v4286 = vadd.f32 %v4103, %v4196
          %v4287 = vadd.f32 %v4104, %v4198
          %v4288 = vadd.f32 %v4105, %v4237
          %v4289 = vadd.f32 %v4106, %v4239
          %v4290 = vadd.f32 %v4107, %v4278
          %v4291 = vadd.f32 %v4108, %v4280
          %s4292 = scalar_lea.vmem %s0, 96
          %v4293 = vld [vmem:[%s4292] sm:$0xf]
          %4294 = vrot.lane.b32.xlu0 %v1323, 108
          %v4295 = vpop.permute.xlu0 %4294
          %v4296 = vsel %vm3901, %v4112, %v4295
          %v4298 = vsel %vm359, %v4293, 0
          %v4301 = vsel %vm363, %v4296, 0
          %4303 = vmatprep.subr.bf16.mxu0 0
          %4304 = vmatpush1.bf16.msra.mxu0 0
          %4305 = vmatprep.subr.bf16.mxu0 0
          %4306 = vmatpush1.bf16.msra.mxu0 0
          %4307 = vmatprep.subr.bf16.mxu0 0
          %4308 = vmatpush1.bf16.msra.mxu0 0
          %4309 = vmatprep.subr.bf16.mxu0 0
          %4310 = vmatpush1.bf16.msra.mxu0 0
          %4311 = vmatprep.subr.bf16.mxu0 0
          %4312 = vmatpush1.bf16.msra.mxu0 0
          %4313 = vmatprep.subr.bf16.mxu0 0
          %4314 = vmatpush1.bf16.msra.mxu0 0
          %4315 = vmatprep.subr.bf16.mxu0 0
          %4316 = vmatpush1.bf16.msra.mxu0 0
          %4317 = vmatprep.subr.bf16.mxu0 %v3923
          %4318 = vmatpush1.bf16.msra.mxu0 %v3920
          %4319 = vmatprep.subr.bf16.mxu0 0
          %4320 = vmatpush2.bf16.msra.mxu0 0
          %4321 = vmatprep.subr.bf16.mxu0 0
          %4322 = vmatpush2.bf16.msra.mxu0 0
          %4323 = vmatprep.subr.bf16.mxu0 0
          %4324 = vmatpush2.bf16.msra.mxu0 0
          %4325 = vmatprep.subr.bf16.mxu0 0
          %4326 = vmatpush2.bf16.msra.mxu0 0
          %4327 = vmatprep.subr.bf16.mxu0 0
          %4328 = vmatpush2.bf16.msra.mxu0 0
          %4329 = vmatprep.subr.bf16.mxu0 0
          %4330 = vmatpush2.bf16.msra.mxu0 0
          %4331 = vmatprep.subr.bf16.mxu0 0
          %4332 = vmatpush2.bf16.msra.mxu0 0
          %4333 = vmatprep.subr.bf16.mxu0 0
          %4334 = vmatpush2.bf16.msra.mxu0 0
          %4335 = vmatprep.mubr.bf16.mxu0 0
          %4336 = vmatmul.mubr.bf16.gmra.mxu0 %v4298
          %v4337 = vpop.f32.mrf.mxu0
          %v4338 = vadd.f32 0.0, %v4337
          %v4339 = vpop.f32.mrf.mxu0
          %v4340 = vadd.f32 0.0, %v4339
          %v4341 = vpop.f32.mrf.mxu0
          %v4342 = vpop.f32.mrf.mxu0
          %4343 = vdwg.mxu0
          %4344 = vmatprep.subr.bf16.mxu0 0
          %4345 = vmatpush1.bf16.msra.mxu0 0
          %4346 = vmatprep.subr.bf16.mxu0 0
          %4347 = vmatpush1.bf16.msra.mxu0 0
          %4348 = vmatprep.subr.bf16.mxu0 0
          %4349 = vmatpush1.bf16.msra.mxu0 0
          %4350 = vmatprep.subr.bf16.mxu0 0
          %4351 = vmatpush1.bf16.msra.mxu0 0
          %4352 = vmatprep.subr.bf16.mxu0 0
          %4353 = vmatpush1.bf16.msra.mxu0 0
          %4354 = vmatprep.subr.bf16.mxu0 0
          %4355 = vmatpush1.bf16.msra.mxu0 0
          %4356 = vmatprep.subr.bf16.mxu0 0
          %4357 = vmatpush1.bf16.msra.mxu0 0
          %4358 = vmatprep.subr.bf16.mxu0 %v3929
          %4359 = vmatpush1.bf16.msra.mxu0 %v3926
          %4360 = vmatprep.subr.bf16.mxu0 0
          %4361 = vmatpush2.bf16.msra.mxu0 0
          %4362 = vmatprep.subr.bf16.mxu0 0
          %4363 = vmatpush2.bf16.msra.mxu0 0
          %4364 = vmatprep.subr.bf16.mxu0 0
          %4365 = vmatpush2.bf16.msra.mxu0 0
          %4366 = vmatprep.subr.bf16.mxu0 0
          %4367 = vmatpush2.bf16.msra.mxu0 0
          %4368 = vmatprep.subr.bf16.mxu0 0
          %4369 = vmatpush2.bf16.msra.mxu0 0
          %4370 = vmatprep.subr.bf16.mxu0 0
          %4371 = vmatpush2.bf16.msra.mxu0 0
          %4372 = vmatprep.subr.bf16.mxu0 0
          %4373 = vmatpush2.bf16.msra.mxu0 0
          %4374 = vmatprep.subr.bf16.mxu0 0
          %4375 = vmatpush2.bf16.msra.mxu0 0
          %4376 = vmatprep.mubr.bf16.mxu0 0
          %4377 = vmatmul.mubr.bf16.gmra.mxu0 %v4298
          %v4378 = vpop.f32.mrf.mxu0
          %v4379 = vadd.f32 0.0, %v4378
          %v4380 = vpop.f32.mrf.mxu0
          %v4381 = vadd.f32 0.0, %v4380
          %v4382 = vpop.f32.mrf.mxu0
          %v4383 = vpop.f32.mrf.mxu0
          %4384 = vdwg.mxu0
          %4385 = vmatprep.subr.bf16.mxu0 0
          %4386 = vmatpush1.bf16.msra.mxu0 0
          %4387 = vmatprep.subr.bf16.mxu0 0
          %4388 = vmatpush1.bf16.msra.mxu0 0
          %4389 = vmatprep.subr.bf16.mxu0 0
          %4390 = vmatpush1.bf16.msra.mxu0 0
          %4391 = vmatprep.subr.bf16.mxu0 0
          %4392 = vmatpush1.bf16.msra.mxu0 0
          %4393 = vmatprep.subr.bf16.mxu0 0
          %4394 = vmatpush1.bf16.msra.mxu0 0
          %4395 = vmatprep.subr.bf16.mxu0 0
          %4396 = vmatpush1.bf16.msra.mxu0 0
          %4397 = vmatprep.subr.bf16.mxu0 0
          %4398 = vmatpush1.bf16.msra.mxu0 0
          %4399 = vmatprep.subr.bf16.mxu0 %v3935
          %4400 = vmatpush1.bf16.msra.mxu0 %v3932
          %4401 = vmatprep.subr.bf16.mxu0 0
          %4402 = vmatpush2.bf16.msra.mxu0 0
          %4403 = vmatprep.subr.bf16.mxu0 0
          %4404 = vmatpush2.bf16.msra.mxu0 0
          %4405 = vmatprep.subr.bf16.mxu0 0
          %4406 = vmatpush2.bf16.msra.mxu0 0
          %4407 = vmatprep.subr.bf16.mxu0 0
          %4408 = vmatpush2.bf16.msra.mxu0 0
          %4409 = vmatprep.subr.bf16.mxu0 0
          %4410 = vmatpush2.bf16.msra.mxu0 0
          %4411 = vmatprep.subr.bf16.mxu0 0
          %4412 = vmatpush2.bf16.msra.mxu0 0
          %4413 = vmatprep.subr.bf16.mxu0 0
          %4414 = vmatpush2.bf16.msra.mxu0 0
          %4415 = vmatprep.subr.bf16.mxu0 0
          %4416 = vmatpush2.bf16.msra.mxu0 0
          %4417 = vmatprep.mubr.bf16.mxu0 0
          %4418 = vmatmul.mubr.bf16.gmra.mxu0 %v4298
          %v4419 = vpop.f32.mrf.mxu0
          %v4420 = vadd.f32 0.0, %v4419
          %v4421 = vpop.f32.mrf.mxu0
          %v4422 = vadd.f32 0.0, %v4421
          %v4423 = vpop.f32.mrf.mxu0
          %v4424 = vpop.f32.mrf.mxu0
          %4425 = vdwg.mxu0
          %4426 = vmatprep.subr.bf16.mxu0 0
          %4427 = vmatpush1.bf16.msra.mxu0 0
          %4428 = vmatprep.subr.bf16.mxu0 0
          %4429 = vmatpush1.bf16.msra.mxu0 0
          %4430 = vmatprep.subr.bf16.mxu0 0
          %4431 = vmatpush1.bf16.msra.mxu0 0
          %4432 = vmatprep.subr.bf16.mxu0 0
          %4433 = vmatpush1.bf16.msra.mxu0 0
          %4434 = vmatprep.subr.bf16.mxu0 0
          %4435 = vmatpush1.bf16.msra.mxu0 0
          %4436 = vmatprep.subr.bf16.mxu0 0
          %4437 = vmatpush1.bf16.msra.mxu0 0
          %4438 = vmatprep.subr.bf16.mxu0 0
          %4439 = vmatpush1.bf16.msra.mxu0 0
          %4440 = vmatprep.subr.bf16.mxu0 %v4301
          %4441 = vmatpush1.bf16.msra.mxu0 %v4118
          %4442 = vmatprep.subr.bf16.mxu0 0
          %4443 = vmatpush2.bf16.msra.mxu0 0
          %4444 = vmatprep.subr.bf16.mxu0 0
          %4445 = vmatpush2.bf16.msra.mxu0 0
          %4446 = vmatprep.subr.bf16.mxu0 0
          %4447 = vmatpush2.bf16.msra.mxu0 0
          %4448 = vmatprep.subr.bf16.mxu0 0
          %4449 = vmatpush2.bf16.msra.mxu0 0
          %4450 = vmatprep.subr.bf16.mxu0 0
          %4451 = vmatpush2.bf16.msra.mxu0 0
          %4452 = vmatprep.subr.bf16.mxu0 0
          %4453 = vmatpush2.bf16.msra.mxu0 0
          %4454 = vmatprep.subr.bf16.mxu0 0
          %4455 = vmatpush2.bf16.msra.mxu0 0
          %4456 = vmatprep.subr.bf16.mxu0 0
          %4457 = vmatpush2.bf16.msra.mxu0 0
          %4458 = vmatprep.mubr.bf16.mxu0 0
          %4459 = vmatmul.mubr.bf16.gmra.mxu0 %v4298
          %v4460 = vpop.f32.mrf.mxu0
          %v4461 = vadd.f32 0.0, %v4460
          %v4462 = vpop.f32.mrf.mxu0
          %v4463 = vadd.f32 0.0, %v4462
          %v4464 = vpop.f32.mrf.mxu0
          %v4465 = vpop.f32.mrf.mxu0
          %4466 = vdwg.mxu0
          %v4467 = vadd.f32 %v4284, %v4338
          %v4468 = vadd.f32 %v4285, %v4340
          %v4469 = vadd.f32 %v4286, %v4379
          %v4470 = vadd.f32 %v4287, %v4381
          %v4471 = vadd.f32 %v4288, %v4420
          %v4472 = vadd.f32 %v4289, %v4422
          %v4473 = vadd.f32 %v4290, %v4461
          %v4474 = vadd.f32 %v4291, %v4463
          %s4475 = scalar_lea.vmem %s0, 28
          %v4476 = vld [vmem:[%s4475] sm:$0xf]
          %4477 = vrot.lane.b32.xlu0 %v325, 107
          %v4478 = vpop.permute.xlu0 %4477
          %4479 = vrot.lane.b32.xlu0 %v333, 107
          %v4480 = vpop.permute.xlu0 %4479
          %4481 = vrot.lane.b32.xlu0 %v332, 107
          %v4482 = vpop.permute.xlu0 %4481
          %4483 = vrot.lane.b32.xlu0 %v334, 107
          %v4484 = vpop.permute.xlu0 %4483
          %4485 = vrot.lane.b32.xlu0 %v342, 107
          %v4486 = vpop.permute.xlu0 %4485
          %4487 = vrot.lane.b32.xlu0 %v350, 107
          %v4488 = vpop.permute.xlu0 %4487
          %4489 = vrot.lane.b32.xlu0 %v349, 107
          %v4490 = vpop.permute.xlu0 %4489
          %4491 = vrot.lane.b32.xlu0 %v351, 107
          %v4492 = vpop.permute.xlu0 %4491
          %4493 = vrot.lane.b32.xlu0 %v358, 107
          %v4494 = vpop.permute.xlu0 %4493
          %vm4495 = vcmask 875520
          %v4496 = vsel %vm4495, %v4478, %v4480
          %v4497 = vsel %vm4495, %v4480, %v4482
          %v4498 = vsel %vm4495, %v4482, %v4484
          %v4499 = vsel %vm4495, %v4484, %v4486
          %v4500 = vsel %vm4495, %v4486, %v4488
          %v4501 = vsel %vm4495, %v4488, %v4490
          %v4502 = vsel %vm4495, %v4490, %v4492
          %v4503 = vsel %vm4495, %v4492, %v4494
          %v4505 = vsel %vm359, %v4476, 0
          %v4508 = vsel %vm363, %v4496, 0
          %v4511 = vsel %vm363, %v4497, 0
          %v4514 = vsel %vm363, %v4498, 0
          %v4517 = vsel %vm363, %v4499, 0
          %v4520 = vsel %vm363, %v4500, 0
          %v4523 = vsel %vm363, %v4501, 0
          %v4526 = vsel %vm363, %v4502, 0
          %v4529 = vsel %vm363, %v4503, 0
          %4531 = vmatprep.subr.bf16.mxu0 0
          %4532 = vmatpush1.bf16.msra.mxu0 0
          %4533 = vmatprep.subr.bf16.mxu0 0
          %4534 = vmatpush1.bf16.msra.mxu0 0
          %4535 = vmatprep.subr.bf16.mxu0 0
          %4536 = vmatpush1.bf16.msra.mxu0 0
          %4537 = vmatprep.subr.bf16.mxu0 0
          %4538 = vmatpush1.bf16.msra.mxu0 0
          %4539 = vmatprep.subr.bf16.mxu0 0
          %4540 = vmatpush1.bf16.msra.mxu0 0
          %4541 = vmatprep.subr.bf16.mxu0 0
          %4542 = vmatpush1.bf16.msra.mxu0 0
          %4543 = vmatprep.subr.bf16.mxu0 0
          %4544 = vmatpush1.bf16.msra.mxu0 0
          %4545 = vmatprep.subr.bf16.mxu0 %v4511
          %4546 = vmatpush1.bf16.msra.mxu0 %v4508
          %4547 = vmatprep.subr.bf16.mxu0 0
          %4548 = vmatpush2.bf16.msra.mxu0 0
          %4549 = vmatprep.subr.bf16.mxu0 0
          %4550 = vmatpush2.bf16.msra.mxu0 0
          %4551 = vmatprep.subr.bf16.mxu0 0
          %4552 = vmatpush2.bf16.msra.mxu0 0
          %4553 = vmatprep.subr.bf16.mxu0 0
          %4554 = vmatpush2.bf16.msra.mxu0 0
          %4555 = vmatprep.subr.bf16.mxu0 0
          %4556 = vmatpush2.bf16.msra.mxu0 0
          %4557 = vmatprep.subr.bf16.mxu0 0
          %4558 = vmatpush2.bf16.msra.mxu0 0
          %4559 = vmatprep.subr.bf16.mxu0 0
          %4560 = vmatpush2.bf16.msra.mxu0 0
          %4561 = vmatprep.subr.bf16.mxu0 0
          %4562 = vmatpush2.bf16.msra.mxu0 0
          %4563 = vmatprep.mubr.bf16.mxu0 0
          %4564 = vmatmul.mubr.bf16.gmra.mxu0 %v4505
          %v4565 = vpop.f32.mrf.mxu0
          %v4566 = vadd.f32 0.0, %v4565
          %v4567 = vpop.f32.mrf.mxu0
          %v4568 = vadd.f32 0.0, %v4567
          %v4569 = vpop.f32.mrf.mxu0
          %v4570 = vpop.f32.mrf.mxu0
          %4571 = vdwg.mxu0
          %4572 = vmatprep.subr.bf16.mxu0 0
          %4573 = vmatpush1.bf16.msra.mxu0 0
          %4574 = vmatprep.subr.bf16.mxu0 0
          %4575 = vmatpush1.bf16.msra.mxu0 0
          %4576 = vmatprep.subr.bf16.mxu0 0
          %4577 = vmatpush1.bf16.msra.mxu0 0
          %4578 = vmatprep.subr.bf16.mxu0 0
          %4579 = vmatpush1.bf16.msra.mxu0 0
          %4580 = vmatprep.subr.bf16.mxu0 0
          %4581 = vmatpush1.bf16.msra.mxu0 0
          %4582 = vmatprep.subr.bf16.mxu0 0
          %4583 = vmatpush1.bf16.msra.mxu0 0
          %4584 = vmatprep.subr.bf16.mxu0 0
          %4585 = vmatpush1.bf16.msra.mxu0 0
          %4586 = vmatprep.subr.bf16.mxu0 %v4517
          %4587 = vmatpush1.bf16.msra.mxu0 %v4514
          %4588 = vmatprep.subr.bf16.mxu0 0
          %4589 = vmatpush2.bf16.msra.mxu0 0
          %4590 = vmatprep.subr.bf16.mxu0 0
          %4591 = vmatpush2.bf16.msra.mxu0 0
          %4592 = vmatprep.subr.bf16.mxu0 0
          %4593 = vmatpush2.bf16.msra.mxu0 0
          %4594 = vmatprep.subr.bf16.mxu0 0
          %4595 = vmatpush2.bf16.msra.mxu0 0
          %4596 = vmatprep.subr.bf16.mxu0 0
          %4597 = vmatpush2.bf16.msra.mxu0 0
          %4598 = vmatprep.subr.bf16.mxu0 0
          %4599 = vmatpush2.bf16.msra.mxu0 0
          %4600 = vmatprep.subr.bf16.mxu0 0
          %4601 = vmatpush2.bf16.msra.mxu0 0
          %4602 = vmatprep.subr.bf16.mxu0 0
          %4603 = vmatpush2.bf16.msra.mxu0 0
          %4604 = vmatprep.mubr.bf16.mxu0 0
          %4605 = vmatmul.mubr.bf16.gmra.mxu0 %v4505
          %v4606 = vpop.f32.mrf.mxu0
          %v4607 = vadd.f32 0.0, %v4606
          %v4608 = vpop.f32.mrf.mxu0
          %v4609 = vadd.f32 0.0, %v4608
          %v4610 = vpop.f32.mrf.mxu0
          %v4611 = vpop.f32.mrf.mxu0
          %4612 = vdwg.mxu0
          %4613 = vmatprep.subr.bf16.mxu0 0
          %4614 = vmatpush1.bf16.msra.mxu0 0
          %4615 = vmatprep.subr.bf16.mxu0 0
          %4616 = vmatpush1.bf16.msra.mxu0 0
          %4617 = vmatprep.subr.bf16.mxu0 0
          %4618 = vmatpush1.bf16.msra.mxu0 0
          %4619 = vmatprep.subr.bf16.mxu0 0
          %4620 = vmatpush1.bf16.msra.mxu0 0
          %4621 = vmatprep.subr.bf16.mxu0 0
          %4622 = vmatpush1.bf16.msra.mxu0 0
          %4623 = vmatprep.subr.bf16.mxu0 0
          %4624 = vmatpush1.bf16.msra.mxu0 0
          %4625 = vmatprep.subr.bf16.mxu0 0
          %4626 = vmatpush1.bf16.msra.mxu0 0
          %4627 = vmatprep.subr.bf16.mxu0 %v4523
          %4628 = vmatpush1.bf16.msra.mxu0 %v4520
          %4629 = vmatprep.subr.bf16.mxu0 0
          %4630 = vmatpush2.bf16.msra.mxu0 0
          %4631 = vmatprep.subr.bf16.mxu0 0
          %4632 = vmatpush2.bf16.msra.mxu0 0
          %4633 = vmatprep.subr.bf16.mxu0 0
          %4634 = vmatpush2.bf16.msra.mxu0 0
          %4635 = vmatprep.subr.bf16.mxu0 0
          %4636 = vmatpush2.bf16.msra.mxu0 0
          %4637 = vmatprep.subr.bf16.mxu0 0
          %4638 = vmatpush2.bf16.msra.mxu0 0
          %4639 = vmatprep.subr.bf16.mxu0 0
          %4640 = vmatpush2.bf16.msra.mxu0 0
          %4641 = vmatprep.subr.bf16.mxu0 0
          %4642 = vmatpush2.bf16.msra.mxu0 0
          %4643 = vmatprep.subr.bf16.mxu0 0
          %4644 = vmatpush2.bf16.msra.mxu0 0
          %4645 = vmatprep.mubr.bf16.mxu0 0
          %4646 = vmatmul.mubr.bf16.gmra.mxu0 %v4505
          %v4647 = vpop.f32.mrf.mxu0
          %v4648 = vadd.f32 0.0, %v4647
          %v4649 = vpop.f32.mrf.mxu0
          %v4650 = vadd.f32 0.0, %v4649
          %v4651 = vpop.f32.mrf.mxu0
          %v4652 = vpop.f32.mrf.mxu0
          %4653 = vdwg.mxu0
          %4654 = vmatprep.subr.bf16.mxu0 0
          %4655 = vmatpush1.bf16.msra.mxu0 0
          %4656 = vmatprep.subr.bf16.mxu0 0
          %4657 = vmatpush1.bf16.msra.mxu0 0
          %4658 = vmatprep.subr.bf16.mxu0 0
          %4659 = vmatpush1.bf16.msra.mxu0 0
          %4660 = vmatprep.subr.bf16.mxu0 0
          %4661 = vmatpush1.bf16.msra.mxu0 0
          %4662 = vmatprep.subr.bf16.mxu0 0
          %4663 = vmatpush1.bf16.msra.mxu0 0
          %4664 = vmatprep.subr.bf16.mxu0 0
          %4665 = vmatpush1.bf16.msra.mxu0 0
          %4666 = vmatprep.subr.bf16.mxu0 0
          %4667 = vmatpush1.bf16.msra.mxu0 0
          %4668 = vmatprep.subr.bf16.mxu0 %v4529
          %4669 = vmatpush1.bf16.msra.mxu0 %v4526
          %4670 = vmatprep.subr.bf16.mxu0 0
          %4671 = vmatpush2.bf16.msra.mxu0 0
          %4672 = vmatprep.subr.bf16.mxu0 0
          %4673 = vmatpush2.bf16.msra.mxu0 0
          %4674 = vmatprep.subr.bf16.mxu0 0
          %4675 = vmatpush2.bf16.msra.mxu0 0
          %4676 = vmatprep.subr.bf16.mxu0 0
          %4677 = vmatpush2.bf16.msra.mxu0 0
          %4678 = vmatprep.subr.bf16.mxu0 0
          %4679 = vmatpush2.bf16.msra.mxu0 0
          %4680 = vmatprep.subr.bf16.mxu0 0
          %4681 = vmatpush2.bf16.msra.mxu0 0
          %4682 = vmatprep.subr.bf16.mxu0 0
          %4683 = vmatpush2.bf16.msra.mxu0 0
          %4684 = vmatprep.subr.bf16.mxu0 0
          %4685 = vmatpush2.bf16.msra.mxu0 0
          %4686 = vmatprep.mubr.bf16.mxu0 0
          %4687 = vmatmul.mubr.bf16.gmra.mxu0 %v4505
          %v4688 = vpop.f32.mrf.mxu0
          %v4689 = vadd.f32 0.0, %v4688
          %v4690 = vpop.f32.mrf.mxu0
          %v4691 = vadd.f32 0.0, %v4690
          %v4692 = vpop.f32.mrf.mxu0
          %v4693 = vpop.f32.mrf.mxu0
          %4694 = vdwg.mxu0
          %v4695 = vadd.f32 %v4467, %v4566
          %v4696 = vadd.f32 %v4468, %v4568
          %v4697 = vadd.f32 %v4469, %v4607
          %v4698 = vadd.f32 %v4470, %v4609
          %v4699 = vadd.f32 %v4471, %v4648
          %v4700 = vadd.f32 %v4472, %v4650
          %v4701 = vadd.f32 %v4473, %v4689
          %v4702 = vadd.f32 %v4474, %v4691
          %s4703 = scalar_lea.vmem %s0, 64
          %v4704 = vld [vmem:[%s4703] sm:$0xf]
          %4705 = vrot.lane.b32.xlu0 %v724, 107
          %v4706 = vpop.permute.xlu0 %4705
          %v4707 = vsel %vm4495, %v4494, %v4706
          %v4709 = vsel %vm359, %v4704, 0
          %v4712 = vsel %vm363, %v4707, 0
          %4714 = vmatprep.subr.bf16.mxu0 0
          %4715 = vmatpush1.bf16.msra.mxu0 0
          %4716 = vmatprep.subr.bf16.mxu0 0
          %4717 = vmatpush1.bf16.msra.mxu0 0
          %4718 = vmatprep.subr.bf16.mxu0 0
          %4719 = vmatpush1.bf16.msra.mxu0 0
          %4720 = vmatprep.subr.bf16.mxu0 0
          %4721 = vmatpush1.bf16.msra.mxu0 0
          %4722 = vmatprep.subr.bf16.mxu0 0
          %4723 = vmatpush1.bf16.msra.mxu0 0
          %4724 = vmatprep.subr.bf16.mxu0 0
          %4725 = vmatpush1.bf16.msra.mxu0 0
          %4726 = vmatprep.subr.bf16.mxu0 0
          %4727 = vmatpush1.bf16.msra.mxu0 0
          %4728 = vmatprep.subr.bf16.mxu0 %v4514
          %4729 = vmatpush1.bf16.msra.mxu0 %v4511
          %4730 = vmatprep.subr.bf16.mxu0 0
          %4731 = vmatpush2.bf16.msra.mxu0 0
          %4732 = vmatprep.subr.bf16.mxu0 0
          %4733 = vmatpush2.bf16.msra.mxu0 0
          %4734 = vmatprep.subr.bf16.mxu0 0
          %4735 = vmatpush2.bf16.msra.mxu0 0
          %4736 = vmatprep.subr.bf16.mxu0 0
          %4737 = vmatpush2.bf16.msra.mxu0 0
          %4738 = vmatprep.subr.bf16.mxu0 0
          %4739 = vmatpush2.bf16.msra.mxu0 0
          %4740 = vmatprep.subr.bf16.mxu0 0
          %4741 = vmatpush2.bf16.msra.mxu0 0
          %4742 = vmatprep.subr.bf16.mxu0 0
          %4743 = vmatpush2.bf16.msra.mxu0 0
          %4744 = vmatprep.subr.bf16.mxu0 0
          %4745 = vmatpush2.bf16.msra.mxu0 0
          %4746 = vmatprep.mubr.bf16.mxu0 0
          %4747 = vmatmul.mubr.bf16.gmra.mxu0 %v4709
          %v4748 = vpop.f32.mrf.mxu0
          %v4749 = vadd.f32 0.0, %v4748
          %v4750 = vpop.f32.mrf.mxu0
          %v4751 = vadd.f32 0.0, %v4750
          %v4752 = vpop.f32.mrf.mxu0
          %v4753 = vpop.f32.mrf.mxu0
          %4754 = vdwg.mxu0
          %4755 = vmatprep.subr.bf16.mxu0 0
          %4756 = vmatpush1.bf16.msra.mxu0 0
          %4757 = vmatprep.subr.bf16.mxu0 0
          %4758 = vmatpush1.bf16.msra.mxu0 0
          %4759 = vmatprep.subr.bf16.mxu0 0
          %4760 = vmatpush1.bf16.msra.mxu0 0
          %4761 = vmatprep.subr.bf16.mxu0 0
          %4762 = vmatpush1.bf16.msra.mxu0 0
          %4763 = vmatprep.subr.bf16.mxu0 0
          %4764 = vmatpush1.bf16.msra.mxu0 0
          %4765 = vmatprep.subr.bf16.mxu0 0
          %4766 = vmatpush1.bf16.msra.mxu0 0
          %4767 = vmatprep.subr.bf16.mxu0 0
          %4768 = vmatpush1.bf16.msra.mxu0 0
          %4769 = vmatprep.subr.bf16.mxu0 %v4520
          %4770 = vmatpush1.bf16.msra.mxu0 %v4517
          %4771 = vmatprep.subr.bf16.mxu0 0
          %4772 = vmatpush2.bf16.msra.mxu0 0
          %4773 = vmatprep.subr.bf16.mxu0 0
          %4774 = vmatpush2.bf16.msra.mxu0 0
          %4775 = vmatprep.subr.bf16.mxu0 0
          %4776 = vmatpush2.bf16.msra.mxu0 0
          %4777 = vmatprep.subr.bf16.mxu0 0
          %4778 = vmatpush2.bf16.msra.mxu0 0
          %4779 = vmatprep.subr.bf16.mxu0 0
          %4780 = vmatpush2.bf16.msra.mxu0 0
          %4781 = vmatprep.subr.bf16.mxu0 0
          %4782 = vmatpush2.bf16.msra.mxu0 0
          %4783 = vmatprep.subr.bf16.mxu0 0
          %4784 = vmatpush2.bf16.msra.mxu0 0
          %4785 = vmatprep.subr.bf16.mxu0 0
          %4786 = vmatpush2.bf16.msra.mxu0 0
          %4787 = vmatprep.mubr.bf16.mxu0 0
          %4788 = vmatmul.mubr.bf16.gmra.mxu0 %v4709
          %v4789 = vpop.f32.mrf.mxu0
          %v4790 = vadd.f32 0.0, %v4789
          %v4791 = vpop.f32.mrf.mxu0
          %v4792 = vadd.f32 0.0, %v4791
          %v4793 = vpop.f32.mrf.mxu0
          %v4794 = vpop.f32.mrf.mxu0
          %4795 = vdwg.mxu0
          %4796 = vmatprep.subr.bf16.mxu0 0
          %4797 = vmatpush1.bf16.msra.mxu0 0
          %4798 = vmatprep.subr.bf16.mxu0 0
          %4799 = vmatpush1.bf16.msra.mxu0 0
          %4800 = vmatprep.subr.bf16.mxu0 0
          %4801 = vmatpush1.bf16.msra.mxu0 0
          %4802 = vmatprep.subr.bf16.mxu0 0
          %4803 = vmatpush1.bf16.msra.mxu0 0
          %4804 = vmatprep.subr.bf16.mxu0 0
          %4805 = vmatpush1.bf16.msra.mxu0 0
          %4806 = vmatprep.subr.bf16.mxu0 0
          %4807 = vmatpush1.bf16.msra.mxu0 0
          %4808 = vmatprep.subr.bf16.mxu0 0
          %4809 = vmatpush1.bf16.msra.mxu0 0
          %4810 = vmatprep.subr.bf16.mxu0 %v4526
          %4811 = vmatpush1.bf16.msra.mxu0 %v4523
          %4812 = vmatprep.subr.bf16.mxu0 0
          %4813 = vmatpush2.bf16.msra.mxu0 0
          %4814 = vmatprep.subr.bf16.mxu0 0
          %4815 = vmatpush2.bf16.msra.mxu0 0
          %4816 = vmatprep.subr.bf16.mxu0 0
          %4817 = vmatpush2.bf16.msra.mxu0 0
          %4818 = vmatprep.subr.bf16.mxu0 0
          %4819 = vmatpush2.bf16.msra.mxu0 0
          %4820 = vmatprep.subr.bf16.mxu0 0
          %4821 = vmatpush2.bf16.msra.mxu0 0
          %4822 = vmatprep.subr.bf16.mxu0 0
          %4823 = vmatpush2.bf16.msra.mxu0 0
          %4824 = vmatprep.subr.bf16.mxu0 0
          %4825 = vmatpush2.bf16.msra.mxu0 0
          %4826 = vmatprep.subr.bf16.mxu0 0
          %4827 = vmatpush2.bf16.msra.mxu0 0
          %4828 = vmatprep.mubr.bf16.mxu0 0
          %4829 = vmatmul.mubr.bf16.gmra.mxu0 %v4709
          %v4830 = vpop.f32.mrf.mxu0
          %v4831 = vadd.f32 0.0, %v4830
          %v4832 = vpop.f32.mrf.mxu0
          %v4833 = vadd.f32 0.0, %v4832
          %v4834 = vpop.f32.mrf.mxu0
          %v4835 = vpop.f32.mrf.mxu0
          %4836 = vdwg.mxu0
          %4837 = vmatprep.subr.bf16.mxu0 0
          %4838 = vmatpush1.bf16.msra.mxu0 0
          %4839 = vmatprep.subr.bf16.mxu0 0
          %4840 = vmatpush1.bf16.msra.mxu0 0
          %4841 = vmatprep.subr.bf16.mxu0 0
          %4842 = vmatpush1.bf16.msra.mxu0 0
          %4843 = vmatprep.subr.bf16.mxu0 0
          %4844 = vmatpush1.bf16.msra.mxu0 0
          %4845 = vmatprep.subr.bf16.mxu0 0
          %4846 = vmatpush1.bf16.msra.mxu0 0
          %4847 = vmatprep.subr.bf16.mxu0 0
          %4848 = vmatpush1.bf16.msra.mxu0 0
          %4849 = vmatprep.subr.bf16.mxu0 0
          %4850 = vmatpush1.bf16.msra.mxu0 0
          %4851 = vmatprep.subr.bf16.mxu0 %v4712
          %4852 = vmatpush1.bf16.msra.mxu0 %v4529
          %4853 = vmatprep.subr.bf16.mxu0 0
          %4854 = vmatpush2.bf16.msra.mxu0 0
          %4855 = vmatprep.subr.bf16.mxu0 0
          %4856 = vmatpush2.bf16.msra.mxu0 0
          %4857 = vmatprep.subr.bf16.mxu0 0
          %4858 = vmatpush2.bf16.msra.mxu0 0
          %4859 = vmatprep.subr.bf16.mxu0 0
          %4860 = vmatpush2.bf16.msra.mxu0 0
          %4861 = vmatprep.subr.bf16.mxu0 0
          %4862 = vmatpush2.bf16.msra.mxu0 0
          %4863 = vmatprep.subr.bf16.mxu0 0
          %4864 = vmatpush2.bf16.msra.mxu0 0
          %4865 = vmatprep.subr.bf16.mxu0 0
          %4866 = vmatpush2.bf16.msra.mxu0 0
          %4867 = vmatprep.subr.bf16.mxu0 0
          %4868 = vmatpush2.bf16.msra.mxu0 0
          %4869 = vmatprep.mubr.bf16.mxu0 0
          %4870 = vmatmul.mubr.bf16.gmra.mxu0 %v4709
          %v4871 = vpop.f32.mrf.mxu0
          %v4872 = vadd.f32 0.0, %v4871
          %v4873 = vpop.f32.mrf.mxu0
          %v4874 = vadd.f32 0.0, %v4873
          %v4875 = vpop.f32.mrf.mxu0
          %v4876 = vpop.f32.mrf.mxu0
          %4877 = vdwg.mxu0
          %v4878 = vadd.f32 %v4695, %v4749
          %v4879 = vadd.f32 %v4696, %v4751
          %v4880 = vadd.f32 %v4697, %v4790
          %v4881 = vadd.f32 %v4698, %v4792
          %v4882 = vadd.f32 %v4699, %v4831
          %v4883 = vadd.f32 %v4700, %v4833
          %v4884 = vadd.f32 %v4701, %v4872
          %v4885 = vadd.f32 %v4702, %v4874
          %s4886 = scalar_lea.vmem %s0, 100
          %v4887 = vld [vmem:[%s4886] sm:$0xf]
          %4888 = vrot.lane.b32.xlu0 %v1323, 107
          %v4889 = vpop.permute.xlu0 %4888
          %v4890 = vsel %vm4495, %v4706, %v4889
          %v4892 = vsel %vm359, %v4887, 0
          %v4895 = vsel %vm363, %v4890, 0
          %4897 = vmatprep.subr.bf16.mxu0 0
          %4898 = vmatpush1.bf16.msra.mxu0 0
          %4899 = vmatprep.subr.bf16.mxu0 0
          %4900 = vmatpush1.bf16.msra.mxu0 0
          %4901 = vmatprep.subr.bf16.mxu0 0
          %4902 = vmatpush1.bf16.msra.mxu0 0
          %4903 = vmatprep.subr.bf16.mxu0 0
          %4904 = vmatpush1.bf16.msra.mxu0 0
          %4905 = vmatprep.subr.bf16.mxu0 0
          %4906 = vmatpush1.bf16.msra.mxu0 0
          %4907 = vmatprep.subr.bf16.mxu0 0
          %4908 = vmatpush1.bf16.msra.mxu0 0
          %4909 = vmatprep.subr.bf16.mxu0 0
          %4910 = vmatpush1.bf16.msra.mxu0 0
          %4911 = vmatprep.subr.bf16.mxu0 %v4517
          %4912 = vmatpush1.bf16.msra.mxu0 %v4514
          %4913 = vmatprep.subr.bf16.mxu0 0
          %4914 = vmatpush2.bf16.msra.mxu0 0
          %4915 = vmatprep.subr.bf16.mxu0 0
          %4916 = vmatpush2.bf16.msra.mxu0 0
          %4917 = vmatprep.subr.bf16.mxu0 0
          %4918 = vmatpush2.bf16.msra.mxu0 0
          %4919 = vmatprep.subr.bf16.mxu0 0
          %4920 = vmatpush2.bf16.msra.mxu0 0
          %4921 = vmatprep.subr.bf16.mxu0 0
          %4922 = vmatpush2.bf16.msra.mxu0 0
          %4923 = vmatprep.subr.bf16.mxu0 0
          %4924 = vmatpush2.bf16.msra.mxu0 0
          %4925 = vmatprep.subr.bf16.mxu0 0
          %4926 = vmatpush2.bf16.msra.mxu0 0
          %4927 = vmatprep.subr.bf16.mxu0 0
          %4928 = vmatpush2.bf16.msra.mxu0 0
          %4929 = vmatprep.mubr.bf16.mxu0 0
          %4930 = vmatmul.mubr.bf16.gmra.mxu0 %v4892
          %v4931 = vpop.f32.mrf.mxu0
          %v4932 = vadd.f32 0.0, %v4931
          %v4933 = vpop.f32.mrf.mxu0
          %v4934 = vadd.f32 0.0, %v4933
          %v4935 = vpop.f32.mrf.mxu0
          %v4936 = vpop.f32.mrf.mxu0
          %4937 = vdwg.mxu0
          %4938 = vmatprep.subr.bf16.mxu0 0
          %4939 = vmatpush1.bf16.msra.mxu0 0
          %4940 = vmatprep.subr.bf16.mxu0 0
          %4941 = vmatpush1.bf16.msra.mxu0 0
          %4942 = vmatprep.subr.bf16.mxu0 0
          %4943 = vmatpush1.bf16.msra.mxu0 0
          %4944 = vmatprep.subr.bf16.mxu0 0
          %4945 = vmatpush1.bf16.msra.mxu0 0
          %4946 = vmatprep.subr.bf16.mxu0 0
          %4947 = vmatpush1.bf16.msra.mxu0 0
          %4948 = vmatprep.subr.bf16.mxu0 0
          %4949 = vmatpush1.bf16.msra.mxu0 0
          %4950 = vmatprep.subr.bf16.mxu0 0
          %4951 = vmatpush1.bf16.msra.mxu0 0
          %4952 = vmatprep.subr.bf16.mxu0 %v4523
          %4953 = vmatpush1.bf16.msra.mxu0 %v4520
          %4954 = vmatprep.subr.bf16.mxu0 0
          %4955 = vmatpush2.bf16.msra.mxu0 0
          %4956 = vmatprep.subr.bf16.mxu0 0
          %4957 = vmatpush2.bf16.msra.mxu0 0
          %4958 = vmatprep.subr.bf16.mxu0 0
          %4959 = vmatpush2.bf16.msra.mxu0 0
          %4960 = vmatprep.subr.bf16.mxu0 0
          %4961 = vmatpush2.bf16.msra.mxu0 0
          %4962 = vmatprep.subr.bf16.mxu0 0
          %4963 = vmatpush2.bf16.msra.mxu0 0
          %4964 = vmatprep.subr.bf16.mxu0 0
          %4965 = vmatpush2.bf16.msra.mxu0 0
          %4966 = vmatprep.subr.bf16.mxu0 0
          %4967 = vmatpush2.bf16.msra.mxu0 0
          %4968 = vmatprep.subr.bf16.mxu0 0
          %4969 = vmatpush2.bf16.msra.mxu0 0
          %4970 = vmatprep.mubr.bf16.mxu0 0
          %4971 = vmatmul.mubr.bf16.gmra.mxu0 %v4892
          %v4972 = vpop.f32.mrf.mxu0
          %v4973 = vadd.f32 0.0, %v4972
          %v4974 = vpop.f32.mrf.mxu0
          %v4975 = vadd.f32 0.0, %v4974
          %v4976 = vpop.f32.mrf.mxu0
          %v4977 = vpop.f32.mrf.mxu0
          %4978 = vdwg.mxu0
          %4979 = vmatprep.subr.bf16.mxu0 0
          %4980 = vmatpush1.bf16.msra.mxu0 0
          %4981 = vmatprep.subr.bf16.mxu0 0
          %4982 = vmatpush1.bf16.msra.mxu0 0
          %4983 = vmatprep.subr.bf16.mxu0 0
          %4984 = vmatpush1.bf16.msra.mxu0 0
          %4985 = vmatprep.subr.bf16.mxu0 0
          %4986 = vmatpush1.bf16.msra.mxu0 0
          %4987 = vmatprep.subr.bf16.mxu0 0
          %4988 = vmatpush1.bf16.msra.mxu0 0
          %4989 = vmatprep.subr.bf16.mxu0 0
          %4990 = vmatpush1.bf16.msra.mxu0 0
          %4991 = vmatprep.subr.bf16.mxu0 0
          %4992 = vmatpush1.bf16.msra.mxu0 0
          %4993 = vmatprep.subr.bf16.mxu0 %v4529
          %4994 = vmatpush1.bf16.msra.mxu0 %v4526
          %4995 = vmatprep.subr.bf16.mxu0 0
          %4996 = vmatpush2.bf16.msra.mxu0 0
          %4997 = vmatprep.subr.bf16.mxu0 0
          %4998 = vmatpush2.bf16.msra.mxu0 0
          %4999 = vmatprep.subr.bf16.mxu0 0
          %5000 = vmatpush2.bf16.msra.mxu0 0
          %5001 = vmatprep.subr.bf16.mxu0 0
          %5002 = vmatpush2.bf16.msra.mxu0 0
          %5003 = vmatprep.subr.bf16.mxu0 0
          %5004 = vmatpush2.bf16.msra.mxu0 0
          %5005 = vmatprep.subr.bf16.mxu0 0
          %5006 = vmatpush2.bf16.msra.mxu0 0
          %5007 = vmatprep.subr.bf16.mxu0 0
          %5008 = vmatpush2.bf16.msra.mxu0 0
          %5009 = vmatprep.subr.bf16.mxu0 0
          %5010 = vmatpush2.bf16.msra.mxu0 0
          %5011 = vmatprep.mubr.bf16.mxu0 0
          %5012 = vmatmul.mubr.bf16.gmra.mxu0 %v4892
          %v5013 = vpop.f32.mrf.mxu0
          %v5014 = vadd.f32 0.0, %v5013
          %v5015 = vpop.f32.mrf.mxu0
          %v5016 = vadd.f32 0.0, %v5015
          %v5017 = vpop.f32.mrf.mxu0
          %v5018 = vpop.f32.mrf.mxu0
          %5019 = vdwg.mxu0
          %5020 = vmatprep.subr.bf16.mxu0 0
          %5021 = vmatpush1.bf16.msra.mxu0 0
          %5022 = vmatprep.subr.bf16.mxu0 0
          %5023 = vmatpush1.bf16.msra.mxu0 0
          %5024 = vmatprep.subr.bf16.mxu0 0
          %5025 = vmatpush1.bf16.msra.mxu0 0
          %5026 = vmatprep.subr.bf16.mxu0 0
          %5027 = vmatpush1.bf16.msra.mxu0 0
          %5028 = vmatprep.subr.bf16.mxu0 0
          %5029 = vmatpush1.bf16.msra.mxu0 0
          %5030 = vmatprep.subr.bf16.mxu0 0
          %5031 = vmatpush1.bf16.msra.mxu0 0
          %5032 = vmatprep.subr.bf16.mxu0 0
          %5033 = vmatpush1.bf16.msra.mxu0 0
          %5034 = vmatprep.subr.bf16.mxu0 %v4895
          %5035 = vmatpush1.bf16.msra.mxu0 %v4712
          %5036 = vmatprep.subr.bf16.mxu0 0
          %5037 = vmatpush2.bf16.msra.mxu0 0
          %5038 = vmatprep.subr.bf16.mxu0 0
          %5039 = vmatpush2.bf16.msra.mxu0 0
          %5040 = vmatprep.subr.bf16.mxu0 0
          %5041 = vmatpush2.bf16.msra.mxu0 0
          %5042 = vmatprep.subr.bf16.mxu0 0
          %5043 = vmatpush2.bf16.msra.mxu0 0
          %5044 = vmatprep.subr.bf16.mxu0 0
          %5045 = vmatpush2.bf16.msra.mxu0 0
          %5046 = vmatprep.subr.bf16.mxu0 0
          %5047 = vmatpush2.bf16.msra.mxu0 0
          %5048 = vmatprep.subr.bf16.mxu0 0
          %5049 = vmatpush2.bf16.msra.mxu0 0
          %5050 = vmatprep.subr.bf16.mxu0 0
          %5051 = vmatpush2.bf16.msra.mxu0 0
          %5052 = vmatprep.mubr.bf16.mxu0 0
          %5053 = vmatmul.mubr.bf16.gmra.mxu0 %v4892
          %v5054 = vpop.f32.mrf.mxu0
          %v5055 = vadd.f32 0.0, %v5054
          %v5056 = vpop.f32.mrf.mxu0
          %v5057 = vadd.f32 0.0, %v5056
          %v5058 = vpop.f32.mrf.mxu0
          %v5059 = vpop.f32.mrf.mxu0
          %5060 = vdwg.mxu0
          %v5061 = vadd.f32 %v4878, %v4932
          %v5062 = vadd.f32 %v4879, %v4934
          %v5063 = vadd.f32 %v4880, %v4973
          %v5064 = vadd.f32 %v4881, %v4975
          %v5065 = vadd.f32 %v4882, %v5014
          %v5066 = vadd.f32 %v4883, %v5016
          %v5067 = vadd.f32 %v4884, %v5055
          %v5068 = vadd.f32 %v4885, %v5057
          %s5069 = scalar_lea.vmem %s0, 32
          %v5070 = vld [vmem:[%s5069] sm:$0xf]
          %5071 = vrot.lane.b32.xlu0 %v325, 106
          %v5072 = vpop.permute.xlu0 %5071
          %5073 = vrot.lane.b32.xlu0 %v333, 106
          %v5074 = vpop.permute.xlu0 %5073
          %5075 = vrot.lane.b32.xlu0 %v332, 106
          %v5076 = vpop.permute.xlu0 %5075
          %5077 = vrot.lane.b32.xlu0 %v334, 106
          %v5078 = vpop.permute.xlu0 %5077
          %5079 = vrot.lane.b32.xlu0 %v342, 106
          %v5080 = vpop.permute.xlu0 %5079
          %5081 = vrot.lane.b32.xlu0 %v350, 106
          %v5082 = vpop.permute.xlu0 %5081
          %5083 = vrot.lane.b32.xlu0 %v349, 106
          %v5084 = vpop.permute.xlu0 %5083
          %5085 = vrot.lane.b32.xlu0 %v351, 106
          %v5086 = vpop.permute.xlu0 %5085
          %5087 = vrot.lane.b32.xlu0 %v358, 106
          %v5088 = vpop.permute.xlu0 %5087
          %vm5089 = vcmask 867328
          %v5090 = vsel %vm5089, %v5072, %v5074
          %v5091 = vsel %vm5089, %v5074, %v5076
          %v5092 = vsel %vm5089, %v5076, %v5078
          %v5093 = vsel %vm5089, %v5078, %v5080
          %v5094 = vsel %vm5089, %v5080, %v5082
          %v5095 = vsel %vm5089, %v5082, %v5084
          %v5096 = vsel %vm5089, %v5084, %v5086
          %v5097 = vsel %vm5089, %v5086, %v5088
          %v5099 = vsel %vm359, %v5070, 0
          %v5102 = vsel %vm363, %v5090, 0
          %v5105 = vsel %vm363, %v5091, 0
          %v5108 = vsel %vm363, %v5092, 0
          %v5111 = vsel %vm363, %v5093, 0
          %v5114 = vsel %vm363, %v5094, 0
          %v5117 = vsel %vm363, %v5095, 0
          %v5120 = vsel %vm363, %v5096, 0
          %v5123 = vsel %vm363, %v5097, 0
          %5125 = vmatprep.subr.bf16.mxu0 0
          %5126 = vmatpush1.bf16.msra.mxu0 0
          %5127 = vmatprep.subr.bf16.mxu0 0
          %5128 = vmatpush1.bf16.msra.mxu0 0
          %5129 = vmatprep.subr.bf16.mxu0 0
          %5130 = vmatpush1.bf16.msra.mxu0 0
          %5131 = vmatprep.subr.bf16.mxu0 0
          %5132 = vmatpush1.bf16.msra.mxu0 0
          %5133 = vmatprep.subr.bf16.mxu0 0
          %5134 = vmatpush1.bf16.msra.mxu0 0
          %5135 = vmatprep.subr.bf16.mxu0 0
          %5136 = vmatpush1.bf16.msra.mxu0 0
          %5137 = vmatprep.subr.bf16.mxu0 0
          %5138 = vmatpush1.bf16.msra.mxu0 0
          %5139 = vmatprep.subr.bf16.mxu0 %v5105
          %5140 = vmatpush1.bf16.msra.mxu0 %v5102
          %5141 = vmatprep.subr.bf16.mxu0 0
          %5142 = vmatpush2.bf16.msra.mxu0 0
          %5143 = vmatprep.subr.bf16.mxu0 0
          %5144 = vmatpush2.bf16.msra.mxu0 0
          %5145 = vmatprep.subr.bf16.mxu0 0
          %5146 = vmatpush2.bf16.msra.mxu0 0
          %5147 = vmatprep.subr.bf16.mxu0 0
          %5148 = vmatpush2.bf16.msra.mxu0 0
          %5149 = vmatprep.subr.bf16.mxu0 0
          %5150 = vmatpush2.bf16.msra.mxu0 0
          %5151 = vmatprep.subr.bf16.mxu0 0
          %5152 = vmatpush2.bf16.msra.mxu0 0
          %5153 = vmatprep.subr.bf16.mxu0 0
          %5154 = vmatpush2.bf16.msra.mxu0 0
          %5155 = vmatprep.subr.bf16.mxu0 0
          %5156 = vmatpush2.bf16.msra.mxu0 0
          %5157 = vmatprep.mubr.bf16.mxu0 0
          %5158 = vmatmul.mubr.bf16.gmra.mxu0 %v5099
          %v5159 = vpop.f32.mrf.mxu0
          %v5160 = vadd.f32 0.0, %v5159
          %v5161 = vpop.f32.mrf.mxu0
          %v5162 = vadd.f32 0.0, %v5161
          %v5163 = vpop.f32.mrf.mxu0
          %v5164 = vpop.f32.mrf.mxu0
          %5165 = vdwg.mxu0
          %5166 = vmatprep.subr.bf16.mxu0 0
          %5167 = vmatpush1.bf16.msra.mxu0 0
          %5168 = vmatprep.subr.bf16.mxu0 0
          %5169 = vmatpush1.bf16.msra.mxu0 0
          %5170 = vmatprep.subr.bf16.mxu0 0
          %5171 = vmatpush1.bf16.msra.mxu0 0
          %5172 = vmatprep.subr.bf16.mxu0 0
          %5173 = vmatpush1.bf16.msra.mxu0 0
          %5174 = vmatprep.subr.bf16.mxu0 0
          %5175 = vmatpush1.bf16.msra.mxu0 0
          %5176 = vmatprep.subr.bf16.mxu0 0
          %5177 = vmatpush1.bf16.msra.mxu0 0
          %5178 = vmatprep.subr.bf16.mxu0 0
          %5179 = vmatpush1.bf16.msra.mxu0 0
          %5180 = vmatprep.subr.bf16.mxu0 %v5111
          %5181 = vmatpush1.bf16.msra.mxu0 %v5108
          %5182 = vmatprep.subr.bf16.mxu0 0
          %5183 = vmatpush2.bf16.msra.mxu0 0
          %5184 = vmatprep.subr.bf16.mxu0 0
          %5185 = vmatpush2.bf16.msra.mxu0 0
          %5186 = vmatprep.subr.bf16.mxu0 0
          %5187 = vmatpush2.bf16.msra.mxu0 0
          %5188 = vmatprep.subr.bf16.mxu0 0
          %5189 = vmatpush2.bf16.msra.mxu0 0
          %5190 = vmatprep.subr.bf16.mxu0 0
          %5191 = vmatpush2.bf16.msra.mxu0 0
          %5192 = vmatprep.subr.bf16.mxu0 0
          %5193 = vmatpush2.bf16.msra.mxu0 0
          %5194 = vmatprep.subr.bf16.mxu0 0
          %5195 = vmatpush2.bf16.msra.mxu0 0
          %5196 = vmatprep.subr.bf16.mxu0 0
          %5197 = vmatpush2.bf16.msra.mxu0 0
          %5198 = vmatprep.mubr.bf16.mxu0 0
          %5199 = vmatmul.mubr.bf16.gmra.mxu0 %v5099
          %v5200 = vpop.f32.mrf.mxu0
          %v5201 = vadd.f32 0.0, %v5200
          %v5202 = vpop.f32.mrf.mxu0
          %v5203 = vadd.f32 0.0, %v5202
          %v5204 = vpop.f32.mrf.mxu0
          %v5205 = vpop.f32.mrf.mxu0
          %5206 = vdwg.mxu0
          %5207 = vmatprep.subr.bf16.mxu0 0
          %5208 = vmatpush1.bf16.msra.mxu0 0
          %5209 = vmatprep.subr.bf16.mxu0 0
          %5210 = vmatpush1.bf16.msra.mxu0 0
          %5211 = vmatprep.subr.bf16.mxu0 0
          %5212 = vmatpush1.bf16.msra.mxu0 0
          %5213 = vmatprep.subr.bf16.mxu0 0
          %5214 = vmatpush1.bf16.msra.mxu0 0
          %5215 = vmatprep.subr.bf16.mxu0 0
          %5216 = vmatpush1.bf16.msra.mxu0 0
          %5217 = vmatprep.subr.bf16.mxu0 0
          %5218 = vmatpush1.bf16.msra.mxu0 0
          %5219 = vmatprep.subr.bf16.mxu0 0
          %5220 = vmatpush1.bf16.msra.mxu0 0
          %5221 = vmatprep.subr.bf16.mxu0 %v5117
          %5222 = vmatpush1.bf16.msra.mxu0 %v5114
          %5223 = vmatprep.subr.bf16.mxu0 0
          %5224 = vmatpush2.bf16.msra.mxu0 0
          %5225 = vmatprep.subr.bf16.mxu0 0
          %5226 = vmatpush2.bf16.msra.mxu0 0
          %5227 = vmatprep.subr.bf16.mxu0 0
          %5228 = vmatpush2.bf16.msra.mxu0 0
          %5229 = vmatprep.subr.bf16.mxu0 0
          %5230 = vmatpush2.bf16.msra.mxu0 0
          %5231 = vmatprep.subr.bf16.mxu0 0
          %5232 = vmatpush2.bf16.msra.mxu0 0
          %5233 = vmatprep.subr.bf16.mxu0 0
          %5234 = vmatpush2.bf16.msra.mxu0 0
          %5235 = vmatprep.subr.bf16.mxu0 0
          %5236 = vmatpush2.bf16.msra.mxu0 0
          %5237 = vmatprep.subr.bf16.mxu0 0
          %5238 = vmatpush2.bf16.msra.mxu0 0
          %5239 = vmatprep.mubr.bf16.mxu0 0
          %5240 = vmatmul.mubr.bf16.gmra.mxu0 %v5099
          %v5241 = vpop.f32.mrf.mxu0
          %v5242 = vadd.f32 0.0, %v5241
          %v5243 = vpop.f32.mrf.mxu0
          %v5244 = vadd.f32 0.0, %v5243
          %v5245 = vpop.f32.mrf.mxu0
          %v5246 = vpop.f32.mrf.mxu0
          %5247 = vdwg.mxu0
          %5248 = vmatprep.subr.bf16.mxu0 0
          %5249 = vmatpush1.bf16.msra.mxu0 0
          %5250 = vmatprep.subr.bf16.mxu0 0
          %5251 = vmatpush1.bf16.msra.mxu0 0
          %5252 = vmatprep.subr.bf16.mxu0 0
          %5253 = vmatpush1.bf16.msra.mxu0 0
          %5254 = vmatprep.subr.bf16.mxu0 0
          %5255 = vmatpush1.bf16.msra.mxu0 0
          %5256 = vmatprep.subr.bf16.mxu0 0
          %5257 = vmatpush1.bf16.msra.mxu0 0
          %5258 = vmatprep.subr.bf16.mxu0 0
          %5259 = vmatpush1.bf16.msra.mxu0 0
          %5260 = vmatprep.subr.bf16.mxu0 0
          %5261 = vmatpush1.bf16.msra.mxu0 0
          %5262 = vmatprep.subr.bf16.mxu0 %v5123
          %5263 = vmatpush1.bf16.msra.mxu0 %v5120
          %5264 = vmatprep.subr.bf16.mxu0 0
          %5265 = vmatpush2.bf16.msra.mxu0 0
          %5266 = vmatprep.subr.bf16.mxu0 0
          %5267 = vmatpush2.bf16.msra.mxu0 0
          %5268 = vmatprep.subr.bf16.mxu0 0
          %5269 = vmatpush2.bf16.msra.mxu0 0
          %5270 = vmatprep.subr.bf16.mxu0 0
          %5271 = vmatpush2.bf16.msra.mxu0 0
          %5272 = vmatprep.subr.bf16.mxu0 0
          %5273 = vmatpush2.bf16.msra.mxu0 0
          %5274 = vmatprep.subr.bf16.mxu0 0
          %5275 = vmatpush2.bf16.msra.mxu0 0
          %5276 = vmatprep.subr.bf16.mxu0 0
          %5277 = vmatpush2.bf16.msra.mxu0 0
          %5278 = vmatprep.subr.bf16.mxu0 0
          %5279 = vmatpush2.bf16.msra.mxu0 0
          %5280 = vmatprep.mubr.bf16.mxu0 0
          %5281 = vmatmul.mubr.bf16.gmra.mxu0 %v5099
          %v5282 = vpop.f32.mrf.mxu0
          %v5283 = vadd.f32 0.0, %v5282
          %v5284 = vpop.f32.mrf.mxu0
          %v5285 = vadd.f32 0.0, %v5284
          %v5286 = vpop.f32.mrf.mxu0
          %v5287 = vpop.f32.mrf.mxu0
          %5288 = vdwg.mxu0
          %v5289 = vadd.f32 %v5061, %v5160
          %v5290 = vadd.f32 %v5062, %v5162
          %v5291 = vadd.f32 %v5063, %v5201
          %v5292 = vadd.f32 %v5064, %v5203
          %v5293 = vadd.f32 %v5065, %v5242
          %v5294 = vadd.f32 %v5066, %v5244
          %v5295 = vadd.f32 %v5067, %v5283
          %v5296 = vadd.f32 %v5068, %v5285
          %s5297 = scalar_lea.vmem %s0, 68
          %v5298 = vld [vmem:[%s5297] sm:$0xf]
          %5299 = vrot.lane.b32.xlu0 %v724, 106
          %v5300 = vpop.permute.xlu0 %5299
          %v5301 = vsel %vm5089, %v5088, %v5300
          %v5303 = vsel %vm359, %v5298, 0
          %v5306 = vsel %vm363, %v5301, 0
          %5308 = vmatprep.subr.bf16.mxu0 0
          %5309 = vmatpush1.bf16.msra.mxu0 0
          %5310 = vmatprep.subr.bf16.mxu0 0
          %5311 = vmatpush1.bf16.msra.mxu0 0
          %5312 = vmatprep.subr.bf16.mxu0 0
          %5313 = vmatpush1.bf16.msra.mxu0 0
          %5314 = vmatprep.subr.bf16.mxu0 0
          %5315 = vmatpush1.bf16.msra.mxu0 0
          %5316 = vmatprep.subr.bf16.mxu0 0
          %5317 = vmatpush1.bf16.msra.mxu0 0
          %5318 = vmatprep.subr.bf16.mxu0 0
          %5319 = vmatpush1.bf16.msra.mxu0 0
          %5320 = vmatprep.subr.bf16.mxu0 0
          %5321 = vmatpush1.bf16.msra.mxu0 0
          %5322 = vmatprep.subr.bf16.mxu0 %v5108
          %5323 = vmatpush1.bf16.msra.mxu0 %v5105
          %5324 = vmatprep.subr.bf16.mxu0 0
          %5325 = vmatpush2.bf16.msra.mxu0 0
          %5326 = vmatprep.subr.bf16.mxu0 0
          %5327 = vmatpush2.bf16.msra.mxu0 0
          %5328 = vmatprep.subr.bf16.mxu0 0
          %5329 = vmatpush2.bf16.msra.mxu0 0
          %5330 = vmatprep.subr.bf16.mxu0 0
          %5331 = vmatpush2.bf16.msra.mxu0 0
          %5332 = vmatprep.subr.bf16.mxu0 0
          %5333 = vmatpush2.bf16.msra.mxu0 0
          %5334 = vmatprep.subr.bf16.mxu0 0
          %5335 = vmatpush2.bf16.msra.mxu0 0
          %5336 = vmatprep.subr.bf16.mxu0 0
          %5337 = vmatpush2.bf16.msra.mxu0 0
          %5338 = vmatprep.subr.bf16.mxu0 0
          %5339 = vmatpush2.bf16.msra.mxu0 0
          %5340 = vmatprep.mubr.bf16.mxu0 0
          %5341 = vmatmul.mubr.bf16.gmra.mxu0 %v5303
          %v5342 = vpop.f32.mrf.mxu0
          %v5343 = vadd.f32 0.0, %v5342
          %v5344 = vpop.f32.mrf.mxu0
          %v5345 = vadd.f32 0.0, %v5344
          %v5346 = vpop.f32.mrf.mxu0
          %v5347 = vpop.f32.mrf.mxu0
          %5348 = vdwg.mxu0
          %5349 = vmatprep.subr.bf16.mxu0 0
          %5350 = vmatpush1.bf16.msra.mxu0 0
          %5351 = vmatprep.subr.bf16.mxu0 0
          %5352 = vmatpush1.bf16.msra.mxu0 0
          %5353 = vmatprep.subr.bf16.mxu0 0
          %5354 = vmatpush1.bf16.msra.mxu0 0
          %5355 = vmatprep.subr.bf16.mxu0 0
          %5356 = vmatpush1.bf16.msra.mxu0 0
          %5357 = vmatprep.subr.bf16.mxu0 0
          %5358 = vmatpush1.bf16.msra.mxu0 0
          %5359 = vmatprep.subr.bf16.mxu0 0
          %5360 = vmatpush1.bf16.msra.mxu0 0
          %5361 = vmatprep.subr.bf16.mxu0 0
          %5362 = vmatpush1.bf16.msra.mxu0 0
          %5363 = vmatprep.subr.bf16.mxu0 %v5114
          %5364 = vmatpush1.bf16.msra.mxu0 %v5111
          %5365 = vmatprep.subr.bf16.mxu0 0
          %5366 = vmatpush2.bf16.msra.mxu0 0
          %5367 = vmatprep.subr.bf16.mxu0 0
          %5368 = vmatpush2.bf16.msra.mxu0 0
          %5369 = vmatprep.subr.bf16.mxu0 0
          %5370 = vmatpush2.bf16.msra.mxu0 0
          %5371 = vmatprep.subr.bf16.mxu0 0
          %5372 = vmatpush2.bf16.msra.mxu0 0
          %5373 = vmatprep.subr.bf16.mxu0 0
          %5374 = vmatpush2.bf16.msra.mxu0 0
          %5375 = vmatprep.subr.bf16.mxu0 0
          %5376 = vmatpush2.bf16.msra.mxu0 0
          %5377 = vmatprep.subr.bf16.mxu0 0
          %5378 = vmatpush2.bf16.msra.mxu0 0
          %5379 = vmatprep.subr.bf16.mxu0 0
          %5380 = vmatpush2.bf16.msra.mxu0 0
          %5381 = vmatprep.mubr.bf16.mxu0 0
          %5382 = vmatmul.mubr.bf16.gmra.mxu0 %v5303
          %v5383 = vpop.f32.mrf.mxu0
          %v5384 = vadd.f32 0.0, %v5383
          %v5385 = vpop.f32.mrf.mxu0
          %v5386 = vadd.f32 0.0, %v5385
          %v5387 = vpop.f32.mrf.mxu0
          %v5388 = vpop.f32.mrf.mxu0
          %5389 = vdwg.mxu0
          %5390 = vmatprep.subr.bf16.mxu0 0
          %5391 = vmatpush1.bf16.msra.mxu0 0
          %5392 = vmatprep.subr.bf16.mxu0 0
          %5393 = vmatpush1.bf16.msra.mxu0 0
          %5394 = vmatprep.subr.bf16.mxu0 0
          %5395 = vmatpush1.bf16.msra.mxu0 0
          %5396 = vmatprep.subr.bf16.mxu0 0
          %5397 = vmatpush1.bf16.msra.mxu0 0
          %5398 = vmatprep.subr.bf16.mxu0 0
          %5399 = vmatpush1.bf16.msra.mxu0 0
          %5400 = vmatprep.subr.bf16.mxu0 0
          %5401 = vmatpush1.bf16.msra.mxu0 0
          %5402 = vmatprep.subr.bf16.mxu0 0
          %5403 = vmatpush1.bf16.msra.mxu0 0
          %5404 = vmatprep.subr.bf16.mxu0 %v5120
          %5405 = vmatpush1.bf16.msra.mxu0 %v5117
          %5406 = vmatprep.subr.bf16.mxu0 0
          %5407 = vmatpush2.bf16.msra.mxu0 0
          %5408 = vmatprep.subr.bf16.mxu0 0
          %5409 = vmatpush2.bf16.msra.mxu0 0
          %5410 = vmatprep.subr.bf16.mxu0 0
          %5411 = vmatpush2.bf16.msra.mxu0 0
          %5412 = vmatprep.subr.bf16.mxu0 0
          %5413 = vmatpush2.bf16.msra.mxu0 0
          %5414 = vmatprep.subr.bf16.mxu0 0
          %5415 = vmatpush2.bf16.msra.mxu0 0
          %5416 = vmatprep.subr.bf16.mxu0 0
          %5417 = vmatpush2.bf16.msra.mxu0 0
          %5418 = vmatprep.subr.bf16.mxu0 0
          %5419 = vmatpush2.bf16.msra.mxu0 0
          %5420 = vmatprep.subr.bf16.mxu0 0
          %5421 = vmatpush2.bf16.msra.mxu0 0
          %5422 = vmatprep.mubr.bf16.mxu0 0
          %5423 = vmatmul.mubr.bf16.gmra.mxu0 %v5303
          %v5424 = vpop.f32.mrf.mxu0
          %v5425 = vadd.f32 0.0, %v5424
          %v5426 = vpop.f32.mrf.mxu0
          %v5427 = vadd.f32 0.0, %v5426
          %v5428 = vpop.f32.mrf.mxu0
          %v5429 = vpop.f32.mrf.mxu0
          %5430 = vdwg.mxu0
          %5431 = vmatprep.subr.bf16.mxu0 0
          %5432 = vmatpush1.bf16.msra.mxu0 0
          %5433 = vmatprep.subr.bf16.mxu0 0
          %5434 = vmatpush1.bf16.msra.mxu0 0
          %5435 = vmatprep.subr.bf16.mxu0 0
          %5436 = vmatpush1.bf16.msra.mxu0 0
          %5437 = vmatprep.subr.bf16.mxu0 0
          %5438 = vmatpush1.bf16.msra.mxu0 0
          %5439 = vmatprep.subr.bf16.mxu0 0
          %5440 = vmatpush1.bf16.msra.mxu0 0
          %5441 = vmatprep.subr.bf16.mxu0 0
          %5442 = vmatpush1.bf16.msra.mxu0 0
          %5443 = vmatprep.subr.bf16.mxu0 0
          %5444 = vmatpush1.bf16.msra.mxu0 0
          %5445 = vmatprep.subr.bf16.mxu0 %v5306
          %5446 = vmatpush1.bf16.msra.mxu0 %v5123
          %5447 = vmatprep.subr.bf16.mxu0 0
          %5448 = vmatpush2.bf16.msra.mxu0 0
          %5449 = vmatprep.subr.bf16.mxu0 0
          %5450 = vmatpush2.bf16.msra.mxu0 0
          %5451 = vmatprep.subr.bf16.mxu0 0
          %5452 = vmatpush2.bf16.msra.mxu0 0
          %5453 = vmatprep.subr.bf16.mxu0 0
          %5454 = vmatpush2.bf16.msra.mxu0 0
          %5455 = vmatprep.subr.bf16.mxu0 0
          %5456 = vmatpush2.bf16.msra.mxu0 0
          %5457 = vmatprep.subr.bf16.mxu0 0
          %5458 = vmatpush2.bf16.msra.mxu0 0
          %5459 = vmatprep.subr.bf16.mxu0 0
          %5460 = vmatpush2.bf16.msra.mxu0 0
          %5461 = vmatprep.subr.bf16.mxu0 0
          %5462 = vmatpush2.bf16.msra.mxu0 0
          %5463 = vmatprep.mubr.bf16.mxu0 0
          %5464 = vmatmul.mubr.bf16.gmra.mxu0 %v5303
          %v5465 = vpop.f32.mrf.mxu0
          %v5466 = vadd.f32 0.0, %v5465
          %v5467 = vpop.f32.mrf.mxu0
          %v5468 = vadd.f32 0.0, %v5467
          %v5469 = vpop.f32.mrf.mxu0
          %v5470 = vpop.f32.mrf.mxu0
          %5471 = vdwg.mxu0
          %v5472 = vadd.f32 %v5289, %v5343
          %v5473 = vadd.f32 %v5290, %v5345
          %v5474 = vadd.f32 %v5291, %v5384
          %v5475 = vadd.f32 %v5292, %v5386
          %v5476 = vadd.f32 %v5293, %v5425
          %v5477 = vadd.f32 %v5294, %v5427
          %v5478 = vadd.f32 %v5295, %v5466
          %v5479 = vadd.f32 %v5296, %v5468
          %s5480 = scalar_lea.vmem %s0, 104
          %v5481 = vld [vmem:[%s5480] sm:$0xf]
          %5482 = vrot.lane.b32.xlu0 %v1323, 106
          %v5483 = vpop.permute.xlu0 %5482
          %v5484 = vsel %vm5089, %v5300, %v5483
          %v5486 = vsel %vm359, %v5481, 0
          %v5489 = vsel %vm363, %v5484, 0
          %5491 = vmatprep.subr.bf16.mxu0 0
          %5492 = vmatpush1.bf16.msra.mxu0 0
          %5493 = vmatprep.subr.bf16.mxu0 0
          %5494 = vmatpush1.bf16.msra.mxu0 0
          %5495 = vmatprep.subr.bf16.mxu0 0
          %5496 = vmatpush1.bf16.msra.mxu0 0
          %5497 = vmatprep.subr.bf16.mxu0 0
          %5498 = vmatpush1.bf16.msra.mxu0 0
          %5499 = vmatprep.subr.bf16.mxu0 0
          %5500 = vmatpush1.bf16.msra.mxu0 0
          %5501 = vmatprep.subr.bf16.mxu0 0
          %5502 = vmatpush1.bf16.msra.mxu0 0
          %5503 = vmatprep.subr.bf16.mxu0 0
          %5504 = vmatpush1.bf16.msra.mxu0 0
          %5505 = vmatprep.subr.bf16.mxu0 %v5111
          %5506 = vmatpush1.bf16.msra.mxu0 %v5108
          %5507 = vmatprep.subr.bf16.mxu0 0
          %5508 = vmatpush2.bf16.msra.mxu0 0
          %5509 = vmatprep.subr.bf16.mxu0 0
          %5510 = vmatpush2.bf16.msra.mxu0 0
          %5511 = vmatprep.subr.bf16.mxu0 0
          %5512 = vmatpush2.bf16.msra.mxu0 0
          %5513 = vmatprep.subr.bf16.mxu0 0
          %5514 = vmatpush2.bf16.msra.mxu0 0
          %5515 = vmatprep.subr.bf16.mxu0 0
          %5516 = vmatpush2.bf16.msra.mxu0 0
          %5517 = vmatprep.subr.bf16.mxu0 0
          %5518 = vmatpush2.bf16.msra.mxu0 0
          %5519 = vmatprep.subr.bf16.mxu0 0
          %5520 = vmatpush2.bf16.msra.mxu0 0
          %5521 = vmatprep.subr.bf16.mxu0 0
          %5522 = vmatpush2.bf16.msra.mxu0 0
          %5523 = vmatprep.mubr.bf16.mxu0 0
          %5524 = vmatmul.mubr.bf16.gmra.mxu0 %v5486
          %v5525 = vpop.f32.mrf.mxu0
          %v5526 = vadd.f32 0.0, %v5525
          %v5527 = vpop.f32.mrf.mxu0
          %v5528 = vadd.f32 0.0, %v5527
          %v5529 = vpop.f32.mrf.mxu0
          %v5530 = vpop.f32.mrf.mxu0
          %5531 = vdwg.mxu0
          %5532 = vmatprep.subr.bf16.mxu0 0
          %5533 = vmatpush1.bf16.msra.mxu0 0
          %5534 = vmatprep.subr.bf16.mxu0 0
          %5535 = vmatpush1.bf16.msra.mxu0 0
          %5536 = vmatprep.subr.bf16.mxu0 0
          %5537 = vmatpush1.bf16.msra.mxu0 0
          %5538 = vmatprep.subr.bf16.mxu0 0
          %5539 = vmatpush1.bf16.msra.mxu0 0
          %5540 = vmatprep.subr.bf16.mxu0 0
          %5541 = vmatpush1.bf16.msra.mxu0 0
          %5542 = vmatprep.subr.bf16.mxu0 0
          %5543 = vmatpush1.bf16.msra.mxu0 0
          %5544 = vmatprep.subr.bf16.mxu0 0
          %5545 = vmatpush1.bf16.msra.mxu0 0
          %5546 = vmatprep.subr.bf16.mxu0 %v5117
          %5547 = vmatpush1.bf16.msra.mxu0 %v5114
          %5548 = vmatprep.subr.bf16.mxu0 0
          %5549 = vmatpush2.bf16.msra.mxu0 0
          %5550 = vmatprep.subr.bf16.mxu0 0
          %5551 = vmatpush2.bf16.msra.mxu0 0
          %5552 = vmatprep.subr.bf16.mxu0 0
          %5553 = vmatpush2.bf16.msra.mxu0 0
          %5554 = vmatprep.subr.bf16.mxu0 0
          %5555 = vmatpush2.bf16.msra.mxu0 0
          %5556 = vmatprep.subr.bf16.mxu0 0
          %5557 = vmatpush2.bf16.msra.mxu0 0
          %5558 = vmatprep.subr.bf16.mxu0 0
          %5559 = vmatpush2.bf16.msra.mxu0 0
          %5560 = vmatprep.subr.bf16.mxu0 0
          %5561 = vmatpush2.bf16.msra.mxu0 0
          %5562 = vmatprep.subr.bf16.mxu0 0
          %5563 = vmatpush2.bf16.msra.mxu0 0
          %5564 = vmatprep.mubr.bf16.mxu0 0
          %5565 = vmatmul.mubr.bf16.gmra.mxu0 %v5486
          %v5566 = vpop.f32.mrf.mxu0
          %v5567 = vadd.f32 0.0, %v5566
          %v5568 = vpop.f32.mrf.mxu0
          %v5569 = vadd.f32 0.0, %v5568
          %v5570 = vpop.f32.mrf.mxu0
          %v5571 = vpop.f32.mrf.mxu0
          %5572 = vdwg.mxu0
          %5573 = vmatprep.subr.bf16.mxu0 0
          %5574 = vmatpush1.bf16.msra.mxu0 0
          %5575 = vmatprep.subr.bf16.mxu0 0
          %5576 = vmatpush1.bf16.msra.mxu0 0
          %5577 = vmatprep.subr.bf16.mxu0 0
          %5578 = vmatpush1.bf16.msra.mxu0 0
          %5579 = vmatprep.subr.bf16.mxu0 0
          %5580 = vmatpush1.bf16.msra.mxu0 0
          %5581 = vmatprep.subr.bf16.mxu0 0
          %5582 = vmatpush1.bf16.msra.mxu0 0
          %5583 = vmatprep.subr.bf16.mxu0 0
          %5584 = vmatpush1.bf16.msra.mxu0 0
          %5585 = vmatprep.subr.bf16.mxu0 0
          %5586 = vmatpush1.bf16.msra.mxu0 0
          %5587 = vmatprep.subr.bf16.mxu0 %v5123
          %5588 = vmatpush1.bf16.msra.mxu0 %v5120
          %5589 = vmatprep.subr.bf16.mxu0 0
          %5590 = vmatpush2.bf16.msra.mxu0 0
          %5591 = vmatprep.subr.bf16.mxu0 0
          %5592 = vmatpush2.bf16.msra.mxu0 0
          %5593 = vmatprep.subr.bf16.mxu0 0
          %5594 = vmatpush2.bf16.msra.mxu0 0
          %5595 = vmatprep.subr.bf16.mxu0 0
          %5596 = vmatpush2.bf16.msra.mxu0 0
          %5597 = vmatprep.subr.bf16.mxu0 0
          %5598 = vmatpush2.bf16.msra.mxu0 0
          %5599 = vmatprep.subr.bf16.mxu0 0
          %5600 = vmatpush2.bf16.msra.mxu0 0
          %5601 = vmatprep.subr.bf16.mxu0 0
          %5602 = vmatpush2.bf16.msra.mxu0 0
          %5603 = vmatprep.subr.bf16.mxu0 0
          %5604 = vmatpush2.bf16.msra.mxu0 0
          %5605 = vmatprep.mubr.bf16.mxu0 0
          %5606 = vmatmul.mubr.bf16.gmra.mxu0 %v5486
          %v5607 = vpop.f32.mrf.mxu0
          %v5608 = vadd.f32 0.0, %v5607
          %v5609 = vpop.f32.mrf.mxu0
          %v5610 = vadd.f32 0.0, %v5609
          %v5611 = vpop.f32.mrf.mxu0
          %v5612 = vpop.f32.mrf.mxu0
          %5613 = vdwg.mxu0
          %5614 = vmatprep.subr.bf16.mxu0 0
          %5615 = vmatpush1.bf16.msra.mxu0 0
          %5616 = vmatprep.subr.bf16.mxu0 0
          %5617 = vmatpush1.bf16.msra.mxu0 0
          %5618 = vmatprep.subr.bf16.mxu0 0
          %5619 = vmatpush1.bf16.msra.mxu0 0
          %5620 = vmatprep.subr.bf16.mxu0 0
          %5621 = vmatpush1.bf16.msra.mxu0 0
          %5622 = vmatprep.subr.bf16.mxu0 0
          %5623 = vmatpush1.bf16.msra.mxu0 0
          %5624 = vmatprep.subr.bf16.mxu0 0
          %5625 = vmatpush1.bf16.msra.mxu0 0
          %5626 = vmatprep.subr.bf16.mxu0 0
          %5627 = vmatpush1.bf16.msra.mxu0 0
          %5628 = vmatprep.subr.bf16.mxu0 %v5489
          %5629 = vmatpush1.bf16.msra.mxu0 %v5306
          %5630 = vmatprep.subr.bf16.mxu0 0
          %5631 = vmatpush2.bf16.msra.mxu0 0
          %5632 = vmatprep.subr.bf16.mxu0 0
          %5633 = vmatpush2.bf16.msra.mxu0 0
          %5634 = vmatprep.subr.bf16.mxu0 0
          %5635 = vmatpush2.bf16.msra.mxu0 0
          %5636 = vmatprep.subr.bf16.mxu0 0
          %5637 = vmatpush2.bf16.msra.mxu0 0
          %5638 = vmatprep.subr.bf16.mxu0 0
          %5639 = vmatpush2.bf16.msra.mxu0 0
          %5640 = vmatprep.subr.bf16.mxu0 0
          %5641 = vmatpush2.bf16.msra.mxu0 0
          %5642 = vmatprep.subr.bf16.mxu0 0
          %5643 = vmatpush2.bf16.msra.mxu0 0
          %5644 = vmatprep.subr.bf16.mxu0 0
          %5645 = vmatpush2.bf16.msra.mxu0 0
          %5646 = vmatprep.mubr.bf16.mxu0 0
          %5647 = vmatmul.mubr.bf16.gmra.mxu0 %v5486
          %v5648 = vpop.f32.mrf.mxu0
          %v5649 = vadd.f32 0.0, %v5648
          %v5650 = vpop.f32.mrf.mxu0
          %v5651 = vadd.f32 0.0, %v5650
          %v5652 = vpop.f32.mrf.mxu0
          %v5653 = vpop.f32.mrf.mxu0
          %5654 = vdwg.mxu0
          %v5655 = vadd.f32 %v5472, %v5526
          %v5656 = vadd.f32 %v5473, %v5528
          %v5657 = vadd.f32 %v5474, %v5567
          %v5658 = vadd.f32 %v5475, %v5569
          %v5659 = vadd.f32 %v5476, %v5608
          %v5660 = vadd.f32 %v5477, %v5610
          %v5661 = vadd.f32 %v5478, %v5649
          %v5662 = vadd.f32 %v5479, %v5651
          %s5663 = smul.u32 %s24, 8
          %s5664 = smul.addr %s5663, 8
          %s5665 = scalar_lea.vmem [#allocation2], %s5664
          %5666 = vst [vmem:[%s5665] sm:$0xff] %v5655
          %5667 = vst [vmem:[%s5665 + $0x8] sm:$0xff] %v5656
          %5668 = vst [vmem:[%s5665 + $0x10] sm:$0xff] %v5657
          %5669 = vst [vmem:[%s5665 + $0x18] sm:$0xff] %v5658
          %5670 = vst [vmem:[%s5665 + $0x20] sm:$0xff] %v5659
          %5671 = vst [vmem:[%s5665 + $0x28] sm:$0xff] %v5660
          %5672 = vst [vmem:[%s5665 + $0x30] sm:$0xff] %v5661
          %5673 = vst [vmem:[%s5665 + $0x38] sm:$0xff] %v5662
          %v5674 = vld [vmem:[#allocation5] sm:$0xff]
          %v5675 = vld [vmem:[#allocation3] sm:$0xff]
          %v5677 = vlaneseq
          %v5678 = vshrl.u32 %v5677, 7
          %v5679 = vsub.s32 0, %v5678
          %v5680 = vrot.slane %v5674, %v5679
          %v5681 = vlaneseq
          %v5682 = vshrl.u32 %v5681, 7
          %v5683 = vsub.s32 1, %v5682
          %v5684 = vrot.slane %v5674, %v5683
          %v5685 = vlaneseq
          %v5686 = vshrl.u32 %v5685, 7
          %v5687 = vsub.s32 2, %v5686
          %v5688 = vrot.slane %v5674, %v5687
          %v5689 = vlaneseq
          %v5690 = vshrl.u32 %v5689, 7
          %v5691 = vsub.s32 3, %v5690
          %v5692 = vrot.slane %v5674, %v5691
          %v5693 = vlaneseq
          %v5694 = vshrl.u32 %v5693, 7
          %v5695 = vsub.s32 4, %v5694
          %v5696 = vrot.slane %v5674, %v5695
          %v5697 = vlaneseq
          %v5698 = vshrl.u32 %v5697, 7
          %v5699 = vsub.s32 5, %v5698
          %v5700 = vrot.slane %v5674, %v5699
          %v5701 = vlaneseq
          %v5702 = vshrl.u32 %v5701, 7
          %v5703 = vsub.s32 6, %v5702
          %v5704 = vrot.slane %v5674, %v5703
          %v5705 = vlaneseq
          %v5706 = vshrl.u32 %v5705, 7
          %v5707 = vsub.s32 7, %v5706
          %v5708 = vrot.slane %v5674, %v5707
          %v5717 = vmul.f32 %v5655, %v5680
          %v5718 = vmul.f32 %v5656, %v5684
          %v5719 = vmul.f32 %v5657, %v5688
          %v5720 = vmul.f32 %v5658, %v5692
          %v5721 = vmul.f32 %v5659, %v5696
          %v5722 = vmul.f32 %v5660, %v5700
          %v5723 = vmul.f32 %v5661, %v5704
          %v5724 = vmul.f32 %v5662, %v5708
          %v5725 = vadd.f32 %v5717, %v5718
          %v5726 = vadd.f32 %v5725, %v5719
          %v5727 = vadd.f32 %v5726, %v5720
          %v5728 = vadd.f32 %v5727, %v5721
          %v5729 = vadd.f32 %v5728, %v5722
          %v5730 = vadd.f32 %v5729, %v5723
          %v5731 = vadd.f32 %v5730, %v5724
          %5732 = vadd.xlane.f32.xlu0 %v5731
          %v5733 = vpop.xlane.xlu0 %5732
          %v5734 = vadd.f32 %v5675, %v5733
          %vm5735 = vcmask 7168
          %5736 = vst.msk [vmem:[#allocation3] sm:$0xff] %vm5735, %v5734
          %v5737 = vld [vmem:[#allocation4] sm:$0xff]
          %v5738 = vmul.f32 %v5655, %v5655
          %v5739 = vmul.f32 %v5656, %v5656
          %v5740 = vmul.f32 %v5657, %v5657
          %v5741 = vmul.f32 %v5658, %v5658
          %v5742 = vmul.f32 %v5659, %v5659
          %v5743 = vmul.f32 %v5660, %v5660
          %v5744 = vmul.f32 %v5661, %v5661
          %v5745 = vmul.f32 %v5662, %v5662
          %v5746 = vmul.f32 %v5738, %v5680
          %v5747 = vmul.f32 %v5739, %v5684
          %v5748 = vmul.f32 %v5740, %v5688
          %v5749 = vmul.f32 %v5741, %v5692
          %v5750 = vmul.f32 %v5742, %v5696
          %v5751 = vmul.f32 %v5743, %v5700
          %v5752 = vmul.f32 %v5744, %v5704
          %v5753 = vmul.f32 %v5745, %v5708
          %v5754 = vadd.f32 %v5746, %v5747
          %v5755 = vadd.f32 %v5754, %v5748
          %v5756 = vadd.f32 %v5755, %v5749
          %v5757 = vadd.f32 %v5756, %v5750
          %v5758 = vadd.f32 %v5757, %v5751
          %v5759 = vadd.f32 %v5758, %v5752
          %v5760 = vadd.f32 %v5759, %v5753
          %5761 = vadd.xlane.f32.xlu0 %v5760
          %v5762 = vpop.xlane.xlu0 %5761
          %v5763 = vadd.f32 %v5737, %v5762
          %5764 = vst.msk [vmem:[#allocation4] sm:$0xff] %vm5735, %v5763
        $region56: #{decoder_block_cup.1} parent=43 // pred_fallthru
          _
        %p5765 = scmp.eq.s32.totalorder %s23, 1
        // Predicated region
        $region61: #{decoder_block_cup.1} parent=43 // pred_check
          %p5766 = pneg %p5765
        $region62: #{decoder_block_cup.1} parent=43 // pred_check_branch
          %5768 = sbr.rel (%p5766) target = $region64
        $region63: #{decoder_block_cup.1} parent=43 // pred_region
          %v5769 = vld [vmem:[#allocation3] sm:$0xff]
          %v5770 = vmul.f32 %v5769, 0.0009765625
          %v5771 = vld [vmem:[#allocation4] sm:$0xff]
          %v5772 = vmul.f32 %v5771, 0.0009765625
          %v5773 = vmul.f32 %v5770, %v5770
          %v5774 = vsub.f32 %v5772, %v5773
          %v5775 = vmax.f32 %v5774, 0.0
          %v5776 = vld [vmem:[%s2] sm:$0xff]
          %v5777 = vadd.f32 %v5775, 1e-05
          %v5778 = vrsqrt.pop %v5777
          %v5779 = vmul.f32 %v5776, %v5778
          %v5780 = vld [vmem:[%s3] sm:$0xff]
          %v5781 = vmul.f32 %v5770, %v5779
          %v5782 = vsub.f32 %v5780, %v5781
          %s5783 = smul.u32 %s24, 8
          %s5784 = smul.addr %s5783, 8
          %s5785 = scalar_lea.vmem [#allocation2], %s5784
          %v5786 = vld [vmem:[%s5785] sm:$0xff]
          %v5787 = vld [vmem:[%s5785 + $0x8] sm:$0xff]
          %v5788 = vld [vmem:[%s5785 + $0x10] sm:$0xff]
          %v5789 = vld [vmem:[%s5785 + $0x18] sm:$0xff]
          %v5790 = vld [vmem:[%s5785 + $0x20] sm:$0xff]
          %v5791 = vld [vmem:[%s5785 + $0x28] sm:$0xff]
          %v5792 = vld [vmem:[%s5785 + $0x30] sm:$0xff]
          %v5793 = vld [vmem:[%s5785 + $0x38] sm:$0xff]
          %5795 = vset.pattern.permute.xlu0 0
          %5796 = vperm.xlu0 %5795, %v5779
          %v5797 = vpop.permute.xlu0 %5796
          %v5799 = vmul.f32 %v5786, %v5797
          %v5800 = vmul.f32 %v5787, %v5797
          %v5801 = vmul.f32 %v5788, %v5797
          %v5802 = vmul.f32 %v5789, %v5797
          %v5803 = vmul.f32 %v5790, %v5797
          %v5804 = vmul.f32 %v5791, %v5797
          %v5805 = vmul.f32 %v5792, %v5797
          %v5806 = vmul.f32 %v5793, %v5797
          %5808 = vset.pattern.permute.xlu0 0
          %5809 = vperm.xlu0 %5808, %v5782
          %v5810 = vpop.permute.xlu0 %5809
          %v5812 = vadd.f32 %v5799, %v5810
          %v5813 = vadd.f32 %v5800, %v5810
          %v5814 = vadd.f32 %v5801, %v5810
          %v5815 = vadd.f32 %v5802, %v5810
          %v5816 = vadd.f32 %v5803, %v5810
          %v5817 = vadd.f32 %v5804, %v5810
          %v5818 = vadd.f32 %v5805, %v5810
          %v5819 = vadd.f32 %v5806, %v5810
          %vm5820 = vcmp.ge.f32.partialorder %v5812, 0.0
          %vm5821 = vcmp.ge.f32.partialorder %v5813, 0.0
          %vm5822 = vcmp.ge.f32.partialorder %v5814, 0.0
          %vm5823 = vcmp.ge.f32.partialorder %v5815, 0.0
          %vm5824 = vcmp.ge.f32.partialorder %v5816, 0.0
          %vm5825 = vcmp.ge.f32.partialorder %v5817, 0.0
          %vm5826 = vcmp.ge.f32.partialorder %v5818, 0.0
          %vm5827 = vcmp.ge.f32.partialorder %v5819, 0.0
          %v5828 = vmul.f32 %v5812, 0.01
          %v5829 = vmul.f32 %v5813, 0.01
          %v5830 = vmul.f32 %v5814, 0.01
          %v5831 = vmul.f32 %v5815, 0.01
          %v5832 = vmul.f32 %v5816, 0.01
          %v5833 = vmul.f32 %v5817, 0.01
          %v5834 = vmul.f32 %v5818, 0.01
          %v5835 = vmul.f32 %v5819, 0.01
          %v5836 = vsel %vm5820, %v5812, %v5828
          %v5837 = vsel %vm5821, %v5813, %v5829
          %v5838 = vsel %vm5822, %v5814, %v5830
          %v5839 = vsel %vm5823, %v5815, %v5831
          %v5840 = vsel %vm5824, %v5816, %v5832
          %v5841 = vsel %vm5825, %v5817, %v5833
          %v5842 = vsel %vm5826, %v5818, %v5834
          %v5843 = vsel %vm5827, %v5819, %v5835
          %v5844 = vpack.c.bf16 %v5836, %v5836
          %v5845 = vpack.c.bf16 %v5837, %v5837
          %v5846 = vpack.c.bf16 %v5838, %v5838
          %v5847 = vpack.c.bf16 %v5839, %v5839
          %v5848 = vpack.c.bf16 %v5840, %v5840
          %v5849 = vpack.c.bf16 %v5841, %v5841
          %v5850 = vpack.c.bf16 %v5842, %v5842
          %v5851 = vpack.c.bf16 %v5843, %v5843
          %v5852 = vunpack.c.l.bf16 %v5844
          %v5853 = vunpack.c.l.bf16 %v5845
          %v5854 = vunpack.c.l.bf16 %v5846
          %v5855 = vunpack.c.l.bf16 %v5847
          %v5856 = vunpack.c.l.bf16 %v5848
          %v5857 = vunpack.c.l.bf16 %v5849
          %v5858 = vunpack.c.l.bf16 %v5850
          %v5859 = vunpack.c.l.bf16 %v5851
          %v5860 = vsub.f32 %v5836, %v5852
          %v5861 = vsub.f32 %v5837, %v5853
          %v5862 = vsub.f32 %v5838, %v5854
          %v5863 = vsub.f32 %v5839, %v5855
          %v5864 = vsub.f32 %v5840, %v5856
          %v5865 = vsub.f32 %v5841, %v5857
          %v5866 = vsub.f32 %v5842, %v5858
          %v5867 = vsub.f32 %v5843, %v5859
          %v5868 = vpack.c.bf16 %v5860, %v5860
          %v5869 = vpack.c.bf16 %v5861, %v5861
          %v5870 = vpack.c.bf16 %v5862, %v5862
          %v5871 = vpack.c.bf16 %v5863, %v5863
          %v5872 = vpack.c.bf16 %v5864, %v5864
          %v5873 = vpack.c.bf16 %v5865, %v5865
          %v5874 = vpack.c.bf16 %v5866, %v5866
          %v5875 = vpack.c.bf16 %v5867, %v5867
          %v5876 = vld [vmem:[#allocation7] sm:$0xff]
          %v5877 = vld [vmem:[#allocation7 + $0x8] sm:$0xff]
          %v5878 = vld [vmem:[#allocation7 + $0x10] sm:$0xff]
          %v5879 = vld [vmem:[#allocation7 + $0x18] sm:$0xff]
          %v5880 = vld [vmem:[#allocation7 + $0x20] sm:$0xff]
          %v5881 = vld [vmem:[#allocation7 + $0x28] sm:$0xff]
          %v5882 = vld [vmem:[#allocation7 + $0x30] sm:$0xff]
          %v5883 = vld [vmem:[#allocation7 + $0x38] sm:$0xff]
          %v5884 = vld [vmem:[#allocation7 + $0x40] sm:$0xff]
          %v5885 = vld [vmem:[#allocation7 + $0x48] sm:$0xff]
          %v5886 = vld [vmem:[#allocation7 + $0x50] sm:$0xff]
          %v5887 = vld [vmem:[#allocation7 + $0x58] sm:$0xff]
          %v5888 = vld [vmem:[#allocation7 + $0x60] sm:$0xff]
          %v5889 = vld [vmem:[#allocation7 + $0x68] sm:$0xff]
          %v5890 = vld [vmem:[#allocation7 + $0x70] sm:$0xff]
          %v5891 = vld [vmem:[#allocation7 + $0x78] sm:$0xff]
          %v5908 = vunpack.c.l.b16 %v5876
          %v5909 = vunpack.c.h.b16 %v5876
          %v5910 = vunpack.c.l.b16 %v5877
          %v5911 = vunpack.c.h.b16 %v5877
          %v5912 = vunpack.c.l.b16 %v5878
          %v5913 = vunpack.c.h.b16 %v5878
          %v5914 = vunpack.c.l.b16 %v5879
          %v5915 = vunpack.c.h.b16 %v5879
          %v5916 = vunpack.c.l.b16 %v5880
          %v5917 = vunpack.c.h.b16 %v5880
          %v5918 = vunpack.c.l.b16 %v5881
          %v5919 = vunpack.c.h.b16 %v5881
          %v5920 = vunpack.c.l.b16 %v5882
          %v5921 = vunpack.c.h.b16 %v5882
          %v5922 = vunpack.c.l.b16 %v5883
          %v5923 = vunpack.c.h.b16 %v5883
          %v5924 = vunpack.c.l.b16 %v5884
          %v5925 = vunpack.c.h.b16 %v5884
          %v5926 = vunpack.c.l.b16 %v5885
          %v5927 = vunpack.c.h.b16 %v5885
          %v5928 = vunpack.c.l.b16 %v5886
          %v5929 = vunpack.c.h.b16 %v5886
          %v5930 = vunpack.c.l.b16 %v5887
          %v5931 = vunpack.c.h.b16 %v5887
          %v5932 = vunpack.c.l.b16 %v5888
          %v5933 = vunpack.c.h.b16 %v5888
          %v5934 = vunpack.c.l.b16 %v5889
          %v5935 = vunpack.c.h.b16 %v5889
          %v5936 = vunpack.c.l.b16 %v5890
          %v5937 = vunpack.c.h.b16 %v5890
          %v5938 = vunpack.c.l.b16 %v5891
          %v5939 = vunpack.c.h.b16 %v5891
          %v5940 = vpack.c.b16 %v5910, %v5908
          %v5941 = vpack.c.b16 %v5911, %v5909
          %v5942 = vpack.c.b16 %v5914, %v5912
          %v5943 = vpack.c.b16 %v5915, %v5913
          %v5944 = vpack.c.b16 %v5918, %v5916
          %v5945 = vpack.c.b16 %v5919, %v5917
          %v5946 = vpack.c.b16 %v5922, %v5920
          %v5947 = vpack.c.b16 %v5923, %v5921
          %v5948 = vpack.c.b16 %v5926, %v5924
          %v5949 = vpack.c.b16 %v5927, %v5925
          %v5950 = vpack.c.b16 %v5930, %v5928
          %v5951 = vpack.c.b16 %v5931, %v5929
          %v5952 = vpack.c.b16 %v5934, %v5932
          %v5953 = vpack.c.b16 %v5935, %v5933
          %v5954 = vpack.c.b16 %v5938, %v5936
          %v5955 = vpack.c.b16 %v5939, %v5937
          %5972 = vmatprep.subr.bf16.mxu0 %v5955
          %5973 = vmatpush1.bf16.msra.mxu0 %v5954
          %5974 = vmatprep.subr.bf16.mxu0 %v5953
          %5975 = vmatpush1.bf16.msra.mxu0 %v5952
          %5976 = vmatprep.subr.bf16.mxu0 %v5951
          %5977 = vmatpush1.bf16.msra.mxu0 %v5950
          %5978 = vmatprep.subr.bf16.mxu0 %v5949
          %5979 = vmatpush1.bf16.msra.mxu0 %v5948
          %5980 = vmatprep.subr.bf16.mxu0 %v5947
          %5981 = vmatpush1.bf16.msra.mxu0 %v5946
          %5982 = vmatprep.subr.bf16.mxu0 %v5945
          %5983 = vmatpush1.bf16.msra.mxu0 %v5944
          %5984 = vmatprep.subr.bf16.mxu0 %v5943
          %5985 = vmatpush1.bf16.msra.mxu0 %v5942
          %5986 = vmatprep.subr.bf16.mxu0 %v5941
          %5987 = vmatpush1.bf16.msra.mxu0 %v5940
          %5988 = vmatprep.subr.bf16.mxu0 0
          %5989 = vmatpush2.bf16.msra.mxu0 0
          %5990 = vmatprep.subr.bf16.mxu0 0
          %5991 = vmatpush2.bf16.msra.mxu0 0
          %5992 = vmatprep.subr.bf16.mxu0 0
          %5993 = vmatpush2.bf16.msra.mxu0 0
          %5994 = vmatprep.subr.bf16.mxu0 0
          %5995 = vmatpush2.bf16.msra.mxu0 0
          %5996 = vmatprep.subr.bf16.mxu0 0
          %5997 = vmatpush2.bf16.msra.mxu0 0
          %5998 = vmatprep.subr.bf16.mxu0 0
          %5999 = vmatpush2.bf16.msra.mxu0 0
          %6000 = vmatprep.subr.bf16.mxu0 0
          %6001 = vmatpush2.bf16.msra.mxu0 0
          %6002 = vmatprep.subr.bf16.mxu0 0
          %6003 = vmatpush2.bf16.msra.mxu0 0
          %6004 = vmatprep.mubr.bf16.mxu0 0
          %6005 = vmatmul.mubr.bf16.gmra.mxu0 %v5868
          %v6006 = vpop.f32.mrf.mxu0
          %v6007 = vadd.f32 0.0, %v6006
          %v6008 = vpop.f32.mrf.mxu0
          %v6009 = vadd.f32 0.0, %v6008
          %v6010 = vpop.f32.mrf.mxu0
          %v6011 = vpop.f32.mrf.mxu0
          %6012 = vdwg.mxu0
          %6013 = vmatprep.subr.bf16.mxu0 %v5955
          %6014 = vmatpush1.bf16.msra.mxu0 %v5954
          %6015 = vmatprep.subr.bf16.mxu0 %v5953
          %6016 = vmatpush1.bf16.msra.mxu0 %v5952
          %6017 = vmatprep.subr.bf16.mxu0 %v5951
          %6018 = vmatpush1.bf16.msra.mxu0 %v5950
          %6019 = vmatprep.subr.bf16.mxu0 %v5949
          %6020 = vmatpush1.bf16.msra.mxu0 %v5948
          %6021 = vmatprep.subr.bf16.mxu0 %v5947
          %6022 = vmatpush1.bf16.msra.mxu0 %v5946
          %6023 = vmatprep.subr.bf16.mxu0 %v5945
          %6024 = vmatpush1.bf16.msra.mxu0 %v5944
          %6025 = vmatprep.subr.bf16.mxu0 %v5943
          %6026 = vmatpush1.bf16.msra.mxu0 %v5942
          %6027 = vmatprep.subr.bf16.mxu0 %v5941
          %6028 = vmatpush1.bf16.msra.mxu0 %v5940
          %6029 = vmatprep.subr.bf16.mxu0 0
          %6030 = vmatpush2.bf16.msra.mxu0 0
          %6031 = vmatprep.subr.bf16.mxu0 0
          %6032 = vmatpush2.bf16.msra.mxu0 0
          %6033 = vmatprep.subr.bf16.mxu0 0
          %6034 = vmatpush2.bf16.msra.mxu0 0
          %6035 = vmatprep.subr.bf16.mxu0 0
          %6036 = vmatpush2.bf16.msra.mxu0 0
          %6037 = vmatprep.subr.bf16.mxu0 0
          %6038 = vmatpush2.bf16.msra.mxu0 0
          %6039 = vmatprep.subr.bf16.mxu0 0
          %6040 = vmatpush2.bf16.msra.mxu0 0
          %6041 = vmatprep.subr.bf16.mxu0 0
          %6042 = vmatpush2.bf16.msra.mxu0 0
          %6043 = vmatprep.subr.bf16.mxu0 0
          %6044 = vmatpush2.bf16.msra.mxu0 0
          %6045 = vmatprep.mubr.bf16.mxu0 0
          %6046 = vmatmul.mubr.bf16.gmra.mxu0 %v5844
          %v6047 = vpop.f32.mrf.mxu0
          %v6048 = vadd.f32 %v6007, %v6047
          %v6049 = vpop.f32.mrf.mxu0
          %v6050 = vadd.f32 %v6009, %v6049
          %v6051 = vpop.f32.mrf.mxu0
          %v6052 = vpop.f32.mrf.mxu0
          %6053 = vdwg.mxu0
          %v6056 = vcombine.low %v6048, %v6050
          %v6057 = vcombine.high %v6048, %v6050
          %v6059 = vunpack.c.l.s4 1966171168
          %v6060 = vunpack.c.0.s8 %v6059
          %v6061 = vlaneseq
          %v6062 = vshrl.u32 %v6061, 7
          %v6063 = vsub.s32 %v6060, %v6062
          %v6064 = vrot.slane %v6056, %v6063
          %v6066 = vunpack.c.l.s4 1966171168
          %v6067 = vunpack.c.0.s8 %v6066
          %v6068 = vlaneseq
          %v6069 = vshrl.u32 %v6068, 7
          %v6070 = vsub.s32 %v6067, %v6069
          %v6071 = vrot.slane %v6057, %v6070
          %v6072 = vcombine.high %v6064, %v6064
          %v6073 = vcombine.high %v6071, %v6071
          %v6075 = vunpack.c.l.s4 1966171168
          %v6076 = vunpack.c.0.s8 %v6075
          %v6077 = vlaneseq
          %v6078 = vshrl.u32 %v6077, 7
          %v6079 = vsub.s32 %v6076, %v6078
          %v6080 = vrot.slane %v6064, %v6079
          %v6082 = vunpack.c.l.s4 1966171168
          %v6083 = vunpack.c.0.s8 %v6082
          %v6084 = vlaneseq
          %v6085 = vshrl.u32 %v6084, 7
          %v6086 = vsub.s32 %v6083, %v6085
          %v6087 = vrot.slane %v6071, %v6086
          %v6089 = vunpack.c.l.s4 1966171168
          %v6090 = vunpack.c.0.s8 %v6089
          %v6091 = vlaneseq
          %v6092 = vshrl.u32 %v6091, 7
          %v6093 = vsub.s32 %v6090, %v6092
          %v6094 = vrot.slane %v6072, %v6093
          %v6096 = vunpack.c.l.s4 1966171168
          %v6097 = vunpack.c.0.s8 %v6096
          %v6098 = vlaneseq
          %v6099 = vshrl.u32 %v6098, 7
          %v6100 = vsub.s32 %v6097, %v6099
          %v6101 = vrot.slane %v6073, %v6100
          %v6102 = vcombine.high %v6080, %v6080
          %v6103 = vcombine.high %v6087, %v6087
          %v6104 = vcombine.high %v6094, %v6094
          %v6105 = vcombine.high %v6101, %v6101
          %v6114 = vlaneseq
          %vm6115 = vcmp.ge.s32.totalorder %v6114, 0
          %vm6116 = vcmp.lt.s32.totalorder %v6114, 256
          %vm6117 = vmand %vm6115, %vm6116
          %6118 = vst.msk [vmem:[%s295] ss:$8 sm:$0x3] %vm6117, %v6080
          %6119 = vst.msk [vmem:[%s295] ss:$8 sm:$0x0] %vm6117, %v6080
          %s6120 = scalar_lea.vmem %s295, 32
          %6121 = vst.msk [vmem:[%s6120] ss:$8 sm:$0x3] %vm6117, %v6094
          %6122 = vst.msk [vmem:[%s6120] ss:$8 sm:$0x0] %vm6117, %v6094
          %s6123 = scalar_lea.vmem %s295, 64
          %6124 = vst.msk [vmem:[%s6123] ss:$8 sm:$0x3] %vm6117, %v6102
          %6125 = vst.msk [vmem:[%s6123] ss:$8 sm:$0x0] %vm6117, %v6102
          %s6126 = scalar_lea.vmem %s295, 96
          %6127 = vst.msk [vmem:[%s6126] ss:$8 sm:$0x3] %vm6117, %v6104
          %6128 = vst.msk [vmem:[%s6126] ss:$8 sm:$0x0] %vm6117, %v6104
          %s6129 = scalar_lea.vmem %s295, 128
          %6130 = vst.msk [vmem:[%s6129] ss:$8 sm:$0x3] %vm6117, %v6087
          %6131 = vst.msk [vmem:[%s6129] ss:$8 sm:$0x0] %vm6117, %v6087
          %s6132 = scalar_lea.vmem %s295, 160
          %6133 = vst.msk [vmem:[%s6132] ss:$8 sm:$0x3] %vm6117, %v6101
          %6134 = vst.msk [vmem:[%s6132] ss:$8 sm:$0x0] %vm6117, %v6101
          %s6135 = scalar_lea.vmem %s295, 192
          %6136 = vst.msk [vmem:[%s6135] ss:$8 sm:$0x3] %vm6117, %v6103
          %6137 = vst.msk [vmem:[%s6135] ss:$8 sm:$0x0] %vm6117, %v6103
          %s6138 = scalar_lea.vmem %s295, 224
          %6139 = vst.msk [vmem:[%s6138] ss:$8 sm:$0x3] %vm6117, %v6105
          %6140 = vst.msk [vmem:[%s6138] ss:$8 sm:$0x0] %vm6117, %v6105
          %s6141 = scalar_lea.vmem %s295, 1
          %6142 = vst.msk [vmem:[%s6141] ss:$8 sm:$0x3] %vm6117, %v6080
          %6143 = vst.msk [vmem:[%s6141] ss:$8 sm:$0x0] %vm6117, %v6080
          %s6144 = scalar_lea.vmem %s295, 33
          %6145 = vst.msk [vmem:[%s6144] ss:$8 sm:$0x3] %vm6117, %v6094
          %6146 = vst.msk [vmem:[%s6144] ss:$8 sm:$0x0] %vm6117, %v6094
          %s6147 = scalar_lea.vmem %s295, 65
          %6148 = vst.msk [vmem:[%s6147] ss:$8 sm:$0x3] %vm6117, %v6102
          %6149 = vst.msk [vmem:[%s6147] ss:$8 sm:$0x0] %vm6117, %v6102
          %s6150 = scalar_lea.vmem %s295, 97
          %6151 = vst.msk [vmem:[%s6150] ss:$8 sm:$0x3] %vm6117, %v6104
          %6152 = vst.msk [vmem:[%s6150] ss:$8 sm:$0x0] %vm6117, %v6104
          %s6153 = scalar_lea.vmem %s295, 129
          %6154 = vst.msk [vmem:[%s6153] ss:$8 sm:$0x3] %vm6117, %v6087
          %6155 = vst.msk [vmem:[%s6153] ss:$8 sm:$0x0] %vm6117, %v6087
          %s6156 = scalar_lea.vmem %s295, 161
          %6157 = vst.msk [vmem:[%s6156] ss:$8 sm:$0x3] %vm6117, %v6101
          %6158 = vst.msk [vmem:[%s6156] ss:$8 sm:$0x0] %vm6117, %v6101
          %s6159 = scalar_lea.vmem %s295, 193
          %6160 = vst.msk [vmem:[%s6159] ss:$8 sm:$0x3] %vm6117, %v6103
          %6161 = vst.msk [vmem:[%s6159] ss:$8 sm:$0x0] %vm6117, %v6103
          %s6162 = scalar_lea.vmem %s295, 225
          %6163 = vst.msk [vmem:[%s6162] ss:$8 sm:$0x3] %vm6117, %v6105
          %6164 = vst.msk [vmem:[%s6162] ss:$8 sm:$0x0] %vm6117, %v6105
          %6165 = vmatprep.subr.bf16.mxu0 %v5955
          %6166 = vmatpush1.bf16.msra.mxu0 %v5954
          %6167 = vmatprep.subr.bf16.mxu0 %v5953
          %6168 = vmatpush1.bf16.msra.mxu0 %v5952
          %6169 = vmatprep.subr.bf16.mxu0 %v5951
          %6170 = vmatpush1.bf16.msra.mxu0 %v5950
          %6171 = vmatprep.subr.bf16.mxu0 %v5949
          %6172 = vmatpush1.bf16.msra.mxu0 %v5948
          %6173 = vmatprep.subr.bf16.mxu0 %v5947
          %6174 = vmatpush1.bf16.msra.mxu0 %v5946
          %6175 = vmatprep.subr.bf16.mxu0 %v5945
          %6176 = vmatpush1.bf16.msra.mxu0 %v5944
          %6177 = vmatprep.subr.bf16.mxu0 %v5943
          %6178 = vmatpush1.bf16.msra.mxu0 %v5942
          %6179 = vmatprep.subr.bf16.mxu0 %v5941
          %6180 = vmatpush1.bf16.msra.mxu0 %v5940
          %6181 = vmatprep.subr.bf16.mxu0 0
          %6182 = vmatpush2.bf16.msra.mxu0 0
          %6183 = vmatprep.subr.bf16.mxu0 0
          %6184 = vmatpush2.bf16.msra.mxu0 0
          %6185 = vmatprep.subr.bf16.mxu0 0
          %6186 = vmatpush2.bf16.msra.mxu0 0
          %6187 = vmatprep.subr.bf16.mxu0 0
          %6188 = vmatpush2.bf16.msra.mxu0 0
          %6189 = vmatprep.subr.bf16.mxu0 0
          %6190 = vmatpush2.bf16.msra.mxu0 0
          %6191 = vmatprep.subr.bf16.mxu0 0
          %6192 = vmatpush2.bf16.msra.mxu0 0
          %6193 = vmatprep.subr.bf16.mxu0 0
          %6194 = vmatpush2.bf16.msra.mxu0 0
          %6195 = vmatprep.subr.bf16.mxu0 0
          %6196 = vmatpush2.bf16.msra.mxu0 0
          %6197 = vmatprep.mubr.bf16.mxu0 0
          %6198 = vmatmul.mubr.bf16.gmra.mxu0 %v5869
          %v6199 = vpop.f32.mrf.mxu0
          %v6200 = vadd.f32 0.0, %v6199
          %v6201 = vpop.f32.mrf.mxu0
          %v6202 = vadd.f32 0.0, %v6201
          %v6203 = vpop.f32.mrf.mxu0
          %v6204 = vpop.f32.mrf.mxu0
          %6205 = vdwg.mxu0
          %6206 = vmatprep.subr.bf16.mxu0 %v5955
          %6207 = vmatpush1.bf16.msra.mxu0 %v5954
          %6208 = vmatprep.subr.bf16.mxu0 %v5953
          %6209 = vmatpush1.bf16.msra.mxu0 %v5952
          %6210 = vmatprep.subr.bf16.mxu0 %v5951
          %6211 = vmatpush1.bf16.msra.mxu0 %v5950
          %6212 = vmatprep.subr.bf16.mxu0 %v5949
          %6213 = vmatpush1.bf16.msra.mxu0 %v5948
          %6214 = vmatprep.subr.bf16.mxu0 %v5947
          %6215 = vmatpush1.bf16.msra.mxu0 %v5946
          %6216 = vmatprep.subr.bf16.mxu0 %v5945
          %6217 = vmatpush1.bf16.msra.mxu0 %v5944
          %6218 = vmatprep.subr.bf16.mxu0 %v5943
          %6219 = vmatpush1.bf16.msra.mxu0 %v5942
          %6220 = vmatprep.subr.bf16.mxu0 %v5941
          %6221 = vmatpush1.bf16.msra.mxu0 %v5940
          %6222 = vmatprep.subr.bf16.mxu0 0
          %6223 = vmatpush2.bf16.msra.mxu0 0
          %6224 = vmatprep.subr.bf16.mxu0 0
          %6225 = vmatpush2.bf16.msra.mxu0 0
          %6226 = vmatprep.subr.bf16.mxu0 0
          %6227 = vmatpush2.bf16.msra.mxu0 0
          %6228 = vmatprep.subr.bf16.mxu0 0
          %6229 = vmatpush2.bf16.msra.mxu0 0
          %6230 = vmatprep.subr.bf16.mxu0 0
          %6231 = vmatpush2.bf16.msra.mxu0 0
          %6232 = vmatprep.subr.bf16.mxu0 0
          %6233 = vmatpush2.bf16.msra.mxu0 0
          %6234 = vmatprep.subr.bf16.mxu0 0
          %6235 = vmatpush2.bf16.msra.mxu0 0
          %6236 = vmatprep.subr.bf16.mxu0 0
          %6237 = vmatpush2.bf16.msra.mxu0 0
          %6238 = vmatprep.mubr.bf16.mxu0 0
          %6239 = vmatmul.mubr.bf16.gmra.mxu0 %v5845
          %v6240 = vpop.f32.mrf.mxu0
          %v6241 = vadd.f32 %v6200, %v6240
          %v6242 = vpop.f32.mrf.mxu0
          %v6243 = vadd.f32 %v6202, %v6242
          %v6244 = vpop.f32.mrf.mxu0
          %v6245 = vpop.f32.mrf.mxu0
          %6246 = vdwg.mxu0
          %v6249 = vcombine.low %v6241, %v6243
          %v6250 = vcombine.high %v6241, %v6243
          %v6252 = vunpack.c.l.s4 1966171168
          %v6253 = vunpack.c.0.s8 %v6252
          %v6254 = vlaneseq
          %v6255 = vshrl.u32 %v6254, 7
          %v6256 = vsub.s32 %v6253, %v6255
          %v6257 = vrot.slane %v6249, %v6256
          %v6259 = vunpack.c.l.s4 1966171168
          %v6260 = vunpack.c.0.s8 %v6259
          %v6261 = vlaneseq
          %v6262 = vshrl.u32 %v6261, 7
          %v6263 = vsub.s32 %v6260, %v6262
          %v6264 = vrot.slane %v6250, %v6263
          %v6265 = vcombine.high %v6257, %v6257
          %v6266 = vcombine.high %v6264, %v6264
          %v6268 = vunpack.c.l.s4 1966171168
          %v6269 = vunpack.c.0.s8 %v6268
          %v6270 = vlaneseq
          %v6271 = vshrl.u32 %v6270, 7
          %v6272 = vsub.s32 %v6269, %v6271
          %v6273 = vrot.slane %v6257, %v6272
          %v6275 = vunpack.c.l.s4 1966171168
          %v6276 = vunpack.c.0.s8 %v6275
          %v6277 = vlaneseq
          %v6278 = vshrl.u32 %v6277, 7
          %v6279 = vsub.s32 %v6276, %v6278
          %v6280 = vrot.slane %v6264, %v6279
          %v6282 = vunpack.c.l.s4 1966171168
          %v6283 = vunpack.c.0.s8 %v6282
          %v6284 = vlaneseq
          %v6285 = vshrl.u32 %v6284, 7
          %v6286 = vsub.s32 %v6283, %v6285
          %v6287 = vrot.slane %v6265, %v6286
          %v6289 = vunpack.c.l.s4 1966171168
          %v6290 = vunpack.c.0.s8 %v6289
          %v6291 = vlaneseq
          %v6292 = vshrl.u32 %v6291, 7
          %v6293 = vsub.s32 %v6290, %v6292
          %v6294 = vrot.slane %v6266, %v6293
          %v6295 = vcombine.high %v6273, %v6273
          %v6296 = vcombine.high %v6280, %v6280
          %v6297 = vcombine.high %v6287, %v6287
          %v6298 = vcombine.high %v6294, %v6294
          %s6307 = scalar_lea.vmem %s295, 2
          %6308 = vst.msk [vmem:[%s6307] ss:$8 sm:$0x3] %vm6117, %v6273
          %6309 = vst.msk [vmem:[%s6307] ss:$8 sm:$0x0] %vm6117, %v6273
          %s6310 = scalar_lea.vmem %s295, 34
          %6311 = vst.msk [vmem:[%s6310] ss:$8 sm:$0x3] %vm6117, %v6287
          %6312 = vst.msk [vmem:[%s6310] ss:$8 sm:$0x0] %vm6117, %v6287
          %s6313 = scalar_lea.vmem %s295, 66
          %6314 = vst.msk [vmem:[%s6313] ss:$8 sm:$0x3] %vm6117, %v6295
          %6315 = vst.msk [vmem:[%s6313] ss:$8 sm:$0x0] %vm6117, %v6295
          %s6316 = scalar_lea.vmem %s295, 98
          %6317 = vst.msk [vmem:[%s6316] ss:$8 sm:$0x3] %vm6117, %v6297
          %6318 = vst.msk [vmem:[%s6316] ss:$8 sm:$0x0] %vm6117, %v6297
          %s6319 = scalar_lea.vmem %s295, 130
          %6320 = vst.msk [vmem:[%s6319] ss:$8 sm:$0x3] %vm6117, %v6280
          %6321 = vst.msk [vmem:[%s6319] ss:$8 sm:$0x0] %vm6117, %v6280
          %s6322 = scalar_lea.vmem %s295, 162
          %6323 = vst.msk [vmem:[%s6322] ss:$8 sm:$0x3] %vm6117, %v6294
          %6324 = vst.msk [vmem:[%s6322] ss:$8 sm:$0x0] %vm6117, %v6294
          %s6325 = scalar_lea.vmem %s295, 194
          %6326 = vst.msk [vmem:[%s6325] ss:$8 sm:$0x3] %vm6117, %v6296
          %6327 = vst.msk [vmem:[%s6325] ss:$8 sm:$0x0] %vm6117, %v6296
          %s6328 = scalar_lea.vmem %s295, 226
          %6329 = vst.msk [vmem:[%s6328] ss:$8 sm:$0x3] %vm6117, %v6298
          %6330 = vst.msk [vmem:[%s6328] ss:$8 sm:$0x0] %vm6117, %v6298
          %s6331 = scalar_lea.vmem %s295, 3
          %6332 = vst.msk [vmem:[%s6331] ss:$8 sm:$0x3] %vm6117, %v6273
          %6333 = vst.msk [vmem:[%s6331] ss:$8 sm:$0x0] %vm6117, %v6273
          %s6334 = scalar_lea.vmem %s295, 35
          %6335 = vst.msk [vmem:[%s6334] ss:$8 sm:$0x3] %vm6117, %v6287
          %6336 = vst.msk [vmem:[%s6334] ss:$8 sm:$0x0] %vm6117, %v6287
          %s6337 = scalar_lea.vmem %s295, 67
          %6338 = vst.msk [vmem:[%s6337] ss:$8 sm:$0x3] %vm6117, %v6295
          %6339 = vst.msk [vmem:[%s6337] ss:$8 sm:$0x0] %vm6117, %v6295
          %s6340 = scalar_lea.vmem %s295, 99
          %6341 = vst.msk [vmem:[%s6340] ss:$8 sm:$0x3] %vm6117, %v6297
          %6342 = vst.msk [vmem:[%s6340] ss:$8 sm:$0x0] %vm6117, %v6297
          %s6343 = scalar_lea.vmem %s295, 131
          %6344 = vst.msk [vmem:[%s6343] ss:$8 sm:$0x3] %vm6117, %v6280
          %6345 = vst.msk [vmem:[%s6343] ss:$8 sm:$0x0] %vm6117, %v6280
          %s6346 = scalar_lea.vmem %s295, 163
          %6347 = vst.msk [vmem:[%s6346] ss:$8 sm:$0x3] %vm6117, %v6294
          %6348 = vst.msk [vmem:[%s6346] ss:$8 sm:$0x0] %vm6117, %v6294
          %s6349 = scalar_lea.vmem %s295, 195
          %6350 = vst.msk [vmem:[%s6349] ss:$8 sm:$0x3] %vm6117, %v6296
          %6351 = vst.msk [vmem:[%s6349] ss:$8 sm:$0x0] %vm6117, %v6296
          %s6352 = scalar_lea.vmem %s295, 227
          %6353 = vst.msk [vmem:[%s6352] ss:$8 sm:$0x3] %vm6117, %v6298
          %6354 = vst.msk [vmem:[%s6352] ss:$8 sm:$0x0] %vm6117, %v6298
          %6355 = vmatprep.subr.bf16.mxu0 %v5955
          %6356 = vmatpush1.bf16.msra.mxu0 %v5954
          %6357 = vmatprep.subr.bf16.mxu0 %v5953
          %6358 = vmatpush1.bf16.msra.mxu0 %v5952
          %6359 = vmatprep.subr.bf16.mxu0 %v5951
          %6360 = vmatpush1.bf16.msra.mxu0 %v5950
          %6361 = vmatprep.subr.bf16.mxu0 %v5949
          %6362 = vmatpush1.bf16.msra.mxu0 %v5948
          %6363 = vmatprep.subr.bf16.mxu0 %v5947
          %6364 = vmatpush1.bf16.msra.mxu0 %v5946
          %6365 = vmatprep.subr.bf16.mxu0 %v5945
          %6366 = vmatpush1.bf16.msra.mxu0 %v5944
          %6367 = vmatprep.subr.bf16.mxu0 %v5943
          %6368 = vmatpush1.bf16.msra.mxu0 %v5942
          %6369 = vmatprep.subr.bf16.mxu0 %v5941
          %6370 = vmatpush1.bf16.msra.mxu0 %v5940
          %6371 = vmatprep.subr.bf16.mxu0 0
          %6372 = vmatpush2.bf16.msra.mxu0 0
          %6373 = vmatprep.subr.bf16.mxu0 0
          %6374 = vmatpush2.bf16.msra.mxu0 0
          %6375 = vmatprep.subr.bf16.mxu0 0
          %6376 = vmatpush2.bf16.msra.mxu0 0
          %6377 = vmatprep.subr.bf16.mxu0 0
          %6378 = vmatpush2.bf16.msra.mxu0 0
          %6379 = vmatprep.subr.bf16.mxu0 0
          %6380 = vmatpush2.bf16.msra.mxu0 0
          %6381 = vmatprep.subr.bf16.mxu0 0
          %6382 = vmatpush2.bf16.msra.mxu0 0
          %6383 = vmatprep.subr.bf16.mxu0 0
          %6384 = vmatpush2.bf16.msra.mxu0 0
          %6385 = vmatprep.subr.bf16.mxu0 0
          %6386 = vmatpush2.bf16.msra.mxu0 0
          %6387 = vmatprep.mubr.bf16.mxu0 0
          %6388 = vmatmul.mubr.bf16.gmra.mxu0 %v5870
          %v6389 = vpop.f32.mrf.mxu0
          %v6390 = vadd.f32 0.0, %v6389
          %v6391 = vpop.f32.mrf.mxu0
          %v6392 = vadd.f32 0.0, %v6391
          %v6393 = vpop.f32.mrf.mxu0
          %v6394 = vpop.f32.mrf.mxu0
          %6395 = vdwg.mxu0
          %6396 = vmatprep.subr.bf16.mxu0 %v5955
          %6397 = vmatpush1.bf16.msra.mxu0 %v5954
          %6398 = vmatprep.subr.bf16.mxu0 %v5953
          %6399 = vmatpush1.bf16.msra.mxu0 %v5952
          %6400 = vmatprep.subr.bf16.mxu0 %v5951
          %6401 = vmatpush1.bf16.msra.mxu0 %v5950
          %6402 = vmatprep.subr.bf16.mxu0 %v5949
          %6403 = vmatpush1.bf16.msra.mxu0 %v5948
          %6404 = vmatprep.subr.bf16.mxu0 %v5947
          %6405 = vmatpush1.bf16.msra.mxu0 %v5946
          %6406 = vmatprep.subr.bf16.mxu0 %v5945
          %6407 = vmatpush1.bf16.msra.mxu0 %v5944
          %6408 = vmatprep.subr.bf16.mxu0 %v5943
          %6409 = vmatpush1.bf16.msra.mxu0 %v5942
          %6410 = vmatprep.subr.bf16.mxu0 %v5941
          %6411 = vmatpush1.bf16.msra.mxu0 %v5940
          %6412 = vmatprep.subr.bf16.mxu0 0
          %6413 = vmatpush2.bf16.msra.mxu0 0
          %6414 = vmatprep.subr.bf16.mxu0 0
          %6415 = vmatpush2.bf16.msra.mxu0 0
          %6416 = vmatprep.subr.bf16.mxu0 0
          %6417 = vmatpush2.bf16.msra.mxu0 0
          %6418 = vmatprep.subr.bf16.mxu0 0
          %6419 = vmatpush2.bf16.msra.mxu0 0
          %6420 = vmatprep.subr.bf16.mxu0 0
          %6421 = vmatpush2.bf16.msra.mxu0 0
          %6422 = vmatprep.subr.bf16.mxu0 0
          %6423 = vmatpush2.bf16.msra.mxu0 0
          %6424 = vmatprep.subr.bf16.mxu0 0
          %6425 = vmatpush2.bf16.msra.mxu0 0
          %6426 = vmatprep.subr.bf16.mxu0 0
          %6427 = vmatpush2.bf16.msra.mxu0 0
          %6428 = vmatprep.mubr.bf16.mxu0 0
          %6429 = vmatmul.mubr.bf16.gmra.mxu0 %v5846
          %v6430 = vpop.f32.mrf.mxu0
          %v6431 = vadd.f32 %v6390, %v6430
          %v6432 = vpop.f32.mrf.mxu0
          %v6433 = vadd.f32 %v6392, %v6432
          %v6434 = vpop.f32.mrf.mxu0
          %v6435 = vpop.f32.mrf.mxu0
          %6436 = vdwg.mxu0
          %v6439 = vcombine.low %v6431, %v6433
          %v6440 = vcombine.high %v6431, %v6433
          %v6442 = vunpack.c.l.s4 1966171168
          %v6443 = vunpack.c.0.s8 %v6442
          %v6444 = vlaneseq
          %v6445 = vshrl.u32 %v6444, 7
          %v6446 = vsub.s32 %v6443, %v6445
          %v6447 = vrot.slane %v6439, %v6446
          %v6449 = vunpack.c.l.s4 1966171168
          %v6450 = vunpack.c.0.s8 %v6449
          %v6451 = vlaneseq
          %v6452 = vshrl.u32 %v6451, 7
          %v6453 = vsub.s32 %v6450, %v6452
          %v6454 = vrot.slane %v6440, %v6453
          %v6455 = vcombine.high %v6447, %v6447
          %v6456 = vcombine.high %v6454, %v6454
          %v6458 = vunpack.c.l.s4 1966171168
          %v6459 = vunpack.c.0.s8 %v6458
          %v6460 = vlaneseq
          %v6461 = vshrl.u32 %v6460, 7
          %v6462 = vsub.s32 %v6459, %v6461
          %v6463 = vrot.slane %v6447, %v6462
          %v6465 = vunpack.c.l.s4 1966171168
          %v6466 = vunpack.c.0.s8 %v6465
          %v6467 = vlaneseq
          %v6468 = vshrl.u32 %v6467, 7
          %v6469 = vsub.s32 %v6466, %v6468
          %v6470 = vrot.slane %v6454, %v6469
          %v6472 = vunpack.c.l.s4 1966171168
          %v6473 = vunpack.c.0.s8 %v6472
          %v6474 = vlaneseq
          %v6475 = vshrl.u32 %v6474, 7
          %v6476 = vsub.s32 %v6473, %v6475
          %v6477 = vrot.slane %v6455, %v6476
          %v6479 = vunpack.c.l.s4 1966171168
          %v6480 = vunpack.c.0.s8 %v6479
          %v6481 = vlaneseq
          %v6482 = vshrl.u32 %v6481, 7
          %v6483 = vsub.s32 %v6480, %v6482
          %v6484 = vrot.slane %v6456, %v6483
          %v6485 = vcombine.high %v6463, %v6463
          %v6486 = vcombine.high %v6470, %v6470
          %v6487 = vcombine.high %v6477, %v6477
          %v6488 = vcombine.high %v6484, %v6484
          %s6497 = scalar_lea.vmem %s295, 4
          %6498 = vst.msk [vmem:[%s6497] ss:$8 sm:$0x3] %vm6117, %v6463
          %6499 = vst.msk [vmem:[%s6497] ss:$8 sm:$0x0] %vm6117, %v6463
          %s6500 = scalar_lea.vmem %s295, 36
          %6501 = vst.msk [vmem:[%s6500] ss:$8 sm:$0x3] %vm6117, %v6477
          %6502 = vst.msk [vmem:[%s6500] ss:$8 sm:$0x0] %vm6117, %v6477
          %s6503 = scalar_lea.vmem %s295, 68
          %6504 = vst.msk [vmem:[%s6503] ss:$8 sm:$0x3] %vm6117, %v6485
          %6505 = vst.msk [vmem:[%s6503] ss:$8 sm:$0x0] %vm6117, %v6485
          %s6506 = scalar_lea.vmem %s295, 100
          %6507 = vst.msk [vmem:[%s6506] ss:$8 sm:$0x3] %vm6117, %v6487
          %6508 = vst.msk [vmem:[%s6506] ss:$8 sm:$0x0] %vm6117, %v6487
          %s6509 = scalar_lea.vmem %s295, 132
          %6510 = vst.msk [vmem:[%s6509] ss:$8 sm:$0x3] %vm6117, %v6470
          %6511 = vst.msk [vmem:[%s6509] ss:$8 sm:$0x0] %vm6117, %v6470
          %s6512 = scalar_lea.vmem %s295, 164
          %6513 = vst.msk [vmem:[%s6512] ss:$8 sm:$0x3] %vm6117, %v6484
          %6514 = vst.msk [vmem:[%s6512] ss:$8 sm:$0x0] %vm6117, %v6484
          %s6515 = scalar_lea.vmem %s295, 196
          %6516 = vst.msk [vmem:[%s6515] ss:$8 sm:$0x3] %vm6117, %v6486
          %6517 = vst.msk [vmem:[%s6515] ss:$8 sm:$0x0] %vm6117, %v6486
          %s6518 = scalar_lea.vmem %s295, 228
          %6519 = vst.msk [vmem:[%s6518] ss:$8 sm:$0x3] %vm6117, %v6488
          %6520 = vst.msk [vmem:[%s6518] ss:$8 sm:$0x0] %vm6117, %v6488
          %s6521 = scalar_lea.vmem %s295, 5
          %6522 = vst.msk [vmem:[%s6521] ss:$8 sm:$0x3] %vm6117, %v6463
          %6523 = vst.msk [vmem:[%s6521] ss:$8 sm:$0x0] %vm6117, %v6463
          %s6524 = scalar_lea.vmem %s295, 37
          %6525 = vst.msk [vmem:[%s6524] ss:$8 sm:$0x3] %vm6117, %v6477
          %6526 = vst.msk [vmem:[%s6524] ss:$8 sm:$0x0] %vm6117, %v6477
          %s6527 = scalar_lea.vmem %s295, 69
          %6528 = vst.msk [vmem:[%s6527] ss:$8 sm:$0x3] %vm6117, %v6485
          %6529 = vst.msk [vmem:[%s6527] ss:$8 sm:$0x0] %vm6117, %v6485
          %s6530 = scalar_lea.vmem %s295, 101
          %6531 = vst.msk [vmem:[%s6530] ss:$8 sm:$0x3] %vm6117, %v6487
          %6532 = vst.msk [vmem:[%s6530] ss:$8 sm:$0x0] %vm6117, %v6487
          %s6533 = scalar_lea.vmem %s295, 133
          %6534 = vst.msk [vmem:[%s6533] ss:$8 sm:$0x3] %vm6117, %v6470
          %6535 = vst.msk [vmem:[%s6533] ss:$8 sm:$0x0] %vm6117, %v6470
          %s6536 = scalar_lea.vmem %s295, 165
          %6537 = vst.msk [vmem:[%s6536] ss:$8 sm:$0x3] %vm6117, %v6484
          %6538 = vst.msk [vmem:[%s6536] ss:$8 sm:$0x0] %vm6117, %v6484
          %s6539 = scalar_lea.vmem %s295, 197
          %6540 = vst.msk [vmem:[%s6539] ss:$8 sm:$0x3] %vm6117, %v6486
          %6541 = vst.msk [vmem:[%s6539] ss:$8 sm:$0x0] %vm6117, %v6486
          %s6542 = scalar_lea.vmem %s295, 229
          %6543 = vst.msk [vmem:[%s6542] ss:$8 sm:$0x3] %vm6117, %v6488
          %6544 = vst.msk [vmem:[%s6542] ss:$8 sm:$0x0] %vm6117, %v6488
          %6545 = vmatprep.subr.bf16.mxu0 %v5955
          %6546 = vmatpush1.bf16.msra.mxu0 %v5954
          %6547 = vmatprep.subr.bf16.mxu0 %v5953
          %6548 = vmatpush1.bf16.msra.mxu0 %v5952
          %6549 = vmatprep.subr.bf16.mxu0 %v5951
          %6550 = vmatpush1.bf16.msra.mxu0 %v5950
          %6551 = vmatprep.subr.bf16.mxu0 %v5949
          %6552 = vmatpush1.bf16.msra.mxu0 %v5948
          %6553 = vmatprep.subr.bf16.mxu0 %v5947
          %6554 = vmatpush1.bf16.msra.mxu0 %v5946
          %6555 = vmatprep.subr.bf16.mxu0 %v5945
          %6556 = vmatpush1.bf16.msra.mxu0 %v5944
          %6557 = vmatprep.subr.bf16.mxu0 %v5943
          %6558 = vmatpush1.bf16.msra.mxu0 %v5942
          %6559 = vmatprep.subr.bf16.mxu0 %v5941
          %6560 = vmatpush1.bf16.msra.mxu0 %v5940
          %6561 = vmatprep.subr.bf16.mxu0 0
          %6562 = vmatpush2.bf16.msra.mxu0 0
          %6563 = vmatprep.subr.bf16.mxu0 0
          %6564 = vmatpush2.bf16.msra.mxu0 0
          %6565 = vmatprep.subr.bf16.mxu0 0
          %6566 = vmatpush2.bf16.msra.mxu0 0
          %6567 = vmatprep.subr.bf16.mxu0 0
          %6568 = vmatpush2.bf16.msra.mxu0 0
          %6569 = vmatprep.subr.bf16.mxu0 0
          %6570 = vmatpush2.bf16.msra.mxu0 0
          %6571 = vmatprep.subr.bf16.mxu0 0
          %6572 = vmatpush2.bf16.msra.mxu0 0
          %6573 = vmatprep.subr.bf16.mxu0 0
          %6574 = vmatpush2.bf16.msra.mxu0 0
          %6575 = vmatprep.subr.bf16.mxu0 0
          %6576 = vmatpush2.bf16.msra.mxu0 0
          %6577 = vmatprep.mubr.bf16.mxu0 0
          %6578 = vmatmul.mubr.bf16.gmra.mxu0 %v5871
          %v6579 = vpop.f32.mrf.mxu0
          %v6580 = vadd.f32 0.0, %v6579
          %v6581 = vpop.f32.mrf.mxu0
          %v6582 = vadd.f32 0.0, %v6581
          %v6583 = vpop.f32.mrf.mxu0
          %v6584 = vpop.f32.mrf.mxu0
          %6585 = vdwg.mxu0
          %6586 = vmatprep.subr.bf16.mxu0 %v5955
          %6587 = vmatpush1.bf16.msra.mxu0 %v5954
          %6588 = vmatprep.subr.bf16.mxu0 %v5953
          %6589 = vmatpush1.bf16.msra.mxu0 %v5952
          %6590 = vmatprep.subr.bf16.mxu0 %v5951
          %6591 = vmatpush1.bf16.msra.mxu0 %v5950
          %6592 = vmatprep.subr.bf16.mxu0 %v5949
          %6593 = vmatpush1.bf16.msra.mxu0 %v5948
          %6594 = vmatprep.subr.bf16.mxu0 %v5947
          %6595 = vmatpush1.bf16.msra.mxu0 %v5946
          %6596 = vmatprep.subr.bf16.mxu0 %v5945
          %6597 = vmatpush1.bf16.msra.mxu0 %v5944
          %6598 = vmatprep.subr.bf16.mxu0 %v5943
          %6599 = vmatpush1.bf16.msra.mxu0 %v5942
          %6600 = vmatprep.subr.bf16.mxu0 %v5941
          %6601 = vmatpush1.bf16.msra.mxu0 %v5940
          %6602 = vmatprep.subr.bf16.mxu0 0
          %6603 = vmatpush2.bf16.msra.mxu0 0
          %6604 = vmatprep.subr.bf16.mxu0 0
          %6605 = vmatpush2.bf16.msra.mxu0 0
          %6606 = vmatprep.subr.bf16.mxu0 0
          %6607 = vmatpush2.bf16.msra.mxu0 0
          %6608 = vmatprep.subr.bf16.mxu0 0
          %6609 = vmatpush2.bf16.msra.mxu0 0
          %6610 = vmatprep.subr.bf16.mxu0 0
          %6611 = vmatpush2.bf16.msra.mxu0 0
          %6612 = vmatprep.subr.bf16.mxu0 0
          %6613 = vmatpush2.bf16.msra.mxu0 0
          %6614 = vmatprep.subr.bf16.mxu0 0
          %6615 = vmatpush2.bf16.msra.mxu0 0
          %6616 = vmatprep.subr.bf16.mxu0 0
          %6617 = vmatpush2.bf16.msra.mxu0 0
          %6618 = vmatprep.mubr.bf16.mxu0 0
          %6619 = vmatmul.mubr.bf16.gmra.mxu0 %v5847
          %v6620 = vpop.f32.mrf.mxu0
          %v6621 = vadd.f32 %v6580, %v6620
          %v6622 = vpop.f32.mrf.mxu0
          %v6623 = vadd.f32 %v6582, %v6622
          %v6624 = vpop.f32.mrf.mxu0
          %v6625 = vpop.f32.mrf.mxu0
          %6626 = vdwg.mxu0
          %v6629 = vcombine.low %v6621, %v6623
          %v6630 = vcombine.high %v6621, %v6623
          %v6632 = vunpack.c.l.s4 1966171168
          %v6633 = vunpack.c.0.s8 %v6632
          %v6634 = vlaneseq
          %v6635 = vshrl.u32 %v6634, 7
          %v6636 = vsub.s32 %v6633, %v6635
          %v6637 = vrot.slane %v6629, %v6636
          %v6639 = vunpack.c.l.s4 1966171168
          %v6640 = vunpack.c.0.s8 %v6639
          %v6641 = vlaneseq
          %v6642 = vshrl.u32 %v6641, 7
          %v6643 = vsub.s32 %v6640, %v6642
          %v6644 = vrot.slane %v6630, %v6643
          %v6645 = vcombine.high %v6637, %v6637
          %v6646 = vcombine.high %v6644, %v6644
          %v6648 = vunpack.c.l.s4 1966171168
          %v6649 = vunpack.c.0.s8 %v6648
          %v6650 = vlaneseq
          %v6651 = vshrl.u32 %v6650, 7
          %v6652 = vsub.s32 %v6649, %v6651
          %v6653 = vrot.slane %v6637, %v6652
          %v6655 = vunpack.c.l.s4 1966171168
          %v6656 = vunpack.c.0.s8 %v6655
          %v6657 = vlaneseq
          %v6658 = vshrl.u32 %v6657, 7
          %v6659 = vsub.s32 %v6656, %v6658
          %v6660 = vrot.slane %v6644, %v6659
          %v6662 = vunpack.c.l.s4 1966171168
          %v6663 = vunpack.c.0.s8 %v6662
          %v6664 = vlaneseq
          %v6665 = vshrl.u32 %v6664, 7
          %v6666 = vsub.s32 %v6663, %v6665
          %v6667 = vrot.slane %v6645, %v6666
          %v6669 = vunpack.c.l.s4 1966171168
          %v6670 = vunpack.c.0.s8 %v6669
          %v6671 = vlaneseq
          %v6672 = vshrl.u32 %v6671, 7
          %v6673 = vsub.s32 %v6670, %v6672
          %v6674 = vrot.slane %v6646, %v6673
          %v6675 = vcombine.high %v6653, %v6653
          %v6676 = vcombine.high %v6660, %v6660
          %v6677 = vcombine.high %v6667, %v6667
          %v6678 = vcombine.high %v6674, %v6674
          %s6687 = scalar_lea.vmem %s295, 6
          %6688 = vst.msk [vmem:[%s6687] ss:$8 sm:$0x3] %vm6117, %v6653
          %6689 = vst.msk [vmem:[%s6687] ss:$8 sm:$0x0] %vm6117, %v6653
          %s6690 = scalar_lea.vmem %s295, 38
          %6691 = vst.msk [vmem:[%s6690] ss:$8 sm:$0x3] %vm6117, %v6667
          %6692 = vst.msk [vmem:[%s6690] ss:$8 sm:$0x0] %vm6117, %v6667
          %s6693 = scalar_lea.vmem %s295, 70
          %6694 = vst.msk [vmem:[%s6693] ss:$8 sm:$0x3] %vm6117, %v6675
          %6695 = vst.msk [vmem:[%s6693] ss:$8 sm:$0x0] %vm6117, %v6675
          %s6696 = scalar_lea.vmem %s295, 102
          %6697 = vst.msk [vmem:[%s6696] ss:$8 sm:$0x3] %vm6117, %v6677
          %6698 = vst.msk [vmem:[%s6696] ss:$8 sm:$0x0] %vm6117, %v6677
          %s6699 = scalar_lea.vmem %s295, 134
          %6700 = vst.msk [vmem:[%s6699] ss:$8 sm:$0x3] %vm6117, %v6660
          %6701 = vst.msk [vmem:[%s6699] ss:$8 sm:$0x0] %vm6117, %v6660
          %s6702 = scalar_lea.vmem %s295, 166
          %6703 = vst.msk [vmem:[%s6702] ss:$8 sm:$0x3] %vm6117, %v6674
          %6704 = vst.msk [vmem:[%s6702] ss:$8 sm:$0x0] %vm6117, %v6674
          %s6705 = scalar_lea.vmem %s295, 198
          %6706 = vst.msk [vmem:[%s6705] ss:$8 sm:$0x3] %vm6117, %v6676
          %6707 = vst.msk [vmem:[%s6705] ss:$8 sm:$0x0] %vm6117, %v6676
          %s6708 = scalar_lea.vmem %s295, 230
          %6709 = vst.msk [vmem:[%s6708] ss:$8 sm:$0x3] %vm6117, %v6678
          %6710 = vst.msk [vmem:[%s6708] ss:$8 sm:$0x0] %vm6117, %v6678
          %s6711 = scalar_lea.vmem %s295, 7
          %6712 = vst.msk [vmem:[%s6711] ss:$8 sm:$0x3] %vm6117, %v6653
          %6713 = vst.msk [vmem:[%s6711] ss:$8 sm:$0x0] %vm6117, %v6653
          %s6714 = scalar_lea.vmem %s295, 39
          %6715 = vst.msk [vmem:[%s6714] ss:$8 sm:$0x3] %vm6117, %v6667
          %6716 = vst.msk [vmem:[%s6714] ss:$8 sm:$0x0] %vm6117, %v6667
          %s6717 = scalar_lea.vmem %s295, 71
          %6718 = vst.msk [vmem:[%s6717] ss:$8 sm:$0x3] %vm6117, %v6675
          %6719 = vst.msk [vmem:[%s6717] ss:$8 sm:$0x0] %vm6117, %v6675
          %s6720 = scalar_lea.vmem %s295, 103
          %6721 = vst.msk [vmem:[%s6720] ss:$8 sm:$0x3] %vm6117, %v6677
          %6722 = vst.msk [vmem:[%s6720] ss:$8 sm:$0x0] %vm6117, %v6677
          %s6723 = scalar_lea.vmem %s295, 135
          %6724 = vst.msk [vmem:[%s6723] ss:$8 sm:$0x3] %vm6117, %v6660
          %6725 = vst.msk [vmem:[%s6723] ss:$8 sm:$0x0] %vm6117, %v6660
          %s6726 = scalar_lea.vmem %s295, 167
          %6727 = vst.msk [vmem:[%s6726] ss:$8 sm:$0x3] %vm6117, %v6674
          %6728 = vst.msk [vmem:[%s6726] ss:$8 sm:$0x0] %vm6117, %v6674
          %s6729 = scalar_lea.vmem %s295, 199
          %6730 = vst.msk [vmem:[%s6729] ss:$8 sm:$0x3] %vm6117, %v6676
          %6731 = vst.msk [vmem:[%s6729] ss:$8 sm:$0x0] %vm6117, %v6676
          %s6732 = scalar_lea.vmem %s295, 231
          %6733 = vst.msk [vmem:[%s6732] ss:$8 sm:$0x3] %vm6117, %v6678
          %6734 = vst.msk [vmem:[%s6732] ss:$8 sm:$0x0] %vm6117, %v6678
          %6735 = vmatprep.subr.bf16.mxu0 %v5955
          %6736 = vmatpush1.bf16.msra.mxu0 %v5954
          %6737 = vmatprep.subr.bf16.mxu0 %v5953
          %6738 = vmatpush1.bf16.msra.mxu0 %v5952
          %6739 = vmatprep.subr.bf16.mxu0 %v5951
          %6740 = vmatpush1.bf16.msra.mxu0 %v5950
          %6741 = vmatprep.subr.bf16.mxu0 %v5949
          %6742 = vmatpush1.bf16.msra.mxu0 %v5948
          %6743 = vmatprep.subr.bf16.mxu0 %v5947
          %6744 = vmatpush1.bf16.msra.mxu0 %v5946
          %6745 = vmatprep.subr.bf16.mxu0 %v5945
          %6746 = vmatpush1.bf16.msra.mxu0 %v5944
          %6747 = vmatprep.subr.bf16.mxu0 %v5943
          %6748 = vmatpush1.bf16.msra.mxu0 %v5942
          %6749 = vmatprep.subr.bf16.mxu0 %v5941
          %6750 = vmatpush1.bf16.msra.mxu0 %v5940
          %6751 = vmatprep.subr.bf16.mxu0 0
          %6752 = vmatpush2.bf16.msra.mxu0 0
          %6753 = vmatprep.subr.bf16.mxu0 0
          %6754 = vmatpush2.bf16.msra.mxu0 0
          %6755 = vmatprep.subr.bf16.mxu0 0
          %6756 = vmatpush2.bf16.msra.mxu0 0
          %6757 = vmatprep.subr.bf16.mxu0 0
          %6758 = vmatpush2.bf16.msra.mxu0 0
          %6759 = vmatprep.subr.bf16.mxu0 0
          %6760 = vmatpush2.bf16.msra.mxu0 0
          %6761 = vmatprep.subr.bf16.mxu0 0
          %6762 = vmatpush2.bf16.msra.mxu0 0
          %6763 = vmatprep.subr.bf16.mxu0 0
          %6764 = vmatpush2.bf16.msra.mxu0 0
          %6765 = vmatprep.subr.bf16.mxu0 0
          %6766 = vmatpush2.bf16.msra.mxu0 0
          %6767 = vmatprep.mubr.bf16.mxu0 0
          %6768 = vmatmul.mubr.bf16.gmra.mxu0 %v5872
          %v6769 = vpop.f32.mrf.mxu0
          %v6770 = vadd.f32 0.0, %v6769
          %v6771 = vpop.f32.mrf.mxu0
          %v6772 = vadd.f32 0.0, %v6771
          %v6773 = vpop.f32.mrf.mxu0
          %v6774 = vpop.f32.mrf.mxu0
          %6775 = vdwg.mxu0
          %6776 = vmatprep.subr.bf16.mxu0 %v5955
          %6777 = vmatpush1.bf16.msra.mxu0 %v5954
          %6778 = vmatprep.subr.bf16.mxu0 %v5953
          %6779 = vmatpush1.bf16.msra.mxu0 %v5952
          %6780 = vmatprep.subr.bf16.mxu0 %v5951
          %6781 = vmatpush1.bf16.msra.mxu0 %v5950
          %6782 = vmatprep.subr.bf16.mxu0 %v5949
          %6783 = vmatpush1.bf16.msra.mxu0 %v5948
          %6784 = vmatprep.subr.bf16.mxu0 %v5947
          %6785 = vmatpush1.bf16.msra.mxu0 %v5946
          %6786 = vmatprep.subr.bf16.mxu0 %v5945
          %6787 = vmatpush1.bf16.msra.mxu0 %v5944
          %6788 = vmatprep.subr.bf16.mxu0 %v5943
          %6789 = vmatpush1.bf16.msra.mxu0 %v5942
          %6790 = vmatprep.subr.bf16.mxu0 %v5941
          %6791 = vmatpush1.bf16.msra.mxu0 %v5940
          %6792 = vmatprep.subr.bf16.mxu0 0
          %6793 = vmatpush2.bf16.msra.mxu0 0
          %6794 = vmatprep.subr.bf16.mxu0 0
          %6795 = vmatpush2.bf16.msra.mxu0 0
          %6796 = vmatprep.subr.bf16.mxu0 0
          %6797 = vmatpush2.bf16.msra.mxu0 0
          %6798 = vmatprep.subr.bf16.mxu0 0
          %6799 = vmatpush2.bf16.msra.mxu0 0
          %6800 = vmatprep.subr.bf16.mxu0 0
          %6801 = vmatpush2.bf16.msra.mxu0 0
          %6802 = vmatprep.subr.bf16.mxu0 0
          %6803 = vmatpush2.bf16.msra.mxu0 0
          %6804 = vmatprep.subr.bf16.mxu0 0
          %6805 = vmatpush2.bf16.msra.mxu0 0
          %6806 = vmatprep.subr.bf16.mxu0 0
          %6807 = vmatpush2.bf16.msra.mxu0 0
          %6808 = vmatprep.mubr.bf16.mxu0 0
          %6809 = vmatmul.mubr.bf16.gmra.mxu0 %v5848
          %v6810 = vpop.f32.mrf.mxu0
          %v6811 = vadd.f32 %v6770, %v6810
          %v6812 = vpop.f32.mrf.mxu0
          %v6813 = vadd.f32 %v6772, %v6812
          %v6814 = vpop.f32.mrf.mxu0
          %v6815 = vpop.f32.mrf.mxu0
          %6816 = vdwg.mxu0
          %v6819 = vcombine.low %v6811, %v6813
          %v6820 = vcombine.high %v6811, %v6813
          %v6822 = vunpack.c.l.s4 1966171168
          %v6823 = vunpack.c.0.s8 %v6822
          %v6824 = vlaneseq
          %v6825 = vshrl.u32 %v6824, 7
          %v6826 = vsub.s32 %v6823, %v6825
          %v6827 = vrot.slane %v6819, %v6826
          %v6829 = vunpack.c.l.s4 1966171168
          %v6830 = vunpack.c.0.s8 %v6829
          %v6831 = vlaneseq
          %v6832 = vshrl.u32 %v6831, 7
          %v6833 = vsub.s32 %v6830, %v6832
          %v6834 = vrot.slane %v6820, %v6833
          %v6835 = vcombine.high %v6827, %v6827
          %v6836 = vcombine.high %v6834, %v6834
          %v6838 = vunpack.c.l.s4 1966171168
          %v6839 = vunpack.c.0.s8 %v6838
          %v6840 = vlaneseq
          %v6841 = vshrl.u32 %v6840, 7
          %v6842 = vsub.s32 %v6839, %v6841
          %v6843 = vrot.slane %v6827, %v6842
          %v6845 = vunpack.c.l.s4 1966171168
          %v6846 = vunpack.c.0.s8 %v6845
          %v6847 = vlaneseq
          %v6848 = vshrl.u32 %v6847, 7
          %v6849 = vsub.s32 %v6846, %v6848
          %v6850 = vrot.slane %v6834, %v6849
          %v6852 = vunpack.c.l.s4 1966171168
          %v6853 = vunpack.c.0.s8 %v6852
          %v6854 = vlaneseq
          %v6855 = vshrl.u32 %v6854, 7
          %v6856 = vsub.s32 %v6853, %v6855
          %v6857 = vrot.slane %v6835, %v6856
          %v6859 = vunpack.c.l.s4 1966171168
          %v6860 = vunpack.c.0.s8 %v6859
          %v6861 = vlaneseq
          %v6862 = vshrl.u32 %v6861, 7
          %v6863 = vsub.s32 %v6860, %v6862
          %v6864 = vrot.slane %v6836, %v6863
          %v6865 = vcombine.high %v6843, %v6843
          %v6866 = vcombine.high %v6850, %v6850
          %v6867 = vcombine.high %v6857, %v6857
          %v6868 = vcombine.high %v6864, %v6864
          %s6877 = scalar_lea.vmem %s295, 16
          %6878 = vst.msk [vmem:[%s6877] ss:$8 sm:$0x3] %vm6117, %v6843
          %6879 = vst.msk [vmem:[%s6877] ss:$8 sm:$0x0] %vm6117, %v6843
          %s6880 = scalar_lea.vmem %s295, 48
          %6881 = vst.msk [vmem:[%s6880] ss:$8 sm:$0x3] %vm6117, %v6857
          %6882 = vst.msk [vmem:[%s6880] ss:$8 sm:$0x0] %vm6117, %v6857
          %s6883 = scalar_lea.vmem %s295, 80
          %6884 = vst.msk [vmem:[%s6883] ss:$8 sm:$0x3] %vm6117, %v6865
          %6885 = vst.msk [vmem:[%s6883] ss:$8 sm:$0x0] %vm6117, %v6865
          %s6886 = scalar_lea.vmem %s295, 112
          %6887 = vst.msk [vmem:[%s6886] ss:$8 sm:$0x3] %vm6117, %v6867
          %6888 = vst.msk [vmem:[%s6886] ss:$8 sm:$0x0] %vm6117, %v6867
          %s6889 = scalar_lea.vmem %s295, 144
          %6890 = vst.msk [vmem:[%s6889] ss:$8 sm:$0x3] %vm6117, %v6850
          %6891 = vst.msk [vmem:[%s6889] ss:$8 sm:$0x0] %vm6117, %v6850
          %s6892 = scalar_lea.vmem %s295, 176
          %6893 = vst.msk [vmem:[%s6892] ss:$8 sm:$0x3] %vm6117, %v6864
          %6894 = vst.msk [vmem:[%s6892] ss:$8 sm:$0x0] %vm6117, %v6864
          %s6895 = scalar_lea.vmem %s295, 208
          %6896 = vst.msk [vmem:[%s6895] ss:$8 sm:$0x3] %vm6117, %v6866
          %6897 = vst.msk [vmem:[%s6895] ss:$8 sm:$0x0] %vm6117, %v6866
          %s6898 = scalar_lea.vmem %s295, 240
          %6899 = vst.msk [vmem:[%s6898] ss:$8 sm:$0x3] %vm6117, %v6868
          %6900 = vst.msk [vmem:[%s6898] ss:$8 sm:$0x0] %vm6117, %v6868
          %s6901 = scalar_lea.vmem %s295, 17
          %6902 = vst.msk [vmem:[%s6901] ss:$8 sm:$0x3] %vm6117, %v6843
          %6903 = vst.msk [vmem:[%s6901] ss:$8 sm:$0x0] %vm6117, %v6843
          %s6904 = scalar_lea.vmem %s295, 49
          %6905 = vst.msk [vmem:[%s6904] ss:$8 sm:$0x3] %vm6117, %v6857
          %6906 = vst.msk [vmem:[%s6904] ss:$8 sm:$0x0] %vm6117, %v6857
          %s6907 = scalar_lea.vmem %s295, 81
          %6908 = vst.msk [vmem:[%s6907] ss:$8 sm:$0x3] %vm6117, %v6865
          %6909 = vst.msk [vmem:[%s6907] ss:$8 sm:$0x0] %vm6117, %v6865
          %s6910 = scalar_lea.vmem %s295, 113
          %6911 = vst.msk [vmem:[%s6910] ss:$8 sm:$0x3] %vm6117, %v6867
          %6912 = vst.msk [vmem:[%s6910] ss:$8 sm:$0x0] %vm6117, %v6867
          %s6913 = scalar_lea.vmem %s295, 145
          %6914 = vst.msk [vmem:[%s6913] ss:$8 sm:$0x3] %vm6117, %v6850
          %6915 = vst.msk [vmem:[%s6913] ss:$8 sm:$0x0] %vm6117, %v6850
          %s6916 = scalar_lea.vmem %s295, 177
          %6917 = vst.msk [vmem:[%s6916] ss:$8 sm:$0x3] %vm6117, %v6864
          %6918 = vst.msk [vmem:[%s6916] ss:$8 sm:$0x0] %vm6117, %v6864
          %s6919 = scalar_lea.vmem %s295, 209
          %6920 = vst.msk [vmem:[%s6919] ss:$8 sm:$0x3] %vm6117, %v6866
          %6921 = vst.msk [vmem:[%s6919] ss:$8 sm:$0x0] %vm6117, %v6866
          %s6922 = scalar_lea.vmem %s295, 241
          %6923 = vst.msk [vmem:[%s6922] ss:$8 sm:$0x3] %vm6117, %v6868
          %6924 = vst.msk [vmem:[%s6922] ss:$8 sm:$0x0] %vm6117, %v6868
          %6925 = vmatprep.subr.bf16.mxu0 %v5955
          %6926 = vmatpush1.bf16.msra.mxu0 %v5954
          %6927 = vmatprep.subr.bf16.mxu0 %v5953
          %6928 = vmatpush1.bf16.msra.mxu0 %v5952
          %6929 = vmatprep.subr.bf16.mxu0 %v5951
          %6930 = vmatpush1.bf16.msra.mxu0 %v5950
          %6931 = vmatprep.subr.bf16.mxu0 %v5949
          %6932 = vmatpush1.bf16.msra.mxu0 %v5948
          %6933 = vmatprep.subr.bf16.mxu0 %v5947
          %6934 = vmatpush1.bf16.msra.mxu0 %v5946
          %6935 = vmatprep.subr.bf16.mxu0 %v5945
          %6936 = vmatpush1.bf16.msra.mxu0 %v5944
          %6937 = vmatprep.subr.bf16.mxu0 %v5943
          %6938 = vmatpush1.bf16.msra.mxu0 %v5942
          %6939 = vmatprep.subr.bf16.mxu0 %v5941
          %6940 = vmatpush1.bf16.msra.mxu0 %v5940
          %6941 = vmatprep.subr.bf16.mxu0 0
          %6942 = vmatpush2.bf16.msra.mxu0 0
          %6943 = vmatprep.subr.bf16.mxu0 0
          %6944 = vmatpush2.bf16.msra.mxu0 0
          %6945 = vmatprep.subr.bf16.mxu0 0
          %6946 = vmatpush2.bf16.msra.mxu0 0
          %6947 = vmatprep.subr.bf16.mxu0 0
          %6948 = vmatpush2.bf16.msra.mxu0 0
          %6949 = vmatprep.subr.bf16.mxu0 0
          %6950 = vmatpush2.bf16.msra.mxu0 0
          %6951 = vmatprep.subr.bf16.mxu0 0
          %6952 = vmatpush2.bf16.msra.mxu0 0
          %6953 = vmatprep.subr.bf16.mxu0 0
          %6954 = vmatpush2.bf16.msra.mxu0 0
          %6955 = vmatprep.subr.bf16.mxu0 0
          %6956 = vmatpush2.bf16.msra.mxu0 0
          %6957 = vmatprep.mubr.bf16.mxu0 0
          %6958 = vmatmul.mubr.bf16.gmra.mxu0 %v5873
          %v6959 = vpop.f32.mrf.mxu0
          %v6960 = vadd.f32 0.0, %v6959
          %v6961 = vpop.f32.mrf.mxu0
          %v6962 = vadd.f32 0.0, %v6961
          %v6963 = vpop.f32.mrf.mxu0
          %v6964 = vpop.f32.mrf.mxu0
          %6965 = vdwg.mxu0
          %6966 = vmatprep.subr.bf16.mxu0 %v5955
          %6967 = vmatpush1.bf16.msra.mxu0 %v5954
          %6968 = vmatprep.subr.bf16.mxu0 %v5953
          %6969 = vmatpush1.bf16.msra.mxu0 %v5952
          %6970 = vmatprep.subr.bf16.mxu0 %v5951
          %6971 = vmatpush1.bf16.msra.mxu0 %v5950
          %6972 = vmatprep.subr.bf16.mxu0 %v5949
          %6973 = vmatpush1.bf16.msra.mxu0 %v5948
          %6974 = vmatprep.subr.bf16.mxu0 %v5947
          %6975 = vmatpush1.bf16.msra.mxu0 %v5946
          %6976 = vmatprep.subr.bf16.mxu0 %v5945
          %6977 = vmatpush1.bf16.msra.mxu0 %v5944
          %6978 = vmatprep.subr.bf16.mxu0 %v5943
          %6979 = vmatpush1.bf16.msra.mxu0 %v5942
          %6980 = vmatprep.subr.bf16.mxu0 %v5941
          %6981 = vmatpush1.bf16.msra.mxu0 %v5940
          %6982 = vmatprep.subr.bf16.mxu0 0
          %6983 = vmatpush2.bf16.msra.mxu0 0
          %6984 = vmatprep.subr.bf16.mxu0 0
          %6985 = vmatpush2.bf16.msra.mxu0 0
          %6986 = vmatprep.subr.bf16.mxu0 0
          %6987 = vmatpush2.bf16.msra.mxu0 0
          %6988 = vmatprep.subr.bf16.mxu0 0
          %6989 = vmatpush2.bf16.msra.mxu0 0
          %6990 = vmatprep.subr.bf16.mxu0 0
          %6991 = vmatpush2.bf16.msra.mxu0 0
          %6992 = vmatprep.subr.bf16.mxu0 0
          %6993 = vmatpush2.bf16.msra.mxu0 0
          %6994 = vmatprep.subr.bf16.mxu0 0
          %6995 = vmatpush2.bf16.msra.mxu0 0
          %6996 = vmatprep.subr.bf16.mxu0 0
          %6997 = vmatpush2.bf16.msra.mxu0 0
          %6998 = vmatprep.mubr.bf16.mxu0 0
          %6999 = vmatmul.mubr.bf16.gmra.mxu0 %v5849
          %v7000 = vpop.f32.mrf.mxu0
          %v7001 = vadd.f32 %v6960, %v7000
          %v7002 = vpop.f32.mrf.mxu0
          %v7003 = vadd.f32 %v6962, %v7002
          %v7004 = vpop.f32.mrf.mxu0
          %v7005 = vpop.f32.mrf.mxu0
          %7006 = vdwg.mxu0
          %v7009 = vcombine.low %v7001, %v7003
          %v7010 = vcombine.high %v7001, %v7003
          %v7012 = vunpack.c.l.s4 1966171168
          %v7013 = vunpack.c.0.s8 %v7012
          %v7014 = vlaneseq
          %v7015 = vshrl.u32 %v7014, 7
          %v7016 = vsub.s32 %v7013, %v7015
          %v7017 = vrot.slane %v7009, %v7016
          %v7019 = vunpack.c.l.s4 1966171168
          %v7020 = vunpack.c.0.s8 %v7019
          %v7021 = vlaneseq
          %v7022 = vshrl.u32 %v7021, 7
          %v7023 = vsub.s32 %v7020, %v7022
          %v7024 = vrot.slane %v7010, %v7023
          %v7025 = vcombine.high %v7017, %v7017
          %v7026 = vcombine.high %v7024, %v7024
          %v7028 = vunpack.c.l.s4 1966171168
          %v7029 = vunpack.c.0.s8 %v7028
          %v7030 = vlaneseq
          %v7031 = vshrl.u32 %v7030, 7
          %v7032 = vsub.s32 %v7029, %v7031
          %v7033 = vrot.slane %v7017, %v7032
          %v7035 = vunpack.c.l.s4 1966171168
          %v7036 = vunpack.c.0.s8 %v7035
          %v7037 = vlaneseq
          %v7038 = vshrl.u32 %v7037, 7
          %v7039 = vsub.s32 %v7036, %v7038
          %v7040 = vrot.slane %v7024, %v7039
          %v7042 = vunpack.c.l.s4 1966171168
          %v7043 = vunpack.c.0.s8 %v7042
          %v7044 = vlaneseq
          %v7045 = vshrl.u32 %v7044, 7
          %v7046 = vsub.s32 %v7043, %v7045
          %v7047 = vrot.slane %v7025, %v7046
          %v7049 = vunpack.c.l.s4 1966171168
          %v7050 = vunpack.c.0.s8 %v7049
          %v7051 = vlaneseq
          %v7052 = vshrl.u32 %v7051, 7
          %v7053 = vsub.s32 %v7050, %v7052
          %v7054 = vrot.slane %v7026, %v7053
          %v7055 = vcombine.high %v7033, %v7033
          %v7056 = vcombine.high %v7040, %v7040
          %v7057 = vcombine.high %v7047, %v7047
          %v7058 = vcombine.high %v7054, %v7054
          %s7067 = scalar_lea.vmem %s295, 18
          %7068 = vst.msk [vmem:[%s7067] ss:$8 sm:$0x3] %vm6117, %v7033
          %7069 = vst.msk [vmem:[%s7067] ss:$8 sm:$0x0] %vm6117, %v7033
          %s7070 = scalar_lea.vmem %s295, 50
          %7071 = vst.msk [vmem:[%s7070] ss:$8 sm:$0x3] %vm6117, %v7047
          %7072 = vst.msk [vmem:[%s7070] ss:$8 sm:$0x0] %vm6117, %v7047
          %s7073 = scalar_lea.vmem %s295, 82
          %7074 = vst.msk [vmem:[%s7073] ss:$8 sm:$0x3] %vm6117, %v7055
          %7075 = vst.msk [vmem:[%s7073] ss:$8 sm:$0x0] %vm6117, %v7055
          %s7076 = scalar_lea.vmem %s295, 114
          %7077 = vst.msk [vmem:[%s7076] ss:$8 sm:$0x3] %vm6117, %v7057
          %7078 = vst.msk [vmem:[%s7076] ss:$8 sm:$0x0] %vm6117, %v7057
          %s7079 = scalar_lea.vmem %s295, 146
          %7080 = vst.msk [vmem:[%s7079] ss:$8 sm:$0x3] %vm6117, %v7040
          %7081 = vst.msk [vmem:[%s7079] ss:$8 sm:$0x0] %vm6117, %v7040
          %s7082 = scalar_lea.vmem %s295, 178
          %7083 = vst.msk [vmem:[%s7082] ss:$8 sm:$0x3] %vm6117, %v7054
          %7084 = vst.msk [vmem:[%s7082] ss:$8 sm:$0x0] %vm6117, %v7054
          %s7085 = scalar_lea.vmem %s295, 210
          %7086 = vst.msk [vmem:[%s7085] ss:$8 sm:$0x3] %vm6117, %v7056
          %7087 = vst.msk [vmem:[%s7085] ss:$8 sm:$0x0] %vm6117, %v7056
          %s7088 = scalar_lea.vmem %s295, 242
          %7089 = vst.msk [vmem:[%s7088] ss:$8 sm:$0x3] %vm6117, %v7058
          %7090 = vst.msk [vmem:[%s7088] ss:$8 sm:$0x0] %vm6117, %v7058
          %s7091 = scalar_lea.vmem %s295, 19
          %7092 = vst.msk [vmem:[%s7091] ss:$8 sm:$0x3] %vm6117, %v7033
          %7093 = vst.msk [vmem:[%s7091] ss:$8 sm:$0x0] %vm6117, %v7033
          %s7094 = scalar_lea.vmem %s295, 51
          %7095 = vst.msk [vmem:[%s7094] ss:$8 sm:$0x3] %vm6117, %v7047
          %7096 = vst.msk [vmem:[%s7094] ss:$8 sm:$0x0] %vm6117, %v7047
          %s7097 = scalar_lea.vmem %s295, 83
          %7098 = vst.msk [vmem:[%s7097] ss:$8 sm:$0x3] %vm6117, %v7055
          %7099 = vst.msk [vmem:[%s7097] ss:$8 sm:$0x0] %vm6117, %v7055
          %s7100 = scalar_lea.vmem %s295, 115
          %7101 = vst.msk [vmem:[%s7100] ss:$8 sm:$0x3] %vm6117, %v7057
          %7102 = vst.msk [vmem:[%s7100] ss:$8 sm:$0x0] %vm6117, %v7057
          %s7103 = scalar_lea.vmem %s295, 147
          %7104 = vst.msk [vmem:[%s7103] ss:$8 sm:$0x3] %vm6117, %v7040
          %7105 = vst.msk [vmem:[%s7103] ss:$8 sm:$0x0] %vm6117, %v7040
          %s7106 = scalar_lea.vmem %s295, 179
          %7107 = vst.msk [vmem:[%s7106] ss:$8 sm:$0x3] %vm6117, %v7054
          %7108 = vst.msk [vmem:[%s7106] ss:$8 sm:$0x0] %vm6117, %v7054
          %s7109 = scalar_lea.vmem %s295, 211
          %7110 = vst.msk [vmem:[%s7109] ss:$8 sm:$0x3] %vm6117, %v7056
          %7111 = vst.msk [vmem:[%s7109] ss:$8 sm:$0x0] %vm6117, %v7056
          %s7112 = scalar_lea.vmem %s295, 243
          %7113 = vst.msk [vmem:[%s7112] ss:$8 sm:$0x3] %vm6117, %v7058
          %7114 = vst.msk [vmem:[%s7112] ss:$8 sm:$0x0] %vm6117, %v7058
          %7115 = vmatprep.subr.bf16.mxu0 %v5955
          %7116 = vmatpush1.bf16.msra.mxu0 %v5954
          %7117 = vmatprep.subr.bf16.mxu0 %v5953
          %7118 = vmatpush1.bf16.msra.mxu0 %v5952
          %7119 = vmatprep.subr.bf16.mxu0 %v5951
          %7120 = vmatpush1.bf16.msra.mxu0 %v5950
          %7121 = vmatprep.subr.bf16.mxu0 %v5949
          %7122 = vmatpush1.bf16.msra.mxu0 %v5948
          %7123 = vmatprep.subr.bf16.mxu0 %v5947
          %7124 = vmatpush1.bf16.msra.mxu0 %v5946
          %7125 = vmatprep.subr.bf16.mxu0 %v5945
          %7126 = vmatpush1.bf16.msra.mxu0 %v5944
          %7127 = vmatprep.subr.bf16.mxu0 %v5943
          %7128 = vmatpush1.bf16.msra.mxu0 %v5942
          %7129 = vmatprep.subr.bf16.mxu0 %v5941
          %7130 = vmatpush1.bf16.msra.mxu0 %v5940
          %7131 = vmatprep.subr.bf16.mxu0 0
          %7132 = vmatpush2.bf16.msra.mxu0 0
          %7133 = vmatprep.subr.bf16.mxu0 0
          %7134 = vmatpush2.bf16.msra.mxu0 0
          %7135 = vmatprep.subr.bf16.mxu0 0
          %7136 = vmatpush2.bf16.msra.mxu0 0
          %7137 = vmatprep.subr.bf16.mxu0 0
          %7138 = vmatpush2.bf16.msra.mxu0 0
          %7139 = vmatprep.subr.bf16.mxu0 0
          %7140 = vmatpush2.bf16.msra.mxu0 0
          %7141 = vmatprep.subr.bf16.mxu0 0
          %7142 = vmatpush2.bf16.msra.mxu0 0
          %7143 = vmatprep.subr.bf16.mxu0 0
          %7144 = vmatpush2.bf16.msra.mxu0 0
          %7145 = vmatprep.subr.bf16.mxu0 0
          %7146 = vmatpush2.bf16.msra.mxu0 0
          %7147 = vmatprep.mubr.bf16.mxu0 0
          %7148 = vmatmul.mubr.bf16.gmra.mxu0 %v5874
          %v7149 = vpop.f32.mrf.mxu0
          %v7150 = vadd.f32 0.0, %v7149
          %v7151 = vpop.f32.mrf.mxu0
          %v7152 = vadd.f32 0.0, %v7151
          %v7153 = vpop.f32.mrf.mxu0
          %v7154 = vpop.f32.mrf.mxu0
          %7155 = vdwg.mxu0
          %7156 = vmatprep.subr.bf16.mxu0 %v5955
          %7157 = vmatpush1.bf16.msra.mxu0 %v5954
          %7158 = vmatprep.subr.bf16.mxu0 %v5953
          %7159 = vmatpush1.bf16.msra.mxu0 %v5952
          %7160 = vmatprep.subr.bf16.mxu0 %v5951
          %7161 = vmatpush1.bf16.msra.mxu0 %v5950
          %7162 = vmatprep.subr.bf16.mxu0 %v5949
          %7163 = vmatpush1.bf16.msra.mxu0 %v5948
          %7164 = vmatprep.subr.bf16.mxu0 %v5947
          %7165 = vmatpush1.bf16.msra.mxu0 %v5946
          %7166 = vmatprep.subr.bf16.mxu0 %v5945
          %7167 = vmatpush1.bf16.msra.mxu0 %v5944
          %7168 = vmatprep.subr.bf16.mxu0 %v5943
          %7169 = vmatpush1.bf16.msra.mxu0 %v5942
          %7170 = vmatprep.subr.bf16.mxu0 %v5941
          %7171 = vmatpush1.bf16.msra.mxu0 %v5940
          %7172 = vmatprep.subr.bf16.mxu0 0
          %7173 = vmatpush2.bf16.msra.mxu0 0
          %7174 = vmatprep.subr.bf16.mxu0 0
          %7175 = vmatpush2.bf16.msra.mxu0 0
          %7176 = vmatprep.subr.bf16.mxu0 0
          %7177 = vmatpush2.bf16.msra.mxu0 0
          %7178 = vmatprep.subr.bf16.mxu0 0
          %7179 = vmatpush2.bf16.msra.mxu0 0
          %7180 = vmatprep.subr.bf16.mxu0 0
          %7181 = vmatpush2.bf16.msra.mxu0 0
          %7182 = vmatprep.subr.bf16.mxu0 0
          %7183 = vmatpush2.bf16.msra.mxu0 0
          %7184 = vmatprep.subr.bf16.mxu0 0
          %7185 = vmatpush2.bf16.msra.mxu0 0
          %7186 = vmatprep.subr.bf16.mxu0 0
          %7187 = vmatpush2.bf16.msra.mxu0 0
          %7188 = vmatprep.mubr.bf16.mxu0 0
          %7189 = vmatmul.mubr.bf16.gmra.mxu0 %v5850
          %v7190 = vpop.f32.mrf.mxu0
          %v7191 = vadd.f32 %v7150, %v7190
          %v7192 = vpop.f32.mrf.mxu0
          %v7193 = vadd.f32 %v7152, %v7192
          %v7194 = vpop.f32.mrf.mxu0
          %v7195 = vpop.f32.mrf.mxu0
          %7196 = vdwg.mxu0
          %v7199 = vcombine.low %v7191, %v7193
          %v7200 = vcombine.high %v7191, %v7193
          %v7202 = vunpack.c.l.s4 1966171168
          %v7203 = vunpack.c.0.s8 %v7202
          %v7204 = vlaneseq
          %v7205 = vshrl.u32 %v7204, 7
          %v7206 = vsub.s32 %v7203, %v7205
          %v7207 = vrot.slane %v7199, %v7206
          %v7209 = vunpack.c.l.s4 1966171168
          %v7210 = vunpack.c.0.s8 %v7209
          %v7211 = vlaneseq
          %v7212 = vshrl.u32 %v7211, 7
          %v7213 = vsub.s32 %v7210, %v7212
          %v7214 = vrot.slane %v7200, %v7213
          %v7215 = vcombine.high %v7207, %v7207
          %v7216 = vcombine.high %v7214, %v7214
          %v7218 = vunpack.c.l.s4 1966171168
          %v7219 = vunpack.c.0.s8 %v7218
          %v7220 = vlaneseq
          %v7221 = vshrl.u32 %v7220, 7
          %v7222 = vsub.s32 %v7219, %v7221
          %v7223 = vrot.slane %v7207, %v7222
          %v7225 = vunpack.c.l.s4 1966171168
          %v7226 = vunpack.c.0.s8 %v7225
          %v7227 = vlaneseq
          %v7228 = vshrl.u32 %v7227, 7
          %v7229 = vsub.s32 %v7226, %v7228
          %v7230 = vrot.slane %v7214, %v7229
          %v7232 = vunpack.c.l.s4 1966171168
          %v7233 = vunpack.c.0.s8 %v7232
          %v7234 = vlaneseq
          %v7235 = vshrl.u32 %v7234, 7
          %v7236 = vsub.s32 %v7233, %v7235
          %v7237 = vrot.slane %v7215, %v7236
          %v7239 = vunpack.c.l.s4 1966171168
          %v7240 = vunpack.c.0.s8 %v7239
          %v7241 = vlaneseq
          %v7242 = vshrl.u32 %v7241, 7
          %v7243 = vsub.s32 %v7240, %v7242
          %v7244 = vrot.slane %v7216, %v7243
          %v7245 = vcombine.high %v7223, %v7223
          %v7246 = vcombine.high %v7230, %v7230
          %v7247 = vcombine.high %v7237, %v7237
          %v7248 = vcombine.high %v7244, %v7244
          %s7257 = scalar_lea.vmem %s295, 20
          %7258 = vst.msk [vmem:[%s7257] ss:$8 sm:$0x3] %vm6117, %v7223
          %7259 = vst.msk [vmem:[%s7257] ss:$8 sm:$0x0] %vm6117, %v7223
          %s7260 = scalar_lea.vmem %s295, 52
          %7261 = vst.msk [vmem:[%s7260] ss:$8 sm:$0x3] %vm6117, %v7237
          %7262 = vst.msk [vmem:[%s7260] ss:$8 sm:$0x0] %vm6117, %v7237
          %s7263 = scalar_lea.vmem %s295, 84
          %7264 = vst.msk [vmem:[%s7263] ss:$8 sm:$0x3] %vm6117, %v7245
          %7265 = vst.msk [vmem:[%s7263] ss:$8 sm:$0x0] %vm6117, %v7245
          %s7266 = scalar_lea.vmem %s295, 116
          %7267 = vst.msk [vmem:[%s7266] ss:$8 sm:$0x3] %vm6117, %v7247
          %7268 = vst.msk [vmem:[%s7266] ss:$8 sm:$0x0] %vm6117, %v7247
          %s7269 = scalar_lea.vmem %s295, 148
          %7270 = vst.msk [vmem:[%s7269] ss:$8 sm:$0x3] %vm6117, %v7230
          %7271 = vst.msk [vmem:[%s7269] ss:$8 sm:$0x0] %vm6117, %v7230
          %s7272 = scalar_lea.vmem %s295, 180
          %7273 = vst.msk [vmem:[%s7272] ss:$8 sm:$0x3] %vm6117, %v7244
          %7274 = vst.msk [vmem:[%s7272] ss:$8 sm:$0x0] %vm6117, %v7244
          %s7275 = scalar_lea.vmem %s295, 212
          %7276 = vst.msk [vmem:[%s7275] ss:$8 sm:$0x3] %vm6117, %v7246
          %7277 = vst.msk [vmem:[%s7275] ss:$8 sm:$0x0] %vm6117, %v7246
          %s7278 = scalar_lea.vmem %s295, 244
          %7279 = vst.msk [vmem:[%s7278] ss:$8 sm:$0x3] %vm6117, %v7248
          %7280 = vst.msk [vmem:[%s7278] ss:$8 sm:$0x0] %vm6117, %v7248
          %s7281 = scalar_lea.vmem %s295, 21
          %7282 = vst.msk [vmem:[%s7281] ss:$8 sm:$0x3] %vm6117, %v7223
          %7283 = vst.msk [vmem:[%s7281] ss:$8 sm:$0x0] %vm6117, %v7223
          %s7284 = scalar_lea.vmem %s295, 53
          %7285 = vst.msk [vmem:[%s7284] ss:$8 sm:$0x3] %vm6117, %v7237
          %7286 = vst.msk [vmem:[%s7284] ss:$8 sm:$0x0] %vm6117, %v7237
          %s7287 = scalar_lea.vmem %s295, 85
          %7288 = vst.msk [vmem:[%s7287] ss:$8 sm:$0x3] %vm6117, %v7245
          %7289 = vst.msk [vmem:[%s7287] ss:$8 sm:$0x0] %vm6117, %v7245
          %s7290 = scalar_lea.vmem %s295, 117
          %7291 = vst.msk [vmem:[%s7290] ss:$8 sm:$0x3] %vm6117, %v7247
          %7292 = vst.msk [vmem:[%s7290] ss:$8 sm:$0x0] %vm6117, %v7247
          %s7293 = scalar_lea.vmem %s295, 149
          %7294 = vst.msk [vmem:[%s7293] ss:$8 sm:$0x3] %vm6117, %v7230
          %7295 = vst.msk [vmem:[%s7293] ss:$8 sm:$0x0] %vm6117, %v7230
          %s7296 = scalar_lea.vmem %s295, 181
          %7297 = vst.msk [vmem:[%s7296] ss:$8 sm:$0x3] %vm6117, %v7244
          %7298 = vst.msk [vmem:[%s7296] ss:$8 sm:$0x0] %vm6117, %v7244
          %s7299 = scalar_lea.vmem %s295, 213
          %7300 = vst.msk [vmem:[%s7299] ss:$8 sm:$0x3] %vm6117, %v7246
          %7301 = vst.msk [vmem:[%s7299] ss:$8 sm:$0x0] %vm6117, %v7246
          %s7302 = scalar_lea.vmem %s295, 245
          %7303 = vst.msk [vmem:[%s7302] ss:$8 sm:$0x3] %vm6117, %v7248
          %7304 = vst.msk [vmem:[%s7302] ss:$8 sm:$0x0] %vm6117, %v7248
          %7305 = vmatprep.subr.bf16.mxu0 %v5955
          %7306 = vmatpush1.bf16.msra.mxu0 %v5954
          %7307 = vmatprep.subr.bf16.mxu0 %v5953
          %7308 = vmatpush1.bf16.msra.mxu0 %v5952
          %7309 = vmatprep.subr.bf16.mxu0 %v5951
          %7310 = vmatpush1.bf16.msra.mxu0 %v5950
          %7311 = vmatprep.subr.bf16.mxu0 %v5949
          %7312 = vmatpush1.bf16.msra.mxu0 %v5948
          %7313 = vmatprep.subr.bf16.mxu0 %v5947
          %7314 = vmatpush1.bf16.msra.mxu0 %v5946
          %7315 = vmatprep.subr.bf16.mxu0 %v5945
          %7316 = vmatpush1.bf16.msra.mxu0 %v5944
          %7317 = vmatprep.subr.bf16.mxu0 %v5943
          %7318 = vmatpush1.bf16.msra.mxu0 %v5942
          %7319 = vmatprep.subr.bf16.mxu0 %v5941
          %7320 = vmatpush1.bf16.msra.mxu0 %v5940
          %7321 = vmatprep.subr.bf16.mxu0 0
          %7322 = vmatpush2.bf16.msra.mxu0 0
          %7323 = vmatprep.subr.bf16.mxu0 0
          %7324 = vmatpush2.bf16.msra.mxu0 0
          %7325 = vmatprep.subr.bf16.mxu0 0
          %7326 = vmatpush2.bf16.msra.mxu0 0
          %7327 = vmatprep.subr.bf16.mxu0 0
          %7328 = vmatpush2.bf16.msra.mxu0 0
          %7329 = vmatprep.subr.bf16.mxu0 0
          %7330 = vmatpush2.bf16.msra.mxu0 0
          %7331 = vmatprep.subr.bf16.mxu0 0
          %7332 = vmatpush2.bf16.msra.mxu0 0
          %7333 = vmatprep.subr.bf16.mxu0 0
          %7334 = vmatpush2.bf16.msra.mxu0 0
          %7335 = vmatprep.subr.bf16.mxu0 0
          %7336 = vmatpush2.bf16.msra.mxu0 0
          %7337 = vmatprep.mubr.bf16.mxu0 0
          %7338 = vmatmul.mubr.bf16.gmra.mxu0 %v5875
          %v7339 = vpop.f32.mrf.mxu0
          %v7340 = vadd.f32 0.0, %v7339
          %v7341 = vpop.f32.mrf.mxu0
          %v7342 = vadd.f32 0.0, %v7341
          %v7343 = vpop.f32.mrf.mxu0
          %v7344 = vpop.f32.mrf.mxu0
          %7345 = vdwg.mxu0
          %7346 = vmatprep.subr.bf16.mxu0 %v5955
          %7347 = vmatpush1.bf16.msra.mxu0 %v5954
          %7348 = vmatprep.subr.bf16.mxu0 %v5953
          %7349 = vmatpush1.bf16.msra.mxu0 %v5952
          %7350 = vmatprep.subr.bf16.mxu0 %v5951
          %7351 = vmatpush1.bf16.msra.mxu0 %v5950
          %7352 = vmatprep.subr.bf16.mxu0 %v5949
          %7353 = vmatpush1.bf16.msra.mxu0 %v5948
          %7354 = vmatprep.subr.bf16.mxu0 %v5947
          %7355 = vmatpush1.bf16.msra.mxu0 %v5946
          %7356 = vmatprep.subr.bf16.mxu0 %v5945
          %7357 = vmatpush1.bf16.msra.mxu0 %v5944
          %7358 = vmatprep.subr.bf16.mxu0 %v5943
          %7359 = vmatpush1.bf16.msra.mxu0 %v5942
          %7360 = vmatprep.subr.bf16.mxu0 %v5941
          %7361 = vmatpush1.bf16.msra.mxu0 %v5940
          %7362 = vmatprep.subr.bf16.mxu0 0
          %7363 = vmatpush2.bf16.msra.mxu0 0
          %7364 = vmatprep.subr.bf16.mxu0 0
          %7365 = vmatpush2.bf16.msra.mxu0 0
          %7366 = vmatprep.subr.bf16.mxu0 0
          %7367 = vmatpush2.bf16.msra.mxu0 0
          %7368 = vmatprep.subr.bf16.mxu0 0
          %7369 = vmatpush2.bf16.msra.mxu0 0
          %7370 = vmatprep.subr.bf16.mxu0 0
          %7371 = vmatpush2.bf16.msra.mxu0 0
          %7372 = vmatprep.subr.bf16.mxu0 0
          %7373 = vmatpush2.bf16.msra.mxu0 0
          %7374 = vmatprep.subr.bf16.mxu0 0
          %7375 = vmatpush2.bf16.msra.mxu0 0
          %7376 = vmatprep.subr.bf16.mxu0 0
          %7377 = vmatpush2.bf16.msra.mxu0 0
          %7378 = vmatprep.mubr.bf16.mxu0 0
          %7379 = vmatmul.mubr.bf16.gmra.mxu0 %v5851
          %v7380 = vpop.f32.mrf.mxu0
          %v7381 = vadd.f32 %v7340, %v7380
          %v7382 = vpop.f32.mrf.mxu0
          %v7383 = vadd.f32 %v7342, %v7382
          %v7384 = vpop.f32.mrf.mxu0
          %v7385 = vpop.f32.mrf.mxu0
          %7386 = vdwg.mxu0
          %v7389 = vcombine.low %v7381, %v7383
          %v7390 = vcombine.high %v7381, %v7383
          %v7392 = vunpack.c.l.s4 1966171168
          %v7393 = vunpack.c.0.s8 %v7392
          %v7394 = vlaneseq
          %v7395 = vshrl.u32 %v7394, 7
          %v7396 = vsub.s32 %v7393, %v7395
          %v7397 = vrot.slane %v7389, %v7396
          %v7399 = vunpack.c.l.s4 1966171168
          %v7400 = vunpack.c.0.s8 %v7399
          %v7401 = vlaneseq
          %v7402 = vshrl.u32 %v7401, 7
          %v7403 = vsub.s32 %v7400, %v7402
          %v7404 = vrot.slane %v7390, %v7403
          %v7405 = vcombine.high %v7397, %v7397
          %v7406 = vcombine.high %v7404, %v7404
          %v7408 = vunpack.c.l.s4 1966171168
          %v7409 = vunpack.c.0.s8 %v7408
          %v7410 = vlaneseq
          %v7411 = vshrl.u32 %v7410, 7
          %v7412 = vsub.s32 %v7409, %v7411
          %v7413 = vrot.slane %v7397, %v7412
          %v7415 = vunpack.c.l.s4 1966171168
          %v7416 = vunpack.c.0.s8 %v7415
          %v7417 = vlaneseq
          %v7418 = vshrl.u32 %v7417, 7
          %v7419 = vsub.s32 %v7416, %v7418
          %v7420 = vrot.slane %v7404, %v7419
          %v7422 = vunpack.c.l.s4 1966171168
          %v7423 = vunpack.c.0.s8 %v7422
          %v7424 = vlaneseq
          %v7425 = vshrl.u32 %v7424, 7
          %v7426 = vsub.s32 %v7423, %v7425
          %v7427 = vrot.slane %v7405, %v7426
          %v7429 = vunpack.c.l.s4 1966171168
          %v7430 = vunpack.c.0.s8 %v7429
          %v7431 = vlaneseq
          %v7432 = vshrl.u32 %v7431, 7
          %v7433 = vsub.s32 %v7430, %v7432
          %v7434 = vrot.slane %v7406, %v7433
          %v7435 = vcombine.high %v7413, %v7413
          %v7436 = vcombine.high %v7420, %v7420
          %v7437 = vcombine.high %v7427, %v7427
          %v7438 = vcombine.high %v7434, %v7434
          %s7447 = scalar_lea.vmem %s295, 22
          %7448 = vst.msk [vmem:[%s7447] ss:$8 sm:$0x3] %vm6117, %v7413
          %7449 = vst.msk [vmem:[%s7447] ss:$8 sm:$0x0] %vm6117, %v7413
          %s7450 = scalar_lea.vmem %s295, 54
          %7451 = vst.msk [vmem:[%s7450] ss:$8 sm:$0x3] %vm6117, %v7427
          %7452 = vst.msk [vmem:[%s7450] ss:$8 sm:$0x0] %vm6117, %v7427
          %s7453 = scalar_lea.vmem %s295, 86
          %7454 = vst.msk [vmem:[%s7453] ss:$8 sm:$0x3] %vm6117, %v7435
          %7455 = vst.msk [vmem:[%s7453] ss:$8 sm:$0x0] %vm6117, %v7435
          %s7456 = scalar_lea.vmem %s295, 118
          %7457 = vst.msk [vmem:[%s7456] ss:$8 sm:$0x3] %vm6117, %v7437
          %7458 = vst.msk [vmem:[%s7456] ss:$8 sm:$0x0] %vm6117, %v7437
          %s7459 = scalar_lea.vmem %s295, 150
          %7460 = vst.msk [vmem:[%s7459] ss:$8 sm:$0x3] %vm6117, %v7420
          %7461 = vst.msk [vmem:[%s7459] ss:$8 sm:$0x0] %vm6117, %v7420
          %s7462 = scalar_lea.vmem %s295, 182
          %7463 = vst.msk [vmem:[%s7462] ss:$8 sm:$0x3] %vm6117, %v7434
          %7464 = vst.msk [vmem:[%s7462] ss:$8 sm:$0x0] %vm6117, %v7434
          %s7465 = scalar_lea.vmem %s295, 214
          %7466 = vst.msk [vmem:[%s7465] ss:$8 sm:$0x3] %vm6117, %v7436
          %7467 = vst.msk [vmem:[%s7465] ss:$8 sm:$0x0] %vm6117, %v7436
          %s7468 = scalar_lea.vmem %s295, 246
          %7469 = vst.msk [vmem:[%s7468] ss:$8 sm:$0x3] %vm6117, %v7438
          %7470 = vst.msk [vmem:[%s7468] ss:$8 sm:$0x0] %vm6117, %v7438
          %s7471 = scalar_lea.vmem %s295, 23
          %7472 = vst.msk [vmem:[%s7471] ss:$8 sm:$0x3] %vm6117, %v7413
          %7473 = vst.msk [vmem:[%s7471] ss:$8 sm:$0x0] %vm6117, %v7413
          %s7474 = scalar_lea.vmem %s295, 55
          %7475 = vst.msk [vmem:[%s7474] ss:$8 sm:$0x3] %vm6117, %v7427
          %7476 = vst.msk [vmem:[%s7474] ss:$8 sm:$0x0] %vm6117, %v7427
          %s7477 = scalar_lea.vmem %s295, 87
          %7478 = vst.msk [vmem:[%s7477] ss:$8 sm:$0x3] %vm6117, %v7435
          %7479 = vst.msk [vmem:[%s7477] ss:$8 sm:$0x0] %vm6117, %v7435
          %s7480 = scalar_lea.vmem %s295, 119
          %7481 = vst.msk [vmem:[%s7480] ss:$8 sm:$0x3] %vm6117, %v7437
          %7482 = vst.msk [vmem:[%s7480] ss:$8 sm:$0x0] %vm6117, %v7437
          %s7483 = scalar_lea.vmem %s295, 151
          %7484 = vst.msk [vmem:[%s7483] ss:$8 sm:$0x3] %vm6117, %v7420
          %7485 = vst.msk [vmem:[%s7483] ss:$8 sm:$0x0] %vm6117, %v7420
          %s7486 = scalar_lea.vmem %s295, 183
          %7487 = vst.msk [vmem:[%s7486] ss:$8 sm:$0x3] %vm6117, %v7434
          %7488 = vst.msk [vmem:[%s7486] ss:$8 sm:$0x0] %vm6117, %v7434
          %s7489 = scalar_lea.vmem %s295, 215
          %7490 = vst.msk [vmem:[%s7489] ss:$8 sm:$0x3] %vm6117, %v7436
          %7491 = vst.msk [vmem:[%s7489] ss:$8 sm:$0x0] %vm6117, %v7436
          %s7492 = scalar_lea.vmem %s295, 247
          %7493 = vst.msk [vmem:[%s7492] ss:$8 sm:$0x3] %vm6117, %v7438
          %7494 = vst.msk [vmem:[%s7492] ss:$8 sm:$0x0] %vm6117, %v7438
        $region64: #{decoder_block_cup.1} parent=43 // pred_fallthru
          _
        %s7495 = smul.u32 %s23, %s24
        %p7496 = scmp.lt.s32.totalorder %s7495, 1
        %s7497 = scalar_select %p7496, %s7495, 1
        %s7498 = smul.addr %s7497, 32
        %s7499 = smul.addr %s7498, 8
        %s7500 = scalar_lea.vmem %s6, %s7499
        // Predicated region
        $region65: #{decoder_block_cup.1} parent=43 // pred_check
          %p7501 = pneg %p182
        $region66: #{decoder_block_cup.1} parent=43 // pred_check_branch
          %7503 = sbr.rel (%p7501) target = $region68
        $region67: #{decoder_block_cup.1} parent=43 // pred_region
          %s7504 = smul.u32 %s23, %s24
        $region68: #{decoder_block_cup.1} parent=43 // pred_fallthru
          _
      $region44: #{decoder_block_cup.1} parent=5 // pred_fallthru
        _
      %p7505 = scmp.le.s32.totalorder 2, %s14
      // Predicated region
      $region69: #{decoder_block_cup.1} parent=5 // pred_check
        %p7506 = pneg %p7505
      $region70: #{decoder_block_cup.1} parent=5 // pred_check_branch
        %7508 = sbr.rel (%p7506) target = $region72
      $region71: #{decoder_block_cup.1} parent=5 // pred_region
        %s7509 = ssub.s32 %s14, 2
        // Predicated region
        $region73: #{decoder_block_cup.1} parent=71 // pred_check
          %p7510 = pneg %p188
        $region74: #{decoder_block_cup.1} parent=71 // pred_check_branch
          %7512 = sbr.rel (%p7510) target = $region76
        $region75: #{decoder_block_cup.1} parent=71 // pred_region
          %s7513 = smul.u32 %s25, %s26
          %p7514 = scmp.lt.s32.totalorder %s7513, 1
          %s7515 = scalar_select %p7514, %s7513, 1
          %s7516 = smul.addr %s7515, 32
          %s7517 = smul.addr %s7516, 8
          %s7518 = scalar_lea.vmem %s6, %s7517
        $region76: #{decoder_block_cup.1} parent=71 // pred_fallthru
          _
      $region72: #{decoder_block_cup.1} parent=5 // pred_fallthru
        _
    $region6: #{decoder_block_cup.1} parent=1 // loop_footer
      %s18 = sadd.s32 1, %s14
    $region7: #{decoder_block_cup.1} parent=1 // loop_footer_branch
      %13 = sbr.rel target = $region3
    $region8: #{decoder_block_cup.1} parent=1 // loop_exit
      _
    %7519 = vsyncpa [#allocation6], 1
    %s7520 = scalar_lea.sflag [#allocation6], 1
    %7521 = vsyncpa %s7520, 1
    %7522 = vsyncpa [#allocation8], 1

</llo_original>
